<compile_context>
chip_gen: v5e
topology: v5e:2x2
jax: 0.10.0
libtpu: 0.0.40
codegen_flags: <defaults>
</compile_context>

<pallas_src>
import jax
import jax.numpy as jnp
from jax.experimental import pallas as pl
from jax.experimental.pallas import tpu as pltpu

FEATURES = [32, 64, 128, 256]
# Small, shape-consistent test configuration (module defaults are 1024/512/256 groups).
GROUPS = [32, 16, 8]
NEIGHBORS = [8, 8, 8]
NUM_CLASSES = 10

VMEM_LIMIT = 32 * 1024 * 1024     # safe on v5e (16MiB default scoped) / v6e / v7x (64MiB phys)


def _detect_row_target():
    """Generation-aware streaming tile size (bigger HBM BW -> bigger tiles)."""
    try:
        kind = jax.devices()[0].device_kind.lower()
    except Exception:
        return 1024
    if "v7" in kind:
        return 4096
    if "v6" in kind:
        return 2048
    return 1024


ROW_TARGET = _detect_row_target()


def _compiler_params(sem=("parallel",)):
    return pltpu.CompilerParams(dimension_semantics=sem,
                                vmem_limit_bytes=VMEM_LIMIT)


# ----------------------------------------------------------------------------
# Pallas kernels
# ----------------------------------------------------------------------------
def _embed_kernel(x_ref, w_ref, b_ref, o_ref):
    # Conv1d(3->C, k=1) + folded BN + ReLU on `pack` points per row.
    # Weight is a block-diagonal (pack*3, pack*C) matrix -> lane-dense output.
    y = jnp.dot(x_ref[...], w_ref[...], preferred_element_type=jnp.float32)
    o_ref[...] = jnp.maximum(y + b_ref[...], 0.0).astype(o_ref.dtype)


def _linear2_kernel(x_ref, w1_ref, b1_ref, w2_ref, b2_ref, o_ref):
    # Linear2Layer: relu( relu(x@W1+b1) @ W2 + b2 + x )  (BN folded).
    # bf16 matmul inputs, f32 accumulation + f32 epilogue, bf16 store.
    x = x_ref[...]                                             # bf16 (tm, C)
    x32 = x.astype(jnp.float32)
    h = jnp.maximum(
        jnp.dot(x, w1_ref[...], preferred_element_type=jnp.float32) + b1_ref[...],
        0.0)
    y = jnp.dot(h.astype(jnp.bfloat16), w2_ref[...],
                preferred_element_type=jnp.float32) + b2_ref[...]
    o_ref[...] = jnp.maximum(y + x32, 0.0).astype(o_ref.dtype)


def _local_stage_kernel(gl_ref, an_ref, w1_ref, b1_ref, w2_ref, b2_ref, wa_ref,
                        o_ref):
    # Fused: anchor-channel concat + local_conv (Linear2Layer over channels)
    # + aggregation Attention (softmax over K neighbours) + bmm pooling.
    # The scalar attention bias is omitted (softmax shift invariance).
    bblk, s, c = gl_ref.shape
    d = 2 * c
    gl32 = gl_ref[...].astype(jnp.float32)                     # (bblk, s, c)
    an32 = jnp.broadcast_to(an_ref[...].astype(jnp.float32)[:, None, :],
                            (bblk, s, c))
    x32 = jnp.concatenate([gl32, an32], axis=-1).reshape(bblk * s, d)
    x = x32.astype(jnp.bfloat16)
    h = jnp.maximum(
        jnp.dot(x, w1_ref[...], preferred_element_type=jnp.float32) + b1_ref[...],
        0.0)
    y = jnp.dot(h.astype(jnp.bfloat16), w2_ref[...],
                preferred_element_type=jnp.float32) + b2_ref[...]
    y3 = jnp.maximum(y + x32, 0.0).reshape(bblk, s, d)         # f32
    # attention logits via VPU broadcast-mul + lane reduction (no MXU N=1 matmul)
    logits = jnp.sum(y3 * wa_ref[...], axis=-1, keepdims=True)  # (bblk, s, 1)
    m = jnp.max(logits, axis=1, keepdims=True)
    e = jnp.exp(logits - m)
    p = e * pl.reciprocal(jnp.sum(e, axis=1, keepdims=True), approx=True)
    o_ref[...] = jnp.sum(p * y3, axis=1).astype(o_ref.dtype)   # (bblk, d) bf16


def _final_kernel(x_ref, wa_ref, w1_ref, b1_ref, w2_ref, b2_ref, o_ref):
    # Fused: final Attention(256) + bmm pooling + classifier
    # (Linear+BN+ReLU+Dropout(eval)+Linear).  Exact softmax in the head.
    x = x_ref[...].astype(jnp.float32)                         # (bb, n, d)
    logits = jnp.sum(x * wa_ref[...], axis=-1, keepdims=True)
    m = jnp.max(logits, axis=1, keepdims=True)
    e = jnp.exp(logits - m)
    p = e / jnp.sum(e, axis=1, keepdims=True)
    pooled = jnp.sum(p * x, axis=1)                            # (bb, d) f32
    h = jnp.maximum(
        jnp.dot(pooled.astype(jnp.bfloat16), w1_ref[...],
                preferred_element_type=jnp.float32) + b1_ref[...],
        0.0)
    o_ref[...] = jnp.dot(h.astype(jnp.bfloat16), w2_ref[...],
                         preferred_element_type=jnp.float32) + b2_ref[...]


# ----------------------------------------------------------------------------
# Tiling helpers
# ----------------------------------------------------------------------------
def _row_tiling(rows, cap=None):
    """Pick (tile, padded_rows); tile divides padded_rows and is (8,·)-legal.

    Tiny problems get one full-extent block; mid-size problems are split into
    2-4 blocks so software pipelining / megacore sharding have work; large
    problems stream ~ROW_TARGET rows per step.
    """
    cap = ROW_TARGET if cap is None else cap
    if rows <= 512:
        return rows, rows
    if rows <= cap:
        for nblk in (2, 4, 3):
            t = rows // nblk
            if rows % nblk == 0 and t % 8 == 0:
                return t, rows
        return rows, rows
    for t in range(cap - cap % 8, 7, -8):
        if rows % t == 0:
            return t, rows
    padded = -(-rows // cap) * cap              # fallback; never hit at test sizes
    return cap, padded


def _seq_block(m, s):
    """Sequences per block: block rows ~= ROW_TARGET, bblk | m, bblk%8==0 or ==m."""
    rows_cap = max(ROW_TARGET // max(s, 1), 8)
    if m * s <= 512:
        return m
    if m <= rows_cap:
        for nblk in (2, 4, 3):
            t = m // nblk
            if m % nblk == 0 and t % 8 == 0:
                return t
        return m
    top = rows_cap - rows_cap % 8
    for t in range(top, 7, -8):
        if m % t == 0:
            return t
    return m                                    # full extent is always legal


# ----------------------------------------------------------------------------
# Kernel wrappers
# ----------------------------------------------------------------------------
def embed_points(x, w, b):
    """x: [M, 3] f32 -> relu(x@W + b): [M, C] bf16 (Conv1d k=1 + folded BN + ReLU).

    Lane-dense: 4 points per output row ((M/4,12) @ block-diag (12,4C) -> (M/4,4C)).
    """
    rows, cin = x.shape
    cout = w.shape[1]
    pack = 4 if rows % 4 == 0 else 1
    wb = w if pack == 1 else jnp.kron(jnp.eye(pack, dtype=w.dtype), w)  # (pack*3, pack*C)
    bb = jnp.tile(b.reshape(1, cout), (1, pack))                        # (1, pack*C)
    prow_in = rows // pack
    xr = x.reshape(prow_in, pack * cin)
    tm, prow = _row_tiling(prow_in)
    xp = xr if prow == prow_in else jnp.pad(xr, ((0, prow - prow_in), (0, 0)))
    out = pl.pallas_call(
        _embed_kernel,
        out_shape=jax.ShapeDtypeStruct((prow, pack * cout), jnp.bfloat16),
        grid=(prow // tm,),
        in_specs=[
            pl.BlockSpec((tm, pack * cin), lambda i: (i, 0)),
            pl.BlockSpec((pack * cin, pack * cout), lambda i: (0, 0)),
            pl.BlockSpec((1, pack * cout), lambda i: (0, 0)),
        ],
        out_specs=pl.BlockSpec((tm, pack * cout), lambda i: (i, 0)),
        compiler_params=_compiler_params(),
    )(xp, wb, bb)
    out = out if prow == prow_in else out[:prow_in]
    return out.reshape(rows, cout)


def linear2_rows(x, w1, b1, w2, b2):
    """Linear2Layer on rows: x [M, C] bf16 -> [M, C] bf16 (bf16 matmuls, f32 accum)."""
    rows, c = x.shape
    c2 = w1.shape[1]
    tm, prow = _row_tiling(rows)
    xp = x if prow == rows else jnp.pad(x, ((0, prow - rows), (0, 0)))
    out = pl.pallas_call(
        _linear2_kernel,
        out_shape=jax.ShapeDtypeStruct((prow, c), jnp.bfloat16),
        grid=(prow // tm,),
        in_specs=[
            pl.BlockSpec((tm, c), lambda i: (i, 0)),
            pl.BlockSpec((c, c2), lambda i: (0, 0)),
            pl.BlockSpec((1, c2), lambda i: (0, 0)),
            pl.BlockSpec((c2, c), lambda i: (0, 0)),
            pl.BlockSpec((1, c), lambda i: (0, 0)),
        ],
        out_specs=pl.BlockSpec((tm, c), lambda i: (i, 0)),
        compiler_params=_compiler_params(),
    )(xp, w1, b1, w2, b2)
    return out if prow == rows else out[:rows]


def local_stage(gl, an, lin2, wa):
    """Fused anchor-concat + local_conv + aggregation Attention + bmm pooling.

    gl: [M, S, C] bf16 normalized local diffs, an: [M, C] bf16 anchors
    -> pooled [M, 2C] bf16.
    """
    m, s, c = gl.shape
    d = 2 * c
    w1, b1, w2, b2 = lin2
    c2 = w1.shape[1]
    bblk = _seq_block(m, s)
    return pl.pallas_call(
        _local_stage_kernel,
        out_shape=jax.ShapeDtypeStruct((m, d), jnp.bfloat16),
        grid=(m // bblk,),
        in_specs=[
            pl.BlockSpec((bblk, s, c), lambda i: (i, 0, 0)),
            pl.BlockSpec((bblk, c), lambda i: (i, 0)),
            pl.BlockSpec((d, c2), lambda i: (0, 0)),
            pl.BlockSpec((1, c2), lambda i: (0, 0)),
            pl.BlockSpec((c2, d), lambda i: (0, 0)),
            pl.BlockSpec((1, d), lambda i: (0, 0)),
            pl.BlockSpec((1, d), lambda i: (0, 0)),
        ],
        out_specs=pl.BlockSpec((bblk, d), lambda i: (i, 0)),
        compiler_params=_compiler_params(),
    )(gl, an, w1, b1, w2, b2, wa)


def final_head(x, wa, w1, b1, w2, b2):
    """x: [B, N, D] bf16 -> logits [B, num_classes] f32 (fused attention pool + classifier)."""
    bsz, n, d = x.shape
    h = w1.shape[1]
    nc = w2.shape[1]
    # Batch-tile when B allows >=2 sublane-legal blocks (pipelining + v7x megacore).
    bb = 8 if (bsz % 8 == 0 and bsz > 8) else bsz
    return pl.pallas_call(
        _final_kernel,
        out_shape=jax.ShapeDtypeStruct((bsz, nc), jnp.float32),
        grid=(bsz // bb,),
        in_specs=[
            pl.BlockSpec((bb, n, d), lambda i: (i, 0, 0)),
            pl.BlockSpec((1, d), lambda i: (0, 0)),
            pl.BlockSpec((d, h), lambda i: (0, 0)),
            pl.BlockSpec((1, h), lambda i: (0, 0)),
            pl.BlockSpec((h, nc), lambda i: (0, 0)),
            pl.BlockSpec((1, nc), lambda i: (0, 0)),
        ],
        out_specs=pl.BlockSpec((bb, nc), lambda i: (i, 0)),
        compiler_params=_compiler_params(),
    )(x, wa, w1, b1, w2, b2)


# ----------------------------------------------------------------------------
# Non-kernel glue (definitions not provided in the reference source)
# ----------------------------------------------------------------------------
def local_grouper(xyz, feats, groups, k):
    """xyz: [B,N,3] f32, feats: [B,N,C] bf16 ->
       new_xyz [B,G,3] f32, local [B,G,K,C] bf16, anchor [B,G,C] bf16.

    # TODO(synk): LocalGrouper (FPS + KNN + 'anchor' normalize + affine) class
    # definition was not provided; deterministic stand-in: stride-sampled
    # anchors, top_k KNN, anchor-normalize.  The anchor-channel duplication is
    # NOT materialized here — local_stage concatenates it on the fly.
    # TODO(synk): the KNN gather itself remains an XLA gather; an in-kernel
    # scalar-prefetch / manual-DMA gather would remove one more HBM pass.
    """
    b, n, c = feats.shape
    idx = jnp.arange(groups) * (n // groups)
    new_xyz = xyz[:, idx, :]                                   # [B, G, 3] f32
    anchor = feats[:, idx, :]                                  # [B, G, C] bf16
    d2 = jnp.sum((new_xyz[:, :, None, :] - xyz[:, None, :, :]) ** 2, axis=-1)
    _, knn = jax.lax.top_k(-d2, k)                             # [B, G, K]
    grouped = jax.vmap(lambda f, i: f[i])(feats, knn)          # [B, G, K, C] bf16
    diff = grouped.astype(jnp.float32) - anchor.astype(jnp.float32)[:, :, None, :]
    std = jnp.std(diff.reshape(b, -1), axis=-1)[:, None, None, None]
    local = (diff / (std + 1e-5)).astype(jnp.bfloat16)
    return new_xyz, local, anchor


# ----------------------------------------------------------------------------
# Parameters (deterministic init; BN folded eval-mode; matmul weights pre-cast bf16)
# ----------------------------------------------------------------------------
def fold_bn(w, b, c_out, eps=1e-5):
    gamma = jnp.ones((c_out,), jnp.float32)
    beta = jnp.zeros((c_out,), jnp.float32)
    mean = jnp.zeros((c_out,), jnp.float32)
    var = jnp.ones((c_out,), jnp.float32)
    scale = gamma / jnp.sqrt(var + eps)
    return w * scale[None, :], (b - mean) * scale + beta


def init_params(key):
    keys = iter(jax.random.split(key, 64))

    def nrm(shape, s=0.1):
        return (s * jax.random.normal(next(keys), shape)).astype(jnp.float32)

    p = {}
    # embed_dim: Conv1d(3, 32, 1) + BN(32) + ReLU  (kept f32: xyz coordinates)
    p["embed_w"], p["embed_b"] = fold_bn(nrm((3, FEATURES[0])), nrm((FEATURES[0],)),
                                         FEATURES[0])
    p["local"], p["global"], p["agg_w"], p["agg_b"] = [], [], [], []
    for i in range(3):
        c = FEATURES[i + 1]
        c2 = c // 2

        def lin2(c=c, c2=c2):
            # MXU weights stored bf16 once; biases stay f32 and pre-reshaped.
            w1, b1 = fold_bn(nrm((c, c2)), nrm((c2,)), c2)
            w2, b2 = fold_bn(nrm((c2, c)), nrm((c,)), c)
            return (w1.astype(jnp.bfloat16), b1.reshape(1, c2),
                    w2.astype(jnp.bfloat16), b2.reshape(1, c))

        p["local"].append(lin2())
        p["agg_w"].append(nrm((1, c)))
        p["agg_b"].append(nrm(()))      # scalar softmax bias: shift-invariant, unused
        p["global"].append(lin2())
    # final Attention(256)
    p["final_w"] = nrm((1, FEATURES[-1]))
    p["final_b"] = nrm(())              # scalar softmax bias: shift-invariant, unused
    # classifier: Linear(256,256)+BN+ReLU+Dropout+Linear(256,num_classes)
    w1, b1 = fold_bn(nrm((FEATURES[-1], 256)), nrm((256,)), 256)
    p["cls_w1"], p["cls_b1"] = w1.astype(jnp.bfloat16), b1.reshape(1, 256)
    p["cls_w2"] = nrm((256, NUM_CLASSES)).astype(jnp.bfloat16)
    p["cls_b2"] = nrm((NUM_CLASSES,)).reshape(1, NUM_CLASSES)
    return p


# ----------------------------------------------------------------------------
# EventMamba forward
# ----------------------------------------------------------------------------
@jax.jit
def eventmamba_forward(x, params):
    """x: [B, 3, N] float32 (same NCL convention as the torch module input)."""
    b0, _, n0 = x.shape
    xyz = jnp.transpose(x, (0, 2, 1))                          # [B, N, 3] f32

    # embed_dim (Conv1d k=1 + BN + ReLU) on every point — lane-dense packed kernel
    feats = embed_points(xyz.reshape(b0 * n0, 3),
                         params["embed_w"], params["embed_b"])
    feats = feats.reshape(b0, n0, FEATURES[0])                 # bf16

    for i in range(3):
        xyz, local, anchor = local_grouper(xyz, feats, GROUPS[i], NEIGHBORS[i])
        b, g, s, c = local.shape

        # torch: local_conv (pointwise Conv1d over neighbours) -> permute ->
        # Attention over s -> bmm pooling.  All fused (incl. anchor concat).
        pooled = local_stage(local.reshape(b * g, s, c),
                             anchor.reshape(b * g, c),
                             params["local"][i], params["agg_w"][i])  # [b*g, 2c] bf16
        d = 2 * c
        feats = pooled.reshape(b, g, d)

        # TODO(synk): MambaBlock(dim, bimamba_type='v2') selective-scan definition
        # not provided in the reference source; applied as identity here.

        # global_conv (pointwise Conv1d over n) == per-row Linear2Layer over channels
        rows = linear2_rows(feats.reshape(b * g, d), *params["global"][i])
        feats = rows.reshape(b, g, d)                          # bf16

    # final Attention(256) + bmm pooling + classifier, fused (batch-tiled)
    logits = final_head(feats, params["final_w"],
                        params["cls_w1"], params["cls_b1"],
                        params["cls_w2"], params["cls_b2"])    # [B, num_classes]
    return logits


if __name__ == "__main__":
    key = jax.random.PRNGKey(0)
    k_in, k_par = jax.random.split(key)
    B, N = 2, 64
    x = jax.random.normal(k_in, (B, 3, N), dtype=jnp.float32)
    params = init_params(k_par)

    out = eventmamba_forward(x, params)
    out = jax.block_until_ready(out)
    assert out.shape == (B, NUM_CLASSES), out.shape
    assert jnp.all(jnp.isfinite(out))
    print("KERNEL_OK")
</pallas_src>

<mosaic_0001>
module attributes {stable_mosaic.version = 11 : i64} {
  func.func @_embed_kernel(%arg0: i32, %arg1: memref<32x12xf32, #tpu.memory_space<vmem>>, %arg2: memref<12x128xf32, #tpu.memory_space<vmem>>, %arg3: memref<1x128xf32, #tpu.memory_space<vmem>>, %arg4: memref<32x128xbf16, #tpu.memory_space<vmem>>) attributes {dimension_semantics = [#tpu.dimension_semantics<parallel>], iteration_bounds = array<i64: 1>, scalar_prefetch = 0 : i64, scratch_operands = 0 : i64, tpu.core_type = #tpu.core_type<tc>, window_params = [{transform_indices = @transform_0, window_bounds = array<i64: 32, 12>}, {pipeline_mode = #tpu.pipeline_mode<synchronous>, transform_indices = @transform_1, window_bounds = array<i64: 12, 128>}, {pipeline_mode = #tpu.pipeline_mode<synchronous>, transform_indices = @transform_2, window_bounds = array<i64: 1, 128>}, {transform_indices = @transform_3, window_bounds = array<i64: 32, 128>}]} {
    %c0 = arith.constant 0 : index
    %c0_0 = arith.constant 0 : index
    %0 = vector.load %arg1[%c0, %c0_0] : memref<32x12xf32, #tpu.memory_space<vmem>>, vector<32x12xf32>
    %c0_1 = arith.constant 0 : index
    %c0_2 = arith.constant 0 : index
    %1 = vector.load %arg2[%c0_1, %c0_2] : memref<12x128xf32, #tpu.memory_space<vmem>>, vector<12x128xf32>
    %cst = arith.constant dense<0.000000e+00> : vector<32x128xf32>
    %2 = tpu.matmul %0, %1, %cst {dimension_numbers = #tpu.dot_dimension_numbers<[1], [0], [0], [1], [0, 0, 1, 1], [], []>} : vector<32x12xf32>, vector<12x128xf32>, vector<32x128xf32> -> vector<32x128xf32>
    %c0_3 = arith.constant 0 : index
    %c0_4 = arith.constant 0 : index
    %3 = vector.load %arg3[%c0_3, %c0_4] : memref<1x128xf32, #tpu.memory_space<vmem>>, vector<1x128xf32>
    %4 = vector.broadcast %3 : vector<1x128xf32> to vector<32x128xf32>
    %5 = arith.addf %2, %4 : vector<32x128xf32>
    %cst_5 = arith.constant 0.000000e+00 : f32
    %6 = vector.broadcast %cst_5 : f32 to vector<32x128xf32>
    %7 = arith.maximumf %5, %6 : vector<32x128xf32>
    %8 = arith.truncf %7 : vector<32x128xf32> to vector<32x128xbf16>
    %c0_6 = arith.constant 0 : index
    %c0_7 = arith.constant 0 : index
    %9 = vector.load %arg4[%c0_6, %c0_7] : memref<32x128xbf16, #tpu.memory_space<vmem>>, vector<32x128xbf16>
    tpu.vector_store %arg4[%c0_6, %c0_7], %8 {strides = array<i32>} : memref<32x128xbf16, #tpu.memory_space<vmem>>, vector<32x128xbf16>,
    return
  }
  func.func @transform_0(%arg0: i32) -> (i32, i32) {
    %c0_i32 = arith.constant 0 : i32
    %c0_i32_0 = arith.constant 0 : i32
    return %arg0, %c0_i32 : i32, i32
  }
  func.func @transform_1(%arg0: i32) -> (i32, i32) {
    %c0_i32 = arith.constant 0 : i32
    %c0_i32_0 = arith.constant 0 : i32
    %c0_i32_1 = arith.constant 0 : i32
    return %c0_i32, %c0_i32_0 : i32, i32
  }
  func.func @transform_2(%arg0: i32) -> (i32, i32) {
    %c0_i32 = arith.constant 0 : i32
    %c0_i32_0 = arith.constant 0 : i32
    %c0_i32_1 = arith.constant 0 : i32
    return %c0_i32, %c0_i32_0 : i32, i32
  }
  func.func @transform_3(%arg0: i32) -> (i32, i32) {
    %c0_i32 = arith.constant 0 : i32
    %c0_i32_0 = arith.constant 0 : i32
    return %arg0, %c0_i32 : i32, i32
  }
}

module attributes {stable_mosaic.version = 11 : i64} {
  func.func @_linear2_kernel(%arg0: i32, %arg1: memref<64x64xbf16, #tpu.memory_space<vmem>>, %arg2: memref<64x32xbf16, #tpu.memory_space<vmem>>, %arg3: memref<1x32xf32, #tpu.memory_space<vmem>>, %arg4: memref<32x64xbf16, #tpu.memory_space<vmem>>, %arg5: memref<1x64xf32, #tpu.memory_space<vmem>>, %arg6: memref<64x64xbf16, #tpu.memory_space<vmem>>) attributes {dimension_semantics = [#tpu.dimension_semantics<parallel>], iteration_bounds = array<i64: 1>, scalar_prefetch = 0 : i64, scratch_operands = 0 : i64, tpu.core_type = #tpu.core_type<tc>, window_params = [{transform_indices = @transform_0, window_bounds = array<i64: 64, 64>}, {pipeline_mode = #tpu.pipeline_mode<synchronous>, transform_indices = @transform_1, window_bounds = array<i64: 64, 32>}, {pipeline_mode = #tpu.pipeline_mode<synchronous>, transform_indices = @transform_2, window_bounds = array<i64: 1, 32>}, {pipeline_mode = #tpu.pipeline_mode<synchronous>, transform_indices = @transform_3, window_bounds = array<i64: 32, 64>}, {pipeline_mode = #tpu.pipeline_mode<synchronous>, transform_indices = @transform_4, window_bounds = array<i64: 1, 64>}, {transform_indices = @transform_5, window_bounds = array<i64: 64, 64>}]} {
    %c0 = arith.constant 0 : index
    %c0_0 = arith.constant 0 : index
    %0 = vector.load %arg1[%c0, %c0_0] : memref<64x64xbf16, #tpu.memory_space<vmem>>, vector<64x64xbf16>
    %1 = arith.extf %0 : vector<64x64xbf16> to vector<64x64xf32>
    %c0_1 = arith.constant 0 : index
    %c0_2 = arith.constant 0 : index
    %2 = vector.load %arg2[%c0_1, %c0_2] : memref<64x32xbf16, #tpu.memory_space<vmem>>, vector<64x32xbf16>
    %cst = arith.constant dense<0.000000e+00> : vector<64x32xf32>
    %3 = tpu.matmul %0, %2, %cst {dimension_numbers = #tpu.dot_dimension_numbers<[1], [0], [0], [1], [0, 0, 1, 1], [], []>} : vector<64x64xbf16>, vector<64x32xbf16>, vector<64x32xf32> -> vector<64x32xf32>
    %c0_3 = arith.constant 0 : index
    %c0_4 = arith.constant 0 : index
    %4 = vector.load %arg3[%c0_3, %c0_4] : memref<1x32xf32, #tpu.memory_space<vmem>>, vector<1x32xf32>
    %5 = vector.broadcast %4 : vector<1x32xf32> to vector<64x32xf32>
    %6 = arith.addf %3, %5 : vector<64x32xf32>
    %cst_5 = arith.constant 0.000000e+00 : f32
    %7 = vector.broadcast %cst_5 : f32 to vector<64x32xf32>
    %8 = arith.maximumf %6, %7 : vector<64x32xf32>
    %9 = arith.truncf %8 : vector<64x32xf32> to vector<64x32xbf16>
    %c0_6 = arith.constant 0 : index
    %c0_7 = arith.constant 0 : index
    %10 = vector.load %arg4[%c0_6, %c0_7] : memref<32x64xbf16, #tpu.memory_space<vmem>>, vector<32x64xbf16>
    %cst_8 = arith.constant dense<0.000000e+00> : vector<64x64xf32>
    %11 = tpu.matmul %9, %10, %cst_8 {dimension_numbers = #tpu.dot_dimension_numbers<[1], [0], [0], [1], [0, 0, 1, 1], [], []>} : vector<64x32xbf16>, vector<32x64xbf16>, vector<64x64xf32> -> vector<64x64xf32>
    %c0_9 = arith.constant 0 : index
    %c0_10 = arith.constant 0 : index
    %12 = vector.load %arg5[%c0_9, %c0_10] : memref<1x64xf32, #tpu.memory_space<vmem>>, vector<1x64xf32>
    %13 = vector.broadcast %12 : vector<1x64xf32> to vector<64x64xf32>
    %14 = arith.addf %11, %13 : vector<64x64xf32>
    %15 = arith.addf %14, %1 : vector<64x64xf32>
    %cst_11 = arith.constant 0.000000e+00 : f32
    %16 = vector.broadcast %cst_11 : f32 to vector<64x64xf32>
    %17 = arith.maximumf %15, %16 : vector<64x64xf32>
    %18 = arith.truncf %17 : vector<64x64xf32> to vector<64x64xbf16>
    %c0_12 = arith.constant 0 : index
    %c0_13 = arith.constant 0 : index
    %19 = vector.load %arg6[%c0_12, %c0_13] : memref<64x64xbf16, #tpu.memory_space<vmem>>, vector<64x64xbf16>
    tpu.vector_store %arg6[%c0_12, %c0_13], %18 {strides = array<i32>} : memref<64x64xbf16, #tpu.memory_space<vmem>>, vector<64x64xbf16>,
    return
  }
  func.func @transform_0(%arg0: i32) -> (i32, i32) {
    %c0_i32 = arith.constant 0 : i32
    %c0_i32_0 = arith.constant 0 : i32
    return %arg0, %c0_i32 : i32, i32
  }
  func.func @transform_1(%arg0: i32) -> (i32, i32) {
    %c0_i32 = arith.constant 0 : i32
    %c0_i32_0 = arith.constant 0 : i32
    %c0_i32_1 = arith.constant 0 : i32
    return %c0_i32, %c0_i32_0 : i32, i32
  }
  func.func @transform_2(%arg0: i32) -> (i32, i32) {
    %c0_i32 = arith.constant 0 : i32
    %c0_i32_0 = arith.constant 0 : i32
    %c0_i32_1 = arith.constant 0 : i32
    return %c0_i32, %c0_i32_0 : i32, i32
  }
  func.func @transform_3(%arg0: i32) -> (i32, i32) {
    %c0_i32 = arith.constant 0 : i32
    %c0_i32_0 = arith.constant 0 : i32
    %c0_i32_1 = arith.constant 0 : i32
    return %c0_i32, %c0_i32_0 : i32, i32
  }
  func.func @transform_4(%arg0: i32) -> (i32, i32) {
    %c0_i32 = arith.constant 0 : i32
    %c0_i32_0 = arith.constant 0 : i32
    %c0_i32_1 = arith.constant 0 : i32
    return %c0_i32, %c0_i32_0 : i32, i32
  }
  func.func @transform_5(%arg0: i32) -> (i32, i32) {
    %c0_i32 = arith.constant 0 : i32
    %c0_i32_0 = arith.constant 0 : i32
    return %arg0, %c0_i32 : i32, i32
  }
}

module attributes {stable_mosaic.version = 11 : i64} {
  func.func @_local_stage_kernel(%arg0: i32, %arg1: memref<64x8x32xbf16, #tpu.memory_space<vmem>>, %arg2: memref<64x32xbf16, #tpu.memory_space<vmem>>, %arg3: memref<64x32xbf16, #tpu.memory_space<vmem>>, %arg4: memref<1x32xf32, #tpu.memory_space<vmem>>, %arg5: memref<32x64xbf16, #tpu.memory_space<vmem>>, %arg6: memref<1x64xf32, #tpu.memory_space<vmem>>, %arg7: memref<1x64xf32, #tpu.memory_space<vmem>>, %arg8: memref<64x64xbf16, #tpu.memory_space<vmem>>) attributes {dimension_semantics = [#tpu.dimension_semantics<parallel>], iteration_bounds = array<i64: 1>, scalar_prefetch = 0 : i64, scratch_operands = 0 : i64, tpu.core_type = #tpu.core_type<tc>, window_params = [{transform_indices = @transform_0, window_bounds = array<i64: 64, 8, 32>}, {transform_indices = @transform_1, window_bounds = array<i64: 64, 32>}, {pipeline_mode = #tpu.pipeline_mode<synchronous>, transform_indices = @transform_2, window_bounds = array<i64: 64, 32>}, {pipeline_mode = #tpu.pipeline_mode<synchronous>, transform_indices = @transform_3, window_bounds = array<i64: 1, 32>}, {pipeline_mode = #tpu.pipeline_mode<synchronous>, transform_indices = @transform_4, window_bounds = array<i64: 32, 64>}, {pipeline_mode = #tpu.pipeline_mode<synchronous>, transform_indices = @transform_5, window_bounds = array<i64: 1, 64>}, {pipeline_mode = #tpu.pipeline_mode<synchronous>, transform_indices = @transform_6, window_bounds = array<i64: 1, 64>}, {transform_indices = @transform_7, window_bounds = array<i64: 64, 64>}]} {
    %c0 = arith.constant 0 : index
    %c0_0 = arith.constant 0 : index
    %c0_1 = arith.constant 0 : index
    %0 = vector.load %arg1[%c0, %c0_0, %c0_1] : memref<64x8x32xbf16, #tpu.memory_space<vmem>>, vector<64x8x32xbf16>
    %1 = arith.extf %0 : vector<64x8x32xbf16> to vector<64x8x32xf32>
    %c0_2 = arith.constant 0 : index
    %c0_3 = arith.constant 0 : index
    %2 = vector.load %arg2[%c0_2, %c0_3] : memref<64x32xbf16, #tpu.memory_space<vmem>>, vector<64x32xbf16>
    %3 = arith.extf %2 : vector<64x32xbf16> to vector<64x32xf32>
    %4 = vector.shape_cast %3 : vector<64x32xf32> to vector<64x1x32xf32>
    %5 = vector.shape_cast %4 : vector<64x1x32xf32> to vector<64x1x32xf32>
    %6 = vector.broadcast %5 : vector<64x1x32xf32> to vector<64x8x32xf32>
    %7 = tpu.concatenate %1, %6 in 2 : vector<64x8x32xf32>, vector<64x8x32xf32> -> vector<64x8x64xf32>
    %8 = vector.shape_cast %7 : vector<64x8x64xf32> to vector<512x64xf32>
    %9 = arith.truncf %8 : vector<512x64xf32> to vector<512x64xbf16>
    %c0_4 = arith.constant 0 : index
    %c0_5 = arith.constant 0 : index
    %10 = vector.load %arg3[%c0_4, %c0_5] : memref<64x32xbf16, #tpu.memory_space<vmem>>, vector<64x32xbf16>
    %cst = arith.constant dense<0.000000e+00> : vector<512x32xf32>
    %11 = tpu.matmul %9, %10, %cst {dimension_numbers = #tpu.dot_dimension_numbers<[1], [0], [0], [1], [0, 0, 1, 1], [], []>} : vector<512x64xbf16>, vector<64x32xbf16>, vector<512x32xf32> -> vector<512x32xf32>
    %c0_6 = arith.constant 0 : index
    %c0_7 = arith.constant 0 : index
    %12 = vector.load %arg4[%c0_6, %c0_7] : memref<1x32xf32, #tpu.memory_space<vmem>>, vector<1x32xf32>
    %13 = vector.broadcast %12 : vector<1x32xf32> to vector<512x32xf32>
    %14 = arith.addf %11, %13 : vector<512x32xf32>
    %cst_8 = arith.constant 0.000000e+00 : f32
    %15 = vector.broadcast %cst_8 : f32 to vector<512x32xf32>
    %16 = arith.maximumf %14, %15 : vector<512x32xf32>
    %17 = arith.truncf %16 : vector<512x32xf32> to vector<512x32xbf16>
    %c0_9 = arith.constant 0 : index
    %c0_10 = arith.constant 0 : index
    %18 = vector.load %arg5[%c0_9, %c0_10] : memref<32x64xbf16, #tpu.memory_space<vmem>>, vector<32x64xbf16>
    %cst_11 = arith.constant dense<0.000000e+00> : vector<512x64xf32>
    %19 = tpu.matmul %17, %18, %cst_11 {dimension_numbers = #tpu.dot_dimension_numbers<[1], [0], [0], [1], [0, 0, 1, 1], [], []>} : vector<512x32xbf16>, vector<32x64xbf16>, vector<512x64xf32> -> vector<512x64xf32>
    %c0_12 = arith.constant 0 : index
    %c0_13 = arith.constant 0 : index
    %20 = vector.load %arg6[%c0_12, %c0_13] : memref<1x64xf32, #tpu.memory_space<vmem>>, vector<1x64xf32>
    %21 = vector.broadcast %20 : vector<1x64xf32> to vector<512x64xf32>
    %22 = arith.addf %19, %21 : vector<512x64xf32>
    %23 = arith.addf %22, %8 : vector<512x64xf32>
    %cst_14 = arith.constant 0.000000e+00 : f32
    %24 = vector.broadcast %cst_14 : f32 to vector<512x64xf32>
    %25 = arith.maximumf %23, %24 : vector<512x64xf32>
    %26 = vector.shape_cast %25 : vector<512x64xf32> to vector<64x8x64xf32>
    %c0_15 = arith.constant 0 : index
    %c0_16 = arith.constant 0 : index
    %27 = vector.load %arg7[%c0_15, %c0_16] : memref<1x64xf32, #tpu.memory_space<vmem>>, vector<1x64xf32>
    %28 = vector.shape_cast %27 : vector<1x64xf32> to vector<1x1x64xf32>
    %29 = vector.broadcast %28 : vector<1x1x64xf32> to vector<64x8x64xf32>
    %30 = arith.mulf %26, %29 : vector<64x8x64xf32>
    %cst_17 = arith.constant dense<0.000000e+00> : vector<64x8xf32>
    %31 = vector.multi_reduction <add>, %30, %cst_17 [2] : vector<64x8x64xf32> to vector<64x8xf32>
    %32 = vector.shape_cast %31 : vector<64x8xf32> to vector<64x8x1xf32>
    %cst_18 = arith.constant dense<0xFF800000> : vector<64x1xf32>
    %33 = vector.multi_reduction <maximumf>, %32, %cst_18 [1] : vector<64x8x1xf32> to vector<64x1xf32>
    %34 = vector.shape_cast %33 : vector<64x1xf32> to vector<64x1x1xf32>
    %35 = vector.broadcast %34 : vector<64x1x1xf32> to vector<64x8x1xf32>
    %36 = arith.subf %32, %35 : vector<64x8x1xf32>
    %37 = math.exp %36 : vector<64x8x1xf32>
    %cst_19 = arith.constant dense<0.000000e+00> : vector<64x1xf32>
    %38 = vector.multi_reduction <add>, %37, %cst_19 [1] : vector<64x8x1xf32> to vector<64x1xf32>
    %39 = vector.shape_cast %38 : vector<64x1xf32> to vector<64x1x1xf32>
    %40 = tpu.reciprocal %39 {approx = true} : vector<64x1x1xf32> -> vector<64x1x1xf32>
    %41 = vector.broadcast %40 : vector<64x1x1xf32> to vector<64x8x1xf32>
    %42 = arith.mulf %37, %41 : vector<64x8x1xf32>
    %43 = vector.broadcast %42 : vector<64x8x1xf32> to vector<64x8x64xf32>
    %44 = arith.mulf %43, %26 : vector<64x8x64xf32>
    %cst_20 = arith.constant dense<0.000000e+00> : vector<64x64xf32>
    %45 = vector.multi_reduction <add>, %44, %cst_20 [1] : vector<64x8x64xf32> to vector<64x64xf32>
    %46 = arith.truncf %45 : vector<64x64xf32> to vector<64x64xbf16>
    %c0_21 = arith.constant 0 : index
    %c0_22 = arith.constant 0 : index
    %47 = vector.load %arg8[%c0_21, %c0_22] : memref<64x64xbf16, #tpu.memory_space<vmem>>, vector<64x64xbf16>
    tpu.vector_store %arg8[%c0_21, %c0_22], %46 {strides = array<i32>} : memref<64x64xbf16, #tpu.memory_space<vmem>>, vector<64x64xbf16>,
    return
  }
  func.func @transform_0(%arg0: i32) -> (i32, i32, i32) {
    %c0_i32 = arith.constant 0 : i32
    %c0_i32_0 = arith.constant 0 : i32
    %c0_i32_1 = arith.constant 0 : i32
    return %arg0, %c0_i32, %c0_i32_0 : i32, i32, i32
  }
  func.func @transform_1(%arg0: i32) -> (i32, i32) {
    %c0_i32 = arith.constant 0 : i32
    %c0_i32_0 = arith.constant 0 : i32
    return %arg0, %c0_i32 : i32, i32
  }
  func.func @transform_2(%arg0: i32) -> (i32, i32) {
    %c0_i32 = arith.constant 0 : i32
    %c0_i32_0 = arith.constant 0 : i32
    %c0_i32_1 = arith.constant 0 : i32
    return %c0_i32, %c0_i32_0 : i32, i32
  }
  func.func @transform_3(%arg0: i32) -> (i32, i32) {
    %c0_i32 = arith.constant 0 : i32
    %c0_i32_0 = arith.constant 0 : i32
    %c0_i32_1 = arith.constant 0 : i32
    return %c0_i32, %c0_i32_0 : i32, i32
  }
  func.func @transform_4(%arg0: i32) -> (i32, i32) {
    %c0_i32 = arith.constant 0 : i32
    %c0_i32_0 = arith.constant 0 : i32
    %c0_i32_1 = arith.constant 0 : i32
    return %c0_i32, %c0_i32_0 : i32, i32
  }
  func.func @transform_5(%arg0: i32) -> (i32, i32) {
    %c0_i32 = arith.constant 0 : i32
    %c0_i32_0 = arith.constant 0 : i32
    %c0_i32_1 = arith.constant 0 : i32
    return %c0_i32, %c0_i32_0 : i32, i32
  }
  func.func @transform_6(%arg0: i32) -> (i32, i32) {
    %c0_i32 = arith.constant 0 : i32
    %c0_i32_0 = arith.constant 0 : i32
    %c0_i32_1 = arith.constant 0 : i32
    return %c0_i32, %c0_i32_0 : i32, i32
  }
  func.func @transform_7(%arg0: i32) -> (i32, i32) {
    %c0_i32 = arith.constant 0 : i32
    %c0_i32_0 = arith.constant 0 : i32
    return %arg0, %c0_i32 : i32, i32
  }
}

module attributes {stable_mosaic.version = 11 : i64} {
  func.func @_local_stage_kernel(%arg0: i32, %arg1: memref<32x8x64xbf16, #tpu.memory_space<vmem>>, %arg2: memref<32x64xbf16, #tpu.memory_space<vmem>>, %arg3: memref<128x64xbf16, #tpu.memory_space<vmem>>, %arg4: memref<1x64xf32, #tpu.memory_space<vmem>>, %arg5: memref<64x128xbf16, #tpu.memory_space<vmem>>, %arg6: memref<1x128xf32, #tpu.memory_space<vmem>>, %arg7: memref<1x128xf32, #tpu.memory_space<vmem>>, %arg8: memref<32x128xbf16, #tpu.memory_space<vmem>>) attributes {dimension_semantics = [#tpu.dimension_semantics<parallel>], iteration_bounds = array<i64: 1>, scalar_prefetch = 0 : i64, scratch_operands = 0 : i64, tpu.core_type = #tpu.core_type<tc>, window_params = [{transform_indices = @transform_0, window_bounds = array<i64: 32, 8, 64>}, {transform_indices = @transform_1, window_bounds = array<i64: 32, 64>}, {pipeline_mode = #tpu.pipeline_mode<synchronous>, transform_indices = @transform_2, window_bounds = array<i64: 128, 64>}, {pipeline_mode = #tpu.pipeline_mode<synchronous>, transform_indices = @transform_3, window_bounds = array<i64: 1, 64>}, {pipeline_mode = #tpu.pipeline_mode<synchronous>, transform_indices = @transform_4, window_bounds = array<i64: 64, 128>}, {pipeline_mode = #tpu.pipeline_mode<synchronous>, transform_indices = @transform_5, window_bounds = array<i64: 1, 128>}, {pipeline_mode = #tpu.pipeline_mode<synchronous>, transform_indices = @transform_6, window_bounds = array<i64: 1, 128>}, {transform_indices = @transform_7, window_bounds = array<i64: 32, 128>}]} {
    %c0 = arith.constant 0 : index
    %c0_0 = arith.constant 0 : index
    %c0_1 = arith.constant 0 : index
    %0 = vector.load %arg1[%c0, %c0_0, %c0_1] : memref<32x8x64xbf16, #tpu.memory_space<vmem>>, vector<32x8x64xbf16>
    %1 = arith.extf %0 : vector<32x8x64xbf16> to vector<32x8x64xf32>
    %c0_2 = arith.constant 0 : index
    %c0_3 = arith.constant 0 : index
    %2 = vector.load %arg2[%c0_2, %c0_3] : memref<32x64xbf16, #tpu.memory_space<vmem>>, vector<32x64xbf16>
    %3 = arith.extf %2 : vector<32x64xbf16> to vector<32x64xf32>
    %4 = vector.shape_cast %3 : vector<32x64xf32> to vector<32x1x64xf32>
    %5 = vector.shape_cast %4 : vector<32x1x64xf32> to vector<32x1x64xf32>
    %6 = vector.broadcast %5 : vector<32x1x64xf32> to vector<32x8x64xf32>
    %7 = tpu.concatenate %1, %6 in 2 : vector<32x8x64xf32>, vector<32x8x64xf32> -> vector<32x8x128xf32>
    %8 = vector.shape_cast %7 : vector<32x8x128xf32> to vector<256x128xf32>
    %9 = arith.truncf %8 : vector<256x128xf32> to vector<256x128xbf16>
    %c0_4 = arith.constant 0 : index
    %c0_5 = arith.constant 0 : index
    %10 = vector.load %arg3[%c0_4, %c0_5] : memref<128x64xbf16, #tpu.memory_space<vmem>>, vector<128x64xbf16>
    %cst = arith.constant dense<0.000000e+00> : vector<256x64xf32>
    %11 = tpu.matmul %9, %10, %cst {dimension_numbers = #tpu.dot_dimension_numbers<[1], [0], [0], [1], [0, 0, 1, 1], [], []>} : vector<256x128xbf16>, vector<128x64xbf16>, vector<256x64xf32> -> vector<256x64xf32>
    %c0_6 = arith.constant 0 : index
    %c0_7 = arith.constant 0 : index
    %12 = vector.load %arg4[%c0_6, %c0_7] : memref<1x64xf32, #tpu.memory_space<vmem>>, vector<1x64xf32>
    %13 = vector.broadcast %12 : vector<1x64xf32> to vector<256x64xf32>
    %14 = arith.addf %11, %13 : vector<256x64xf32>
    %cst_8 = arith.constant 0.000000e+00 : f32
    %15 = vector.broadcast %cst_8 : f32 to vector<256x64xf32>
    %16 = arith.maximumf %14, %15 : vector<256x64xf32>
    %17 = arith.truncf %16 : vector<256x64xf32> to vector<256x64xbf16>
    %c0_9 = arith.constant 0 : index
    %c0_10 = arith.constant 0 : index
    %18 = vector.load %arg5[%c0_9, %c0_10] : memref<64x128xbf16, #tpu.memory_space<vmem>>, vector<64x128xbf16>
    %cst_11 = arith.constant dense<0.000000e+00> : vector<256x128xf32>
    %19 = tpu.matmul %17, %18, %cst_11 {dimension_numbers = #tpu.dot_dimension_numbers<[1], [0], [0], [1], [0, 0, 1, 1], [], []>} : vector<256x64xbf16>, vector<64x128xbf16>, vector<256x128xf32> -> vector<256x128xf32>
    %c0_12 = arith.constant 0 : index
    %c0_13 = arith.constant 0 : index
    %20 = vector.load %arg6[%c0_12, %c0_13] : memref<1x128xf32, #tpu.memory_space<vmem>>, vector<1x128xf32>
    %21 = vector.broadcast %20 : vector<1x128xf32> to vector<256x128xf32>
    %22 = arith.addf %19, %21 : vector<256x128xf32>
    %23 = arith.addf %22, %8 : vector<256x128xf32>
    %cst_14 = arith.constant 0.000000e+00 : f32
    %24 = vector.broadcast %cst_14 : f32 to vector<256x128xf32>
    %25 = arith.maximumf %23, %24 : vector<256x128xf32>
    %26 = vector.shape_cast %25 : vector<256x128xf32> to vector<32x8x128xf32>
    %c0_15 = arith.constant 0 : index
    %c0_16 = arith.constant 0 : index
    %27 = vector.load %arg7[%c0_15, %c0_16] : memref<1x128xf32, #tpu.memory_space<vmem>>, vector<1x128xf32>
    %28 = vector.shape_cast %27 : vector<1x128xf32> to vector<1x1x128xf32>
    %29 = vector.broadcast %28 : vector<1x1x128xf32> to vector<32x8x128xf32>
    %30 = arith.mulf %26, %29 : vector<32x8x128xf32>
    %cst_17 = arith.constant dense<0.000000e+00> : vector<32x8xf32>
    %31 = vector.multi_reduction <add>, %30, %cst_17 [2] : vector<32x8x128xf32> to vector<32x8xf32>
    %32 = vector.shape_cast %31 : vector<32x8xf32> to vector<32x8x1xf32>
    %cst_18 = arith.constant dense<0xFF800000> : vector<32x1xf32>
    %33 = vector.multi_reduction <maximumf>, %32, %cst_18 [1] : vector<32x8x1xf32> to vector<32x1xf32>
    %34 = vector.shape_cast %33 : vector<32x1xf32> to vector<32x1x1xf32>
    %35 = vector.broadcast %34 : vector<32x1x1xf32> to vector<32x8x1xf32>
    %36 = arith.subf %32, %35 : vector<32x8x1xf32>
    %37 = math.exp %36 : vector<32x8x1xf32>
    %cst_19 = arith.constant dense<0.000000e+00> : vector<32x1xf32>
    %38 = vector.multi_reduction <add>, %37, %cst_19 [1] : vector<32x8x1xf32> to vector<32x1xf32>
    %39 = vector.shape_cast %38 : vector<32x1xf32> to vector<32x1x1xf32>
    %40 = tpu.reciprocal %39 {approx = true} : vector<32x1x1xf32> -> vector<32x1x1xf32>
    %41 = vector.broadcast %40 : vector<32x1x1xf32> to vector<32x8x1xf32>
    %42 = arith.mulf %37, %41 : vector<32x8x1xf32>
    %43 = vector.broadcast %42 : vector<32x8x1xf32> to vector<32x8x128xf32>
    %44 = arith.mulf %43, %26 : vector<32x8x128xf32>
    %cst_20 = arith.constant dense<0.000000e+00> : vector<32x128xf32>
    %45 = vector.multi_reduction <add>, %44, %cst_20 [1] : vector<32x8x128xf32> to vector<32x128xf32>
    %46 = arith.truncf %45 : vector<32x128xf32> to vector<32x128xbf16>
    %c0_21 = arith.constant 0 : index
    %c0_22 = arith.constant 0 : index
    %47 = vector.load %arg8[%c0_21, %c0_22] : memref<32x128xbf16, #tpu.memory_space<vmem>>, vector<32x128xbf16>
    tpu.vector_store %arg8[%c0_21, %c0_22], %46 {strides = array<i32>} : memref<32x128xbf16, #tpu.memory_space<vmem>>, vector<32x128xbf16>,
    return
  }
  func.func @transform_0(%arg0: i32) -> (i32, i32, i32) {
    %c0_i32 = arith.constant 0 : i32
    %c0_i32_0 = arith.constant 0 : i32
    %c0_i32_1 = arith.constant 0 : i32
    return %arg0, %c0_i32, %c0_i32_0 : i32, i32, i32
  }
  func.func @transform_1(%arg0: i32) -> (i32, i32) {
    %c0_i32 = arith.constant 0 : i32
    %c0_i32_0 = arith.constant 0 : i32
    return %arg0, %c0_i32 : i32, i32
  }
  func.func @transform_2(%arg0: i32) -> (i32, i32) {
    %c0_i32 = arith.constant 0 : i32
    %c0_i32_0 = arith.constant 0 : i32
    %c0_i32_1 = arith.constant 0 : i32
    return %c0_i32, %c0_i32_0 : i32, i32
  }
  func.func @transform_3(%arg0: i32) -> (i32, i32) {
    %c0_i32 = arith.constant 0 : i32
    %c0_i32_0 = arith.constant 0 : i32
    %c0_i32_1 = arith.constant 0 : i32
    return %c0_i32, %c0_i32_0 : i32, i32
  }
  func.func @transform_4(%arg0: i32) -> (i32, i32) {
    %c0_i32 = arith.constant 0 : i32
    %c0_i32_0 = arith.constant 0 : i32
    %c0_i32_1 = arith.constant 0 : i32
    return %c0_i32, %c0_i32_0 : i32, i32
  }
  func.func @transform_5(%arg0: i32) -> (i32, i32) {
    %c0_i32 = arith.constant 0 : i32
    %c0_i32_0 = arith.constant 0 : i32
    %c0_i32_1 = arith.constant 0 : i32
    return %c0_i32, %c0_i32_0 : i32, i32
  }
  func.func @transform_6(%arg0: i32) -> (i32, i32) {
    %c0_i32 = arith.constant 0 : i32
    %c0_i32_0 = arith.constant 0 : i32
    %c0_i32_1 = arith.constant 0 : i32
    return %c0_i32, %c0_i32_0 : i32, i32
  }
  func.func @transform_7(%arg0: i32) -> (i32, i32) {
    %c0_i32 = arith.constant 0 : i32
    %c0_i32_0 = arith.constant 0 : i32
    return %arg0, %c0_i32 : i32, i32
  }
}

module attributes {stable_mosaic.version = 11 : i64} {
  func.func @_linear2_kernel(%arg0: i32, %arg1: memref<32x128xbf16, #tpu.memory_space<vmem>>, %arg2: memref<128x64xbf16, #tpu.memory_space<vmem>>, %arg3: memref<1x64xf32, #tpu.memory_space<vmem>>, %arg4: memref<64x128xbf16, #tpu.memory_space<vmem>>, %arg5: memref<1x128xf32, #tpu.memory_space<vmem>>, %arg6: memref<32x128xbf16, #tpu.memory_space<vmem>>) attributes {dimension_semantics = [#tpu.dimension_semantics<parallel>], iteration_bounds = array<i64: 1>, scalar_prefetch = 0 : i64, scratch_operands = 0 : i64, tpu.core_type = #tpu.core_type<tc>, window_params = [{transform_indices = @transform_0, window_bounds = array<i64: 32, 128>}, {pipeline_mode = #tpu.pipeline_mode<synchronous>, transform_indices = @transform_1, window_bounds = array<i64: 128, 64>}, {pipeline_mode = #tpu.pipeline_mode<synchronous>, transform_indices = @transform_2, window_bounds = array<i64: 1, 64>}, {pipeline_mode = #tpu.pipeline_mode<synchronous>, transform_indices = @transform_3, window_bounds = array<i64: 64, 128>}, {pipeline_mode = #tpu.pipeline_mode<synchronous>, transform_indices = @transform_4, window_bounds = array<i64: 1, 128>}, {transform_indices = @transform_5, window_bounds = array<i64: 32, 128>}]} {
    %c0 = arith.constant 0 : index
    %c0_0 = arith.constant 0 : index
    %0 = vector.load %arg1[%c0, %c0_0] : memref<32x128xbf16, #tpu.memory_space<vmem>>, vector<32x128xbf16>
    %1 = arith.extf %0 : vector<32x128xbf16> to vector<32x128xf32>
    %c0_1 = arith.constant 0 : index
    %c0_2 = arith.constant 0 : index
    %2 = vector.load %arg2[%c0_1, %c0_2] : memref<128x64xbf16, #tpu.memory_space<vmem>>, vector<128x64xbf16>
    %cst = arith.constant dense<0.000000e+00> : vector<32x64xf32>
    %3 = tpu.matmul %0, %2, %cst {dimension_numbers = #tpu.dot_dimension_numbers<[1], [0], [0], [1], [0, 0, 1, 1], [], []>} : vector<32x128xbf16>, vector<128x64xbf16>, vector<32x64xf32> -> vector<32x64xf32>
    %c0_3 = arith.constant 0 : index
    %c0_4 = arith.constant 0 : index
    %4 = vector.load %arg3[%c0_3, %c0_4] : memref<1x64xf32, #tpu.memory_space<vmem>>, vector<1x64xf32>
    %5 = vector.broadcast %4 : vector<1x64xf32> to vector<32x64xf32>
    %6 = arith.addf %3, %5 : vector<32x64xf32>
    %cst_5 = arith.constant 0.000000e+00 : f32
    %7 = vector.broadcast %cst_5 : f32 to vector<32x64xf32>
    %8 = arith.maximumf %6, %7 : vector<32x64xf32>
    %9 = arith.truncf %8 : vector<32x64xf32> to vector<32x64xbf16>
    %c0_6 = arith.constant 0 : index
    %c0_7 = arith.constant 0 : index
    %10 = vector.load %arg4[%c0_6, %c0_7] : memref<64x128xbf16, #tpu.memory_space<vmem>>, vector<64x128xbf16>
    %cst_8 = arith.constant dense<0.000000e+00> : vector<32x128xf32>
    %11 = tpu.matmul %9, %10, %cst_8 {dimension_numbers = #tpu.dot_dimension_numbers<[1], [0], [0], [1], [0, 0, 1, 1], [], []>} : vector<32x64xbf16>, vector<64x128xbf16>, vector<32x128xf32> -> vector<32x128xf32>
    %c0_9 = arith.constant 0 : index
    %c0_10 = arith.constant 0 : index
    %12 = vector.load %arg5[%c0_9, %c0_10] : memref<1x128xf32, #tpu.memory_space<vmem>>, vector<1x128xf32>
    %13 = vector.broadcast %12 : vector<1x128xf32> to vector<32x128xf32>
    %14 = arith.addf %11, %13 : vector<32x128xf32>
    %15 = arith.addf %14, %1 : vector<32x128xf32>
    %cst_11 = arith.constant 0.000000e+00 : f32
    %16 = vector.broadcast %cst_11 : f32 to vector<32x128xf32>
    %17 = arith.maximumf %15, %16 : vector<32x128xf32>
    %18 = arith.truncf %17 : vector<32x128xf32> to vector<32x128xbf16>
    %c0_12 = arith.constant 0 : index
    %c0_13 = arith.constant 0 : index
    %19 = vector.load %arg6[%c0_12, %c0_13] : memref<32x128xbf16, #tpu.memory_space<vmem>>, vector<32x128xbf16>
    tpu.vector_store %arg6[%c0_12, %c0_13], %18 {strides = array<i32>} : memref<32x128xbf16, #tpu.memory_space<vmem>>, vector<32x128xbf16>,
    return
  }
  func.func @transform_0(%arg0: i32) -> (i32, i32) {
    %c0_i32 = arith.constant 0 : i32
    %c0_i32_0 = arith.constant 0 : i32
    return %arg0, %c0_i32 : i32, i32
  }
  func.func @transform_1(%arg0: i32) -> (i32, i32) {
    %c0_i32 = arith.constant 0 : i32
    %c0_i32_0 = arith.constant 0 : i32
    %c0_i32_1 = arith.constant 0 : i32
    return %c0_i32, %c0_i32_0 : i32, i32
  }
  func.func @transform_2(%arg0: i32) -> (i32, i32) {
    %c0_i32 = arith.constant 0 : i32
    %c0_i32_0 = arith.constant 0 : i32
    %c0_i32_1 = arith.constant 0 : i32
    return %c0_i32, %c0_i32_0 : i32, i32
  }
  func.func @transform_3(%arg0: i32) -> (i32, i32) {
    %c0_i32 = arith.constant 0 : i32
    %c0_i32_0 = arith.constant 0 : i32
    %c0_i32_1 = arith.constant 0 : i32
    return %c0_i32, %c0_i32_0 : i32, i32
  }
  func.func @transform_4(%arg0: i32) -> (i32, i32) {
    %c0_i32 = arith.constant 0 : i32
    %c0_i32_0 = arith.constant 0 : i32
    %c0_i32_1 = arith.constant 0 : i32
    return %c0_i32, %c0_i32_0 : i32, i32
  }
  func.func @transform_5(%arg0: i32) -> (i32, i32) {
    %c0_i32 = arith.constant 0 : i32
    %c0_i32_0 = arith.constant 0 : i32
    return %arg0, %c0_i32 : i32, i32
  }
}

module attributes {stable_mosaic.version = 11 : i64} {
  func.func @_linear2_kernel(%arg0: i32, %arg1: memref<16x256xbf16, #tpu.memory_space<vmem>>, %arg2: memref<256x128xbf16, #tpu.memory_space<vmem>>, %arg3: memref<1x128xf32, #tpu.memory_space<vmem>>, %arg4: memref<128x256xbf16, #tpu.memory_space<vmem>>, %arg5: memref<1x256xf32, #tpu.memory_space<vmem>>, %arg6: memref<16x256xbf16, #tpu.memory_space<vmem>>) attributes {dimension_semantics = [#tpu.dimension_semantics<parallel>], iteration_bounds = array<i64: 1>, scalar_prefetch = 0 : i64, scratch_operands = 0 : i64, tpu.core_type = #tpu.core_type<tc>, window_params = [{transform_indices = @transform_0, window_bounds = array<i64: 16, 256>}, {pipeline_mode = #tpu.pipeline_mode<synchronous>, transform_indices = @transform_1, window_bounds = array<i64: 256, 128>}, {pipeline_mode = #tpu.pipeline_mode<synchronous>, transform_indices = @transform_2, window_bounds = array<i64: 1, 128>}, {pipeline_mode = #tpu.pipeline_mode<synchronous>, transform_indices = @transform_3, window_bounds = array<i64: 128, 256>}, {pipeline_mode = #tpu.pipeline_mode<synchronous>, transform_indices = @transform_4, window_bounds = array<i64: 1, 256>}, {transform_indices = @transform_5, window_bounds = array<i64: 16, 256>}]} {
    %c0 = arith.constant 0 : index
    %c0_0 = arith.constant 0 : index
    %0 = vector.load %arg1[%c0, %c0_0] : memref<16x256xbf16, #tpu.memory_space<vmem>>, vector<16x256xbf16>
    %1 = arith.extf %0 : vector<16x256xbf16> to vector<16x256xf32>
    %c0_1 = arith.constant 0 : index
    %c0_2 = arith.constant 0 : index
    %2 = vector.load %arg2[%c0_1, %c0_2] : memref<256x128xbf16, #tpu.memory_space<vmem>>, vector<256x128xbf16>
    %cst = arith.constant dense<0.000000e+00> : vector<16x128xf32>
    %3 = tpu.matmul %0, %2, %cst {dimension_numbers = #tpu.dot_dimension_numbers<[1], [0], [0], [1], [0, 0, 1, 1], [], []>} : vector<16x256xbf16>, vector<256x128xbf16>, vector<16x128xf32> -> vector<16x128xf32>
    %c0_3 = arith.constant 0 : index
    %c0_4 = arith.constant 0 : index
    %4 = vector.load %arg3[%c0_3, %c0_4] : memref<1x128xf32, #tpu.memory_space<vmem>>, vector<1x128xf32>
    %5 = vector.broadcast %4 : vector<1x128xf32> to vector<16x128xf32>
    %6 = arith.addf %3, %5 : vector<16x128xf32>
    %cst_5 = arith.constant 0.000000e+00 : f32
    %7 = vector.broadcast %cst_5 : f32 to vector<16x128xf32>
    %8 = arith.maximumf %6, %7 : vector<16x128xf32>
    %9 = arith.truncf %8 : vector<16x128xf32> to vector<16x128xbf16>
    %c0_6 = arith.constant 0 : index
    %c0_7 = arith.constant 0 : index
    %10 = vector.load %arg4[%c0_6, %c0_7] : memref<128x256xbf16, #tpu.memory_space<vmem>>, vector<128x256xbf16>
    %cst_8 = arith.constant dense<0.000000e+00> : vector<16x256xf32>
    %11 = tpu.matmul %9, %10, %cst_8 {dimension_numbers = #tpu.dot_dimension_numbers<[1], [0], [0], [1], [0, 0, 1, 1], [], []>} : vector<16x128xbf16>, vector<128x256xbf16>, vector<16x256xf32> -> vector<16x256xf32>
    %c0_9 = arith.constant 0 : index
    %c0_10 = arith.constant 0 : index
    %12 = vector.load %arg5[%c0_9, %c0_10] : memref<1x256xf32, #tpu.memory_space<vmem>>, vector<1x256xf32>
    %13 = vector.broadcast %12 : vector<1x256xf32> to vector<16x256xf32>
    %14 = arith.addf %11, %13 : vector<16x256xf32>
    %15 = arith.addf %14, %1 : vector<16x256xf32>
    %cst_11 = arith.constant 0.000000e+00 : f32
    %16 = vector.broadcast %cst_11 : f32 to vector<16x256xf32>
    %17 = arith.maximumf %15, %16 : vector<16x256xf32>
    %18 = arith.truncf %17 : vector<16x256xf32> to vector<16x256xbf16>
    %c0_12 = arith.constant 0 : index
    %c0_13 = arith.constant 0 : index
    %19 = vector.load %arg6[%c0_12, %c0_13] : memref<16x256xbf16, #tpu.memory_space<vmem>>, vector<16x256xbf16>
    tpu.vector_store %arg6[%c0_12, %c0_13], %18 {strides = array<i32>} : memref<16x256xbf16, #tpu.memory_space<vmem>>, vector<16x256xbf16>,
    return
  }
  func.func @transform_0(%arg0: i32) -> (i32, i32) {
    %c0_i32 = arith.constant 0 : i32
    %c0_i32_0 = arith.constant 0 : i32
    return %arg0, %c0_i32 : i32, i32
  }
  func.func @transform_1(%arg0: i32) -> (i32, i32) {
    %c0_i32 = arith.constant 0 : i32
    %c0_i32_0 = arith.constant 0 : i32
    %c0_i32_1 = arith.constant 0 : i32
    return %c0_i32, %c0_i32_0 : i32, i32
  }
  func.func @transform_2(%arg0: i32) -> (i32, i32) {
    %c0_i32 = arith.constant 0 : i32
    %c0_i32_0 = arith.constant 0 : i32
    %c0_i32_1 = arith.constant 0 : i32
    return %c0_i32, %c0_i32_0 : i32, i32
  }
  func.func @transform_3(%arg0: i32) -> (i32, i32) {
    %c0_i32 = arith.constant 0 : i32
    %c0_i32_0 = arith.constant 0 : i32
    %c0_i32_1 = arith.constant 0 : i32
    return %c0_i32, %c0_i32_0 : i32, i32
  }
  func.func @transform_4(%arg0: i32) -> (i32, i32) {
    %c0_i32 = arith.constant 0 : i32
    %c0_i32_0 = arith.constant 0 : i32
    %c0_i32_1 = arith.constant 0 : i32
    return %c0_i32, %c0_i32_0 : i32, i32
  }
  func.func @transform_5(%arg0: i32) -> (i32, i32) {
    %c0_i32 = arith.constant 0 : i32
    %c0_i32_0 = arith.constant 0 : i32
    return %arg0, %c0_i32 : i32, i32
  }
}

module attributes {stable_mosaic.version = 11 : i64} {
  func.func @_local_stage_kernel(%arg0: i32, %arg1: memref<16x8x128xbf16, #tpu.memory_space<vmem>>, %arg2: memref<16x128xbf16, #tpu.memory_space<vmem>>, %arg3: memref<256x128xbf16, #tpu.memory_space<vmem>>, %arg4: memref<1x128xf32, #tpu.memory_space<vmem>>, %arg5: memref<128x256xbf16, #tpu.memory_space<vmem>>, %arg6: memref<1x256xf32, #tpu.memory_space<vmem>>, %arg7: memref<1x256xf32, #tpu.memory_space<vmem>>, %arg8: memref<16x256xbf16, #tpu.memory_space<vmem>>) attributes {dimension_semantics = [#tpu.dimension_semantics<parallel>], iteration_bounds = array<i64: 1>, scalar_prefetch = 0 : i64, scratch_operands = 0 : i64, tpu.core_type = #tpu.core_type<tc>, window_params = [{transform_indices = @transform_0, window_bounds = array<i64: 16, 8, 128>}, {transform_indices = @transform_1, window_bounds = array<i64: 16, 128>}, {pipeline_mode = #tpu.pipeline_mode<synchronous>, transform_indices = @transform_2, window_bounds = array<i64: 256, 128>}, {pipeline_mode = #tpu.pipeline_mode<synchronous>, transform_indices = @transform_3, window_bounds = array<i64: 1, 128>}, {pipeline_mode = #tpu.pipeline_mode<synchronous>, transform_indices = @transform_4, window_bounds = array<i64: 128, 256>}, {pipeline_mode = #tpu.pipeline_mode<synchronous>, transform_indices = @transform_5, window_bounds = array<i64: 1, 256>}, {pipeline_mode = #tpu.pipeline_mode<synchronous>, transform_indices = @transform_6, window_bounds = array<i64: 1, 256>}, {transform_indices = @transform_7, window_bounds = array<i64: 16, 256>}]} {
    %c0 = arith.constant 0 : index
    %c0_0 = arith.constant 0 : index
    %c0_1 = arith.constant 0 : index
    %0 = vector.load %arg1[%c0, %c0_0, %c0_1] : memref<16x8x128xbf16, #tpu.memory_space<vmem>>, vector<16x8x128xbf16>
    %1 = arith.extf %0 : vector<16x8x128xbf16> to vector<16x8x128xf32>
    %c0_2 = arith.constant 0 : index
    %c0_3 = arith.constant 0 : index
    %2 = vector.load %arg2[%c0_2, %c0_3] : memref<16x128xbf16, #tpu.memory_space<vmem>>, vector<16x128xbf16>
    %3 = arith.extf %2 : vector<16x128xbf16> to vector<16x128xf32>
    %4 = vector.shape_cast %3 : vector<16x128xf32> to vector<16x1x128xf32>
    %5 = vector.shape_cast %4 : vector<16x1x128xf32> to vector<16x1x128xf32>
    %6 = vector.broadcast %5 : vector<16x1x128xf32> to vector<16x8x128xf32>
    %7 = tpu.concatenate %1, %6 in 2 : vector<16x8x128xf32>, vector<16x8x128xf32> -> vector<16x8x256xf32>
    %8 = vector.shape_cast %7 : vector<16x8x256xf32> to vector<128x256xf32>
    %9 = arith.truncf %8 : vector<128x256xf32> to vector<128x256xbf16>
    %c0_4 = arith.constant 0 : index
    %c0_5 = arith.constant 0 : index
    %10 = vector.load %arg3[%c0_4, %c0_5] : memref<256x128xbf16, #tpu.memory_space<vmem>>, vector<256x128xbf16>
    %cst = arith.constant dense<0.000000e+00> : vector<128x128xf32>
    %11 = tpu.matmul %9, %10, %cst {dimension_numbers = #tpu.dot_dimension_numbers<[1], [0], [0], [1], [0, 0, 1, 1], [], []>} : vector<128x256xbf16>, vector<256x128xbf16>, vector<128x128xf32> -> vector<128x128xf32>
    %c0_6 = arith.constant 0 : index
    %c0_7 = arith.constant 0 : index
    %12 = vector.load %arg4[%c0_6, %c0_7] : memref<1x128xf32, #tpu.memory_space<vmem>>, vector<1x128xf32>
    %13 = vector.broadcast %12 : vector<1x128xf32> to vector<128x128xf32>
    %14 = arith.addf %11, %13 : vector<128x128xf32>
    %cst_8 = arith.constant 0.000000e+00 : f32
    %15 = vector.broadcast %cst_8 : f32 to vector<128x128xf32>
    %16 = arith.maximumf %14, %15 : vector<128x128xf32>
    %17 = arith.truncf %16 : vector<128x128xf32> to vector<128x128xbf16>
    %c0_9 = arith.constant 0 : index
    %c0_10 = arith.constant 0 : index
    %18 = vector.load %arg5[%c0_9, %c0_10] : memref<128x256xbf16, #tpu.memory_space<vmem>>, vector<128x256xbf16>
    %cst_11 = arith.constant dense<0.000000e+00> : vector<128x256xf32>
    %19 = tpu.matmul %17, %18, %cst_11 {dimension_numbers = #tpu.dot_dimension_numbers<[1], [0], [0], [1], [0, 0, 1, 1], [], []>} : vector<128x128xbf16>, vector<128x256xbf16>, vector<128x256xf32> -> vector<128x256xf32>
    %c0_12 = arith.constant 0 : index
    %c0_13 = arith.constant 0 : index
    %20 = vector.load %arg6[%c0_12, %c0_13] : memref<1x256xf32, #tpu.memory_space<vmem>>, vector<1x256xf32>
    %21 = vector.broadcast %20 : vector<1x256xf32> to vector<128x256xf32>
    %22 = arith.addf %19, %21 : vector<128x256xf32>
    %23 = arith.addf %22, %8 : vector<128x256xf32>
    %cst_14 = arith.constant 0.000000e+00 : f32
    %24 = vector.broadcast %cst_14 : f32 to vector<128x256xf32>
    %25 = arith.maximumf %23, %24 : vector<128x256xf32>
    %26 = vector.shape_cast %25 : vector<128x256xf32> to vector<16x8x256xf32>
    %c0_15 = arith.constant 0 : index
    %c0_16 = arith.constant 0 : index
    %27 = vector.load %arg7[%c0_15, %c0_16] : memref<1x256xf32, #tpu.memory_space<vmem>>, vector<1x256xf32>
    %28 = vector.shape_cast %27 : vector<1x256xf32> to vector<1x1x256xf32>
    %29 = vector.broadcast %28 : vector<1x1x256xf32> to vector<16x8x256xf32>
    %30 = arith.mulf %26, %29 : vector<16x8x256xf32>
    %cst_17 = arith.constant dense<0.000000e+00> : vector<16x8xf32>
    %31 = vector.multi_reduction <add>, %30, %cst_17 [2] : vector<16x8x256xf32> to vector<16x8xf32>
    %32 = vector.shape_cast %31 : vector<16x8xf32> to vector<16x8x1xf32>
    %cst_18 = arith.constant dense<0xFF800000> : vector<16x1xf32>
    %33 = vector.multi_reduction <maximumf>, %32, %cst_18 [1] : vector<16x8x1xf32> to vector<16x1xf32>
    %34 = vector.shape_cast %33 : vector<16x1xf32> to vector<16x1x1xf32>
    %35 = vector.broadcast %34 : vector<16x1x1xf32> to vector<16x8x1xf32>
    %36 = arith.subf %32, %35 : vector<16x8x1xf32>
    %37 = math.exp %36 : vector<16x8x1xf32>
    %cst_19 = arith.constant dense<0.000000e+00> : vector<16x1xf32>
    %38 = vector.multi_reduction <add>, %37, %cst_19 [1] : vector<16x8x1xf32> to vector<16x1xf32>
    %39 = vector.shape_cast %38 : vector<16x1xf32> to vector<16x1x1xf32>
    %40 = tpu.reciprocal %39 {approx = true} : vector<16x1x1xf32> -> vector<16x1x1xf32>
    %41 = vector.broadcast %40 : vector<16x1x1xf32> to vector<16x8x1xf32>
    %42 = arith.mulf %37, %41 : vector<16x8x1xf32>
    %43 = vector.broadcast %42 : vector<16x8x1xf32> to vector<16x8x256xf32>
    %44 = arith.mulf %43, %26 : vector<16x8x256xf32>
    %cst_20 = arith.constant dense<0.000000e+00> : vector<16x256xf32>
    %45 = vector.multi_reduction <add>, %44, %cst_20 [1] : vector<16x8x256xf32> to vector<16x256xf32>
    %46 = arith.truncf %45 : vector<16x256xf32> to vector<16x256xbf16>
    %c0_21 = arith.constant 0 : index
    %c0_22 = arith.constant 0 : index
    %47 = vector.load %arg8[%c0_21, %c0_22] : memref<16x256xbf16, #tpu.memory_space<vmem>>, vector<16x256xbf16>
    tpu.vector_store %arg8[%c0_21, %c0_22], %46 {strides = array<i32>} : memref<16x256xbf16, #tpu.memory_space<vmem>>, vector<16x256xbf16>,
    return
  }
  func.func @transform_0(%arg0: i32) -> (i32, i32, i32) {
    %c0_i32 = arith.constant 0 : i32
    %c0_i32_0 = arith.constant 0 : i32
    %c0_i32_1 = arith.constant 0 : i32
    return %arg0, %c0_i32, %c0_i32_0 : i32, i32, i32
  }
  func.func @transform_1(%arg0: i32) -> (i32, i32) {
    %c0_i32 = arith.constant 0 : i32
    %c0_i32_0 = arith.constant 0 : i32
    return %arg0, %c0_i32 : i32, i32
  }
  func.func @transform_2(%arg0: i32) -> (i32, i32) {
    %c0_i32 = arith.constant 0 : i32
    %c0_i32_0 = arith.constant 0 : i32
    %c0_i32_1 = arith.constant 0 : i32
    return %c0_i32, %c0_i32_0 : i32, i32
  }
  func.func @transform_3(%arg0: i32) -> (i32, i32) {
    %c0_i32 = arith.constant 0 : i32
    %c0_i32_0 = arith.constant 0 : i32
    %c0_i32_1 = arith.constant 0 : i32
    return %c0_i32, %c0_i32_0 : i32, i32
  }
  func.func @transform_4(%arg0: i32) -> (i32, i32) {
    %c0_i32 = arith.constant 0 : i32
    %c0_i32_0 = arith.constant 0 : i32
    %c0_i32_1 = arith.constant 0 : i32
    return %c0_i32, %c0_i32_0 : i32, i32
  }
  func.func @transform_5(%arg0: i32) -> (i32, i32) {
    %c0_i32 = arith.constant 0 : i32
    %c0_i32_0 = arith.constant 0 : i32
    %c0_i32_1 = arith.constant 0 : i32
    return %c0_i32, %c0_i32_0 : i32, i32
  }
  func.func @transform_6(%arg0: i32) -> (i32, i32) {
    %c0_i32 = arith.constant 0 : i32
    %c0_i32_0 = arith.constant 0 : i32
    %c0_i32_1 = arith.constant 0 : i32
    return %c0_i32, %c0_i32_0 : i32, i32
  }
  func.func @transform_7(%arg0: i32) -> (i32, i32) {
    %c0_i32 = arith.constant 0 : i32
    %c0_i32_0 = arith.constant 0 : i32
    return %arg0, %c0_i32 : i32, i32
  }
}

module attributes {stable_mosaic.version = 11 : i64} {
  func.func @_final_kernel(%arg0: i32, %arg1: memref<2x8x256xbf16, #tpu.memory_space<vmem>>, %arg2: memref<1x256xf32, #tpu.memory_space<vmem>>, %arg3: memref<256x256xbf16, #tpu.memory_space<vmem>>, %arg4: memref<1x256xf32, #tpu.memory_space<vmem>>, %arg5: memref<256x10xbf16, #tpu.memory_space<vmem>>, %arg6: memref<1x10xf32, #tpu.memory_space<vmem>>, %arg7: memref<2x10xf32, #tpu.memory_space<vmem>>) attributes {dimension_semantics = [#tpu.dimension_semantics<parallel>], iteration_bounds = array<i64: 1>, scalar_prefetch = 0 : i64, scratch_operands = 0 : i64, tpu.core_type = #tpu.core_type<tc>, window_params = [{transform_indices = @transform_0, window_bounds = array<i64: 2, 8, 256>}, {pipeline_mode = #tpu.pipeline_mode<synchronous>, transform_indices = @transform_1, window_bounds = array<i64: 1, 256>}, {pipeline_mode = #tpu.pipeline_mode<synchronous>, transform_indices = @transform_2, window_bounds = array<i64: 256, 256>}, {pipeline_mode = #tpu.pipeline_mode<synchronous>, transform_indices = @transform_3, window_bounds = array<i64: 1, 256>}, {pipeline_mode = #tpu.pipeline_mode<synchronous>, transform_indices = @transform_4, window_bounds = array<i64: 256, 10>}, {pipeline_mode = #tpu.pipeline_mode<synchronous>, transform_indices = @transform_5, window_bounds = array<i64: 1, 10>}, {transform_indices = @transform_6, window_bounds = array<i64: 2, 10>}]} {
    %c0 = arith.constant 0 : index
    %c0_0 = arith.constant 0 : index
    %c0_1 = arith.constant 0 : index
    %0 = vector.load %arg1[%c0, %c0_0, %c0_1] : memref<2x8x256xbf16, #tpu.memory_space<vmem>>, vector<2x8x256xbf16>
    %1 = arith.extf %0 : vector<2x8x256xbf16> to vector<2x8x256xf32>
    %c0_2 = arith.constant 0 : index
    %c0_3 = arith.constant 0 : index
    %2 = vector.load %arg2[%c0_2, %c0_3] : memref<1x256xf32, #tpu.memory_space<vmem>>, vector<1x256xf32>
    %3 = vector.shape_cast %2 : vector<1x256xf32> to vector<1x1x256xf32>
    %4 = vector.broadcast %3 : vector<1x1x256xf32> to vector<2x8x256xf32>
    %5 = arith.mulf %1, %4 : vector<2x8x256xf32>
    %cst = arith.constant dense<0.000000e+00> : vector<2x8xf32>
    %6 = vector.multi_reduction <add>, %5, %cst [2] : vector<2x8x256xf32> to vector<2x8xf32>
    %7 = vector.shape_cast %6 : vector<2x8xf32> to vector<2x8x1xf32>
    %cst_4 = arith.constant dense<0xFF800000> : vector<2x1xf32>
    %8 = vector.multi_reduction <maximumf>, %7, %cst_4 [1] : vector<2x8x1xf32> to vector<2x1xf32>
    %9 = vector.shape_cast %8 : vector<2x1xf32> to vector<2x1x1xf32>
    %10 = vector.broadcast %9 : vector<2x1x1xf32> to vector<2x8x1xf32>
    %11 = arith.subf %7, %10 : vector<2x8x1xf32>
    %12 = math.exp %11 : vector<2x8x1xf32>
    %cst_5 = arith.constant dense<0.000000e+00> : vector<2x1xf32>
    %13 = vector.multi_reduction <add>, %12, %cst_5 [1] : vector<2x8x1xf32> to vector<2x1xf32>
    %14 = vector.shape_cast %13 : vector<2x1xf32> to vector<2x1x1xf32>
    %15 = vector.broadcast %14 : vector<2x1x1xf32> to vector<2x8x1xf32>
    %16 = arith.divf %12, %15 : vector<2x8x1xf32>
    %17 = vector.broadcast %16 : vector<2x8x1xf32> to vector<2x8x256xf32>
    %18 = arith.mulf %17, %1 : vector<2x8x256xf32>
    %cst_6 = arith.constant dense<0.000000e+00> : vector<2x256xf32>
    %19 = vector.multi_reduction <add>, %18, %cst_6 [1] : vector<2x8x256xf32> to vector<2x256xf32>
    %20 = arith.truncf %19 : vector<2x256xf32> to vector<2x256xbf16>
    %c0_7 = arith.constant 0 : index
    %c0_8 = arith.constant 0 : index
    %21 = vector.load %arg3[%c0_7, %c0_8] : memref<256x256xbf16, #tpu.memory_space<vmem>>, vector<256x256xbf16>
    %cst_9 = arith.constant dense<0.000000e+00> : vector<2x256xf32>
    %22 = tpu.matmul %20, %21, %cst_9 {dimension_numbers = #tpu.dot_dimension_numbers<[1], [0], [0], [1], [0, 0, 1, 1], [], []>} : vector<2x256xbf16>, vector<256x256xbf16>, vector<2x256xf32> -> vector<2x256xf32>
    %c0_10 = arith.constant 0 : index
    %c0_11 = arith.constant 0 : index
    %23 = vector.load %arg4[%c0_10, %c0_11] : memref<1x256xf32, #tpu.memory_space<vmem>>, vector<1x256xf32>
    %24 = vector.broadcast %23 : vector<1x256xf32> to vector<2x256xf32>
    %25 = arith.addf %22, %24 : vector<2x256xf32>
    %cst_12 = arith.constant 0.000000e+00 : f32
    %26 = vector.broadcast %cst_12 : f32 to vector<2x256xf32>
    %27 = arith.maximumf %25, %26 : vector<2x256xf32>
    %28 = arith.truncf %27 : vector<2x256xf32> to vector<2x256xbf16>
    %c0_13 = arith.constant 0 : index
    %c0_14 = arith.constant 0 : index
    %29 = vector.load %arg5[%c0_13, %c0_14] : memref<256x10xbf16, #tpu.memory_space<vmem>>, vector<256x10xbf16>
    %cst_15 = arith.constant dense<0.000000e+00> : vector<2x10xf32>
    %30 = tpu.matmul %28, %29, %cst_15 {dimension_numbers = #tpu.dot_dimension_numbers<[1], [0], [0], [1], [0, 0, 1, 1], [], []>} : vector<2x256xbf16>, vector<256x10xbf16>, vector<2x10xf32> -> vector<2x10xf32>
    %c0_16 = arith.constant 0 : index
    %c0_17 = arith.constant 0 : index
    %31 = vector.load %arg6[%c0_16, %c0_17] : memref<1x10xf32, #tpu.memory_space<vmem>>, vector<1x10xf32>
    %32 = vector.broadcast %31 : vector<1x10xf32> to vector<2x10xf32>
    %33 = arith.addf %30, %32 : vector<2x10xf32>
    %c0_18 = arith.constant 0 : index
    %c0_19 = arith.constant 0 : index
    %34 = vector.load %arg7[%c0_18, %c0_19] : memref<2x10xf32, #tpu.memory_space<vmem>>, vector<2x10xf32>
    tpu.vector_store %arg7[%c0_18, %c0_19], %33 {strides = array<i32>} : memref<2x10xf32, #tpu.memory_space<vmem>>, vector<2x10xf32>,
    return
  }
  func.func @transform_0(%arg0: i32) -> (i32, i32, i32) {
    %c0_i32 = arith.constant 0 : i32
    %c0_i32_0 = arith.constant 0 : i32
    %c0_i32_1 = arith.constant 0 : i32
    return %arg0, %c0_i32, %c0_i32_0 : i32, i32, i32
  }
  func.func @transform_1(%arg0: i32) -> (i32, i32) {
    %c0_i32 = arith.constant 0 : i32
    %c0_i32_0 = arith.constant 0 : i32
    %c0_i32_1 = arith.constant 0 : i32
    return %c0_i32, %c0_i32_0 : i32, i32
  }
  func.func @transform_2(%arg0: i32) -> (i32, i32) {
    %c0_i32 = arith.constant 0 : i32
    %c0_i32_0 = arith.constant 0 : i32
    %c0_i32_1 = arith.constant 0 : i32
    return %c0_i32, %c0_i32_0 : i32, i32
  }
  func.func @transform_3(%arg0: i32) -> (i32, i32) {
    %c0_i32 = arith.constant 0 : i32
    %c0_i32_0 = arith.constant 0 : i32
    %c0_i32_1 = arith.constant 0 : i32
    return %c0_i32, %c0_i32_0 : i32, i32
  }
  func.func @transform_4(%arg0: i32) -> (i32, i32) {
    %c0_i32 = arith.constant 0 : i32
    %c0_i32_0 = arith.constant 0 : i32
    %c0_i32_1 = arith.constant 0 : i32
    return %c0_i32, %c0_i32_0 : i32, i32
  }
  func.func @transform_5(%arg0: i32) -> (i32, i32) {
    %c0_i32 = arith.constant 0 : i32
    %c0_i32_0 = arith.constant 0 : i32
    %c0_i32_1 = arith.constant 0 : i32
    return %c0_i32, %c0_i32_0 : i32, i32
  }
  func.func @transform_6(%arg0: i32) -> (i32, i32) {
    %c0_i32 = arith.constant 0 : i32
    %c0_i32_0 = arith.constant 0 : i32
    return %arg0, %c0_i32 : i32, i32
  }
}

</mosaic_0001>

<llo_original>
// kernel: neg.3
$region0: #{neg.3}
  #allocation0 [shape = 's32[1]{0}', space=sflag, size = 0x4, scoped, tag = 'scoped memory for neg.3']
  %s0 = inlined_call_operand.vmem [shape: f32[2,32,64], index: 0, kind: input, shape index: {}]
  %s1 = inlined_call_operand.vmem [shape: f32[2,32,64], index: 1, kind: output, shape index: {}]
  %v2 = vld [vmem:[%s0] sm:$0xff]
  %3 = xla_tuple %v2
  %4 = xla_tuple %3
  %v5 = vxor.u32 %v2, 2147483648
  %6 = xla_tuple %v5
  %7 = vst [vmem:[%s1] sm:$0xff] %v5
  %s8 = scalar_lea.vmem %s0, 32
  %v9 = vld [vmem:[%s8] sm:$0xff]
  %10 = xla_tuple %v9
  %11 = xla_tuple %10
  %v12 = vxor.u32 %v9, 2147483648
  %13 = xla_tuple %v12
  %s14 = scalar_lea.vmem %s1, 32
  %15 = vst [vmem:[%s14] sm:$0xff] %v12
  %s16 = scalar_lea.vmem %s0, 8
  %v17 = vld [vmem:[%s16] sm:$0xff]
  %18 = xla_tuple %v17
  %19 = xla_tuple %18
  %v20 = vxor.u32 %v17, 2147483648
  %21 = xla_tuple %v20
  %s22 = scalar_lea.vmem %s1, 8
  %23 = vst [vmem:[%s22] sm:$0xff] %v20
  %s24 = scalar_lea.vmem %s0, 40
  %v25 = vld [vmem:[%s24] sm:$0xff]
  %26 = xla_tuple %v25
  %27 = xla_tuple %26
  %v28 = vxor.u32 %v25, 2147483648
  %29 = xla_tuple %v28
  %s30 = scalar_lea.vmem %s1, 40
  %31 = vst [vmem:[%s30] sm:$0xff] %v28
  %s32 = scalar_lea.vmem %s0, 16
  %v33 = vld [vmem:[%s32] sm:$0xff]
  %34 = xla_tuple %v33
  %35 = xla_tuple %34
  %v36 = vxor.u32 %v33, 2147483648
  %37 = xla_tuple %v36
  %s38 = scalar_lea.vmem %s1, 16
  %39 = vst [vmem:[%s38] sm:$0xff] %v36
  %s40 = scalar_lea.vmem %s0, 48
  %v41 = vld [vmem:[%s40] sm:$0xff]
  %42 = xla_tuple %v41
  %43 = xla_tuple %42
  %v44 = vxor.u32 %v41, 2147483648
  %45 = xla_tuple %v44
  %s46 = scalar_lea.vmem %s1, 48
  %47 = vst [vmem:[%s46] sm:$0xff] %v44
  %s48 = scalar_lea.vmem %s0, 24
  %v49 = vld [vmem:[%s48] sm:$0xff]
  %50 = xla_tuple %v49
  %51 = xla_tuple %50
  %v52 = vxor.u32 %v49, 2147483648
  %53 = xla_tuple %v52
  %s54 = scalar_lea.vmem %s1, 24
  %55 = vst [vmem:[%s54] sm:$0xff] %v52
  %s56 = scalar_lea.vmem %s0, 56
  %v57 = vld [vmem:[%s56] sm:$0xff]
  %58 = xla_tuple %v57
  %59 = xla_tuple %58
  %v60 = vxor.u32 %v57, 2147483648
  %61 = xla_tuple %v60
  %s62 = scalar_lea.vmem %s1, 56
  %63 = vst [vmem:[%s62] sm:$0xff] %v60

// kernel: eventmamba_forward.8
$region0: #{eventmamba_forward.8}
  #allocation0 [shape = 'u32[]', space=smem, size = 0x4, offset = 0x4, fixed_abs, tag = 'smem constant byte address 0x4 - core index']
  #allocation1 [shape = 'u32[72,128]{1,0:T(1,128)}', space=vmem, size = 0x9000, scoped, tag = 'internal scratch']
  %s0 = inlined_call_operand.vmem [shape: f32[32,12], index: 0, kind: input, shape index: {}]
  %s1 = inlined_call_operand.vmem [shape: f32[12,128], index: 1, kind: input, shape index: {}]
  %s2 = inlined_call_operand.vmem [shape: f32[1,128], index: 2, kind: input, shape index: {}]
  %s3 = inlined_call_operand.vmem [shape: bf16[32,128], index: 3, kind: output, shape index: {}]
  %s4 = sld [smem:[#allocation0]]
  $region22: #{eventmamba_forward.8} parent=0
    _
  %s6 = ssub.s32 1, %s4
  %s7 = scalar_select 0, %s6, %s4
  // Predicated region
  $region2: #{eventmamba_forward.8} parent=0 // pred_check
    _
  $region3: #{eventmamba_forward.8} parent=0 // pred_check_branch
    %9 = sbr.rel (0) target = $region5
  $region4: #{eventmamba_forward.8} parent=0 // pred_region
    _
  $region5: #{eventmamba_forward.8} parent=0 // pred_fallthru
    _
  // Predicated region
  $region6: #{eventmamba_forward.8} parent=0 // pred_check
    _
  $region7: #{eventmamba_forward.8} parent=0 // pred_check_branch
    %11 = sbr.rel (0) target = $region9
  $region8: #{eventmamba_forward.8} parent=0 // pred_region
    _
  $region9: #{eventmamba_forward.8} parent=0 // pred_fallthru
    _
  // Predicated region
  $region10: #{eventmamba_forward.8} parent=0 // pred_check
    _
  $region11: #{eventmamba_forward.8} parent=0 // pred_check_branch
    %13 = sbr.rel (0) target = $region13
  $region12: #{eventmamba_forward.8} parent=0 // pred_region
    _
  $region13: #{eventmamba_forward.8} parent=0 // pred_fallthru
    _
  %v14 = vld [vmem:[%s0] sm:$0xff]
  %v15 = vld [vmem:[%s0 + $0x8] sm:$0xff]
  %v16 = vld [vmem:[%s0 + $0x10] sm:$0xff]
  %v17 = vld [vmem:[%s0 + $0x18] sm:$0xff]
  %v18 = vld [vmem:[%s1] sm:$0xff]
  %v19 = vld [vmem:[%s1 + $0x8] sm:$0xf]
  %v20 = vld [vmem:[%s2] sm:$0x1]
  %v22 = vperm.slane %v20, 0
  %vm24 = vcmask 97280
  %v26 = vsel %vm24, %v14, 0
  %v29 = vsel %vm24, %v15, 0
  %v32 = vsel %vm24, %v16, 0
  %v35 = vsel %vm24, %v17, 0
  %vm37 = vcmask 1043456
  %v39 = vsel %vm37, %v19, 0
  %41 = vmatpush.msra.mxu0 0.0
  %42 = vmatpush.msra.mxu0 0.0
  %43 = vmatpush.msra.mxu0 0.0
  %44 = vmatpush.msra.mxu0 0.0
  %45 = vmatpush.msra.mxu0 0.0
  %46 = vmatpush.msra.mxu0 0.0
  %47 = vmatpush.msra.mxu0 0.0
  %48 = vmatpush.msra.mxu0 0.0
  %49 = vmatpush.msra.mxu0 0.0
  %50 = vmatpush.msra.mxu0 0.0
  %51 = vmatpush.msra.mxu0 0.0
  %52 = vmatpush.msra.mxu0 0.0
  %53 = vmatpush.msra.mxu0 0.0
  %54 = vmatpush.msra.mxu0 0.0
  %55 = vmatpush.msra.mxu0 %v39
  %56 = vmatpush.msra.mxu0 %v18
  %57 = vmatmul.f32.gmra.mxu0 %v26
  %v58 = vpop.f32.mrf.mxu0
  %v59 = vadd.f32 %v22, %v58
  %60 = vmatmul.f32.gmra.mxu0 %v29
  %v61 = vpop.f32.mrf.mxu0
  %v62 = vadd.f32 %v22, %v61
  %63 = vmatmul.f32.gmra.mxu0 %v32
  %v64 = vpop.f32.mrf.mxu0
  %v65 = vadd.f32 %v22, %v64
  %66 = vmatmul.f32.gmra.mxu0 %v35
  %v67 = vpop.f32.mrf.mxu0
  %v68 = vadd.f32 %v22, %v67
  %69 = vdwg.mxu0
  %v70 = vmax.f32 %v59, 0.0
  %v71 = vmax.f32 %v62, 0.0
  %v72 = vmax.f32 %v65, 0.0
  %v73 = vmax.f32 %v68, 0.0
  %v74 = vpack.c.bf16 %v70, %v70
  %v75 = vpack.c.bf16 %v71, %v71
  %v76 = vpack.c.bf16 %v72, %v72
  %v77 = vpack.c.bf16 %v73, %v73
  %78 = vst [vmem:[%s3] sm:$0xf] %v74
  %79 = vst [vmem:[%s3 + $0x4] sm:$0xf] %v75
  %80 = vst [vmem:[%s3 + $0x8] sm:$0xf] %v76
  %81 = vst [vmem:[%s3 + $0xc] sm:$0xf] %v77
  // Predicated region
  $region14: #{eventmamba_forward.8} parent=0 // pred_check
    _
  $region15: #{eventmamba_forward.8} parent=0 // pred_check_branch
    %83 = sbr.rel (0) target = $region17
  $region16: #{eventmamba_forward.8} parent=0 // pred_region
    _
  $region17: #{eventmamba_forward.8} parent=0 // pred_fallthru
    _
  // Predicated region
  $region18: #{eventmamba_forward.8} parent=0 // pred_check
    _
  $region19: #{eventmamba_forward.8} parent=0 // pred_check_branch
    %85 = sbr.rel (0) target = $region21
  $region20: #{eventmamba_forward.8} parent=0 // pred_region
    _
  $region21: #{eventmamba_forward.8} parent=0 // pred_fallthru
    _

// kernel: neg.4
$region0: #{neg.4}
  #allocation0 [shape = 's32[1]{0}', space=sflag, size = 0x4, scoped, tag = 'scoped memory for neg.4']
  %s0 = inlined_call_operand.vmem [shape: f32[2,16,32], index: 0, kind: input, shape index: {}]
  %s1 = inlined_call_operand.vmem [shape: f32[2,16,32], index: 1, kind: output, shape index: {}]
  %v2 = vld [vmem:[%s0] sm:$0xff]
  %3 = xla_tuple %v2
  %4 = xla_tuple %3
  %v5 = vxor.u32 %v2, 2147483648
  %6 = xla_tuple %v5
  %7 = vst [vmem:[%s1] sm:$0xff] %v5
  %s8 = scalar_lea.vmem %s0, 16
  %v9 = vld [vmem:[%s8] sm:$0xff]
  %10 = xla_tuple %v9
  %11 = xla_tuple %10
  %v12 = vxor.u32 %v9, 2147483648
  %13 = xla_tuple %v12
  %s14 = scalar_lea.vmem %s1, 16
  %15 = vst [vmem:[%s14] sm:$0xff] %v12
  %s16 = scalar_lea.vmem %s0, 8
  %v17 = vld [vmem:[%s16] sm:$0xff]
  %18 = xla_tuple %v17
  %19 = xla_tuple %18
  %v20 = vxor.u32 %v17, 2147483648
  %21 = xla_tuple %v20
  %s22 = scalar_lea.vmem %s1, 8
  %23 = vst [vmem:[%s22] sm:$0xff] %v20
  %s24 = scalar_lea.vmem %s0, 24
  %v25 = vld [vmem:[%s24] sm:$0xff]
  %26 = xla_tuple %v25
  %27 = xla_tuple %26
  %v28 = vxor.u32 %v25, 2147483648
  %29 = xla_tuple %v28
  %s30 = scalar_lea.vmem %s1, 24
  %31 = vst [vmem:[%s30] sm:$0xff] %v28

// kernel: eventmamba_forward.10
$region0: #{eventmamba_forward.10}
  #allocation0 [shape = 'u32[]', space=smem, size = 0x4, offset = 0x4, fixed_abs, tag = 'smem constant byte address 0x4 - core index']
  #allocation1 [shape = 'u32[72,128]{1,0:T(1,128)}', space=vmem, size = 0x9000, scoped, tag = 'internal scratch']
  %s0 = inlined_call_operand.vmem [shape: bf16[64,64], index: 0, kind: input, shape index: {}]
  %s1 = inlined_call_operand.vmem [shape: bf16[64,32], index: 1, kind: input, shape index: {}]
  %s2 = inlined_call_operand.vmem [shape: f32[1,32], index: 2, kind: input, shape index: {}]
  %s3 = inlined_call_operand.vmem [shape: bf16[32,64], index: 3, kind: input, shape index: {}]
  %s4 = inlined_call_operand.vmem [shape: f32[1,64], index: 4, kind: input, shape index: {}]
  %s5 = inlined_call_operand.vmem [shape: bf16[64,64], index: 5, kind: output, shape index: {}]
  %s6 = sld [smem:[#allocation0]]
  $region30: #{eventmamba_forward.10} parent=0
    _
  %s8 = ssub.s32 1, %s6
  %s9 = scalar_select 0, %s8, %s6
  // Predicated region
  $region2: #{eventmamba_forward.10} parent=0 // pred_check
    _
  $region3: #{eventmamba_forward.10} parent=0 // pred_check_branch
    %11 = sbr.rel (0) target = $region5
  $region4: #{eventmamba_forward.10} parent=0 // pred_region
    _
  $region5: #{eventmamba_forward.10} parent=0 // pred_fallthru
    _
  // Predicated region
  $region6: #{eventmamba_forward.10} parent=0 // pred_check
    _
  $region7: #{eventmamba_forward.10} parent=0 // pred_check_branch
    %13 = sbr.rel (0) target = $region9
  $region8: #{eventmamba_forward.10} parent=0 // pred_region
    _
  $region9: #{eventmamba_forward.10} parent=0 // pred_fallthru
    _
  // Predicated region
  $region10: #{eventmamba_forward.10} parent=0 // pred_check
    _
  $region11: #{eventmamba_forward.10} parent=0 // pred_check_branch
    %15 = sbr.rel (0) target = $region13
  $region12: #{eventmamba_forward.10} parent=0 // pred_region
    _
  $region13: #{eventmamba_forward.10} parent=0 // pred_fallthru
    _
  // Predicated region
  $region14: #{eventmamba_forward.10} parent=0 // pred_check
    _
  $region15: #{eventmamba_forward.10} parent=0 // pred_check_branch
    %17 = sbr.rel (0) target = $region17
  $region16: #{eventmamba_forward.10} parent=0 // pred_region
    _
  $region17: #{eventmamba_forward.10} parent=0 // pred_fallthru
    _
  // Predicated region
  $region18: #{eventmamba_forward.10} parent=0 // pred_check
    _
  $region19: #{eventmamba_forward.10} parent=0 // pred_check_branch
    %19 = sbr.rel (0) target = $region21
  $region20: #{eventmamba_forward.10} parent=0 // pred_region
    _
  $region21: #{eventmamba_forward.10} parent=0 // pred_fallthru
    _
  %v21 = vld [vmem:[%s0] sm:$0xf]
  %v22 = vld [vmem:[%s0 + $0x4] sm:$0xf]
  %v23 = vld [vmem:[%s0 + $0x8] sm:$0xf]
  %v24 = vld [vmem:[%s0 + $0xc] sm:$0xf]
  %v25 = vld [vmem:[%s0 + $0x10] sm:$0xf]
  %v26 = vld [vmem:[%s0 + $0x14] sm:$0xf]
  %v27 = vld [vmem:[%s0 + $0x18] sm:$0xf]
  %v28 = vld [vmem:[%s0 + $0x1c] sm:$0xf]
  %v29 = vunpack.c.l.bf16 %v21
  %v30 = vunpack.c.l.bf16 %v22
  %v31 = vunpack.c.l.bf16 %v23
  %v32 = vunpack.c.l.bf16 %v24
  %v33 = vunpack.c.l.bf16 %v25
  %v34 = vunpack.c.l.bf16 %v26
  %v35 = vunpack.c.l.bf16 %v27
  %v36 = vunpack.c.l.bf16 %v28
  %v37 = vld [vmem:[%s1] sm:$0xf]
  %v38 = vld [vmem:[%s1 + $0x4] sm:$0xf]
  %v39 = vld [vmem:[%s1 + $0x8] sm:$0xf]
  %v40 = vld [vmem:[%s1 + $0xc] sm:$0xf]
  %v41 = vld [vmem:[%s1 + $0x10] sm:$0xf]
  %v42 = vld [vmem:[%s1 + $0x14] sm:$0xf]
  %v43 = vld [vmem:[%s1 + $0x18] sm:$0xf]
  %v44 = vld [vmem:[%s1 + $0x1c] sm:$0xf]
  %v45 = vld [vmem:[%s2] sm:$0x1]
  %v47 = vperm.slane %v45, 0
  %v57 = vunpack.c.l.b16 %v21
  %v58 = vunpack.c.l.b16 %v22
  %v59 = vunpack.c.l.b16 %v23
  %v60 = vunpack.c.l.b16 %v24
  %v61 = vunpack.c.l.b16 %v25
  %v62 = vunpack.c.l.b16 %v26
  %v63 = vunpack.c.l.b16 %v27
  %v64 = vunpack.c.l.b16 %v28
  %v65 = vpack.c.b16 %v58, %v57
  %v66 = vpack.c.b16 %v60, %v59
  %v67 = vpack.c.b16 %v62, %v61
  %v68 = vpack.c.b16 %v64, %v63
  %v77 = vunpack.c.l.b16 %v37
  %v78 = vunpack.c.l.b16 %v38
  %v79 = vunpack.c.l.b16 %v39
  %v80 = vunpack.c.l.b16 %v40
  %v81 = vunpack.c.l.b16 %v41
  %v82 = vunpack.c.l.b16 %v42
  %v83 = vunpack.c.l.b16 %v43
  %v84 = vunpack.c.l.b16 %v44
  %v85 = vpack.c.b16 %v78, %v77
  %v86 = vpack.c.b16 %v80, %v79
  %v87 = vpack.c.b16 %v82, %v81
  %v88 = vpack.c.b16 %v84, %v83
  %vm93 = vcmask 523264
  %v95 = vsel %vm93, %v65, 0
  %v98 = vsel %vm93, %v66, 0
  %v101 = vsel %vm93, %v67, 0
  %v104 = vsel %vm93, %v68, 0
  %106 = vmatpush.bf16.msra.mxu0 0
  %107 = vmatpush.bf16.msra.mxu0 0
  %108 = vmatpush.bf16.msra.mxu0 0
  %109 = vmatpush.bf16.msra.mxu0 0
  %110 = vmatpush.bf16.msra.mxu0 %v88
  %111 = vmatpush.bf16.msra.mxu0 %v87
  %112 = vmatpush.bf16.msra.mxu0 %v86
  %113 = vmatpush.bf16.msra.mxu0 %v85
  %114 = vmatmul.bf16.gmra.mxu0 %v95
  %v115 = vpop.f32.mrf.mxu0
  %v116 = vadd.f32 %v47, %v115
  %v117 = vpop.f32.mrf.mxu0
  %v118 = vadd.f32 %v47, %v117
  %119 = vmatmul.bf16.gmra.mxu0 %v98
  %v120 = vpop.f32.mrf.mxu0
  %v121 = vadd.f32 %v47, %v120
  %v122 = vpop.f32.mrf.mxu0
  %v123 = vadd.f32 %v47, %v122
  %124 = vmatmul.bf16.gmra.mxu0 %v101
  %v125 = vpop.f32.mrf.mxu0
  %v126 = vadd.f32 %v47, %v125
  %v127 = vpop.f32.mrf.mxu0
  %v128 = vadd.f32 %v47, %v127
  %129 = vmatmul.bf16.gmra.mxu0 %v104
  %v130 = vpop.f32.mrf.mxu0
  %v131 = vadd.f32 %v47, %v130
  %v132 = vpop.f32.mrf.mxu0
  %v133 = vadd.f32 %v47, %v132
  %134 = vdwg.mxu0
  %v135 = vmax.f32 %v116, 0.0
  %v136 = vmax.f32 %v118, 0.0
  %v137 = vmax.f32 %v121, 0.0
  %v138 = vmax.f32 %v123, 0.0
  %v139 = vmax.f32 %v126, 0.0
  %v140 = vmax.f32 %v128, 0.0
  %v141 = vmax.f32 %v131, 0.0
  %v142 = vmax.f32 %v133, 0.0
  %v143 = vpack.c.bf16 %v136, %v135
  %v144 = vpack.c.bf16 %v138, %v137
  %v145 = vpack.c.bf16 %v140, %v139
  %v146 = vpack.c.bf16 %v142, %v141
  %v147 = vld [vmem:[%s3] sm:$0xf]
  %v148 = vld [vmem:[%s3 + $0x4] sm:$0xf]
  %v149 = vld [vmem:[%s3 + $0x8] sm:$0xf]
  %v150 = vld [vmem:[%s3 + $0xc] sm:$0xf]
  %v151 = vld [vmem:[%s4] sm:$0x1]
  %v153 = vperm.slane %v151, 0
  %v159 = vunpack.c.l.b16 %v147
  %v160 = vunpack.c.l.b16 %v148
  %v161 = vunpack.c.l.b16 %v149
  %v162 = vunpack.c.l.b16 %v150
  %v163 = vpack.c.b16 %v160, %v159
  %v164 = vpack.c.b16 %v162, %v161
  %vm167 = vcmask 261120
  %v169 = vsel %vm167, %v143, 0
  %v172 = vsel %vm167, %v144, 0
  %v175 = vsel %vm167, %v145, 0
  %v178 = vsel %vm167, %v146, 0
  %180 = vmatpush.bf16.msra.mxu0 0
  %181 = vmatpush.bf16.msra.mxu0 0
  %182 = vmatpush.bf16.msra.mxu0 0
  %183 = vmatpush.bf16.msra.mxu0 0
  %184 = vmatpush.bf16.msra.mxu0 0
  %185 = vmatpush.bf16.msra.mxu0 0
  %186 = vmatpush.bf16.msra.mxu0 %v164
  %187 = vmatpush.bf16.msra.mxu0 %v163
  %188 = vmatmul.bf16.gmra.mxu0 %v169
  %v189 = vpop.f32.mrf.mxu0
  %v190 = vadd.f32 %v153, %v189
  %v191 = vpop.f32.mrf.mxu0
  %v192 = vadd.f32 %v153, %v191
  %193 = vmatmul.bf16.gmra.mxu0 %v172
  %v194 = vpop.f32.mrf.mxu0
  %v195 = vadd.f32 %v153, %v194
  %v196 = vpop.f32.mrf.mxu0
  %v197 = vadd.f32 %v153, %v196
  %198 = vmatmul.bf16.gmra.mxu0 %v175
  %v199 = vpop.f32.mrf.mxu0
  %v200 = vadd.f32 %v153, %v199
  %v201 = vpop.f32.mrf.mxu0
  %v202 = vadd.f32 %v153, %v201
  %203 = vmatmul.bf16.gmra.mxu0 %v178
  %v204 = vpop.f32.mrf.mxu0
  %v205 = vadd.f32 %v153, %v204
  %v206 = vpop.f32.mrf.mxu0
  %v207 = vadd.f32 %v153, %v206
  %208 = vdwg.mxu0
  %v209 = vadd.f32 %v190, %v29
  %v210 = vadd.f32 %v192, %v30
  %v211 = vadd.f32 %v195, %v31
  %v212 = vadd.f32 %v197, %v32
  %v213 = vadd.f32 %v200, %v33
  %v214 = vadd.f32 %v202, %v34
  %v215 = vadd.f32 %v205, %v35
  %v216 = vadd.f32 %v207, %v36
  %v217 = vmax.f32 %v209, 0.0
  %v218 = vmax.f32 %v210, 0.0
  %v219 = vmax.f32 %v211, 0.0
  %v220 = vmax.f32 %v212, 0.0
  %v221 = vmax.f32 %v213, 0.0
  %v222 = vmax.f32 %v214, 0.0
  %v223 = vmax.f32 %v215, 0.0
  %v224 = vmax.f32 %v216, 0.0
  %v225 = vpack.c.bf16 %v217, %v217
  %v226 = vpack.c.bf16 %v218, %v218
  %v227 = vpack.c.bf16 %v219, %v219
  %v228 = vpack.c.bf16 %v220, %v220
  %v229 = vpack.c.bf16 %v221, %v221
  %v230 = vpack.c.bf16 %v222, %v222
  %v231 = vpack.c.bf16 %v223, %v223
  %v232 = vpack.c.bf16 %v224, %v224
  %vm233 = vcmask 519168
  %234 = vst.msk [vmem:[%s5] sm:$0xf] %vm233, %v225
  %235 = vst.msk [vmem:[%s5 + $0x4] sm:$0xf] %vm233, %v226
  %236 = vst.msk [vmem:[%s5 + $0x8] sm:$0xf] %vm233, %v227
  %237 = vst.msk [vmem:[%s5 + $0xc] sm:$0xf] %vm233, %v228
  %238 = vst.msk [vmem:[%s5 + $0x10] sm:$0xf] %vm233, %v229
  %239 = vst.msk [vmem:[%s5 + $0x14] sm:$0xf] %vm233, %v230
  %240 = vst.msk [vmem:[%s5 + $0x18] sm:$0xf] %vm233, %v231
  %241 = vst.msk [vmem:[%s5 + $0x1c] sm:$0xf] %vm233, %v232
  // Predicated region
  $region22: #{eventmamba_forward.10} parent=0 // pred_check
    _
  $region23: #{eventmamba_forward.10} parent=0 // pred_check_branch
    %243 = sbr.rel (0) target = $region25
  $region24: #{eventmamba_forward.10} parent=0 // pred_region
    _
  $region25: #{eventmamba_forward.10} parent=0 // pred_fallthru
    _
  // Predicated region
  $region26: #{eventmamba_forward.10} parent=0 // pred_check
    _
  $region27: #{eventmamba_forward.10} parent=0 // pred_check_branch
    %245 = sbr.rel (0) target = $region29
  $region28: #{eventmamba_forward.10} parent=0 // pred_region
    _
  $region29: #{eventmamba_forward.10} parent=0 // pred_fallthru
    _

// kernel: eventmamba_forward.9
$region0: #{eventmamba_forward.9}
  #allocation0 [shape = 'u32[]', space=smem, size = 0x4, offset = 0x4, fixed_abs, tag = 'smem constant byte address 0x4 - core index']
  #allocation1 [shape = 'u32[72,128]{1,0:T(1,128)}', space=vmem, size = 0x9000, scoped, tag = 'internal scratch']
  %s0 = inlined_call_operand.vmem [shape: bf16[64,8,32], index: 0, kind: input, shape index: {}]
  %s1 = inlined_call_operand.vmem [shape: bf16[64,32], index: 1, kind: input, shape index: {}]
  %s2 = inlined_call_operand.vmem [shape: bf16[64,32], index: 2, kind: input, shape index: {}]
  %s3 = inlined_call_operand.vmem [shape: f32[1,32], index: 3, kind: input, shape index: {}]
  %s4 = inlined_call_operand.vmem [shape: bf16[32,64], index: 4, kind: input, shape index: {}]
  %s5 = inlined_call_operand.vmem [shape: f32[1,64], index: 5, kind: input, shape index: {}]
  %s6 = inlined_call_operand.vmem [shape: f32[1,64], index: 6, kind: input, shape index: {}]
  %s7 = inlined_call_operand.vmem [shape: bf16[64,64], index: 7, kind: output, shape index: {}]
  %s8 = sld [smem:[#allocation0]]
  $region38: #{eventmamba_forward.9} parent=0
    _
  %s10 = ssub.s32 1, %s8
  %s11 = scalar_select 0, %s10, %s8
  // Predicated region
  $region2: #{eventmamba_forward.9} parent=0 // pred_check
    _
  $region3: #{eventmamba_forward.9} parent=0 // pred_check_branch
    %13 = sbr.rel (0) target = $region5
  $region4: #{eventmamba_forward.9} parent=0 // pred_region
    _
  $region5: #{eventmamba_forward.9} parent=0 // pred_fallthru
    _
  // Predicated region
  $region6: #{eventmamba_forward.9} parent=0 // pred_check
    _
  $region7: #{eventmamba_forward.9} parent=0 // pred_check_branch
    %15 = sbr.rel (0) target = $region9
  $region8: #{eventmamba_forward.9} parent=0 // pred_region
    _
  $region9: #{eventmamba_forward.9} parent=0 // pred_fallthru
    _
  // Predicated region
  $region10: #{eventmamba_forward.9} parent=0 // pred_check
    _
  $region11: #{eventmamba_forward.9} parent=0 // pred_check_branch
    %17 = sbr.rel (0) target = $region13
  $region12: #{eventmamba_forward.9} parent=0 // pred_region
    _
  $region13: #{eventmamba_forward.9} parent=0 // pred_fallthru
    _
  // Predicated region
  $region14: #{eventmamba_forward.9} parent=0 // pred_check
    _
  $region15: #{eventmamba_forward.9} parent=0 // pred_check_branch
    %19 = sbr.rel (0) target = $region17
  $region16: #{eventmamba_forward.9} parent=0 // pred_region
    _
  $region17: #{eventmamba_forward.9} parent=0 // pred_fallthru
    _
  // Predicated region
  $region18: #{eventmamba_forward.9} parent=0 // pred_check
    _
  $region19: #{eventmamba_forward.9} parent=0 // pred_check_branch
    %21 = sbr.rel (0) target = $region21
  $region20: #{eventmamba_forward.9} parent=0 // pred_region
    _
  $region21: #{eventmamba_forward.9} parent=0 // pred_fallthru
    _
  // Predicated region
  $region22: #{eventmamba_forward.9} parent=0 // pred_check
    _
  $region23: #{eventmamba_forward.9} parent=0 // pred_check_branch
    %23 = sbr.rel (0) target = $region25
  $region24: #{eventmamba_forward.9} parent=0 // pred_region
    _
  $region25: #{eventmamba_forward.9} parent=0 // pred_fallthru
    _
  // Predicated region
  $region26: #{eventmamba_forward.9} parent=0 // pred_check
    _
  $region27: #{eventmamba_forward.9} parent=0 // pred_check_branch
    %25 = sbr.rel (0) target = $region29
  $region28: #{eventmamba_forward.9} parent=0 // pred_region
    _
  $region29: #{eventmamba_forward.9} parent=0 // pred_fallthru
    _
  %v27 = vld [vmem:[%s0] sm:$0xf]
  %v28 = vld [vmem:[%s0 + $0x4] sm:$0xf]
  %v29 = vld [vmem:[%s0 + $0x8] sm:$0xf]
  %v30 = vld [vmem:[%s0 + $0xc] sm:$0xf]
  %v31 = vld [vmem:[%s0 + $0x10] sm:$0xf]
  %v32 = vld [vmem:[%s0 + $0x14] sm:$0xf]
  %v33 = vld [vmem:[%s0 + $0x18] sm:$0xf]
  %v34 = vld [vmem:[%s0 + $0x1c] sm:$0xf]
  %v35 = vld [vmem:[%s0 + $0x20] sm:$0xf]
  %v36 = vld [vmem:[%s0 + $0x24] sm:$0xf]
  %v37 = vld [vmem:[%s0 + $0x28] sm:$0xf]
  %v38 = vld [vmem:[%s0 + $0x2c] sm:$0xf]
  %v39 = vld [vmem:[%s0 + $0x30] sm:$0xf]
  %v40 = vld [vmem:[%s0 + $0x34] sm:$0xf]
  %v41 = vld [vmem:[%s0 + $0x38] sm:$0xf]
  %v42 = vld [vmem:[%s0 + $0x3c] sm:$0xf]
  %v43 = vld [vmem:[%s0 + $0x40] sm:$0xf]
  %v44 = vld [vmem:[%s0 + $0x44] sm:$0xf]
  %v45 = vld [vmem:[%s0 + $0x48] sm:$0xf]
  %v46 = vld [vmem:[%s0 + $0x4c] sm:$0xf]
  %v47 = vld [vmem:[%s0 + $0x50] sm:$0xf]
  %v48 = vld [vmem:[%s0 + $0x54] sm:$0xf]
  %v49 = vld [vmem:[%s0 + $0x58] sm:$0xf]
  %v50 = vld [vmem:[%s0 + $0x5c] sm:$0xf]
  %v51 = vld [vmem:[%s0 + $0x60] sm:$0xf]
  %v52 = vld [vmem:[%s0 + $0x64] sm:$0xf]
  %v53 = vld [vmem:[%s0 + $0x68] sm:$0xf]
  %v54 = vld [vmem:[%s0 + $0x6c] sm:$0xf]
  %v55 = vld [vmem:[%s0 + $0x70] sm:$0xf]
  %v56 = vld [vmem:[%s0 + $0x74] sm:$0xf]
  %v57 = vld [vmem:[%s0 + $0x78] sm:$0xf]
  %v58 = vld [vmem:[%s0 + $0x7c] sm:$0xf]
  %v59 = vld [vmem:[%s0 + $0x80] sm:$0xf]
  %v60 = vld [vmem:[%s0 + $0x84] sm:$0xf]
  %v61 = vld [vmem:[%s0 + $0x88] sm:$0xf]
  %v62 = vld [vmem:[%s0 + $0x8c] sm:$0xf]
  %v63 = vld [vmem:[%s0 + $0x90] sm:$0xf]
  %v64 = vld [vmem:[%s0 + $0x94] sm:$0xf]
  %v65 = vld [vmem:[%s0 + $0x98] sm:$0xf]
  %v66 = vld [vmem:[%s0 + $0x9c] sm:$0xf]
  %v67 = vld [vmem:[%s0 + $0xa0] sm:$0xf]
  %v68 = vld [vmem:[%s0 + $0xa4] sm:$0xf]
  %v69 = vld [vmem:[%s0 + $0xa8] sm:$0xf]
  %v70 = vld [vmem:[%s0 + $0xac] sm:$0xf]
  %v71 = vld [vmem:[%s0 + $0xb0] sm:$0xf]
  %v72 = vld [vmem:[%s0 + $0xb4] sm:$0xf]
  %v73 = vld [vmem:[%s0 + $0xb8] sm:$0xf]
  %v74 = vld [vmem:[%s0 + $0xbc] sm:$0xf]
  %v75 = vld [vmem:[%s0 + $0xc0] sm:$0xf]
  %v76 = vld [vmem:[%s0 + $0xc4] sm:$0xf]
  %v77 = vld [vmem:[%s0 + $0xc8] sm:$0xf]
  %v78 = vld [vmem:[%s0 + $0xcc] sm:$0xf]
  %v79 = vld [vmem:[%s0 + $0xd0] sm:$0xf]
  %v80 = vld [vmem:[%s0 + $0xd4] sm:$0xf]
  %v81 = vld [vmem:[%s0 + $0xd8] sm:$0xf]
  %v82 = vld [vmem:[%s0 + $0xdc] sm:$0xf]
  %v83 = vld [vmem:[%s0 + $0xe0] sm:$0xf]
  %v84 = vld [vmem:[%s0 + $0xe4] sm:$0xf]
  %v85 = vld [vmem:[%s0 + $0xe8] sm:$0xf]
  %v86 = vld [vmem:[%s0 + $0xec] sm:$0xf]
  %v87 = vld [vmem:[%s0 + $0xf0] sm:$0xf]
  %v88 = vld [vmem:[%s0 + $0xf4] sm:$0xf]
  %v89 = vld [vmem:[%s0 + $0xf8] sm:$0xf]
  %v90 = vld [vmem:[%s0 + $0xfc] sm:$0xf]
  %v91 = vunpack.c.l.bf16 %v27
  %v92 = vunpack.c.l.bf16 %v28
  %v93 = vunpack.c.l.bf16 %v29
  %v94 = vunpack.c.l.bf16 %v30
  %v95 = vunpack.c.l.bf16 %v31
  %v96 = vunpack.c.l.bf16 %v32
  %v97 = vunpack.c.l.bf16 %v33
  %v98 = vunpack.c.l.bf16 %v34
  %v99 = vunpack.c.l.bf16 %v35
  %v100 = vunpack.c.l.bf16 %v36
  %v101 = vunpack.c.l.bf16 %v37
  %v102 = vunpack.c.l.bf16 %v38
  %v103 = vunpack.c.l.bf16 %v39
  %v104 = vunpack.c.l.bf16 %v40
  %v105 = vunpack.c.l.bf16 %v41
  %v106 = vunpack.c.l.bf16 %v42
  %v107 = vunpack.c.l.bf16 %v43
  %v108 = vunpack.c.l.bf16 %v44
  %v109 = vunpack.c.l.bf16 %v45
  %v110 = vunpack.c.l.bf16 %v46
  %v111 = vunpack.c.l.bf16 %v47
  %v112 = vunpack.c.l.bf16 %v48
  %v113 = vunpack.c.l.bf16 %v49
  %v114 = vunpack.c.l.bf16 %v50
  %v115 = vunpack.c.l.bf16 %v51
  %v116 = vunpack.c.l.bf16 %v52
  %v117 = vunpack.c.l.bf16 %v53
  %v118 = vunpack.c.l.bf16 %v54
  %v119 = vunpack.c.l.bf16 %v55
  %v120 = vunpack.c.l.bf16 %v56
  %v121 = vunpack.c.l.bf16 %v57
  %v122 = vunpack.c.l.bf16 %v58
  %v123 = vunpack.c.l.bf16 %v59
  %v124 = vunpack.c.l.bf16 %v60
  %v125 = vunpack.c.l.bf16 %v61
  %v126 = vunpack.c.l.bf16 %v62
  %v127 = vunpack.c.l.bf16 %v63
  %v128 = vunpack.c.l.bf16 %v64
  %v129 = vunpack.c.l.bf16 %v65
  %v130 = vunpack.c.l.bf16 %v66
  %v131 = vunpack.c.l.bf16 %v67
  %v132 = vunpack.c.l.bf16 %v68
  %v133 = vunpack.c.l.bf16 %v69
  %v134 = vunpack.c.l.bf16 %v70
  %v135 = vunpack.c.l.bf16 %v71
  %v136 = vunpack.c.l.bf16 %v72
  %v137 = vunpack.c.l.bf16 %v73
  %v138 = vunpack.c.l.bf16 %v74
  %v139 = vunpack.c.l.bf16 %v75
  %v140 = vunpack.c.l.bf16 %v76
  %v141 = vunpack.c.l.bf16 %v77
  %v142 = vunpack.c.l.bf16 %v78
  %v143 = vunpack.c.l.bf16 %v79
  %v144 = vunpack.c.l.bf16 %v80
  %v145 = vunpack.c.l.bf16 %v81
  %v146 = vunpack.c.l.bf16 %v82
  %v147 = vunpack.c.l.bf16 %v83
  %v148 = vunpack.c.l.bf16 %v84
  %v149 = vunpack.c.l.bf16 %v85
  %v150 = vunpack.c.l.bf16 %v86
  %v151 = vunpack.c.l.bf16 %v87
  %v152 = vunpack.c.l.bf16 %v88
  %v153 = vunpack.c.l.bf16 %v89
  %v154 = vunpack.c.l.bf16 %v90
  %v155 = vld [vmem:[%s1] sm:$0xf]
  %v156 = vld [vmem:[%s1 + $0x4] sm:$0xf]
  %v157 = vld [vmem:[%s1 + $0x8] sm:$0xf]
  %v158 = vld [vmem:[%s1 + $0xc] sm:$0xf]
  %v159 = vld [vmem:[%s1 + $0x10] sm:$0xf]
  %v160 = vld [vmem:[%s1 + $0x14] sm:$0xf]
  %v161 = vld [vmem:[%s1 + $0x18] sm:$0xf]
  %v162 = vld [vmem:[%s1 + $0x1c] sm:$0xf]
  %v163 = vunpack.c.l.bf16 %v155
  %v164 = vunpack.c.l.bf16 %v156
  %v165 = vunpack.c.l.bf16 %v157
  %v166 = vunpack.c.l.bf16 %v158
  %v167 = vunpack.c.l.bf16 %v159
  %v168 = vunpack.c.l.bf16 %v160
  %v169 = vunpack.c.l.bf16 %v161
  %v170 = vunpack.c.l.bf16 %v162
  %v179 = vrot.slane %v163, 1
  %v180 = vrot.slane %v163, 2
  %v181 = vrot.slane %v163, 3
  %v182 = vrot.slane %v163, 4
  %v183 = vrot.slane %v163, 5
  %v184 = vrot.slane %v163, 6
  %v185 = vrot.slane %v163, 7
  %v186 = vrot.slane %v164, 1
  %v187 = vrot.slane %v164, 2
  %v188 = vrot.slane %v164, 3
  %v189 = vrot.slane %v164, 4
  %v190 = vrot.slane %v164, 5
  %v191 = vrot.slane %v164, 6
  %v192 = vrot.slane %v164, 7
  %v193 = vrot.slane %v165, 1
  %v194 = vrot.slane %v165, 2
  %v195 = vrot.slane %v165, 3
  %v196 = vrot.slane %v165, 4
  %v197 = vrot.slane %v165, 5
  %v198 = vrot.slane %v165, 6
  %v199 = vrot.slane %v165, 7
  %v200 = vrot.slane %v166, 1
  %v201 = vrot.slane %v166, 2
  %v202 = vrot.slane %v166, 3
  %v203 = vrot.slane %v166, 4
  %v204 = vrot.slane %v166, 5
  %v205 = vrot.slane %v166, 6
  %v206 = vrot.slane %v166, 7
  %v207 = vrot.slane %v167, 1
  %v208 = vrot.slane %v167, 2
  %v209 = vrot.slane %v167, 3
  %v210 = vrot.slane %v167, 4
  %v211 = vrot.slane %v167, 5
  %v212 = vrot.slane %v167, 6
  %v213 = vrot.slane %v167, 7
  %v214 = vrot.slane %v168, 1
  %v215 = vrot.slane %v168, 2
  %v216 = vrot.slane %v168, 3
  %v217 = vrot.slane %v168, 4
  %v218 = vrot.slane %v168, 5
  %v219 = vrot.slane %v168, 6
  %v220 = vrot.slane %v168, 7
  %v221 = vrot.slane %v169, 1
  %v222 = vrot.slane %v169, 2
  %v223 = vrot.slane %v169, 3
  %v224 = vrot.slane %v169, 4
  %v225 = vrot.slane %v169, 5
  %v226 = vrot.slane %v169, 6
  %v227 = vrot.slane %v169, 7
  %v228 = vrot.slane %v170, 1
  %v229 = vrot.slane %v170, 2
  %v230 = vrot.slane %v170, 3
  %v231 = vrot.slane %v170, 4
  %v232 = vrot.slane %v170, 5
  %v233 = vrot.slane %v170, 6
  %v234 = vrot.slane %v170, 7
  %v235 = vperm.slane %v163, 0
  %v236 = vperm.slane %v179, 0
  %v237 = vperm.slane %v180, 0
  %v238 = vperm.slane %v181, 0
  %v239 = vperm.slane %v182, 0
  %v240 = vperm.slane %v183, 0
  %v241 = vperm.slane %v184, 0
  %v242 = vperm.slane %v185, 0
  %v243 = vperm.slane %v164, 0
  %v244 = vperm.slane %v186, 0
  %v245 = vperm.slane %v187, 0
  %v246 = vperm.slane %v188, 0
  %v247 = vperm.slane %v189, 0
  %v248 = vperm.slane %v190, 0
  %v249 = vperm.slane %v191, 0
  %v250 = vperm.slane %v192, 0
  %v251 = vperm.slane %v165, 0
  %v252 = vperm.slane %v193, 0
  %v253 = vperm.slane %v194, 0
  %v254 = vperm.slane %v195, 0
  %v255 = vperm.slane %v196, 0
  %v256 = vperm.slane %v197, 0
  %v257 = vperm.slane %v198, 0
  %v258 = vperm.slane %v199, 0
  %v259 = vperm.slane %v166, 0
  %v260 = vperm.slane %v200, 0
  %v261 = vperm.slane %v201, 0
  %v262 = vperm.slane %v202, 0
  %v263 = vperm.slane %v203, 0
  %v264 = vperm.slane %v204, 0
  %v265 = vperm.slane %v205, 0
  %v266 = vperm.slane %v206, 0
  %v267 = vperm.slane %v167, 0
  %v268 = vperm.slane %v207, 0
  %v269 = vperm.slane %v208, 0
  %v270 = vperm.slane %v209, 0
  %v271 = vperm.slane %v210, 0
  %v272 = vperm.slane %v211, 0
  %v273 = vperm.slane %v212, 0
  %v274 = vperm.slane %v213, 0
  %v275 = vperm.slane %v168, 0
  %v276 = vperm.slane %v214, 0
  %v277 = vperm.slane %v215, 0
  %v278 = vperm.slane %v216, 0
  %v279 = vperm.slane %v217, 0
  %v280 = vperm.slane %v218, 0
  %v281 = vperm.slane %v219, 0
  %v282 = vperm.slane %v220, 0
  %v283 = vperm.slane %v169, 0
  %v284 = vperm.slane %v221, 0
  %v285 = vperm.slane %v222, 0
  %v286 = vperm.slane %v223, 0
  %v287 = vperm.slane %v224, 0
  %v288 = vperm.slane %v225, 0
  %v289 = vperm.slane %v226, 0
  %v290 = vperm.slane %v227, 0
  %v291 = vperm.slane %v170, 0
  %v292 = vperm.slane %v228, 0
  %v293 = vperm.slane %v229, 0
  %v294 = vperm.slane %v230, 0
  %v295 = vperm.slane %v231, 0
  %v296 = vperm.slane %v232, 0
  %v297 = vperm.slane %v233, 0
  %v298 = vperm.slane %v234, 0
  %299 = vrot.lane.b32.xlu0 %v235, 32
  %v300 = vpop.permute.xlu0 %299
  %301 = vrot.lane.b32.xlu0 %v236, 32
  %v302 = vpop.permute.xlu0 %301
  %303 = vrot.lane.b32.xlu0 %v237, 32
  %v304 = vpop.permute.xlu0 %303
  %305 = vrot.lane.b32.xlu0 %v238, 32
  %v306 = vpop.permute.xlu0 %305
  %307 = vrot.lane.b32.xlu0 %v239, 32
  %v308 = vpop.permute.xlu0 %307
  %309 = vrot.lane.b32.xlu0 %v240, 32
  %v310 = vpop.permute.xlu0 %309
  %311 = vrot.lane.b32.xlu0 %v241, 32
  %v312 = vpop.permute.xlu0 %311
  %313 = vrot.lane.b32.xlu0 %v242, 32
  %v314 = vpop.permute.xlu0 %313
  %315 = vrot.lane.b32.xlu0 %v243, 32
  %v316 = vpop.permute.xlu0 %315
  %317 = vrot.lane.b32.xlu0 %v244, 32
  %v318 = vpop.permute.xlu0 %317
  %319 = vrot.lane.b32.xlu0 %v245, 32
  %v320 = vpop.permute.xlu0 %319
  %321 = vrot.lane.b32.xlu0 %v246, 32
  %v322 = vpop.permute.xlu0 %321
  %323 = vrot.lane.b32.xlu0 %v247, 32
  %v324 = vpop.permute.xlu0 %323
  %325 = vrot.lane.b32.xlu0 %v248, 32
  %v326 = vpop.permute.xlu0 %325
  %327 = vrot.lane.b32.xlu0 %v249, 32
  %v328 = vpop.permute.xlu0 %327
  %329 = vrot.lane.b32.xlu0 %v250, 32
  %v330 = vpop.permute.xlu0 %329
  %331 = vrot.lane.b32.xlu0 %v251, 32
  %v332 = vpop.permute.xlu0 %331
  %333 = vrot.lane.b32.xlu0 %v252, 32
  %v334 = vpop.permute.xlu0 %333
  %335 = vrot.lane.b32.xlu0 %v253, 32
  %v336 = vpop.permute.xlu0 %335
  %337 = vrot.lane.b32.xlu0 %v254, 32
  %v338 = vpop.permute.xlu0 %337
  %339 = vrot.lane.b32.xlu0 %v255, 32
  %v340 = vpop.permute.xlu0 %339
  %341 = vrot.lane.b32.xlu0 %v256, 32
  %v342 = vpop.permute.xlu0 %341
  %343 = vrot.lane.b32.xlu0 %v257, 32
  %v344 = vpop.permute.xlu0 %343
  %345 = vrot.lane.b32.xlu0 %v258, 32
  %v346 = vpop.permute.xlu0 %345
  %347 = vrot.lane.b32.xlu0 %v259, 32
  %v348 = vpop.permute.xlu0 %347
  %349 = vrot.lane.b32.xlu0 %v260, 32
  %v350 = vpop.permute.xlu0 %349
  %351 = vrot.lane.b32.xlu0 %v261, 32
  %v352 = vpop.permute.xlu0 %351
  %353 = vrot.lane.b32.xlu0 %v262, 32
  %v354 = vpop.permute.xlu0 %353
  %355 = vrot.lane.b32.xlu0 %v263, 32
  %v356 = vpop.permute.xlu0 %355
  %357 = vrot.lane.b32.xlu0 %v264, 32
  %v358 = vpop.permute.xlu0 %357
  %359 = vrot.lane.b32.xlu0 %v265, 32
  %v360 = vpop.permute.xlu0 %359
  %361 = vrot.lane.b32.xlu0 %v266, 32
  %v362 = vpop.permute.xlu0 %361
  %363 = vrot.lane.b32.xlu0 %v267, 32
  %v364 = vpop.permute.xlu0 %363
  %365 = vrot.lane.b32.xlu0 %v268, 32
  %v366 = vpop.permute.xlu0 %365
  %367 = vrot.lane.b32.xlu0 %v269, 32
  %v368 = vpop.permute.xlu0 %367
  %369 = vrot.lane.b32.xlu0 %v270, 32
  %v370 = vpop.permute.xlu0 %369
  %371 = vrot.lane.b32.xlu0 %v271, 32
  %v372 = vpop.permute.xlu0 %371
  %373 = vrot.lane.b32.xlu0 %v272, 32
  %v374 = vpop.permute.xlu0 %373
  %375 = vrot.lane.b32.xlu0 %v273, 32
  %v376 = vpop.permute.xlu0 %375
  %377 = vrot.lane.b32.xlu0 %v274, 32
  %v378 = vpop.permute.xlu0 %377
  %379 = vrot.lane.b32.xlu0 %v275, 32
  %v380 = vpop.permute.xlu0 %379
  %381 = vrot.lane.b32.xlu0 %v276, 32
  %v382 = vpop.permute.xlu0 %381
  %383 = vrot.lane.b32.xlu0 %v277, 32
  %v384 = vpop.permute.xlu0 %383
  %385 = vrot.lane.b32.xlu0 %v278, 32
  %v386 = vpop.permute.xlu0 %385
  %387 = vrot.lane.b32.xlu0 %v279, 32
  %v388 = vpop.permute.xlu0 %387
  %389 = vrot.lane.b32.xlu0 %v280, 32
  %v390 = vpop.permute.xlu0 %389
  %391 = vrot.lane.b32.xlu0 %v281, 32
  %v392 = vpop.permute.xlu0 %391
  %393 = vrot.lane.b32.xlu0 %v282, 32
  %v394 = vpop.permute.xlu0 %393
  %395 = vrot.lane.b32.xlu0 %v283, 32
  %v396 = vpop.permute.xlu0 %395
  %397 = vrot.lane.b32.xlu0 %v284, 32
  %v398 = vpop.permute.xlu0 %397
  %399 = vrot.lane.b32.xlu0 %v285, 32
  %v400 = vpop.permute.xlu0 %399
  %401 = vrot.lane.b32.xlu0 %v286, 32
  %v402 = vpop.permute.xlu0 %401
  %403 = vrot.lane.b32.xlu0 %v287, 32
  %v404 = vpop.permute.xlu0 %403
  %405 = vrot.lane.b32.xlu0 %v288, 32
  %v406 = vpop.permute.xlu0 %405
  %407 = vrot.lane.b32.xlu0 %v289, 32
  %v408 = vpop.permute.xlu0 %407
  %409 = vrot.lane.b32.xlu0 %v290, 32
  %v410 = vpop.permute.xlu0 %409
  %411 = vrot.lane.b32.xlu0 %v291, 32
  %v412 = vpop.permute.xlu0 %411
  %413 = vrot.lane.b32.xlu0 %v292, 32
  %v414 = vpop.permute.xlu0 %413
  %415 = vrot.lane.b32.xlu0 %v293, 32
  %v416 = vpop.permute.xlu0 %415
  %417 = vrot.lane.b32.xlu0 %v294, 32
  %v418 = vpop.permute.xlu0 %417
  %419 = vrot.lane.b32.xlu0 %v295, 32
  %v420 = vpop.permute.xlu0 %419
  %421 = vrot.lane.b32.xlu0 %v296, 32
  %v422 = vpop.permute.xlu0 %421
  %423 = vrot.lane.b32.xlu0 %v297, 32
  %v424 = vpop.permute.xlu0 %423
  %425 = vrot.lane.b32.xlu0 %v298, 32
  %v426 = vpop.permute.xlu0 %425
  %vm491 = vcmask 261120
  %v492 = vsel %vm491, %v91, %v300
  %v493 = vsel %vm491, %v92, %v302
  %v494 = vsel %vm491, %v93, %v304
  %v495 = vsel %vm491, %v94, %v306
  %v496 = vsel %vm491, %v95, %v308
  %v497 = vsel %vm491, %v96, %v310
  %v498 = vsel %vm491, %v97, %v312
  %v499 = vsel %vm491, %v98, %v314
  %v500 = vsel %vm491, %v99, %v316
  %v501 = vsel %vm491, %v100, %v318
  %v502 = vsel %vm491, %v101, %v320
  %v503 = vsel %vm491, %v102, %v322
  %v504 = vsel %vm491, %v103, %v324
  %v505 = vsel %vm491, %v104, %v326
  %v506 = vsel %vm491, %v105, %v328
  %v507 = vsel %vm491, %v106, %v330
  %v508 = vsel %vm491, %v107, %v332
  %v509 = vsel %vm491, %v108, %v334
  %v510 = vsel %vm491, %v109, %v336
  %v511 = vsel %vm491, %v110, %v338
  %v512 = vsel %vm491, %v111, %v340
  %v513 = vsel %vm491, %v112, %v342
  %v514 = vsel %vm491, %v113, %v344
  %v515 = vsel %vm491, %v114, %v346
  %v516 = vsel %vm491, %v115, %v348
  %v517 = vsel %vm491, %v116, %v350
  %v518 = vsel %vm491, %v117, %v352
  %v519 = vsel %vm491, %v118, %v354
  %v520 = vsel %vm491, %v119, %v356
  %v521 = vsel %vm491, %v120, %v358
  %v522 = vsel %vm491, %v121, %v360
  %v523 = vsel %vm491, %v122, %v362
  %v524 = vsel %vm491, %v123, %v364
  %v525 = vsel %vm491, %v124, %v366
  %v526 = vsel %vm491, %v125, %v368
  %v527 = vsel %vm491, %v126, %v370
  %v528 = vsel %vm491, %v127, %v372
  %v529 = vsel %vm491, %v128, %v374
  %v530 = vsel %vm491, %v129, %v376
  %v531 = vsel %vm491, %v130, %v378
  %v532 = vsel %vm491, %v131, %v380
  %v533 = vsel %vm491, %v132, %v382
  %v534 = vsel %vm491, %v133, %v384
  %v535 = vsel %vm491, %v134, %v386
  %v536 = vsel %vm491, %v135, %v388
  %v537 = vsel %vm491, %v136, %v390
  %v538 = vsel %vm491, %v137, %v392
  %v539 = vsel %vm491, %v138, %v394
  %v540 = vsel %vm491, %v139, %v396
  %v541 = vsel %vm491, %v140, %v398
  %v542 = vsel %vm491, %v141, %v400
  %v543 = vsel %vm491, %v142, %v402
  %v544 = vsel %vm491, %v143, %v404
  %v545 = vsel %vm491, %v144, %v406
  %v546 = vsel %vm491, %v145, %v408
  %v547 = vsel %vm491, %v146, %v410
  %v548 = vsel %vm491, %v147, %v412
  %v549 = vsel %vm491, %v148, %v414
  %v550 = vsel %vm491, %v149, %v416
  %v551 = vsel %vm491, %v150, %v418
  %v552 = vsel %vm491, %v151, %v420
  %v553 = vsel %vm491, %v152, %v422
  %v554 = vsel %vm491, %v153, %v424
  %v555 = vsel %vm491, %v154, %v426
  %v556 = vpack.c.bf16 %v493, %v492
  %v557 = vpack.c.bf16 %v495, %v494
  %v558 = vpack.c.bf16 %v497, %v496
  %v559 = vpack.c.bf16 %v499, %v498
  %v560 = vpack.c.bf16 %v501, %v500
  %v561 = vpack.c.bf16 %v503, %v502
  %v562 = vpack.c.bf16 %v505, %v504
  %v563 = vpack.c.bf16 %v507, %v506
  %v564 = vpack.c.bf16 %v509, %v508
  %v565 = vpack.c.bf16 %v511, %v510
  %v566 = vpack.c.bf16 %v513, %v512
  %v567 = vpack.c.bf16 %v515, %v514
  %v568 = vpack.c.bf16 %v517, %v516
  %v569 = vpack.c.bf16 %v519, %v518
  %v570 = vpack.c.bf16 %v521, %v520
  %v571 = vpack.c.bf16 %v523, %v522
  %v572 = vpack.c.bf16 %v525, %v524
  %v573 = vpack.c.bf16 %v527, %v526
  %v574 = vpack.c.bf16 %v529, %v528
  %v575 = vpack.c.bf16 %v531, %v530
  %v576 = vpack.c.bf16 %v533, %v532
  %v577 = vpack.c.bf16 %v535, %v534
  %v578 = vpack.c.bf16 %v537, %v536
  %v579 = vpack.c.bf16 %v539, %v538
  %v580 = vpack.c.bf16 %v541, %v540
  %v581 = vpack.c.bf16 %v543, %v542
  %v582 = vpack.c.bf16 %v545, %v544
  %v583 = vpack.c.bf16 %v547, %v546
  %v584 = vpack.c.bf16 %v549, %v548
  %v585 = vpack.c.bf16 %v551, %v550
  %v586 = vpack.c.bf16 %v553, %v552
  %v587 = vpack.c.bf16 %v555, %v554
  %v588 = vld [vmem:[%s2] sm:$0xf]
  %v589 = vld [vmem:[%s2 + $0x4] sm:$0xf]
  %v590 = vld [vmem:[%s2 + $0x8] sm:$0xf]
  %v591 = vld [vmem:[%s2 + $0xc] sm:$0xf]
  %v592 = vld [vmem:[%s2 + $0x10] sm:$0xf]
  %v593 = vld [vmem:[%s2 + $0x14] sm:$0xf]
  %v594 = vld [vmem:[%s2 + $0x18] sm:$0xf]
  %v595 = vld [vmem:[%s2 + $0x1c] sm:$0xf]
  %v596 = vld [vmem:[%s3] sm:$0x1]
  %v598 = vperm.slane %v596, 0
  %v608 = vunpack.c.l.b16 %v588
  %v609 = vunpack.c.l.b16 %v589
  %v610 = vunpack.c.l.b16 %v590
  %v611 = vunpack.c.l.b16 %v591
  %v612 = vunpack.c.l.b16 %v592
  %v613 = vunpack.c.l.b16 %v593
  %v614 = vunpack.c.l.b16 %v594
  %v615 = vunpack.c.l.b16 %v595
  %v616 = vpack.c.b16 %v609, %v608
  %v617 = vpack.c.b16 %v611, %v610
  %v618 = vpack.c.b16 %v613, %v612
  %v619 = vpack.c.b16 %v615, %v614
  %vm624 = vcmask 523264
  %v626 = vsel %vm624, %v556, 0
  %v629 = vsel %vm624, %v557, 0
  %v632 = vsel %vm624, %v558, 0
  %v635 = vsel %vm624, %v559, 0
  %v638 = vsel %vm624, %v560, 0
  %v641 = vsel %vm624, %v561, 0
  %v644 = vsel %vm624, %v562, 0
  %v647 = vsel %vm624, %v563, 0
  %v650 = vsel %vm624, %v564, 0
  %v653 = vsel %vm624, %v565, 0
  %v656 = vsel %vm624, %v566, 0
  %v659 = vsel %vm624, %v567, 0
  %v662 = vsel %vm624, %v568, 0
  %v665 = vsel %vm624, %v569, 0
  %v668 = vsel %vm624, %v570, 0
  %v671 = vsel %vm624, %v571, 0
  %v674 = vsel %vm624, %v572, 0
  %v677 = vsel %vm624, %v573, 0
  %v680 = vsel %vm624, %v574, 0
  %v683 = vsel %vm624, %v575, 0
  %v686 = vsel %vm624, %v576, 0
  %v689 = vsel %vm624, %v577, 0
  %v692 = vsel %vm624, %v578, 0
  %v695 = vsel %vm624, %v579, 0
  %v698 = vsel %vm624, %v580, 0
  %v701 = vsel %vm624, %v581, 0
  %v704 = vsel %vm624, %v582, 0
  %v707 = vsel %vm624, %v583, 0
  %v710 = vsel %vm624, %v584, 0
  %v713 = vsel %vm624, %v585, 0
  %v716 = vsel %vm624, %v586, 0
  %v719 = vsel %vm624, %v587, 0
  %721 = vmatpush.bf16.msra.mxu0 0
  %722 = vmatpush.bf16.msra.mxu0 0
  %723 = vmatpush.bf16.msra.mxu0 0
  %724 = vmatpush.bf16.msra.mxu0 0
  %725 = vmatpush.bf16.msra.mxu0 %v619
  %726 = vmatpush.bf16.msra.mxu0 %v618
  %727 = vmatpush.bf16.msra.mxu0 %v617
  %728 = vmatpush.bf16.msra.mxu0 %v616
  %729 = vmatmul.bf16.gmra.mxu0 %v626
  %v730 = vpop.f32.mrf.mxu0
  %v731 = vadd.f32 %v598, %v730
  %v732 = vpop.f32.mrf.mxu0
  %v733 = vadd.f32 %v598, %v732
  %734 = vmatmul.bf16.gmra.mxu0 %v629
  %v735 = vpop.f32.mrf.mxu0
  %v736 = vadd.f32 %v598, %v735
  %v737 = vpop.f32.mrf.mxu0
  %v738 = vadd.f32 %v598, %v737
  %739 = vmatmul.bf16.gmra.mxu0 %v632
  %v740 = vpop.f32.mrf.mxu0
  %v741 = vadd.f32 %v598, %v740
  %v742 = vpop.f32.mrf.mxu0
  %v743 = vadd.f32 %v598, %v742
  %744 = vmatmul.bf16.gmra.mxu0 %v635
  %v745 = vpop.f32.mrf.mxu0
  %v746 = vadd.f32 %v598, %v745
  %v747 = vpop.f32.mrf.mxu0
  %v748 = vadd.f32 %v598, %v747
  %749 = vmatmul.bf16.gmra.mxu0 %v638
  %v750 = vpop.f32.mrf.mxu0
  %v751 = vadd.f32 %v598, %v750
  %v752 = vpop.f32.mrf.mxu0
  %v753 = vadd.f32 %v598, %v752
  %754 = vmatmul.bf16.gmra.mxu0 %v641
  %v755 = vpop.f32.mrf.mxu0
  %v756 = vadd.f32 %v598, %v755
  %v757 = vpop.f32.mrf.mxu0
  %v758 = vadd.f32 %v598, %v757
  %759 = vmatmul.bf16.gmra.mxu0 %v644
  %v760 = vpop.f32.mrf.mxu0
  %v761 = vadd.f32 %v598, %v760
  %v762 = vpop.f32.mrf.mxu0
  %v763 = vadd.f32 %v598, %v762
  %764 = vmatmul.bf16.gmra.mxu0 %v647
  %v765 = vpop.f32.mrf.mxu0
  %v766 = vadd.f32 %v598, %v765
  %v767 = vpop.f32.mrf.mxu0
  %v768 = vadd.f32 %v598, %v767
  %769 = vmatmul.bf16.gmra.mxu0 %v650
  %v770 = vpop.f32.mrf.mxu0
  %v771 = vadd.f32 %v598, %v770
  %v772 = vpop.f32.mrf.mxu0
  %v773 = vadd.f32 %v598, %v772
  %774 = vmatmul.bf16.gmra.mxu0 %v653
  %v775 = vpop.f32.mrf.mxu0
  %v776 = vadd.f32 %v598, %v775
  %v777 = vpop.f32.mrf.mxu0
  %v778 = vadd.f32 %v598, %v777
  %779 = vmatmul.bf16.gmra.mxu0 %v656
  %v780 = vpop.f32.mrf.mxu0
  %v781 = vadd.f32 %v598, %v780
  %v782 = vpop.f32.mrf.mxu0
  %v783 = vadd.f32 %v598, %v782
  %784 = vmatmul.bf16.gmra.mxu0 %v659
  %v785 = vpop.f32.mrf.mxu0
  %v786 = vadd.f32 %v598, %v785
  %v787 = vpop.f32.mrf.mxu0
  %v788 = vadd.f32 %v598, %v787
  %789 = vmatmul.bf16.gmra.mxu0 %v662
  %v790 = vpop.f32.mrf.mxu0
  %v791 = vadd.f32 %v598, %v790
  %v792 = vpop.f32.mrf.mxu0
  %v793 = vadd.f32 %v598, %v792
  %794 = vmatmul.bf16.gmra.mxu0 %v665
  %v795 = vpop.f32.mrf.mxu0
  %v796 = vadd.f32 %v598, %v795
  %v797 = vpop.f32.mrf.mxu0
  %v798 = vadd.f32 %v598, %v797
  %799 = vmatmul.bf16.gmra.mxu0 %v668
  %v800 = vpop.f32.mrf.mxu0
  %v801 = vadd.f32 %v598, %v800
  %v802 = vpop.f32.mrf.mxu0
  %v803 = vadd.f32 %v598, %v802
  %804 = vmatmul.bf16.gmra.mxu0 %v671
  %v805 = vpop.f32.mrf.mxu0
  %v806 = vadd.f32 %v598, %v805
  %v807 = vpop.f32.mrf.mxu0
  %v808 = vadd.f32 %v598, %v807
  %809 = vmatmul.bf16.gmra.mxu0 %v674
  %v810 = vpop.f32.mrf.mxu0
  %v811 = vadd.f32 %v598, %v810
  %v812 = vpop.f32.mrf.mxu0
  %v813 = vadd.f32 %v598, %v812
  %814 = vmatmul.bf16.gmra.mxu0 %v677
  %v815 = vpop.f32.mrf.mxu0
  %v816 = vadd.f32 %v598, %v815
  %v817 = vpop.f32.mrf.mxu0
  %v818 = vadd.f32 %v598, %v817
  %819 = vmatmul.bf16.gmra.mxu0 %v680
  %v820 = vpop.f32.mrf.mxu0
  %v821 = vadd.f32 %v598, %v820
  %v822 = vpop.f32.mrf.mxu0
  %v823 = vadd.f32 %v598, %v822
  %824 = vmatmul.bf16.gmra.mxu0 %v683
  %v825 = vpop.f32.mrf.mxu0
  %v826 = vadd.f32 %v598, %v825
  %v827 = vpop.f32.mrf.mxu0
  %v828 = vadd.f32 %v598, %v827
  %829 = vmatmul.bf16.gmra.mxu0 %v686
  %v830 = vpop.f32.mrf.mxu0
  %v831 = vadd.f32 %v598, %v830
  %v832 = vpop.f32.mrf.mxu0
  %v833 = vadd.f32 %v598, %v832
  %834 = vmatmul.bf16.gmra.mxu0 %v689
  %v835 = vpop.f32.mrf.mxu0
  %v836 = vadd.f32 %v598, %v835
  %v837 = vpop.f32.mrf.mxu0
  %v838 = vadd.f32 %v598, %v837
  %839 = vmatmul.bf16.gmra.mxu0 %v692
  %v840 = vpop.f32.mrf.mxu0
  %v841 = vadd.f32 %v598, %v840
  %v842 = vpop.f32.mrf.mxu0
  %v843 = vadd.f32 %v598, %v842
  %844 = vmatmul.bf16.gmra.mxu0 %v695
  %v845 = vpop.f32.mrf.mxu0
  %v846 = vadd.f32 %v598, %v845
  %v847 = vpop.f32.mrf.mxu0
  %v848 = vadd.f32 %v598, %v847
  %849 = vmatmul.bf16.gmra.mxu0 %v698
  %v850 = vpop.f32.mrf.mxu0
  %v851 = vadd.f32 %v598, %v850
  %v852 = vpop.f32.mrf.mxu0
  %v853 = vadd.f32 %v598, %v852
  %854 = vmatmul.bf16.gmra.mxu0 %v701
  %v855 = vpop.f32.mrf.mxu0
  %v856 = vadd.f32 %v598, %v855
  %v857 = vpop.f32.mrf.mxu0
  %v858 = vadd.f32 %v598, %v857
  %859 = vmatmul.bf16.gmra.mxu0 %v704
  %v860 = vpop.f32.mrf.mxu0
  %v861 = vadd.f32 %v598, %v860
  %v862 = vpop.f32.mrf.mxu0
  %v863 = vadd.f32 %v598, %v862
  %864 = vmatmul.bf16.gmra.mxu0 %v707
  %v865 = vpop.f32.mrf.mxu0
  %v866 = vadd.f32 %v598, %v865
  %v867 = vpop.f32.mrf.mxu0
  %v868 = vadd.f32 %v598, %v867
  %869 = vmatmul.bf16.gmra.mxu0 %v710
  %v870 = vpop.f32.mrf.mxu0
  %v871 = vadd.f32 %v598, %v870
  %v872 = vpop.f32.mrf.mxu0
  %v873 = vadd.f32 %v598, %v872
  %874 = vmatmul.bf16.gmra.mxu0 %v713
  %v875 = vpop.f32.mrf.mxu0
  %v876 = vadd.f32 %v598, %v875
  %v877 = vpop.f32.mrf.mxu0
  %v878 = vadd.f32 %v598, %v877
  %879 = vmatmul.bf16.gmra.mxu0 %v716
  %v880 = vpop.f32.mrf.mxu0
  %v881 = vadd.f32 %v598, %v880
  %v882 = vpop.f32.mrf.mxu0
  %v883 = vadd.f32 %v598, %v882
  %884 = vmatmul.bf16.gmra.mxu0 %v719
  %v885 = vpop.f32.mrf.mxu0
  %v886 = vadd.f32 %v598, %v885
  %v887 = vpop.f32.mrf.mxu0
  %v888 = vadd.f32 %v598, %v887
  %889 = vdwg.mxu0
  %v890 = vmax.f32 %v731, 0.0
  %v891 = vmax.f32 %v733, 0.0
  %v892 = vmax.f32 %v736, 0.0
  %v893 = vmax.f32 %v738, 0.0
  %v894 = vmax.f32 %v741, 0.0
  %v895 = vmax.f32 %v743, 0.0
  %v896 = vmax.f32 %v746, 0.0
  %v897 = vmax.f32 %v748, 0.0
  %v898 = vmax.f32 %v751, 0.0
  %v899 = vmax.f32 %v753, 0.0
  %v900 = vmax.f32 %v756, 0.0
  %v901 = vmax.f32 %v758, 0.0
  %v902 = vmax.f32 %v761, 0.0
  %v903 = vmax.f32 %v763, 0.0
  %v904 = vmax.f32 %v766, 0.0
  %v905 = vmax.f32 %v768, 0.0
  %v906 = vmax.f32 %v771, 0.0
  %v907 = vmax.f32 %v773, 0.0
  %v908 = vmax.f32 %v776, 0.0
  %v909 = vmax.f32 %v778, 0.0
  %v910 = vmax.f32 %v781, 0.0
  %v911 = vmax.f32 %v783, 0.0
  %v912 = vmax.f32 %v786, 0.0
  %v913 = vmax.f32 %v788, 0.0
  %v914 = vmax.f32 %v791, 0.0
  %v915 = vmax.f32 %v793, 0.0
  %v916 = vmax.f32 %v796, 0.0
  %v917 = vmax.f32 %v798, 0.0
  %v918 = vmax.f32 %v801, 0.0
  %v919 = vmax.f32 %v803, 0.0
  %v920 = vmax.f32 %v806, 0.0
  %v921 = vmax.f32 %v808, 0.0
  %v922 = vmax.f32 %v811, 0.0
  %v923 = vmax.f32 %v813, 0.0
  %v924 = vmax.f32 %v816, 0.0
  %v925 = vmax.f32 %v818, 0.0
  %v926 = vmax.f32 %v821, 0.0
  %v927 = vmax.f32 %v823, 0.0
  %v928 = vmax.f32 %v826, 0.0
  %v929 = vmax.f32 %v828, 0.0
  %v930 = vmax.f32 %v831, 0.0
  %v931 = vmax.f32 %v833, 0.0
  %v932 = vmax.f32 %v836, 0.0
  %v933 = vmax.f32 %v838, 0.0
  %v934 = vmax.f32 %v841, 0.0
  %v935 = vmax.f32 %v843, 0.0
  %v936 = vmax.f32 %v846, 0.0
  %v937 = vmax.f32 %v848, 0.0
  %v938 = vmax.f32 %v851, 0.0
  %v939 = vmax.f32 %v853, 0.0
  %v940 = vmax.f32 %v856, 0.0
  %v941 = vmax.f32 %v858, 0.0
  %v942 = vmax.f32 %v861, 0.0
  %v943 = vmax.f32 %v863, 0.0
  %v944 = vmax.f32 %v866, 0.0
  %v945 = vmax.f32 %v868, 0.0
  %v946 = vmax.f32 %v871, 0.0
  %v947 = vmax.f32 %v873, 0.0
  %v948 = vmax.f32 %v876, 0.0
  %v949 = vmax.f32 %v878, 0.0
  %v950 = vmax.f32 %v881, 0.0
  %v951 = vmax.f32 %v883, 0.0
  %v952 = vmax.f32 %v886, 0.0
  %v953 = vmax.f32 %v888, 0.0
  %v954 = vpack.c.bf16 %v891, %v890
  %v955 = vpack.c.bf16 %v893, %v892
  %v956 = vpack.c.bf16 %v895, %v894
  %v957 = vpack.c.bf16 %v897, %v896
  %v958 = vpack.c.bf16 %v899, %v898
  %v959 = vpack.c.bf16 %v901, %v900
  %v960 = vpack.c.bf16 %v903, %v902
  %v961 = vpack.c.bf16 %v905, %v904
  %v962 = vpack.c.bf16 %v907, %v906
  %v963 = vpack.c.bf16 %v909, %v908
  %v964 = vpack.c.bf16 %v911, %v910
  %v965 = vpack.c.bf16 %v913, %v912
  %v966 = vpack.c.bf16 %v915, %v914
  %v967 = vpack.c.bf16 %v917, %v916
  %v968 = vpack.c.bf16 %v919, %v918
  %v969 = vpack.c.bf16 %v921, %v920
  %v970 = vpack.c.bf16 %v923, %v922
  %v971 = vpack.c.bf16 %v925, %v924
  %v972 = vpack.c.bf16 %v927, %v926
  %v973 = vpack.c.bf16 %v929, %v928
  %v974 = vpack.c.bf16 %v931, %v930
  %v975 = vpack.c.bf16 %v933, %v932
  %v976 = vpack.c.bf16 %v935, %v934
  %v977 = vpack.c.bf16 %v937, %v936
  %v978 = vpack.c.bf16 %v939, %v938
  %v979 = vpack.c.bf16 %v941, %v940
  %v980 = vpack.c.bf16 %v943, %v942
  %v981 = vpack.c.bf16 %v945, %v944
  %v982 = vpack.c.bf16 %v947, %v946
  %v983 = vpack.c.bf16 %v949, %v948
  %v984 = vpack.c.bf16 %v951, %v950
  %v985 = vpack.c.bf16 %v953, %v952
  %v986 = vld [vmem:[%s4] sm:$0xf]
  %v987 = vld [vmem:[%s4 + $0x4] sm:$0xf]
  %v988 = vld [vmem:[%s4 + $0x8] sm:$0xf]
  %v989 = vld [vmem:[%s4 + $0xc] sm:$0xf]
  %v990 = vld [vmem:[%s5] sm:$0x1]
  %v992 = vperm.slane %v990, 0
  %v998 = vunpack.c.l.b16 %v986
  %v999 = vunpack.c.l.b16 %v987
  %v1000 = vunpack.c.l.b16 %v988
  %v1001 = vunpack.c.l.b16 %v989
  %v1002 = vpack.c.b16 %v999, %v998
  %v1003 = vpack.c.b16 %v1001, %v1000
  %v1007 = vsel %vm491, %v954, 0
  %v1010 = vsel %vm491, %v955, 0
  %v1013 = vsel %vm491, %v956, 0
  %v1016 = vsel %vm491, %v957, 0
  %v1019 = vsel %vm491, %v958, 0
  %v1022 = vsel %vm491, %v959, 0
  %v1025 = vsel %vm491, %v960, 0
  %v1028 = vsel %vm491, %v961, 0
  %v1031 = vsel %vm491, %v962, 0
  %v1034 = vsel %vm491, %v963, 0
  %v1037 = vsel %vm491, %v964, 0
  %v1040 = vsel %vm491, %v965, 0
  %v1043 = vsel %vm491, %v966, 0
  %v1046 = vsel %vm491, %v967, 0
  %v1049 = vsel %vm491, %v968, 0
  %v1052 = vsel %vm491, %v969, 0
  %v1055 = vsel %vm491, %v970, 0
  %v1058 = vsel %vm491, %v971, 0
  %v1061 = vsel %vm491, %v972, 0
  %v1064 = vsel %vm491, %v973, 0
  %v1067 = vsel %vm491, %v974, 0
  %v1070 = vsel %vm491, %v975, 0
  %v1073 = vsel %vm491, %v976, 0
  %v1076 = vsel %vm491, %v977, 0
  %v1079 = vsel %vm491, %v978, 0
  %v1082 = vsel %vm491, %v979, 0
  %v1085 = vsel %vm491, %v980, 0
  %v1088 = vsel %vm491, %v981, 0
  %v1091 = vsel %vm491, %v982, 0
  %v1094 = vsel %vm491, %v983, 0
  %v1097 = vsel %vm491, %v984, 0
  %v1100 = vsel %vm491, %v985, 0
  %1102 = vmatpush.bf16.msra.mxu0 0
  %1103 = vmatpush.bf16.msra.mxu0 0
  %1104 = vmatpush.bf16.msra.mxu0 0
  %1105 = vmatpush.bf16.msra.mxu0 0
  %1106 = vmatpush.bf16.msra.mxu0 0
  %1107 = vmatpush.bf16.msra.mxu0 0
  %1108 = vmatpush.bf16.msra.mxu0 %v1003
  %1109 = vmatpush.bf16.msra.mxu0 %v1002
  %1110 = vmatmul.bf16.gmra.mxu0 %v1007
  %v1111 = vpop.f32.mrf.mxu0
  %v1112 = vadd.f32 %v992, %v1111
  %v1113 = vpop.f32.mrf.mxu0
  %v1114 = vadd.f32 %v992, %v1113
  %1115 = vmatmul.bf16.gmra.mxu0 %v1010
  %v1116 = vpop.f32.mrf.mxu0
  %v1117 = vadd.f32 %v992, %v1116
  %v1118 = vpop.f32.mrf.mxu0
  %v1119 = vadd.f32 %v992, %v1118
  %1120 = vmatmul.bf16.gmra.mxu0 %v1013
  %v1121 = vpop.f32.mrf.mxu0
  %v1122 = vadd.f32 %v992, %v1121
  %v1123 = vpop.f32.mrf.mxu0
  %v1124 = vadd.f32 %v992, %v1123
  %1125 = vmatmul.bf16.gmra.mxu0 %v1016
  %v1126 = vpop.f32.mrf.mxu0
  %v1127 = vadd.f32 %v992, %v1126
  %v1128 = vpop.f32.mrf.mxu0
  %v1129 = vadd.f32 %v992, %v1128
  %1130 = vmatmul.bf16.gmra.mxu0 %v1019
  %v1131 = vpop.f32.mrf.mxu0
  %v1132 = vadd.f32 %v992, %v1131
  %v1133 = vpop.f32.mrf.mxu0
  %v1134 = vadd.f32 %v992, %v1133
  %1135 = vmatmul.bf16.gmra.mxu0 %v1022
  %v1136 = vpop.f32.mrf.mxu0
  %v1137 = vadd.f32 %v992, %v1136
  %v1138 = vpop.f32.mrf.mxu0
  %v1139 = vadd.f32 %v992, %v1138
  %1140 = vmatmul.bf16.gmra.mxu0 %v1025
  %v1141 = vpop.f32.mrf.mxu0
  %v1142 = vadd.f32 %v992, %v1141
  %v1143 = vpop.f32.mrf.mxu0
  %v1144 = vadd.f32 %v992, %v1143
  %1145 = vmatmul.bf16.gmra.mxu0 %v1028
  %v1146 = vpop.f32.mrf.mxu0
  %v1147 = vadd.f32 %v992, %v1146
  %v1148 = vpop.f32.mrf.mxu0
  %v1149 = vadd.f32 %v992, %v1148
  %1150 = vmatmul.bf16.gmra.mxu0 %v1031
  %v1151 = vpop.f32.mrf.mxu0
  %v1152 = vadd.f32 %v992, %v1151
  %v1153 = vpop.f32.mrf.mxu0
  %v1154 = vadd.f32 %v992, %v1153
  %1155 = vmatmul.bf16.gmra.mxu0 %v1034
  %v1156 = vpop.f32.mrf.mxu0
  %v1157 = vadd.f32 %v992, %v1156
  %v1158 = vpop.f32.mrf.mxu0
  %v1159 = vadd.f32 %v992, %v1158
  %1160 = vmatmul.bf16.gmra.mxu0 %v1037
  %v1161 = vpop.f32.mrf.mxu0
  %v1162 = vadd.f32 %v992, %v1161
  %v1163 = vpop.f32.mrf.mxu0
  %v1164 = vadd.f32 %v992, %v1163
  %1165 = vmatmul.bf16.gmra.mxu0 %v1040
  %v1166 = vpop.f32.mrf.mxu0
  %v1167 = vadd.f32 %v992, %v1166
  %v1168 = vpop.f32.mrf.mxu0
  %v1169 = vadd.f32 %v992, %v1168
  %1170 = vmatmul.bf16.gmra.mxu0 %v1043
  %v1171 = vpop.f32.mrf.mxu0
  %v1172 = vadd.f32 %v992, %v1171
  %v1173 = vpop.f32.mrf.mxu0
  %v1174 = vadd.f32 %v992, %v1173
  %1175 = vmatmul.bf16.gmra.mxu0 %v1046
  %v1176 = vpop.f32.mrf.mxu0
  %v1177 = vadd.f32 %v992, %v1176
  %v1178 = vpop.f32.mrf.mxu0
  %v1179 = vadd.f32 %v992, %v1178
  %1180 = vmatmul.bf16.gmra.mxu0 %v1049
  %v1181 = vpop.f32.mrf.mxu0
  %v1182 = vadd.f32 %v992, %v1181
  %v1183 = vpop.f32.mrf.mxu0
  %v1184 = vadd.f32 %v992, %v1183
  %1185 = vmatmul.bf16.gmra.mxu0 %v1052
  %v1186 = vpop.f32.mrf.mxu0
  %v1187 = vadd.f32 %v992, %v1186
  %v1188 = vpop.f32.mrf.mxu0
  %v1189 = vadd.f32 %v992, %v1188
  %1190 = vmatmul.bf16.gmra.mxu0 %v1055
  %v1191 = vpop.f32.mrf.mxu0
  %v1192 = vadd.f32 %v992, %v1191
  %v1193 = vpop.f32.mrf.mxu0
  %v1194 = vadd.f32 %v992, %v1193
  %1195 = vmatmul.bf16.gmra.mxu0 %v1058
  %v1196 = vpop.f32.mrf.mxu0
  %v1197 = vadd.f32 %v992, %v1196
  %v1198 = vpop.f32.mrf.mxu0
  %v1199 = vadd.f32 %v992, %v1198
  %1200 = vmatmul.bf16.gmra.mxu0 %v1061
  %v1201 = vpop.f32.mrf.mxu0
  %v1202 = vadd.f32 %v992, %v1201
  %v1203 = vpop.f32.mrf.mxu0
  %v1204 = vadd.f32 %v992, %v1203
  %1205 = vmatmul.bf16.gmra.mxu0 %v1064
  %v1206 = vpop.f32.mrf.mxu0
  %v1207 = vadd.f32 %v992, %v1206
  %v1208 = vpop.f32.mrf.mxu0
  %v1209 = vadd.f32 %v992, %v1208
  %1210 = vmatmul.bf16.gmra.mxu0 %v1067
  %v1211 = vpop.f32.mrf.mxu0
  %v1212 = vadd.f32 %v992, %v1211
  %v1213 = vpop.f32.mrf.mxu0
  %v1214 = vadd.f32 %v992, %v1213
  %1215 = vmatmul.bf16.gmra.mxu0 %v1070
  %v1216 = vpop.f32.mrf.mxu0
  %v1217 = vadd.f32 %v992, %v1216
  %v1218 = vpop.f32.mrf.mxu0
  %v1219 = vadd.f32 %v992, %v1218
  %1220 = vmatmul.bf16.gmra.mxu0 %v1073
  %v1221 = vpop.f32.mrf.mxu0
  %v1222 = vadd.f32 %v992, %v1221
  %v1223 = vpop.f32.mrf.mxu0
  %v1224 = vadd.f32 %v992, %v1223
  %1225 = vmatmul.bf16.gmra.mxu0 %v1076
  %v1226 = vpop.f32.mrf.mxu0
  %v1227 = vadd.f32 %v992, %v1226
  %v1228 = vpop.f32.mrf.mxu0
  %v1229 = vadd.f32 %v992, %v1228
  %1230 = vmatmul.bf16.gmra.mxu0 %v1079
  %v1231 = vpop.f32.mrf.mxu0
  %v1232 = vadd.f32 %v992, %v1231
  %v1233 = vpop.f32.mrf.mxu0
  %v1234 = vadd.f32 %v992, %v1233
  %1235 = vmatmul.bf16.gmra.mxu0 %v1082
  %v1236 = vpop.f32.mrf.mxu0
  %v1237 = vadd.f32 %v992, %v1236
  %v1238 = vpop.f32.mrf.mxu0
  %v1239 = vadd.f32 %v992, %v1238
  %1240 = vmatmul.bf16.gmra.mxu0 %v1085
  %v1241 = vpop.f32.mrf.mxu0
  %v1242 = vadd.f32 %v992, %v1241
  %v1243 = vpop.f32.mrf.mxu0
  %v1244 = vadd.f32 %v992, %v1243
  %1245 = vmatmul.bf16.gmra.mxu0 %v1088
  %v1246 = vpop.f32.mrf.mxu0
  %v1247 = vadd.f32 %v992, %v1246
  %v1248 = vpop.f32.mrf.mxu0
  %v1249 = vadd.f32 %v992, %v1248
  %1250 = vmatmul.bf16.gmra.mxu0 %v1091
  %v1251 = vpop.f32.mrf.mxu0
  %v1252 = vadd.f32 %v992, %v1251
  %v1253 = vpop.f32.mrf.mxu0
  %v1254 = vadd.f32 %v992, %v1253
  %1255 = vmatmul.bf16.gmra.mxu0 %v1094
  %v1256 = vpop.f32.mrf.mxu0
  %v1257 = vadd.f32 %v992, %v1256
  %v1258 = vpop.f32.mrf.mxu0
  %v1259 = vadd.f32 %v992, %v1258
  %1260 = vmatmul.bf16.gmra.mxu0 %v1097
  %v1261 = vpop.f32.mrf.mxu0
  %v1262 = vadd.f32 %v992, %v1261
  %v1263 = vpop.f32.mrf.mxu0
  %v1264 = vadd.f32 %v992, %v1263
  %1265 = vmatmul.bf16.gmra.mxu0 %v1100
  %v1266 = vpop.f32.mrf.mxu0
  %v1267 = vadd.f32 %v992, %v1266
  %v1268 = vpop.f32.mrf.mxu0
  %v1269 = vadd.f32 %v992, %v1268
  %1270 = vdwg.mxu0
  %v1271 = vadd.f32 %v1112, %v492
  %v1272 = vadd.f32 %v1114, %v493
  %v1273 = vadd.f32 %v1117, %v494
  %v1274 = vadd.f32 %v1119, %v495
  %v1275 = vadd.f32 %v1122, %v496
  %v1276 = vadd.f32 %v1124, %v497
  %v1277 = vadd.f32 %v1127, %v498
  %v1278 = vadd.f32 %v1129, %v499
  %v1279 = vadd.f32 %v1132, %v500
  %v1280 = vadd.f32 %v1134, %v501
  %v1281 = vadd.f32 %v1137, %v502
  %v1282 = vadd.f32 %v1139, %v503
  %v1283 = vadd.f32 %v1142, %v504
  %v1284 = vadd.f32 %v1144, %v505
  %v1285 = vadd.f32 %v1147, %v506
  %v1286 = vadd.f32 %v1149, %v507
  %v1287 = vadd.f32 %v1152, %v508
  %v1288 = vadd.f32 %v1154, %v509
  %v1289 = vadd.f32 %v1157, %v510
  %v1290 = vadd.f32 %v1159, %v511
  %v1291 = vadd.f32 %v1162, %v512
  %v1292 = vadd.f32 %v1164, %v513
  %v1293 = vadd.f32 %v1167, %v514
  %v1294 = vadd.f32 %v1169, %v515
  %v1295 = vadd.f32 %v1172, %v516
  %v1296 = vadd.f32 %v1174, %v517
  %v1297 = vadd.f32 %v1177, %v518
  %v1298 = vadd.f32 %v1179, %v519
  %v1299 = vadd.f32 %v1182, %v520
  %v1300 = vadd.f32 %v1184, %v521
  %v1301 = vadd.f32 %v1187, %v522
  %v1302 = vadd.f32 %v1189, %v523
  %v1303 = vadd.f32 %v1192, %v524
  %v1304 = vadd.f32 %v1194, %v525
  %v1305 = vadd.f32 %v1197, %v526
  %v1306 = vadd.f32 %v1199, %v527
  %v1307 = vadd.f32 %v1202, %v528
  %v1308 = vadd.f32 %v1204, %v529
  %v1309 = vadd.f32 %v1207, %v530
  %v1310 = vadd.f32 %v1209, %v531
  %v1311 = vadd.f32 %v1212, %v532
  %v1312 = vadd.f32 %v1214, %v533
  %v1313 = vadd.f32 %v1217, %v534
  %v1314 = vadd.f32 %v1219, %v535
  %v1315 = vadd.f32 %v1222, %v536
  %v1316 = vadd.f32 %v1224, %v537
  %v1317 = vadd.f32 %v1227, %v538
  %v1318 = vadd.f32 %v1229, %v539
  %v1319 = vadd.f32 %v1232, %v540
  %v1320 = vadd.f32 %v1234, %v541
  %v1321 = vadd.f32 %v1237, %v542
  %v1322 = vadd.f32 %v1239, %v543
  %v1323 = vadd.f32 %v1242, %v544
  %v1324 = vadd.f32 %v1244, %v545
  %v1325 = vadd.f32 %v1247, %v546
  %v1326 = vadd.f32 %v1249, %v547
  %v1327 = vadd.f32 %v1252, %v548
  %v1328 = vadd.f32 %v1254, %v549
  %v1329 = vadd.f32 %v1257, %v550
  %v1330 = vadd.f32 %v1259, %v551
  %v1331 = vadd.f32 %v1262, %v552
  %v1332 = vadd.f32 %v1264, %v553
  %v1333 = vadd.f32 %v1267, %v554
  %v1334 = vadd.f32 %v1269, %v555
  %v1335 = vmax.f32 %v1271, 0.0
  %v1336 = vmax.f32 %v1272, 0.0
  %v1337 = vmax.f32 %v1273, 0.0
  %v1338 = vmax.f32 %v1274, 0.0
  %v1339 = vmax.f32 %v1275, 0.0
  %v1340 = vmax.f32 %v1276, 0.0
  %v1341 = vmax.f32 %v1277, 0.0
  %v1342 = vmax.f32 %v1278, 0.0
  %v1343 = vmax.f32 %v1279, 0.0
  %v1344 = vmax.f32 %v1280, 0.0
  %v1345 = vmax.f32 %v1281, 0.0
  %v1346 = vmax.f32 %v1282, 0.0
  %v1347 = vmax.f32 %v1283, 0.0
  %v1348 = vmax.f32 %v1284, 0.0
  %v1349 = vmax.f32 %v1285, 0.0
  %v1350 = vmax.f32 %v1286, 0.0
  %v1351 = vmax.f32 %v1287, 0.0
  %v1352 = vmax.f32 %v1288, 0.0
  %v1353 = vmax.f32 %v1289, 0.0
  %v1354 = vmax.f32 %v1290, 0.0
  %v1355 = vmax.f32 %v1291, 0.0
  %v1356 = vmax.f32 %v1292, 0.0
  %v1357 = vmax.f32 %v1293, 0.0
  %v1358 = vmax.f32 %v1294, 0.0
  %v1359 = vmax.f32 %v1295, 0.0
  %v1360 = vmax.f32 %v1296, 0.0
  %v1361 = vmax.f32 %v1297, 0.0
  %v1362 = vmax.f32 %v1298, 0.0
  %v1363 = vmax.f32 %v1299, 0.0
  %v1364 = vmax.f32 %v1300, 0.0
  %v1365 = vmax.f32 %v1301, 0.0
  %v1366 = vmax.f32 %v1302, 0.0
  %v1367 = vmax.f32 %v1303, 0.0
  %v1368 = vmax.f32 %v1304, 0.0
  %v1369 = vmax.f32 %v1305, 0.0
  %v1370 = vmax.f32 %v1306, 0.0
  %v1371 = vmax.f32 %v1307, 0.0
  %v1372 = vmax.f32 %v1308, 0.0
  %v1373 = vmax.f32 %v1309, 0.0
  %v1374 = vmax.f32 %v1310, 0.0
  %v1375 = vmax.f32 %v1311, 0.0
  %v1376 = vmax.f32 %v1312, 0.0
  %v1377 = vmax.f32 %v1313, 0.0
  %v1378 = vmax.f32 %v1314, 0.0
  %v1379 = vmax.f32 %v1315, 0.0
  %v1380 = vmax.f32 %v1316, 0.0
  %v1381 = vmax.f32 %v1317, 0.0
  %v1382 = vmax.f32 %v1318, 0.0
  %v1383 = vmax.f32 %v1319, 0.0
  %v1384 = vmax.f32 %v1320, 0.0
  %v1385 = vmax.f32 %v1321, 0.0
  %v1386 = vmax.f32 %v1322, 0.0
  %v1387 = vmax.f32 %v1323, 0.0
  %v1388 = vmax.f32 %v1324, 0.0
  %v1389 = vmax.f32 %v1325, 0.0
  %v1390 = vmax.f32 %v1326, 0.0
  %v1391 = vmax.f32 %v1327, 0.0
  %v1392 = vmax.f32 %v1328, 0.0
  %v1393 = vmax.f32 %v1329, 0.0
  %v1394 = vmax.f32 %v1330, 0.0
  %v1395 = vmax.f32 %v1331, 0.0
  %v1396 = vmax.f32 %v1332, 0.0
  %v1397 = vmax.f32 %v1333, 0.0
  %v1398 = vmax.f32 %v1334, 0.0
  %v1399 = vld [vmem:[%s6] sm:$0x1]
  %v1401 = vperm.slane %v1399, 0
  %v1403 = vmul.f32 %v1335, %v1401
  %v1404 = vmul.f32 %v1336, %v1401
  %v1405 = vmul.f32 %v1337, %v1401
  %v1406 = vmul.f32 %v1338, %v1401
  %v1407 = vmul.f32 %v1339, %v1401
  %v1408 = vmul.f32 %v1340, %v1401
  %v1409 = vmul.f32 %v1341, %v1401
  %v1410 = vmul.f32 %v1342, %v1401
  %v1411 = vmul.f32 %v1343, %v1401
  %v1412 = vmul.f32 %v1344, %v1401
  %v1413 = vmul.f32 %v1345, %v1401
  %v1414 = vmul.f32 %v1346, %v1401
  %v1415 = vmul.f32 %v1347, %v1401
  %v1416 = vmul.f32 %v1348, %v1401
  %v1417 = vmul.f32 %v1349, %v1401
  %v1418 = vmul.f32 %v1350, %v1401
  %v1419 = vmul.f32 %v1351, %v1401
  %v1420 = vmul.f32 %v1352, %v1401
  %v1421 = vmul.f32 %v1353, %v1401
  %v1422 = vmul.f32 %v1354, %v1401
  %v1423 = vmul.f32 %v1355, %v1401
  %v1424 = vmul.f32 %v1356, %v1401
  %v1425 = vmul.f32 %v1357, %v1401
  %v1426 = vmul.f32 %v1358, %v1401
  %v1427 = vmul.f32 %v1359, %v1401
  %v1428 = vmul.f32 %v1360, %v1401
  %v1429 = vmul.f32 %v1361, %v1401
  %v1430 = vmul.f32 %v1362, %v1401
  %v1431 = vmul.f32 %v1363, %v1401
  %v1432 = vmul.f32 %v1364, %v1401
  %v1433 = vmul.f32 %v1365, %v1401
  %v1434 = vmul.f32 %v1366, %v1401
  %v1435 = vmul.f32 %v1367, %v1401
  %v1436 = vmul.f32 %v1368, %v1401
  %v1437 = vmul.f32 %v1369, %v1401
  %v1438 = vmul.f32 %v1370, %v1401
  %v1439 = vmul.f32 %v1371, %v1401
  %v1440 = vmul.f32 %v1372, %v1401
  %v1441 = vmul.f32 %v1373, %v1401
  %v1442 = vmul.f32 %v1374, %v1401
  %v1443 = vmul.f32 %v1375, %v1401
  %v1444 = vmul.f32 %v1376, %v1401
  %v1445 = vmul.f32 %v1377, %v1401
  %v1446 = vmul.f32 %v1378, %v1401
  %v1447 = vmul.f32 %v1379, %v1401
  %v1448 = vmul.f32 %v1380, %v1401
  %v1449 = vmul.f32 %v1381, %v1401
  %v1450 = vmul.f32 %v1382, %v1401
  %v1451 = vmul.f32 %v1383, %v1401
  %v1452 = vmul.f32 %v1384, %v1401
  %v1453 = vmul.f32 %v1385, %v1401
  %v1454 = vmul.f32 %v1386, %v1401
  %v1455 = vmul.f32 %v1387, %v1401
  %v1456 = vmul.f32 %v1388, %v1401
  %v1457 = vmul.f32 %v1389, %v1401
  %v1458 = vmul.f32 %v1390, %v1401
  %v1459 = vmul.f32 %v1391, %v1401
  %v1460 = vmul.f32 %v1392, %v1401
  %v1461 = vmul.f32 %v1393, %v1401
  %v1462 = vmul.f32 %v1394, %v1401
  %v1463 = vmul.f32 %v1395, %v1401
  %v1464 = vmul.f32 %v1396, %v1401
  %v1465 = vmul.f32 %v1397, %v1401
  %v1466 = vmul.f32 %v1398, %v1401
  %v1467 = vsel %vm624, %v1403, 0.0
  %1468 = vadd.xlane.f32.xlu0 %v1467
  %v1469 = vpop.xlane.xlu0 %1468
  %v1470 = vsel %vm624, %v1404, 0.0
  %1471 = vadd.xlane.f32.xlu0 %v1470
  %v1472 = vpop.xlane.xlu0 %1471
  %v1473 = vsel %vm624, %v1405, 0.0
  %1474 = vadd.xlane.f32.xlu0 %v1473
  %v1475 = vpop.xlane.xlu0 %1474
  %v1476 = vsel %vm624, %v1406, 0.0
  %1477 = vadd.xlane.f32.xlu0 %v1476
  %v1478 = vpop.xlane.xlu0 %1477
  %v1479 = vsel %vm624, %v1407, 0.0
  %1480 = vadd.xlane.f32.xlu0 %v1479
  %v1481 = vpop.xlane.xlu0 %1480
  %v1482 = vsel %vm624, %v1408, 0.0
  %1483 = vadd.xlane.f32.xlu0 %v1482
  %v1484 = vpop.xlane.xlu0 %1483
  %v1485 = vsel %vm624, %v1409, 0.0
  %1486 = vadd.xlane.f32.xlu0 %v1485
  %v1487 = vpop.xlane.xlu0 %1486
  %v1488 = vsel %vm624, %v1410, 0.0
  %1489 = vadd.xlane.f32.xlu0 %v1488
  %v1490 = vpop.xlane.xlu0 %1489
  %v1491 = vsel %vm624, %v1411, 0.0
  %1492 = vadd.xlane.f32.xlu0 %v1491
  %v1493 = vpop.xlane.xlu0 %1492
  %v1494 = vsel %vm624, %v1412, 0.0
  %1495 = vadd.xlane.f32.xlu0 %v1494
  %v1496 = vpop.xlane.xlu0 %1495
  %v1497 = vsel %vm624, %v1413, 0.0
  %1498 = vadd.xlane.f32.xlu0 %v1497
  %v1499 = vpop.xlane.xlu0 %1498
  %v1500 = vsel %vm624, %v1414, 0.0
  %1501 = vadd.xlane.f32.xlu0 %v1500
  %v1502 = vpop.xlane.xlu0 %1501
  %v1503 = vsel %vm624, %v1415, 0.0
  %1504 = vadd.xlane.f32.xlu0 %v1503
  %v1505 = vpop.xlane.xlu0 %1504
  %v1506 = vsel %vm624, %v1416, 0.0
  %1507 = vadd.xlane.f32.xlu0 %v1506
  %v1508 = vpop.xlane.xlu0 %1507
  %v1509 = vsel %vm624, %v1417, 0.0
  %1510 = vadd.xlane.f32.xlu0 %v1509
  %v1511 = vpop.xlane.xlu0 %1510
  %v1512 = vsel %vm624, %v1418, 0.0
  %1513 = vadd.xlane.f32.xlu0 %v1512
  %v1514 = vpop.xlane.xlu0 %1513
  %v1515 = vsel %vm624, %v1419, 0.0
  %1516 = vadd.xlane.f32.xlu0 %v1515
  %v1517 = vpop.xlane.xlu0 %1516
  %v1518 = vsel %vm624, %v1420, 0.0
  %1519 = vadd.xlane.f32.xlu0 %v1518
  %v1520 = vpop.xlane.xlu0 %1519
  %v1521 = vsel %vm624, %v1421, 0.0
  %1522 = vadd.xlane.f32.xlu0 %v1521
  %v1523 = vpop.xlane.xlu0 %1522
  %v1524 = vsel %vm624, %v1422, 0.0
  %1525 = vadd.xlane.f32.xlu0 %v1524
  %v1526 = vpop.xlane.xlu0 %1525
  %v1527 = vsel %vm624, %v1423, 0.0
  %1528 = vadd.xlane.f32.xlu0 %v1527
  %v1529 = vpop.xlane.xlu0 %1528
  %v1530 = vsel %vm624, %v1424, 0.0
  %1531 = vadd.xlane.f32.xlu0 %v1530
  %v1532 = vpop.xlane.xlu0 %1531
  %v1533 = vsel %vm624, %v1425, 0.0
  %1534 = vadd.xlane.f32.xlu0 %v1533
  %v1535 = vpop.xlane.xlu0 %1534
  %v1536 = vsel %vm624, %v1426, 0.0
  %1537 = vadd.xlane.f32.xlu0 %v1536
  %v1538 = vpop.xlane.xlu0 %1537
  %v1539 = vsel %vm624, %v1427, 0.0
  %1540 = vadd.xlane.f32.xlu0 %v1539
  %v1541 = vpop.xlane.xlu0 %1540
  %v1542 = vsel %vm624, %v1428, 0.0
  %1543 = vadd.xlane.f32.xlu0 %v1542
  %v1544 = vpop.xlane.xlu0 %1543
  %v1545 = vsel %vm624, %v1429, 0.0
  %1546 = vadd.xlane.f32.xlu0 %v1545
  %v1547 = vpop.xlane.xlu0 %1546
  %v1548 = vsel %vm624, %v1430, 0.0
  %1549 = vadd.xlane.f32.xlu0 %v1548
  %v1550 = vpop.xlane.xlu0 %1549
  %v1551 = vsel %vm624, %v1431, 0.0
  %1552 = vadd.xlane.f32.xlu0 %v1551
  %v1553 = vpop.xlane.xlu0 %1552
  %v1554 = vsel %vm624, %v1432, 0.0
  %1555 = vadd.xlane.f32.xlu0 %v1554
  %v1556 = vpop.xlane.xlu0 %1555
  %v1557 = vsel %vm624, %v1433, 0.0
  %1558 = vadd.xlane.f32.xlu0 %v1557
  %v1559 = vpop.xlane.xlu0 %1558
  %v1560 = vsel %vm624, %v1434, 0.0
  %1561 = vadd.xlane.f32.xlu0 %v1560
  %v1562 = vpop.xlane.xlu0 %1561
  %v1563 = vsel %vm624, %v1435, 0.0
  %1564 = vadd.xlane.f32.xlu0 %v1563
  %v1565 = vpop.xlane.xlu0 %1564
  %v1566 = vsel %vm624, %v1436, 0.0
  %1567 = vadd.xlane.f32.xlu0 %v1566
  %v1568 = vpop.xlane.xlu0 %1567
  %v1569 = vsel %vm624, %v1437, 0.0
  %1570 = vadd.xlane.f32.xlu0 %v1569
  %v1571 = vpop.xlane.xlu0 %1570
  %v1572 = vsel %vm624, %v1438, 0.0
  %1573 = vadd.xlane.f32.xlu0 %v1572
  %v1574 = vpop.xlane.xlu0 %1573
  %v1575 = vsel %vm624, %v1439, 0.0
  %1576 = vadd.xlane.f32.xlu0 %v1575
  %v1577 = vpop.xlane.xlu0 %1576
  %v1578 = vsel %vm624, %v1440, 0.0
  %1579 = vadd.xlane.f32.xlu0 %v1578
  %v1580 = vpop.xlane.xlu0 %1579
  %v1581 = vsel %vm624, %v1441, 0.0
  %1582 = vadd.xlane.f32.xlu0 %v1581
  %v1583 = vpop.xlane.xlu0 %1582
  %v1584 = vsel %vm624, %v1442, 0.0
  %1585 = vadd.xlane.f32.xlu0 %v1584
  %v1586 = vpop.xlane.xlu0 %1585
  %v1587 = vsel %vm624, %v1443, 0.0
  %1588 = vadd.xlane.f32.xlu0 %v1587
  %v1589 = vpop.xlane.xlu0 %1588
  %v1590 = vsel %vm624, %v1444, 0.0
  %1591 = vadd.xlane.f32.xlu0 %v1590
  %v1592 = vpop.xlane.xlu0 %1591
  %v1593 = vsel %vm624, %v1445, 0.0
  %1594 = vadd.xlane.f32.xlu0 %v1593
  %v1595 = vpop.xlane.xlu0 %1594
  %v1596 = vsel %vm624, %v1446, 0.0
  %1597 = vadd.xlane.f32.xlu0 %v1596
  %v1598 = vpop.xlane.xlu0 %1597
  %v1599 = vsel %vm624, %v1447, 0.0
  %1600 = vadd.xlane.f32.xlu0 %v1599
  %v1601 = vpop.xlane.xlu0 %1600
  %v1602 = vsel %vm624, %v1448, 0.0
  %1603 = vadd.xlane.f32.xlu0 %v1602
  %v1604 = vpop.xlane.xlu0 %1603
  %v1605 = vsel %vm624, %v1449, 0.0
  %1606 = vadd.xlane.f32.xlu0 %v1605
  %v1607 = vpop.xlane.xlu0 %1606
  %v1608 = vsel %vm624, %v1450, 0.0
  %1609 = vadd.xlane.f32.xlu0 %v1608
  %v1610 = vpop.xlane.xlu0 %1609
  %v1611 = vsel %vm624, %v1451, 0.0
  %1612 = vadd.xlane.f32.xlu0 %v1611
  %v1613 = vpop.xlane.xlu0 %1612
  %v1614 = vsel %vm624, %v1452, 0.0
  %1615 = vadd.xlane.f32.xlu0 %v1614
  %v1616 = vpop.xlane.xlu0 %1615
  %v1617 = vsel %vm624, %v1453, 0.0
  %1618 = vadd.xlane.f32.xlu0 %v1617
  %v1619 = vpop.xlane.xlu0 %1618
  %v1620 = vsel %vm624, %v1454, 0.0
  %1621 = vadd.xlane.f32.xlu0 %v1620
  %v1622 = vpop.xlane.xlu0 %1621
  %v1623 = vsel %vm624, %v1455, 0.0
  %1624 = vadd.xlane.f32.xlu0 %v1623
  %v1625 = vpop.xlane.xlu0 %1624
  %v1626 = vsel %vm624, %v1456, 0.0
  %1627 = vadd.xlane.f32.xlu0 %v1626
  %v1628 = vpop.xlane.xlu0 %1627
  %v1629 = vsel %vm624, %v1457, 0.0
  %1630 = vadd.xlane.f32.xlu0 %v1629
  %v1631 = vpop.xlane.xlu0 %1630
  %v1632 = vsel %vm624, %v1458, 0.0
  %1633 = vadd.xlane.f32.xlu0 %v1632
  %v1634 = vpop.xlane.xlu0 %1633
  %v1635 = vsel %vm624, %v1459, 0.0
  %1636 = vadd.xlane.f32.xlu0 %v1635
  %v1637 = vpop.xlane.xlu0 %1636
  %v1638 = vsel %vm624, %v1460, 0.0
  %1639 = vadd.xlane.f32.xlu0 %v1638
  %v1640 = vpop.xlane.xlu0 %1639
  %v1641 = vsel %vm624, %v1461, 0.0
  %1642 = vadd.xlane.f32.xlu0 %v1641
  %v1643 = vpop.xlane.xlu0 %1642
  %v1644 = vsel %vm624, %v1462, 0.0
  %1645 = vadd.xlane.f32.xlu0 %v1644
  %v1646 = vpop.xlane.xlu0 %1645
  %v1647 = vsel %vm624, %v1463, 0.0
  %1648 = vadd.xlane.f32.xlu0 %v1647
  %v1649 = vpop.xlane.xlu0 %1648
  %v1650 = vsel %vm624, %v1464, 0.0
  %1651 = vadd.xlane.f32.xlu0 %v1650
  %v1652 = vpop.xlane.xlu0 %1651
  %v1653 = vsel %vm624, %v1465, 0.0
  %1654 = vadd.xlane.f32.xlu0 %v1653
  %v1655 = vpop.xlane.xlu0 %1654
  %v1656 = vsel %vm624, %v1466, 0.0
  %1657 = vadd.xlane.f32.xlu0 %v1656
  %v1658 = vpop.xlane.xlu0 %1657
  %v1659 = vrot.slane %v1469, 4
  %v1660 = vmax.f32 %v1469, %v1659
  %v1661 = vrot.slane %v1660, 2
  %v1662 = vmax.f32 %v1660, %v1661
  %v1663 = vrot.slane %v1662, 1
  %v1664 = vmax.f32 %v1662, %v1663
  %v1665 = vrot.slane %v1472, 4
  %v1666 = vmax.f32 %v1472, %v1665
  %v1667 = vrot.slane %v1666, 2
  %v1668 = vmax.f32 %v1666, %v1667
  %v1669 = vrot.slane %v1668, 1
  %v1670 = vmax.f32 %v1668, %v1669
  %v1671 = vrot.slane %v1475, 4
  %v1672 = vmax.f32 %v1475, %v1671
  %v1673 = vrot.slane %v1672, 2
  %v1674 = vmax.f32 %v1672, %v1673
  %v1675 = vrot.slane %v1674, 1
  %v1676 = vmax.f32 %v1674, %v1675
  %v1677 = vrot.slane %v1478, 4
  %v1678 = vmax.f32 %v1478, %v1677
  %v1679 = vrot.slane %v1678, 2
  %v1680 = vmax.f32 %v1678, %v1679
  %v1681 = vrot.slane %v1680, 1
  %v1682 = vmax.f32 %v1680, %v1681
  %v1683 = vrot.slane %v1481, 4
  %v1684 = vmax.f32 %v1481, %v1683
  %v1685 = vrot.slane %v1684, 2
  %v1686 = vmax.f32 %v1684, %v1685
  %v1687 = vrot.slane %v1686, 1
  %v1688 = vmax.f32 %v1686, %v1687
  %v1689 = vrot.slane %v1484, 4
  %v1690 = vmax.f32 %v1484, %v1689
  %v1691 = vrot.slane %v1690, 2
  %v1692 = vmax.f32 %v1690, %v1691
  %v1693 = vrot.slane %v1692, 1
  %v1694 = vmax.f32 %v1692, %v1693
  %v1695 = vrot.slane %v1487, 4
  %v1696 = vmax.f32 %v1487, %v1695
  %v1697 = vrot.slane %v1696, 2
  %v1698 = vmax.f32 %v1696, %v1697
  %v1699 = vrot.slane %v1698, 1
  %v1700 = vmax.f32 %v1698, %v1699
  %v1701 = vrot.slane %v1490, 4
  %v1702 = vmax.f32 %v1490, %v1701
  %v1703 = vrot.slane %v1702, 2
  %v1704 = vmax.f32 %v1702, %v1703
  %v1705 = vrot.slane %v1704, 1
  %v1706 = vmax.f32 %v1704, %v1705
  %v1707 = vrot.slane %v1493, 4
  %v1708 = vmax.f32 %v1493, %v1707
  %v1709 = vrot.slane %v1708, 2
  %v1710 = vmax.f32 %v1708, %v1709
  %v1711 = vrot.slane %v1710, 1
  %v1712 = vmax.f32 %v1710, %v1711
  %v1713 = vrot.slane %v1496, 4
  %v1714 = vmax.f32 %v1496, %v1713
  %v1715 = vrot.slane %v1714, 2
  %v1716 = vmax.f32 %v1714, %v1715
  %v1717 = vrot.slane %v1716, 1
  %v1718 = vmax.f32 %v1716, %v1717
  %v1719 = vrot.slane %v1499, 4
  %v1720 = vmax.f32 %v1499, %v1719
  %v1721 = vrot.slane %v1720, 2
  %v1722 = vmax.f32 %v1720, %v1721
  %v1723 = vrot.slane %v1722, 1
  %v1724 = vmax.f32 %v1722, %v1723
  %v1725 = vrot.slane %v1502, 4
  %v1726 = vmax.f32 %v1502, %v1725
  %v1727 = vrot.slane %v1726, 2
  %v1728 = vmax.f32 %v1726, %v1727
  %v1729 = vrot.slane %v1728, 1
  %v1730 = vmax.f32 %v1728, %v1729
  %v1731 = vrot.slane %v1505, 4
  %v1732 = vmax.f32 %v1505, %v1731
  %v1733 = vrot.slane %v1732, 2
  %v1734 = vmax.f32 %v1732, %v1733
  %v1735 = vrot.slane %v1734, 1
  %v1736 = vmax.f32 %v1734, %v1735
  %v1737 = vrot.slane %v1508, 4
  %v1738 = vmax.f32 %v1508, %v1737
  %v1739 = vrot.slane %v1738, 2
  %v1740 = vmax.f32 %v1738, %v1739
  %v1741 = vrot.slane %v1740, 1
  %v1742 = vmax.f32 %v1740, %v1741
  %v1743 = vrot.slane %v1511, 4
  %v1744 = vmax.f32 %v1511, %v1743
  %v1745 = vrot.slane %v1744, 2
  %v1746 = vmax.f32 %v1744, %v1745
  %v1747 = vrot.slane %v1746, 1
  %v1748 = vmax.f32 %v1746, %v1747
  %v1749 = vrot.slane %v1514, 4
  %v1750 = vmax.f32 %v1514, %v1749
  %v1751 = vrot.slane %v1750, 2
  %v1752 = vmax.f32 %v1750, %v1751
  %v1753 = vrot.slane %v1752, 1
  %v1754 = vmax.f32 %v1752, %v1753
  %v1755 = vrot.slane %v1517, 4
  %v1756 = vmax.f32 %v1517, %v1755
  %v1757 = vrot.slane %v1756, 2
  %v1758 = vmax.f32 %v1756, %v1757
  %v1759 = vrot.slane %v1758, 1
  %v1760 = vmax.f32 %v1758, %v1759
  %v1761 = vrot.slane %v1520, 4
  %v1762 = vmax.f32 %v1520, %v1761
  %v1763 = vrot.slane %v1762, 2
  %v1764 = vmax.f32 %v1762, %v1763
  %v1765 = vrot.slane %v1764, 1
  %v1766 = vmax.f32 %v1764, %v1765
  %v1767 = vrot.slane %v1523, 4
  %v1768 = vmax.f32 %v1523, %v1767
  %v1769 = vrot.slane %v1768, 2
  %v1770 = vmax.f32 %v1768, %v1769
  %v1771 = vrot.slane %v1770, 1
  %v1772 = vmax.f32 %v1770, %v1771
  %v1773 = vrot.slane %v1526, 4
  %v1774 = vmax.f32 %v1526, %v1773
  %v1775 = vrot.slane %v1774, 2
  %v1776 = vmax.f32 %v1774, %v1775
  %v1777 = vrot.slane %v1776, 1
  %v1778 = vmax.f32 %v1776, %v1777
  %v1779 = vrot.slane %v1529, 4
  %v1780 = vmax.f32 %v1529, %v1779
  %v1781 = vrot.slane %v1780, 2
  %v1782 = vmax.f32 %v1780, %v1781
  %v1783 = vrot.slane %v1782, 1
  %v1784 = vmax.f32 %v1782, %v1783
  %v1785 = vrot.slane %v1532, 4
  %v1786 = vmax.f32 %v1532, %v1785
  %v1787 = vrot.slane %v1786, 2
  %v1788 = vmax.f32 %v1786, %v1787
  %v1789 = vrot.slane %v1788, 1
  %v1790 = vmax.f32 %v1788, %v1789
  %v1791 = vrot.slane %v1535, 4
  %v1792 = vmax.f32 %v1535, %v1791
  %v1793 = vrot.slane %v1792, 2
  %v1794 = vmax.f32 %v1792, %v1793
  %v1795 = vrot.slane %v1794, 1
  %v1796 = vmax.f32 %v1794, %v1795
  %v1797 = vrot.slane %v1538, 4
  %v1798 = vmax.f32 %v1538, %v1797
  %v1799 = vrot.slane %v1798, 2
  %v1800 = vmax.f32 %v1798, %v1799
  %v1801 = vrot.slane %v1800, 1
  %v1802 = vmax.f32 %v1800, %v1801
  %v1803 = vrot.slane %v1541, 4
  %v1804 = vmax.f32 %v1541, %v1803
  %v1805 = vrot.slane %v1804, 2
  %v1806 = vmax.f32 %v1804, %v1805
  %v1807 = vrot.slane %v1806, 1
  %v1808 = vmax.f32 %v1806, %v1807
  %v1809 = vrot.slane %v1544, 4
  %v1810 = vmax.f32 %v1544, %v1809
  %v1811 = vrot.slane %v1810, 2
  %v1812 = vmax.f32 %v1810, %v1811
  %v1813 = vrot.slane %v1812, 1
  %v1814 = vmax.f32 %v1812, %v1813
  %v1815 = vrot.slane %v1547, 4
  %v1816 = vmax.f32 %v1547, %v1815
  %v1817 = vrot.slane %v1816, 2
  %v1818 = vmax.f32 %v1816, %v1817
  %v1819 = vrot.slane %v1818, 1
  %v1820 = vmax.f32 %v1818, %v1819
  %v1821 = vrot.slane %v1550, 4
  %v1822 = vmax.f32 %v1550, %v1821
  %v1823 = vrot.slane %v1822, 2
  %v1824 = vmax.f32 %v1822, %v1823
  %v1825 = vrot.slane %v1824, 1
  %v1826 = vmax.f32 %v1824, %v1825
  %v1827 = vrot.slane %v1553, 4
  %v1828 = vmax.f32 %v1553, %v1827
  %v1829 = vrot.slane %v1828, 2
  %v1830 = vmax.f32 %v1828, %v1829
  %v1831 = vrot.slane %v1830, 1
  %v1832 = vmax.f32 %v1830, %v1831
  %v1833 = vrot.slane %v1556, 4
  %v1834 = vmax.f32 %v1556, %v1833
  %v1835 = vrot.slane %v1834, 2
  %v1836 = vmax.f32 %v1834, %v1835
  %v1837 = vrot.slane %v1836, 1
  %v1838 = vmax.f32 %v1836, %v1837
  %v1839 = vrot.slane %v1559, 4
  %v1840 = vmax.f32 %v1559, %v1839
  %v1841 = vrot.slane %v1840, 2
  %v1842 = vmax.f32 %v1840, %v1841
  %v1843 = vrot.slane %v1842, 1
  %v1844 = vmax.f32 %v1842, %v1843
  %v1845 = vrot.slane %v1562, 4
  %v1846 = vmax.f32 %v1562, %v1845
  %v1847 = vrot.slane %v1846, 2
  %v1848 = vmax.f32 %v1846, %v1847
  %v1849 = vrot.slane %v1848, 1
  %v1850 = vmax.f32 %v1848, %v1849
  %v1851 = vrot.slane %v1565, 4
  %v1852 = vmax.f32 %v1565, %v1851
  %v1853 = vrot.slane %v1852, 2
  %v1854 = vmax.f32 %v1852, %v1853
  %v1855 = vrot.slane %v1854, 1
  %v1856 = vmax.f32 %v1854, %v1855
  %v1857 = vrot.slane %v1568, 4
  %v1858 = vmax.f32 %v1568, %v1857
  %v1859 = vrot.slane %v1858, 2
  %v1860 = vmax.f32 %v1858, %v1859
  %v1861 = vrot.slane %v1860, 1
  %v1862 = vmax.f32 %v1860, %v1861
  %v1863 = vrot.slane %v1571, 4
  %v1864 = vmax.f32 %v1571, %v1863
  %v1865 = vrot.slane %v1864, 2
  %v1866 = vmax.f32 %v1864, %v1865
  %v1867 = vrot.slane %v1866, 1
  %v1868 = vmax.f32 %v1866, %v1867
  %v1869 = vrot.slane %v1574, 4
  %v1870 = vmax.f32 %v1574, %v1869
  %v1871 = vrot.slane %v1870, 2
  %v1872 = vmax.f32 %v1870, %v1871
  %v1873 = vrot.slane %v1872, 1
  %v1874 = vmax.f32 %v1872, %v1873
  %v1875 = vrot.slane %v1577, 4
  %v1876 = vmax.f32 %v1577, %v1875
  %v1877 = vrot.slane %v1876, 2
  %v1878 = vmax.f32 %v1876, %v1877
  %v1879 = vrot.slane %v1878, 1
  %v1880 = vmax.f32 %v1878, %v1879
  %v1881 = vrot.slane %v1580, 4
  %v1882 = vmax.f32 %v1580, %v1881
  %v1883 = vrot.slane %v1882, 2
  %v1884 = vmax.f32 %v1882, %v1883
  %v1885 = vrot.slane %v1884, 1
  %v1886 = vmax.f32 %v1884, %v1885
  %v1887 = vrot.slane %v1583, 4
  %v1888 = vmax.f32 %v1583, %v1887
  %v1889 = vrot.slane %v1888, 2
  %v1890 = vmax.f32 %v1888, %v1889
  %v1891 = vrot.slane %v1890, 1
  %v1892 = vmax.f32 %v1890, %v1891
  %v1893 = vrot.slane %v1586, 4
  %v1894 = vmax.f32 %v1586, %v1893
  %v1895 = vrot.slane %v1894, 2
  %v1896 = vmax.f32 %v1894, %v1895
  %v1897 = vrot.slane %v1896, 1
  %v1898 = vmax.f32 %v1896, %v1897
  %v1899 = vrot.slane %v1589, 4
  %v1900 = vmax.f32 %v1589, %v1899
  %v1901 = vrot.slane %v1900, 2
  %v1902 = vmax.f32 %v1900, %v1901
  %v1903 = vrot.slane %v1902, 1
  %v1904 = vmax.f32 %v1902, %v1903
  %v1905 = vrot.slane %v1592, 4
  %v1906 = vmax.f32 %v1592, %v1905
  %v1907 = vrot.slane %v1906, 2
  %v1908 = vmax.f32 %v1906, %v1907
  %v1909 = vrot.slane %v1908, 1
  %v1910 = vmax.f32 %v1908, %v1909
  %v1911 = vrot.slane %v1595, 4
  %v1912 = vmax.f32 %v1595, %v1911
  %v1913 = vrot.slane %v1912, 2
  %v1914 = vmax.f32 %v1912, %v1913
  %v1915 = vrot.slane %v1914, 1
  %v1916 = vmax.f32 %v1914, %v1915
  %v1917 = vrot.slane %v1598, 4
  %v1918 = vmax.f32 %v1598, %v1917
  %v1919 = vrot.slane %v1918, 2
  %v1920 = vmax.f32 %v1918, %v1919
  %v1921 = vrot.slane %v1920, 1
  %v1922 = vmax.f32 %v1920, %v1921
  %v1923 = vrot.slane %v1601, 4
  %v1924 = vmax.f32 %v1601, %v1923
  %v1925 = vrot.slane %v1924, 2
  %v1926 = vmax.f32 %v1924, %v1925
  %v1927 = vrot.slane %v1926, 1
  %v1928 = vmax.f32 %v1926, %v1927
  %v1929 = vrot.slane %v1604, 4
  %v1930 = vmax.f32 %v1604, %v1929
  %v1931 = vrot.slane %v1930, 2
  %v1932 = vmax.f32 %v1930, %v1931
  %v1933 = vrot.slane %v1932, 1
  %v1934 = vmax.f32 %v1932, %v1933
  %v1935 = vrot.slane %v1607, 4
  %v1936 = vmax.f32 %v1607, %v1935
  %v1937 = vrot.slane %v1936, 2
  %v1938 = vmax.f32 %v1936, %v1937
  %v1939 = vrot.slane %v1938, 1
  %v1940 = vmax.f32 %v1938, %v1939
  %v1941 = vrot.slane %v1610, 4
  %v1942 = vmax.f32 %v1610, %v1941
  %v1943 = vrot.slane %v1942, 2
  %v1944 = vmax.f32 %v1942, %v1943
  %v1945 = vrot.slane %v1944, 1
  %v1946 = vmax.f32 %v1944, %v1945
  %v1947 = vrot.slane %v1613, 4
  %v1948 = vmax.f32 %v1613, %v1947
  %v1949 = vrot.slane %v1948, 2
  %v1950 = vmax.f32 %v1948, %v1949
  %v1951 = vrot.slane %v1950, 1
  %v1952 = vmax.f32 %v1950, %v1951
  %v1953 = vrot.slane %v1616, 4
  %v1954 = vmax.f32 %v1616, %v1953
  %v1955 = vrot.slane %v1954, 2
  %v1956 = vmax.f32 %v1954, %v1955
  %v1957 = vrot.slane %v1956, 1
  %v1958 = vmax.f32 %v1956, %v1957
  %v1959 = vrot.slane %v1619, 4
  %v1960 = vmax.f32 %v1619, %v1959
  %v1961 = vrot.slane %v1960, 2
  %v1962 = vmax.f32 %v1960, %v1961
  %v1963 = vrot.slane %v1962, 1
  %v1964 = vmax.f32 %v1962, %v1963
  %v1965 = vrot.slane %v1622, 4
  %v1966 = vmax.f32 %v1622, %v1965
  %v1967 = vrot.slane %v1966, 2
  %v1968 = vmax.f32 %v1966, %v1967
  %v1969 = vrot.slane %v1968, 1
  %v1970 = vmax.f32 %v1968, %v1969
  %v1971 = vrot.slane %v1625, 4
  %v1972 = vmax.f32 %v1625, %v1971
  %v1973 = vrot.slane %v1972, 2
  %v1974 = vmax.f32 %v1972, %v1973
  %v1975 = vrot.slane %v1974, 1
  %v1976 = vmax.f32 %v1974, %v1975
  %v1977 = vrot.slane %v1628, 4
  %v1978 = vmax.f32 %v1628, %v1977
  %v1979 = vrot.slane %v1978, 2
  %v1980 = vmax.f32 %v1978, %v1979
  %v1981 = vrot.slane %v1980, 1
  %v1982 = vmax.f32 %v1980, %v1981
  %v1983 = vrot.slane %v1631, 4
  %v1984 = vmax.f32 %v1631, %v1983
  %v1985 = vrot.slane %v1984, 2
  %v1986 = vmax.f32 %v1984, %v1985
  %v1987 = vrot.slane %v1986, 1
  %v1988 = vmax.f32 %v1986, %v1987
  %v1989 = vrot.slane %v1634, 4
  %v1990 = vmax.f32 %v1634, %v1989
  %v1991 = vrot.slane %v1990, 2
  %v1992 = vmax.f32 %v1990, %v1991
  %v1993 = vrot.slane %v1992, 1
  %v1994 = vmax.f32 %v1992, %v1993
  %v1995 = vrot.slane %v1637, 4
  %v1996 = vmax.f32 %v1637, %v1995
  %v1997 = vrot.slane %v1996, 2
  %v1998 = vmax.f32 %v1996, %v1997
  %v1999 = vrot.slane %v1998, 1
  %v2000 = vmax.f32 %v1998, %v1999
  %v2001 = vrot.slane %v1640, 4
  %v2002 = vmax.f32 %v1640, %v2001
  %v2003 = vrot.slane %v2002, 2
  %v2004 = vmax.f32 %v2002, %v2003
  %v2005 = vrot.slane %v2004, 1
  %v2006 = vmax.f32 %v2004, %v2005
  %v2007 = vrot.slane %v1643, 4
  %v2008 = vmax.f32 %v1643, %v2007
  %v2009 = vrot.slane %v2008, 2
  %v2010 = vmax.f32 %v2008, %v2009
  %v2011 = vrot.slane %v2010, 1
  %v2012 = vmax.f32 %v2010, %v2011
  %v2013 = vrot.slane %v1646, 4
  %v2014 = vmax.f32 %v1646, %v2013
  %v2015 = vrot.slane %v2014, 2
  %v2016 = vmax.f32 %v2014, %v2015
  %v2017 = vrot.slane %v2016, 1
  %v2018 = vmax.f32 %v2016, %v2017
  %v2019 = vrot.slane %v1649, 4
  %v2020 = vmax.f32 %v1649, %v2019
  %v2021 = vrot.slane %v2020, 2
  %v2022 = vmax.f32 %v2020, %v2021
  %v2023 = vrot.slane %v2022, 1
  %v2024 = vmax.f32 %v2022, %v2023
  %v2025 = vrot.slane %v1652, 4
  %v2026 = vmax.f32 %v1652, %v2025
  %v2027 = vrot.slane %v2026, 2
  %v2028 = vmax.f32 %v2026, %v2027
  %v2029 = vrot.slane %v2028, 1
  %v2030 = vmax.f32 %v2028, %v2029
  %v2031 = vrot.slane %v1655, 4
  %v2032 = vmax.f32 %v1655, %v2031
  %v2033 = vrot.slane %v2032, 2
  %v2034 = vmax.f32 %v2032, %v2033
  %v2035 = vrot.slane %v2034, 1
  %v2036 = vmax.f32 %v2034, %v2035
  %v2037 = vrot.slane %v1658, 4
  %v2038 = vmax.f32 %v1658, %v2037
  %v2039 = vrot.slane %v2038, 2
  %v2040 = vmax.f32 %v2038, %v2039
  %v2041 = vrot.slane %v2040, 1
  %v2042 = vmax.f32 %v2040, %v2041
  %v2043 = vsub.f32 %v1469, %v1664
  %v2044 = vsub.f32 %v1472, %v1670
  %v2045 = vsub.f32 %v1475, %v1676
  %v2046 = vsub.f32 %v1478, %v1682
  %v2047 = vsub.f32 %v1481, %v1688
  %v2048 = vsub.f32 %v1484, %v1694
  %v2049 = vsub.f32 %v1487, %v1700
  %v2050 = vsub.f32 %v1490, %v1706
  %v2051 = vsub.f32 %v1493, %v1712
  %v2052 = vsub.f32 %v1496, %v1718
  %v2053 = vsub.f32 %v1499, %v1724
  %v2054 = vsub.f32 %v1502, %v1730
  %v2055 = vsub.f32 %v1505, %v1736
  %v2056 = vsub.f32 %v1508, %v1742
  %v2057 = vsub.f32 %v1511, %v1748
  %v2058 = vsub.f32 %v1514, %v1754
  %v2059 = vsub.f32 %v1517, %v1760
  %v2060 = vsub.f32 %v1520, %v1766
  %v2061 = vsub.f32 %v1523, %v1772
  %v2062 = vsub.f32 %v1526, %v1778
  %v2063 = vsub.f32 %v1529, %v1784
  %v2064 = vsub.f32 %v1532, %v1790
  %v2065 = vsub.f32 %v1535, %v1796
  %v2066 = vsub.f32 %v1538, %v1802
  %v2067 = vsub.f32 %v1541, %v1808
  %v2068 = vsub.f32 %v1544, %v1814
  %v2069 = vsub.f32 %v1547, %v1820
  %v2070 = vsub.f32 %v1550, %v1826
  %v2071 = vsub.f32 %v1553, %v1832
  %v2072 = vsub.f32 %v1556, %v1838
  %v2073 = vsub.f32 %v1559, %v1844
  %v2074 = vsub.f32 %v1562, %v1850
  %v2075 = vsub.f32 %v1565, %v1856
  %v2076 = vsub.f32 %v1568, %v1862
  %v2077 = vsub.f32 %v1571, %v1868
  %v2078 = vsub.f32 %v1574, %v1874
  %v2079 = vsub.f32 %v1577, %v1880
  %v2080 = vsub.f32 %v1580, %v1886
  %v2081 = vsub.f32 %v1583, %v1892
  %v2082 = vsub.f32 %v1586, %v1898
  %v2083 = vsub.f32 %v1589, %v1904
  %v2084 = vsub.f32 %v1592, %v1910
  %v2085 = vsub.f32 %v1595, %v1916
  %v2086 = vsub.f32 %v1598, %v1922
  %v2087 = vsub.f32 %v1601, %v1928
  %v2088 = vsub.f32 %v1604, %v1934
  %v2089 = vsub.f32 %v1607, %v1940
  %v2090 = vsub.f32 %v1610, %v1946
  %v2091 = vsub.f32 %v1613, %v1952
  %v2092 = vsub.f32 %v1616, %v1958
  %v2093 = vsub.f32 %v1619, %v1964
  %v2094 = vsub.f32 %v1622, %v1970
  %v2095 = vsub.f32 %v1625, %v1976
  %v2096 = vsub.f32 %v1628, %v1982
  %v2097 = vsub.f32 %v1631, %v1988
  %v2098 = vsub.f32 %v1634, %v1994
  %v2099 = vsub.f32 %v1637, %v2000
  %v2100 = vsub.f32 %v1640, %v2006
  %v2101 = vsub.f32 %v1643, %v2012
  %v2102 = vsub.f32 %v1646, %v2018
  %v2103 = vsub.f32 %v1649, %v2024
  %v2104 = vsub.f32 %v1652, %v2030
  %v2105 = vsub.f32 %v1655, %v2036
  %v2106 = vsub.f32 %v1658, %v2042
  %v2107 = vmul.f32 %v2043, 1.442695
  %v2108 = vpow.pop %v2107
  %v2109 = vmul.f32 %v2044, 1.442695
  %v2110 = vpow.pop %v2109
  %v2111 = vmul.f32 %v2045, 1.442695
  %v2112 = vpow.pop %v2111
  %v2113 = vmul.f32 %v2046, 1.442695
  %v2114 = vpow.pop %v2113
  %v2115 = vmul.f32 %v2047, 1.442695
  %v2116 = vpow.pop %v2115
  %v2117 = vmul.f32 %v2048, 1.442695
  %v2118 = vpow.pop %v2117
  %v2119 = vmul.f32 %v2049, 1.442695
  %v2120 = vpow.pop %v2119
  %v2121 = vmul.f32 %v2050, 1.442695
  %v2122 = vpow.pop %v2121
  %v2123 = vmul.f32 %v2051, 1.442695
  %v2124 = vpow.pop %v2123
  %v2125 = vmul.f32 %v2052, 1.442695
  %v2126 = vpow.pop %v2125
  %v2127 = vmul.f32 %v2053, 1.442695
  %v2128 = vpow.pop %v2127
  %v2129 = vmul.f32 %v2054, 1.442695
  %v2130 = vpow.pop %v2129
  %v2131 = vmul.f32 %v2055, 1.442695
  %v2132 = vpow.pop %v2131
  %v2133 = vmul.f32 %v2056, 1.442695
  %v2134 = vpow.pop %v2133
  %v2135 = vmul.f32 %v2057, 1.442695
  %v2136 = vpow.pop %v2135
  %v2137 = vmul.f32 %v2058, 1.442695
  %v2138 = vpow.pop %v2137
  %v2139 = vmul.f32 %v2059, 1.442695
  %v2140 = vpow.pop %v2139
  %v2141 = vmul.f32 %v2060, 1.442695
  %v2142 = vpow.pop %v2141
  %v2143 = vmul.f32 %v2061, 1.442695
  %v2144 = vpow.pop %v2143
  %v2145 = vmul.f32 %v2062, 1.442695
  %v2146 = vpow.pop %v2145
  %v2147 = vmul.f32 %v2063, 1.442695
  %v2148 = vpow.pop %v2147
  %v2149 = vmul.f32 %v2064, 1.442695
  %v2150 = vpow.pop %v2149
  %v2151 = vmul.f32 %v2065, 1.442695
  %v2152 = vpow.pop %v2151
  %v2153 = vmul.f32 %v2066, 1.442695
  %v2154 = vpow.pop %v2153
  %v2155 = vmul.f32 %v2067, 1.442695
  %v2156 = vpow.pop %v2155
  %v2157 = vmul.f32 %v2068, 1.442695
  %v2158 = vpow.pop %v2157
  %v2159 = vmul.f32 %v2069, 1.442695
  %v2160 = vpow.pop %v2159
  %v2161 = vmul.f32 %v2070, 1.442695
  %v2162 = vpow.pop %v2161
  %v2163 = vmul.f32 %v2071, 1.442695
  %v2164 = vpow.pop %v2163
  %v2165 = vmul.f32 %v2072, 1.442695
  %v2166 = vpow.pop %v2165
  %v2167 = vmul.f32 %v2073, 1.442695
  %v2168 = vpow.pop %v2167
  %v2169 = vmul.f32 %v2074, 1.442695
  %v2170 = vpow.pop %v2169
  %v2171 = vmul.f32 %v2075, 1.442695
  %v2172 = vpow.pop %v2171
  %v2173 = vmul.f32 %v2076, 1.442695
  %v2174 = vpow.pop %v2173
  %v2175 = vmul.f32 %v2077, 1.442695
  %v2176 = vpow.pop %v2175
  %v2177 = vmul.f32 %v2078, 1.442695
  %v2178 = vpow.pop %v2177
  %v2179 = vmul.f32 %v2079, 1.442695
  %v2180 = vpow.pop %v2179
  %v2181 = vmul.f32 %v2080, 1.442695
  %v2182 = vpow.pop %v2181
  %v2183 = vmul.f32 %v2081, 1.442695
  %v2184 = vpow.pop %v2183
  %v2185 = vmul.f32 %v2082, 1.442695
  %v2186 = vpow.pop %v2185
  %v2187 = vmul.f32 %v2083, 1.442695
  %v2188 = vpow.pop %v2187
  %v2189 = vmul.f32 %v2084, 1.442695
  %v2190 = vpow.pop %v2189
  %v2191 = vmul.f32 %v2085, 1.442695
  %v2192 = vpow.pop %v2191
  %v2193 = vmul.f32 %v2086, 1.442695
  %v2194 = vpow.pop %v2193
  %v2195 = vmul.f32 %v2087, 1.442695
  %v2196 = vpow.pop %v2195
  %v2197 = vmul.f32 %v2088, 1.442695
  %v2198 = vpow.pop %v2197
  %v2199 = vmul.f32 %v2089, 1.442695
  %v2200 = vpow.pop %v2199
  %v2201 = vmul.f32 %v2090, 1.442695
  %v2202 = vpow.pop %v2201
  %v2203 = vmul.f32 %v2091, 1.442695
  %v2204 = vpow.pop %v2203
  %v2205 = vmul.f32 %v2092, 1.442695
  %v2206 = vpow.pop %v2205
  %v2207 = vmul.f32 %v2093, 1.442695
  %v2208 = vpow.pop %v2207
  %v2209 = vmul.f32 %v2094, 1.442695
  %v2210 = vpow.pop %v2209
  %v2211 = vmul.f32 %v2095, 1.442695
  %v2212 = vpow.pop %v2211
  %v2213 = vmul.f32 %v2096, 1.442695
  %v2214 = vpow.pop %v2213
  %v2215 = vmul.f32 %v2097, 1.442695
  %v2216 = vpow.pop %v2215
  %v2217 = vmul.f32 %v2098, 1.442695
  %v2218 = vpow.pop %v2217
  %v2219 = vmul.f32 %v2099, 1.442695
  %v2220 = vpow.pop %v2219
  %v2221 = vmul.f32 %v2100, 1.442695
  %v2222 = vpow.pop %v2221
  %v2223 = vmul.f32 %v2101, 1.442695
  %v2224 = vpow.pop %v2223
  %v2225 = vmul.f32 %v2102, 1.442695
  %v2226 = vpow.pop %v2225
  %v2227 = vmul.f32 %v2103, 1.442695
  %v2228 = vpow.pop %v2227
  %v2229 = vmul.f32 %v2104, 1.442695
  %v2230 = vpow.pop %v2229
  %v2231 = vmul.f32 %v2105, 1.442695
  %v2232 = vpow.pop %v2231
  %v2233 = vmul.f32 %v2106, 1.442695
  %v2234 = vpow.pop %v2233
  %v2235 = vrot.slane %v2108, 4
  %v2236 = vadd.f32 %v2108, %v2235
  %v2237 = vrot.slane %v2236, 2
  %v2238 = vadd.f32 %v2236, %v2237
  %v2239 = vrot.slane %v2238, 1
  %v2240 = vadd.f32 %v2238, %v2239
  %v2241 = vrot.slane %v2110, 4
  %v2242 = vadd.f32 %v2110, %v2241
  %v2243 = vrot.slane %v2242, 2
  %v2244 = vadd.f32 %v2242, %v2243
  %v2245 = vrot.slane %v2244, 1
  %v2246 = vadd.f32 %v2244, %v2245
  %v2247 = vrot.slane %v2112, 4
  %v2248 = vadd.f32 %v2112, %v2247
  %v2249 = vrot.slane %v2248, 2
  %v2250 = vadd.f32 %v2248, %v2249
  %v2251 = vrot.slane %v2250, 1
  %v2252 = vadd.f32 %v2250, %v2251
  %v2253 = vrot.slane %v2114, 4
  %v2254 = vadd.f32 %v2114, %v2253
  %v2255 = vrot.slane %v2254, 2
  %v2256 = vadd.f32 %v2254, %v2255
  %v2257 = vrot.slane %v2256, 1
  %v2258 = vadd.f32 %v2256, %v2257
  %v2259 = vrot.slane %v2116, 4
  %v2260 = vadd.f32 %v2116, %v2259
  %v2261 = vrot.slane %v2260, 2
  %v2262 = vadd.f32 %v2260, %v2261
  %v2263 = vrot.slane %v2262, 1
  %v2264 = vadd.f32 %v2262, %v2263
  %v2265 = vrot.slane %v2118, 4
  %v2266 = vadd.f32 %v2118, %v2265
  %v2267 = vrot.slane %v2266, 2
  %v2268 = vadd.f32 %v2266, %v2267
  %v2269 = vrot.slane %v2268, 1
  %v2270 = vadd.f32 %v2268, %v2269
  %v2271 = vrot.slane %v2120, 4
  %v2272 = vadd.f32 %v2120, %v2271
  %v2273 = vrot.slane %v2272, 2
  %v2274 = vadd.f32 %v2272, %v2273
  %v2275 = vrot.slane %v2274, 1
  %v2276 = vadd.f32 %v2274, %v2275
  %v2277 = vrot.slane %v2122, 4
  %v2278 = vadd.f32 %v2122, %v2277
  %v2279 = vrot.slane %v2278, 2
  %v2280 = vadd.f32 %v2278, %v2279
  %v2281 = vrot.slane %v2280, 1
  %v2282 = vadd.f32 %v2280, %v2281
  %v2283 = vrot.slane %v2124, 4
  %v2284 = vadd.f32 %v2124, %v2283
  %v2285 = vrot.slane %v2284, 2
  %v2286 = vadd.f32 %v2284, %v2285
  %v2287 = vrot.slane %v2286, 1
  %v2288 = vadd.f32 %v2286, %v2287
  %v2289 = vrot.slane %v2126, 4
  %v2290 = vadd.f32 %v2126, %v2289
  %v2291 = vrot.slane %v2290, 2
  %v2292 = vadd.f32 %v2290, %v2291
  %v2293 = vrot.slane %v2292, 1
  %v2294 = vadd.f32 %v2292, %v2293
  %v2295 = vrot.slane %v2128, 4
  %v2296 = vadd.f32 %v2128, %v2295
  %v2297 = vrot.slane %v2296, 2
  %v2298 = vadd.f32 %v2296, %v2297
  %v2299 = vrot.slane %v2298, 1
  %v2300 = vadd.f32 %v2298, %v2299
  %v2301 = vrot.slane %v2130, 4
  %v2302 = vadd.f32 %v2130, %v2301
  %v2303 = vrot.slane %v2302, 2
  %v2304 = vadd.f32 %v2302, %v2303
  %v2305 = vrot.slane %v2304, 1
  %v2306 = vadd.f32 %v2304, %v2305
  %v2307 = vrot.slane %v2132, 4
  %v2308 = vadd.f32 %v2132, %v2307
  %v2309 = vrot.slane %v2308, 2
  %v2310 = vadd.f32 %v2308, %v2309
  %v2311 = vrot.slane %v2310, 1
  %v2312 = vadd.f32 %v2310, %v2311
  %v2313 = vrot.slane %v2134, 4
  %v2314 = vadd.f32 %v2134, %v2313
  %v2315 = vrot.slane %v2314, 2
  %v2316 = vadd.f32 %v2314, %v2315
  %v2317 = vrot.slane %v2316, 1
  %v2318 = vadd.f32 %v2316, %v2317
  %v2319 = vrot.slane %v2136, 4
  %v2320 = vadd.f32 %v2136, %v2319
  %v2321 = vrot.slane %v2320, 2
  %v2322 = vadd.f32 %v2320, %v2321
  %v2323 = vrot.slane %v2322, 1
  %v2324 = vadd.f32 %v2322, %v2323
  %v2325 = vrot.slane %v2138, 4
  %v2326 = vadd.f32 %v2138, %v2325
  %v2327 = vrot.slane %v2326, 2
  %v2328 = vadd.f32 %v2326, %v2327
  %v2329 = vrot.slane %v2328, 1
  %v2330 = vadd.f32 %v2328, %v2329
  %v2331 = vrot.slane %v2140, 4
  %v2332 = vadd.f32 %v2140, %v2331
  %v2333 = vrot.slane %v2332, 2
  %v2334 = vadd.f32 %v2332, %v2333
  %v2335 = vrot.slane %v2334, 1
  %v2336 = vadd.f32 %v2334, %v2335
  %v2337 = vrot.slane %v2142, 4
  %v2338 = vadd.f32 %v2142, %v2337
  %v2339 = vrot.slane %v2338, 2
  %v2340 = vadd.f32 %v2338, %v2339
  %v2341 = vrot.slane %v2340, 1
  %v2342 = vadd.f32 %v2340, %v2341
  %v2343 = vrot.slane %v2144, 4
  %v2344 = vadd.f32 %v2144, %v2343
  %v2345 = vrot.slane %v2344, 2
  %v2346 = vadd.f32 %v2344, %v2345
  %v2347 = vrot.slane %v2346, 1
  %v2348 = vadd.f32 %v2346, %v2347
  %v2349 = vrot.slane %v2146, 4
  %v2350 = vadd.f32 %v2146, %v2349
  %v2351 = vrot.slane %v2350, 2
  %v2352 = vadd.f32 %v2350, %v2351
  %v2353 = vrot.slane %v2352, 1
  %v2354 = vadd.f32 %v2352, %v2353
  %v2355 = vrot.slane %v2148, 4
  %v2356 = vadd.f32 %v2148, %v2355
  %v2357 = vrot.slane %v2356, 2
  %v2358 = vadd.f32 %v2356, %v2357
  %v2359 = vrot.slane %v2358, 1
  %v2360 = vadd.f32 %v2358, %v2359
  %v2361 = vrot.slane %v2150, 4
  %v2362 = vadd.f32 %v2150, %v2361
  %v2363 = vrot.slane %v2362, 2
  %v2364 = vadd.f32 %v2362, %v2363
  %v2365 = vrot.slane %v2364, 1
  %v2366 = vadd.f32 %v2364, %v2365
  %v2367 = vrot.slane %v2152, 4
  %v2368 = vadd.f32 %v2152, %v2367
  %v2369 = vrot.slane %v2368, 2
  %v2370 = vadd.f32 %v2368, %v2369
  %v2371 = vrot.slane %v2370, 1
  %v2372 = vadd.f32 %v2370, %v2371
  %v2373 = vrot.slane %v2154, 4
  %v2374 = vadd.f32 %v2154, %v2373
  %v2375 = vrot.slane %v2374, 2
  %v2376 = vadd.f32 %v2374, %v2375
  %v2377 = vrot.slane %v2376, 1
  %v2378 = vadd.f32 %v2376, %v2377
  %v2379 = vrot.slane %v2156, 4
  %v2380 = vadd.f32 %v2156, %v2379
  %v2381 = vrot.slane %v2380, 2
  %v2382 = vadd.f32 %v2380, %v2381
  %v2383 = vrot.slane %v2382, 1
  %v2384 = vadd.f32 %v2382, %v2383
  %v2385 = vrot.slane %v2158, 4
  %v2386 = vadd.f32 %v2158, %v2385
  %v2387 = vrot.slane %v2386, 2
  %v2388 = vadd.f32 %v2386, %v2387
  %v2389 = vrot.slane %v2388, 1
  %v2390 = vadd.f32 %v2388, %v2389
  %v2391 = vrot.slane %v2160, 4
  %v2392 = vadd.f32 %v2160, %v2391
  %v2393 = vrot.slane %v2392, 2
  %v2394 = vadd.f32 %v2392, %v2393
  %v2395 = vrot.slane %v2394, 1
  %v2396 = vadd.f32 %v2394, %v2395
  %v2397 = vrot.slane %v2162, 4
  %v2398 = vadd.f32 %v2162, %v2397
  %v2399 = vrot.slane %v2398, 2
  %v2400 = vadd.f32 %v2398, %v2399
  %v2401 = vrot.slane %v2400, 1
  %v2402 = vadd.f32 %v2400, %v2401
  %v2403 = vrot.slane %v2164, 4
  %v2404 = vadd.f32 %v2164, %v2403
  %v2405 = vrot.slane %v2404, 2
  %v2406 = vadd.f32 %v2404, %v2405
  %v2407 = vrot.slane %v2406, 1
  %v2408 = vadd.f32 %v2406, %v2407
  %v2409 = vrot.slane %v2166, 4
  %v2410 = vadd.f32 %v2166, %v2409
  %v2411 = vrot.slane %v2410, 2
  %v2412 = vadd.f32 %v2410, %v2411
  %v2413 = vrot.slane %v2412, 1
  %v2414 = vadd.f32 %v2412, %v2413
  %v2415 = vrot.slane %v2168, 4
  %v2416 = vadd.f32 %v2168, %v2415
  %v2417 = vrot.slane %v2416, 2
  %v2418 = vadd.f32 %v2416, %v2417
  %v2419 = vrot.slane %v2418, 1
  %v2420 = vadd.f32 %v2418, %v2419
  %v2421 = vrot.slane %v2170, 4
  %v2422 = vadd.f32 %v2170, %v2421
  %v2423 = vrot.slane %v2422, 2
  %v2424 = vadd.f32 %v2422, %v2423
  %v2425 = vrot.slane %v2424, 1
  %v2426 = vadd.f32 %v2424, %v2425
  %v2427 = vrot.slane %v2172, 4
  %v2428 = vadd.f32 %v2172, %v2427
  %v2429 = vrot.slane %v2428, 2
  %v2430 = vadd.f32 %v2428, %v2429
  %v2431 = vrot.slane %v2430, 1
  %v2432 = vadd.f32 %v2430, %v2431
  %v2433 = vrot.slane %v2174, 4
  %v2434 = vadd.f32 %v2174, %v2433
  %v2435 = vrot.slane %v2434, 2
  %v2436 = vadd.f32 %v2434, %v2435
  %v2437 = vrot.slane %v2436, 1
  %v2438 = vadd.f32 %v2436, %v2437
  %v2439 = vrot.slane %v2176, 4
  %v2440 = vadd.f32 %v2176, %v2439
  %v2441 = vrot.slane %v2440, 2
  %v2442 = vadd.f32 %v2440, %v2441
  %v2443 = vrot.slane %v2442, 1
  %v2444 = vadd.f32 %v2442, %v2443
  %v2445 = vrot.slane %v2178, 4
  %v2446 = vadd.f32 %v2178, %v2445
  %v2447 = vrot.slane %v2446, 2
  %v2448 = vadd.f32 %v2446, %v2447
  %v2449 = vrot.slane %v2448, 1
  %v2450 = vadd.f32 %v2448, %v2449
  %v2451 = vrot.slane %v2180, 4
  %v2452 = vadd.f32 %v2180, %v2451
  %v2453 = vrot.slane %v2452, 2
  %v2454 = vadd.f32 %v2452, %v2453
  %v2455 = vrot.slane %v2454, 1
  %v2456 = vadd.f32 %v2454, %v2455
  %v2457 = vrot.slane %v2182, 4
  %v2458 = vadd.f32 %v2182, %v2457
  %v2459 = vrot.slane %v2458, 2
  %v2460 = vadd.f32 %v2458, %v2459
  %v2461 = vrot.slane %v2460, 1
  %v2462 = vadd.f32 %v2460, %v2461
  %v2463 = vrot.slane %v2184, 4
  %v2464 = vadd.f32 %v2184, %v2463
  %v2465 = vrot.slane %v2464, 2
  %v2466 = vadd.f32 %v2464, %v2465
  %v2467 = vrot.slane %v2466, 1
  %v2468 = vadd.f32 %v2466, %v2467
  %v2469 = vrot.slane %v2186, 4
  %v2470 = vadd.f32 %v2186, %v2469
  %v2471 = vrot.slane %v2470, 2
  %v2472 = vadd.f32 %v2470, %v2471
  %v2473 = vrot.slane %v2472, 1
  %v2474 = vadd.f32 %v2472, %v2473
  %v2475 = vrot.slane %v2188, 4
  %v2476 = vadd.f32 %v2188, %v2475
  %v2477 = vrot.slane %v2476, 2
  %v2478 = vadd.f32 %v2476, %v2477
  %v2479 = vrot.slane %v2478, 1
  %v2480 = vadd.f32 %v2478, %v2479
  %v2481 = vrot.slane %v2190, 4
  %v2482 = vadd.f32 %v2190, %v2481
  %v2483 = vrot.slane %v2482, 2
  %v2484 = vadd.f32 %v2482, %v2483
  %v2485 = vrot.slane %v2484, 1
  %v2486 = vadd.f32 %v2484, %v2485
  %v2487 = vrot.slane %v2192, 4
  %v2488 = vadd.f32 %v2192, %v2487
  %v2489 = vrot.slane %v2488, 2
  %v2490 = vadd.f32 %v2488, %v2489
  %v2491 = vrot.slane %v2490, 1
  %v2492 = vadd.f32 %v2490, %v2491
  %v2493 = vrot.slane %v2194, 4
  %v2494 = vadd.f32 %v2194, %v2493
  %v2495 = vrot.slane %v2494, 2
  %v2496 = vadd.f32 %v2494, %v2495
  %v2497 = vrot.slane %v2496, 1
  %v2498 = vadd.f32 %v2496, %v2497
  %v2499 = vrot.slane %v2196, 4
  %v2500 = vadd.f32 %v2196, %v2499
  %v2501 = vrot.slane %v2500, 2
  %v2502 = vadd.f32 %v2500, %v2501
  %v2503 = vrot.slane %v2502, 1
  %v2504 = vadd.f32 %v2502, %v2503
  %v2505 = vrot.slane %v2198, 4
  %v2506 = vadd.f32 %v2198, %v2505
  %v2507 = vrot.slane %v2506, 2
  %v2508 = vadd.f32 %v2506, %v2507
  %v2509 = vrot.slane %v2508, 1
  %v2510 = vadd.f32 %v2508, %v2509
  %v2511 = vrot.slane %v2200, 4
  %v2512 = vadd.f32 %v2200, %v2511
  %v2513 = vrot.slane %v2512, 2
  %v2514 = vadd.f32 %v2512, %v2513
  %v2515 = vrot.slane %v2514, 1
  %v2516 = vadd.f32 %v2514, %v2515
  %v2517 = vrot.slane %v2202, 4
  %v2518 = vadd.f32 %v2202, %v2517
  %v2519 = vrot.slane %v2518, 2
  %v2520 = vadd.f32 %v2518, %v2519
  %v2521 = vrot.slane %v2520, 1
  %v2522 = vadd.f32 %v2520, %v2521
  %v2523 = vrot.slane %v2204, 4
  %v2524 = vadd.f32 %v2204, %v2523
  %v2525 = vrot.slane %v2524, 2
  %v2526 = vadd.f32 %v2524, %v2525
  %v2527 = vrot.slane %v2526, 1
  %v2528 = vadd.f32 %v2526, %v2527
  %v2529 = vrot.slane %v2206, 4
  %v2530 = vadd.f32 %v2206, %v2529
  %v2531 = vrot.slane %v2530, 2
  %v2532 = vadd.f32 %v2530, %v2531
  %v2533 = vrot.slane %v2532, 1
  %v2534 = vadd.f32 %v2532, %v2533
  %v2535 = vrot.slane %v2208, 4
  %v2536 = vadd.f32 %v2208, %v2535
  %v2537 = vrot.slane %v2536, 2
  %v2538 = vadd.f32 %v2536, %v2537
  %v2539 = vrot.slane %v2538, 1
  %v2540 = vadd.f32 %v2538, %v2539
  %v2541 = vrot.slane %v2210, 4
  %v2542 = vadd.f32 %v2210, %v2541
  %v2543 = vrot.slane %v2542, 2
  %v2544 = vadd.f32 %v2542, %v2543
  %v2545 = vrot.slane %v2544, 1
  %v2546 = vadd.f32 %v2544, %v2545
  %v2547 = vrot.slane %v2212, 4
  %v2548 = vadd.f32 %v2212, %v2547
  %v2549 = vrot.slane %v2548, 2
  %v2550 = vadd.f32 %v2548, %v2549
  %v2551 = vrot.slane %v2550, 1
  %v2552 = vadd.f32 %v2550, %v2551
  %v2553 = vrot.slane %v2214, 4
  %v2554 = vadd.f32 %v2214, %v2553
  %v2555 = vrot.slane %v2554, 2
  %v2556 = vadd.f32 %v2554, %v2555
  %v2557 = vrot.slane %v2556, 1
  %v2558 = vadd.f32 %v2556, %v2557
  %v2559 = vrot.slane %v2216, 4
  %v2560 = vadd.f32 %v2216, %v2559
  %v2561 = vrot.slane %v2560, 2
  %v2562 = vadd.f32 %v2560, %v2561
  %v2563 = vrot.slane %v2562, 1
  %v2564 = vadd.f32 %v2562, %v2563
  %v2565 = vrot.slane %v2218, 4
  %v2566 = vadd.f32 %v2218, %v2565
  %v2567 = vrot.slane %v2566, 2
  %v2568 = vadd.f32 %v2566, %v2567
  %v2569 = vrot.slane %v2568, 1
  %v2570 = vadd.f32 %v2568, %v2569
  %v2571 = vrot.slane %v2220, 4
  %v2572 = vadd.f32 %v2220, %v2571
  %v2573 = vrot.slane %v2572, 2
  %v2574 = vadd.f32 %v2572, %v2573
  %v2575 = vrot.slane %v2574, 1
  %v2576 = vadd.f32 %v2574, %v2575
  %v2577 = vrot.slane %v2222, 4
  %v2578 = vadd.f32 %v2222, %v2577
  %v2579 = vrot.slane %v2578, 2
  %v2580 = vadd.f32 %v2578, %v2579
  %v2581 = vrot.slane %v2580, 1
  %v2582 = vadd.f32 %v2580, %v2581
  %v2583 = vrot.slane %v2224, 4
  %v2584 = vadd.f32 %v2224, %v2583
  %v2585 = vrot.slane %v2584, 2
  %v2586 = vadd.f32 %v2584, %v2585
  %v2587 = vrot.slane %v2586, 1
  %v2588 = vadd.f32 %v2586, %v2587
  %v2589 = vrot.slane %v2226, 4
  %v2590 = vadd.f32 %v2226, %v2589
  %v2591 = vrot.slane %v2590, 2
  %v2592 = vadd.f32 %v2590, %v2591
  %v2593 = vrot.slane %v2592, 1
  %v2594 = vadd.f32 %v2592, %v2593
  %v2595 = vrot.slane %v2228, 4
  %v2596 = vadd.f32 %v2228, %v2595
  %v2597 = vrot.slane %v2596, 2
  %v2598 = vadd.f32 %v2596, %v2597
  %v2599 = vrot.slane %v2598, 1
  %v2600 = vadd.f32 %v2598, %v2599
  %v2601 = vrot.slane %v2230, 4
  %v2602 = vadd.f32 %v2230, %v2601
  %v2603 = vrot.slane %v2602, 2
  %v2604 = vadd.f32 %v2602, %v2603
  %v2605 = vrot.slane %v2604, 1
  %v2606 = vadd.f32 %v2604, %v2605
  %v2607 = vrot.slane %v2232, 4
  %v2608 = vadd.f32 %v2232, %v2607
  %v2609 = vrot.slane %v2608, 2
  %v2610 = vadd.f32 %v2608, %v2609
  %v2611 = vrot.slane %v2610, 1
  %v2612 = vadd.f32 %v2610, %v2611
  %v2613 = vrot.slane %v2234, 4
  %v2614 = vadd.f32 %v2234, %v2613
  %v2615 = vrot.slane %v2614, 2
  %v2616 = vadd.f32 %v2614, %v2615
  %v2617 = vrot.slane %v2616, 1
  %v2618 = vadd.f32 %v2616, %v2617
  %v2619 = vrcp.pop %v2240
  %v2620 = vrcp.pop %v2246
  %v2621 = vrcp.pop %v2252
  %v2622 = vrcp.pop %v2258
  %v2623 = vrcp.pop %v2264
  %v2624 = vrcp.pop %v2270
  %v2625 = vrcp.pop %v2276
  %v2626 = vrcp.pop %v2282
  %v2627 = vrcp.pop %v2288
  %v2628 = vrcp.pop %v2294
  %v2629 = vrcp.pop %v2300
  %v2630 = vrcp.pop %v2306
  %v2631 = vrcp.pop %v2312
  %v2632 = vrcp.pop %v2318
  %v2633 = vrcp.pop %v2324
  %v2634 = vrcp.pop %v2330
  %v2635 = vrcp.pop %v2336
  %v2636 = vrcp.pop %v2342
  %v2637 = vrcp.pop %v2348
  %v2638 = vrcp.pop %v2354
  %v2639 = vrcp.pop %v2360
  %v2640 = vrcp.pop %v2366
  %v2641 = vrcp.pop %v2372
  %v2642 = vrcp.pop %v2378
  %v2643 = vrcp.pop %v2384
  %v2644 = vrcp.pop %v2390
  %v2645 = vrcp.pop %v2396
  %v2646 = vrcp.pop %v2402
  %v2647 = vrcp.pop %v2408
  %v2648 = vrcp.pop %v2414
  %v2649 = vrcp.pop %v2420
  %v2650 = vrcp.pop %v2426
  %v2651 = vrcp.pop %v2432
  %v2652 = vrcp.pop %v2438
  %v2653 = vrcp.pop %v2444
  %v2654 = vrcp.pop %v2450
  %v2655 = vrcp.pop %v2456
  %v2656 = vrcp.pop %v2462
  %v2657 = vrcp.pop %v2468
  %v2658 = vrcp.pop %v2474
  %v2659 = vrcp.pop %v2480
  %v2660 = vrcp.pop %v2486
  %v2661 = vrcp.pop %v2492
  %v2662 = vrcp.pop %v2498
  %v2663 = vrcp.pop %v2504
  %v2664 = vrcp.pop %v2510
  %v2665 = vrcp.pop %v2516
  %v2666 = vrcp.pop %v2522
  %v2667 = vrcp.pop %v2528
  %v2668 = vrcp.pop %v2534
  %v2669 = vrcp.pop %v2540
  %v2670 = vrcp.pop %v2546
  %v2671 = vrcp.pop %v2552
  %v2672 = vrcp.pop %v2558
  %v2673 = vrcp.pop %v2564
  %v2674 = vrcp.pop %v2570
  %v2675 = vrcp.pop %v2576
  %v2676 = vrcp.pop %v2582
  %v2677 = vrcp.pop %v2588
  %v2678 = vrcp.pop %v2594
  %v2679 = vrcp.pop %v2600
  %v2680 = vrcp.pop %v2606
  %v2681 = vrcp.pop %v2612
  %v2682 = vrcp.pop %v2618
  %v2683 = vmul.f32 %v2108, %v2619
  %v2684 = vmul.f32 %v2110, %v2620
  %v2685 = vmul.f32 %v2112, %v2621
  %v2686 = vmul.f32 %v2114, %v2622
  %v2687 = vmul.f32 %v2116, %v2623
  %v2688 = vmul.f32 %v2118, %v2624
  %v2689 = vmul.f32 %v2120, %v2625
  %v2690 = vmul.f32 %v2122, %v2626
  %v2691 = vmul.f32 %v2124, %v2627
  %v2692 = vmul.f32 %v2126, %v2628
  %v2693 = vmul.f32 %v2128, %v2629
  %v2694 = vmul.f32 %v2130, %v2630
  %v2695 = vmul.f32 %v2132, %v2631
  %v2696 = vmul.f32 %v2134, %v2632
  %v2697 = vmul.f32 %v2136, %v2633
  %v2698 = vmul.f32 %v2138, %v2634
  %v2699 = vmul.f32 %v2140, %v2635
  %v2700 = vmul.f32 %v2142, %v2636
  %v2701 = vmul.f32 %v2144, %v2637
  %v2702 = vmul.f32 %v2146, %v2638
  %v2703 = vmul.f32 %v2148, %v2639
  %v2704 = vmul.f32 %v2150, %v2640
  %v2705 = vmul.f32 %v2152, %v2641
  %v2706 = vmul.f32 %v2154, %v2642
  %v2707 = vmul.f32 %v2156, %v2643
  %v2708 = vmul.f32 %v2158, %v2644
  %v2709 = vmul.f32 %v2160, %v2645
  %v2710 = vmul.f32 %v2162, %v2646
  %v2711 = vmul.f32 %v2164, %v2647
  %v2712 = vmul.f32 %v2166, %v2648
  %v2713 = vmul.f32 %v2168, %v2649
  %v2714 = vmul.f32 %v2170, %v2650
  %v2715 = vmul.f32 %v2172, %v2651
  %v2716 = vmul.f32 %v2174, %v2652
  %v2717 = vmul.f32 %v2176, %v2653
  %v2718 = vmul.f32 %v2178, %v2654
  %v2719 = vmul.f32 %v2180, %v2655
  %v2720 = vmul.f32 %v2182, %v2656
  %v2721 = vmul.f32 %v2184, %v2657
  %v2722 = vmul.f32 %v2186, %v2658
  %v2723 = vmul.f32 %v2188, %v2659
  %v2724 = vmul.f32 %v2190, %v2660
  %v2725 = vmul.f32 %v2192, %v2661
  %v2726 = vmul.f32 %v2194, %v2662
  %v2727 = vmul.f32 %v2196, %v2663
  %v2728 = vmul.f32 %v2198, %v2664
  %v2729 = vmul.f32 %v2200, %v2665
  %v2730 = vmul.f32 %v2202, %v2666
  %v2731 = vmul.f32 %v2204, %v2667
  %v2732 = vmul.f32 %v2206, %v2668
  %v2733 = vmul.f32 %v2208, %v2669
  %v2734 = vmul.f32 %v2210, %v2670
  %v2735 = vmul.f32 %v2212, %v2671
  %v2736 = vmul.f32 %v2214, %v2672
  %v2737 = vmul.f32 %v2216, %v2673
  %v2738 = vmul.f32 %v2218, %v2674
  %v2739 = vmul.f32 %v2220, %v2675
  %v2740 = vmul.f32 %v2222, %v2676
  %v2741 = vmul.f32 %v2224, %v2677
  %v2742 = vmul.f32 %v2226, %v2678
  %v2743 = vmul.f32 %v2228, %v2679
  %v2744 = vmul.f32 %v2230, %v2680
  %v2745 = vmul.f32 %v2232, %v2681
  %v2746 = vmul.f32 %v2234, %v2682
  %v2747 = vmul.f32 %v2683, %v1335
  %v2748 = vmul.f32 %v2684, %v1336
  %v2749 = vmul.f32 %v2685, %v1337
  %v2750 = vmul.f32 %v2686, %v1338
  %v2751 = vmul.f32 %v2687, %v1339
  %v2752 = vmul.f32 %v2688, %v1340
  %v2753 = vmul.f32 %v2689, %v1341
  %v2754 = vmul.f32 %v2690, %v1342
  %v2755 = vmul.f32 %v2691, %v1343
  %v2756 = vmul.f32 %v2692, %v1344
  %v2757 = vmul.f32 %v2693, %v1345
  %v2758 = vmul.f32 %v2694, %v1346
  %v2759 = vmul.f32 %v2695, %v1347
  %v2760 = vmul.f32 %v2696, %v1348
  %v2761 = vmul.f32 %v2697, %v1349
  %v2762 = vmul.f32 %v2698, %v1350
  %v2763 = vmul.f32 %v2699, %v1351
  %v2764 = vmul.f32 %v2700, %v1352
  %v2765 = vmul.f32 %v2701, %v1353
  %v2766 = vmul.f32 %v2702, %v1354
  %v2767 = vmul.f32 %v2703, %v1355
  %v2768 = vmul.f32 %v2704, %v1356
  %v2769 = vmul.f32 %v2705, %v1357
  %v2770 = vmul.f32 %v2706, %v1358
  %v2771 = vmul.f32 %v2707, %v1359
  %v2772 = vmul.f32 %v2708, %v1360
  %v2773 = vmul.f32 %v2709, %v1361
  %v2774 = vmul.f32 %v2710, %v1362
  %v2775 = vmul.f32 %v2711, %v1363
  %v2776 = vmul.f32 %v2712, %v1364
  %v2777 = vmul.f32 %v2713, %v1365
  %v2778 = vmul.f32 %v2714, %v1366
  %v2779 = vmul.f32 %v2715, %v1367
  %v2780 = vmul.f32 %v2716, %v1368
  %v2781 = vmul.f32 %v2717, %v1369
  %v2782 = vmul.f32 %v2718, %v1370
  %v2783 = vmul.f32 %v2719, %v1371
  %v2784 = vmul.f32 %v2720, %v1372
  %v2785 = vmul.f32 %v2721, %v1373
  %v2786 = vmul.f32 %v2722, %v1374
  %v2787 = vmul.f32 %v2723, %v1375
  %v2788 = vmul.f32 %v2724, %v1376
  %v2789 = vmul.f32 %v2725, %v1377
  %v2790 = vmul.f32 %v2726, %v1378
  %v2791 = vmul.f32 %v2727, %v1379
  %v2792 = vmul.f32 %v2728, %v1380
  %v2793 = vmul.f32 %v2729, %v1381
  %v2794 = vmul.f32 %v2730, %v1382
  %v2795 = vmul.f32 %v2731, %v1383
  %v2796 = vmul.f32 %v2732, %v1384
  %v2797 = vmul.f32 %v2733, %v1385
  %v2798 = vmul.f32 %v2734, %v1386
  %v2799 = vmul.f32 %v2735, %v1387
  %v2800 = vmul.f32 %v2736, %v1388
  %v2801 = vmul.f32 %v2737, %v1389
  %v2802 = vmul.f32 %v2738, %v1390
  %v2803 = vmul.f32 %v2739, %v1391
  %v2804 = vmul.f32 %v2740, %v1392
  %v2805 = vmul.f32 %v2741, %v1393
  %v2806 = vmul.f32 %v2742, %v1394
  %v2807 = vmul.f32 %v2743, %v1395
  %v2808 = vmul.f32 %v2744, %v1396
  %v2809 = vmul.f32 %v2745, %v1397
  %v2810 = vmul.f32 %v2746, %v1398
  %v2811 = vsel %vm624, %v2747, 0.0
  %v2812 = vrot.slane %v2811, 4
  %v2813 = vadd.f32 %v2811, %v2812
  %v2814 = vrot.slane %v2813, 2
  %v2815 = vadd.f32 %v2813, %v2814
  %v2816 = vrot.slane %v2815, 1
  %v2817 = vadd.f32 %v2815, %v2816
  %v2818 = vsel %vm624, %v2748, 0.0
  %v2819 = vrot.slane %v2818, 4
  %v2820 = vadd.f32 %v2818, %v2819
  %v2821 = vrot.slane %v2820, 2
  %v2822 = vadd.f32 %v2820, %v2821
  %v2823 = vrot.slane %v2822, 1
  %v2824 = vadd.f32 %v2822, %v2823
  %v2825 = vsel %vm624, %v2749, 0.0
  %v2826 = vrot.slane %v2825, 4
  %v2827 = vadd.f32 %v2825, %v2826
  %v2828 = vrot.slane %v2827, 2
  %v2829 = vadd.f32 %v2827, %v2828
  %v2830 = vrot.slane %v2829, 1
  %v2831 = vadd.f32 %v2829, %v2830
  %v2832 = vsel %vm624, %v2750, 0.0
  %v2833 = vrot.slane %v2832, 4
  %v2834 = vadd.f32 %v2832, %v2833
  %v2835 = vrot.slane %v2834, 2
  %v2836 = vadd.f32 %v2834, %v2835
  %v2837 = vrot.slane %v2836, 1
  %v2838 = vadd.f32 %v2836, %v2837
  %v2839 = vsel %vm624, %v2751, 0.0
  %v2840 = vrot.slane %v2839, 4
  %v2841 = vadd.f32 %v2839, %v2840
  %v2842 = vrot.slane %v2841, 2
  %v2843 = vadd.f32 %v2841, %v2842
  %v2844 = vrot.slane %v2843, 1
  %v2845 = vadd.f32 %v2843, %v2844
  %v2846 = vsel %vm624, %v2752, 0.0
  %v2847 = vrot.slane %v2846, 4
  %v2848 = vadd.f32 %v2846, %v2847
  %v2849 = vrot.slane %v2848, 2
  %v2850 = vadd.f32 %v2848, %v2849
  %v2851 = vrot.slane %v2850, 1
  %v2852 = vadd.f32 %v2850, %v2851
  %v2853 = vsel %vm624, %v2753, 0.0
  %v2854 = vrot.slane %v2853, 4
  %v2855 = vadd.f32 %v2853, %v2854
  %v2856 = vrot.slane %v2855, 2
  %v2857 = vadd.f32 %v2855, %v2856
  %v2858 = vrot.slane %v2857, 1
  %v2859 = vadd.f32 %v2857, %v2858
  %v2860 = vsel %vm624, %v2754, 0.0
  %v2861 = vrot.slane %v2860, 4
  %v2862 = vadd.f32 %v2860, %v2861
  %v2863 = vrot.slane %v2862, 2
  %v2864 = vadd.f32 %v2862, %v2863
  %v2865 = vrot.slane %v2864, 1
  %v2866 = vadd.f32 %v2864, %v2865
  %v2867 = vsel %vm624, %v2755, 0.0
  %v2868 = vrot.slane %v2867, 4
  %v2869 = vadd.f32 %v2867, %v2868
  %v2870 = vrot.slane %v2869, 2
  %v2871 = vadd.f32 %v2869, %v2870
  %v2872 = vrot.slane %v2871, 1
  %v2873 = vadd.f32 %v2871, %v2872
  %v2874 = vsel %vm624, %v2756, 0.0
  %v2875 = vrot.slane %v2874, 4
  %v2876 = vadd.f32 %v2874, %v2875
  %v2877 = vrot.slane %v2876, 2
  %v2878 = vadd.f32 %v2876, %v2877
  %v2879 = vrot.slane %v2878, 1
  %v2880 = vadd.f32 %v2878, %v2879
  %v2881 = vsel %vm624, %v2757, 0.0
  %v2882 = vrot.slane %v2881, 4
  %v2883 = vadd.f32 %v2881, %v2882
  %v2884 = vrot.slane %v2883, 2
  %v2885 = vadd.f32 %v2883, %v2884
  %v2886 = vrot.slane %v2885, 1
  %v2887 = vadd.f32 %v2885, %v2886
  %v2888 = vsel %vm624, %v2758, 0.0
  %v2889 = vrot.slane %v2888, 4
  %v2890 = vadd.f32 %v2888, %v2889
  %v2891 = vrot.slane %v2890, 2
  %v2892 = vadd.f32 %v2890, %v2891
  %v2893 = vrot.slane %v2892, 1
  %v2894 = vadd.f32 %v2892, %v2893
  %v2895 = vsel %vm624, %v2759, 0.0
  %v2896 = vrot.slane %v2895, 4
  %v2897 = vadd.f32 %v2895, %v2896
  %v2898 = vrot.slane %v2897, 2
  %v2899 = vadd.f32 %v2897, %v2898
  %v2900 = vrot.slane %v2899, 1
  %v2901 = vadd.f32 %v2899, %v2900
  %v2902 = vsel %vm624, %v2760, 0.0
  %v2903 = vrot.slane %v2902, 4
  %v2904 = vadd.f32 %v2902, %v2903
  %v2905 = vrot.slane %v2904, 2
  %v2906 = vadd.f32 %v2904, %v2905
  %v2907 = vrot.slane %v2906, 1
  %v2908 = vadd.f32 %v2906, %v2907
  %v2909 = vsel %vm624, %v2761, 0.0
  %v2910 = vrot.slane %v2909, 4
  %v2911 = vadd.f32 %v2909, %v2910
  %v2912 = vrot.slane %v2911, 2
  %v2913 = vadd.f32 %v2911, %v2912
  %v2914 = vrot.slane %v2913, 1
  %v2915 = vadd.f32 %v2913, %v2914
  %v2916 = vsel %vm624, %v2762, 0.0
  %v2917 = vrot.slane %v2916, 4
  %v2918 = vadd.f32 %v2916, %v2917
  %v2919 = vrot.slane %v2918, 2
  %v2920 = vadd.f32 %v2918, %v2919
  %v2921 = vrot.slane %v2920, 1
  %v2922 = vadd.f32 %v2920, %v2921
  %v2923 = vsel %vm624, %v2763, 0.0
  %v2924 = vrot.slane %v2923, 4
  %v2925 = vadd.f32 %v2923, %v2924
  %v2926 = vrot.slane %v2925, 2
  %v2927 = vadd.f32 %v2925, %v2926
  %v2928 = vrot.slane %v2927, 1
  %v2929 = vadd.f32 %v2927, %v2928
  %v2930 = vsel %vm624, %v2764, 0.0
  %v2931 = vrot.slane %v2930, 4
  %v2932 = vadd.f32 %v2930, %v2931
  %v2933 = vrot.slane %v2932, 2
  %v2934 = vadd.f32 %v2932, %v2933
  %v2935 = vrot.slane %v2934, 1
  %v2936 = vadd.f32 %v2934, %v2935
  %v2937 = vsel %vm624, %v2765, 0.0
  %v2938 = vrot.slane %v2937, 4
  %v2939 = vadd.f32 %v2937, %v2938
  %v2940 = vrot.slane %v2939, 2
  %v2941 = vadd.f32 %v2939, %v2940
  %v2942 = vrot.slane %v2941, 1
  %v2943 = vadd.f32 %v2941, %v2942
  %v2944 = vsel %vm624, %v2766, 0.0
  %v2945 = vrot.slane %v2944, 4
  %v2946 = vadd.f32 %v2944, %v2945
  %v2947 = vrot.slane %v2946, 2
  %v2948 = vadd.f32 %v2946, %v2947
  %v2949 = vrot.slane %v2948, 1
  %v2950 = vadd.f32 %v2948, %v2949
  %v2951 = vsel %vm624, %v2767, 0.0
  %v2952 = vrot.slane %v2951, 4
  %v2953 = vadd.f32 %v2951, %v2952
  %v2954 = vrot.slane %v2953, 2
  %v2955 = vadd.f32 %v2953, %v2954
  %v2956 = vrot.slane %v2955, 1
  %v2957 = vadd.f32 %v2955, %v2956
  %v2958 = vsel %vm624, %v2768, 0.0
  %v2959 = vrot.slane %v2958, 4
  %v2960 = vadd.f32 %v2958, %v2959
  %v2961 = vrot.slane %v2960, 2
  %v2962 = vadd.f32 %v2960, %v2961
  %v2963 = vrot.slane %v2962, 1
  %v2964 = vadd.f32 %v2962, %v2963
  %v2965 = vsel %vm624, %v2769, 0.0
  %v2966 = vrot.slane %v2965, 4
  %v2967 = vadd.f32 %v2965, %v2966
  %v2968 = vrot.slane %v2967, 2
  %v2969 = vadd.f32 %v2967, %v2968
  %v2970 = vrot.slane %v2969, 1
  %v2971 = vadd.f32 %v2969, %v2970
  %v2972 = vsel %vm624, %v2770, 0.0
  %v2973 = vrot.slane %v2972, 4
  %v2974 = vadd.f32 %v2972, %v2973
  %v2975 = vrot.slane %v2974, 2
  %v2976 = vadd.f32 %v2974, %v2975
  %v2977 = vrot.slane %v2976, 1
  %v2978 = vadd.f32 %v2976, %v2977
  %v2979 = vsel %vm624, %v2771, 0.0
  %v2980 = vrot.slane %v2979, 4
  %v2981 = vadd.f32 %v2979, %v2980
  %v2982 = vrot.slane %v2981, 2
  %v2983 = vadd.f32 %v2981, %v2982
  %v2984 = vrot.slane %v2983, 1
  %v2985 = vadd.f32 %v2983, %v2984
  %v2986 = vsel %vm624, %v2772, 0.0
  %v2987 = vrot.slane %v2986, 4
  %v2988 = vadd.f32 %v2986, %v2987
  %v2989 = vrot.slane %v2988, 2
  %v2990 = vadd.f32 %v2988, %v2989
  %v2991 = vrot.slane %v2990, 1
  %v2992 = vadd.f32 %v2990, %v2991
  %v2993 = vsel %vm624, %v2773, 0.0
  %v2994 = vrot.slane %v2993, 4
  %v2995 = vadd.f32 %v2993, %v2994
  %v2996 = vrot.slane %v2995, 2
  %v2997 = vadd.f32 %v2995, %v2996
  %v2998 = vrot.slane %v2997, 1
  %v2999 = vadd.f32 %v2997, %v2998
  %v3000 = vsel %vm624, %v2774, 0.0
  %v3001 = vrot.slane %v3000, 4
  %v3002 = vadd.f32 %v3000, %v3001
  %v3003 = vrot.slane %v3002, 2
  %v3004 = vadd.f32 %v3002, %v3003
  %v3005 = vrot.slane %v3004, 1
  %v3006 = vadd.f32 %v3004, %v3005
  %v3007 = vsel %vm624, %v2775, 0.0
  %v3008 = vrot.slane %v3007, 4
  %v3009 = vadd.f32 %v3007, %v3008
  %v3010 = vrot.slane %v3009, 2
  %v3011 = vadd.f32 %v3009, %v3010
  %v3012 = vrot.slane %v3011, 1
  %v3013 = vadd.f32 %v3011, %v3012
  %v3014 = vsel %vm624, %v2776, 0.0
  %v3015 = vrot.slane %v3014, 4
  %v3016 = vadd.f32 %v3014, %v3015
  %v3017 = vrot.slane %v3016, 2
  %v3018 = vadd.f32 %v3016, %v3017
  %v3019 = vrot.slane %v3018, 1
  %v3020 = vadd.f32 %v3018, %v3019
  %v3021 = vsel %vm624, %v2777, 0.0
  %v3022 = vrot.slane %v3021, 4
  %v3023 = vadd.f32 %v3021, %v3022
  %v3024 = vrot.slane %v3023, 2
  %v3025 = vadd.f32 %v3023, %v3024
  %v3026 = vrot.slane %v3025, 1
  %v3027 = vadd.f32 %v3025, %v3026
  %v3028 = vsel %vm624, %v2778, 0.0
  %v3029 = vrot.slane %v3028, 4
  %v3030 = vadd.f32 %v3028, %v3029
  %v3031 = vrot.slane %v3030, 2
  %v3032 = vadd.f32 %v3030, %v3031
  %v3033 = vrot.slane %v3032, 1
  %v3034 = vadd.f32 %v3032, %v3033
  %v3035 = vsel %vm624, %v2779, 0.0
  %v3036 = vrot.slane %v3035, 4
  %v3037 = vadd.f32 %v3035, %v3036
  %v3038 = vrot.slane %v3037, 2
  %v3039 = vadd.f32 %v3037, %v3038
  %v3040 = vrot.slane %v3039, 1
  %v3041 = vadd.f32 %v3039, %v3040
  %v3042 = vsel %vm624, %v2780, 0.0
  %v3043 = vrot.slane %v3042, 4
  %v3044 = vadd.f32 %v3042, %v3043
  %v3045 = vrot.slane %v3044, 2
  %v3046 = vadd.f32 %v3044, %v3045
  %v3047 = vrot.slane %v3046, 1
  %v3048 = vadd.f32 %v3046, %v3047
  %v3049 = vsel %vm624, %v2781, 0.0
  %v3050 = vrot.slane %v3049, 4
  %v3051 = vadd.f32 %v3049, %v3050
  %v3052 = vrot.slane %v3051, 2
  %v3053 = vadd.f32 %v3051, %v3052
  %v3054 = vrot.slane %v3053, 1
  %v3055 = vadd.f32 %v3053, %v3054
  %v3056 = vsel %vm624, %v2782, 0.0
  %v3057 = vrot.slane %v3056, 4
  %v3058 = vadd.f32 %v3056, %v3057
  %v3059 = vrot.slane %v3058, 2
  %v3060 = vadd.f32 %v3058, %v3059
  %v3061 = vrot.slane %v3060, 1
  %v3062 = vadd.f32 %v3060, %v3061
  %v3063 = vsel %vm624, %v2783, 0.0
  %v3064 = vrot.slane %v3063, 4
  %v3065 = vadd.f32 %v3063, %v3064
  %v3066 = vrot.slane %v3065, 2
  %v3067 = vadd.f32 %v3065, %v3066
  %v3068 = vrot.slane %v3067, 1
  %v3069 = vadd.f32 %v3067, %v3068
  %v3070 = vsel %vm624, %v2784, 0.0
  %v3071 = vrot.slane %v3070, 4
  %v3072 = vadd.f32 %v3070, %v3071
  %v3073 = vrot.slane %v3072, 2
  %v3074 = vadd.f32 %v3072, %v3073
  %v3075 = vrot.slane %v3074, 1
  %v3076 = vadd.f32 %v3074, %v3075
  %v3077 = vsel %vm624, %v2785, 0.0
  %v3078 = vrot.slane %v3077, 4
  %v3079 = vadd.f32 %v3077, %v3078
  %v3080 = vrot.slane %v3079, 2
  %v3081 = vadd.f32 %v3079, %v3080
  %v3082 = vrot.slane %v3081, 1
  %v3083 = vadd.f32 %v3081, %v3082
  %v3084 = vsel %vm624, %v2786, 0.0
  %v3085 = vrot.slane %v3084, 4
  %v3086 = vadd.f32 %v3084, %v3085
  %v3087 = vrot.slane %v3086, 2
  %v3088 = vadd.f32 %v3086, %v3087
  %v3089 = vrot.slane %v3088, 1
  %v3090 = vadd.f32 %v3088, %v3089
  %v3091 = vsel %vm624, %v2787, 0.0
  %v3092 = vrot.slane %v3091, 4
  %v3093 = vadd.f32 %v3091, %v3092
  %v3094 = vrot.slane %v3093, 2
  %v3095 = vadd.f32 %v3093, %v3094
  %v3096 = vrot.slane %v3095, 1
  %v3097 = vadd.f32 %v3095, %v3096
  %v3098 = vsel %vm624, %v2788, 0.0
  %v3099 = vrot.slane %v3098, 4
  %v3100 = vadd.f32 %v3098, %v3099
  %v3101 = vrot.slane %v3100, 2
  %v3102 = vadd.f32 %v3100, %v3101
  %v3103 = vrot.slane %v3102, 1
  %v3104 = vadd.f32 %v3102, %v3103
  %v3105 = vsel %vm624, %v2789, 0.0
  %v3106 = vrot.slane %v3105, 4
  %v3107 = vadd.f32 %v3105, %v3106
  %v3108 = vrot.slane %v3107, 2
  %v3109 = vadd.f32 %v3107, %v3108
  %v3110 = vrot.slane %v3109, 1
  %v3111 = vadd.f32 %v3109, %v3110
  %v3112 = vsel %vm624, %v2790, 0.0
  %v3113 = vrot.slane %v3112, 4
  %v3114 = vadd.f32 %v3112, %v3113
  %v3115 = vrot.slane %v3114, 2
  %v3116 = vadd.f32 %v3114, %v3115
  %v3117 = vrot.slane %v3116, 1
  %v3118 = vadd.f32 %v3116, %v3117
  %v3119 = vsel %vm624, %v2791, 0.0
  %v3120 = vrot.slane %v3119, 4
  %v3121 = vadd.f32 %v3119, %v3120
  %v3122 = vrot.slane %v3121, 2
  %v3123 = vadd.f32 %v3121, %v3122
  %v3124 = vrot.slane %v3123, 1
  %v3125 = vadd.f32 %v3123, %v3124
  %v3126 = vsel %vm624, %v2792, 0.0
  %v3127 = vrot.slane %v3126, 4
  %v3128 = vadd.f32 %v3126, %v3127
  %v3129 = vrot.slane %v3128, 2
  %v3130 = vadd.f32 %v3128, %v3129
  %v3131 = vrot.slane %v3130, 1
  %v3132 = vadd.f32 %v3130, %v3131
  %v3133 = vsel %vm624, %v2793, 0.0
  %v3134 = vrot.slane %v3133, 4
  %v3135 = vadd.f32 %v3133, %v3134
  %v3136 = vrot.slane %v3135, 2
  %v3137 = vadd.f32 %v3135, %v3136
  %v3138 = vrot.slane %v3137, 1
  %v3139 = vadd.f32 %v3137, %v3138
  %v3140 = vsel %vm624, %v2794, 0.0
  %v3141 = vrot.slane %v3140, 4
  %v3142 = vadd.f32 %v3140, %v3141
  %v3143 = vrot.slane %v3142, 2
  %v3144 = vadd.f32 %v3142, %v3143
  %v3145 = vrot.slane %v3144, 1
  %v3146 = vadd.f32 %v3144, %v3145
  %v3147 = vsel %vm624, %v2795, 0.0
  %v3148 = vrot.slane %v3147, 4
  %v3149 = vadd.f32 %v3147, %v3148
  %v3150 = vrot.slane %v3149, 2
  %v3151 = vadd.f32 %v3149, %v3150
  %v3152 = vrot.slane %v3151, 1
  %v3153 = vadd.f32 %v3151, %v3152
  %v3154 = vsel %vm624, %v2796, 0.0
  %v3155 = vrot.slane %v3154, 4
  %v3156 = vadd.f32 %v3154, %v3155
  %v3157 = vrot.slane %v3156, 2
  %v3158 = vadd.f32 %v3156, %v3157
  %v3159 = vrot.slane %v3158, 1
  %v3160 = vadd.f32 %v3158, %v3159
  %v3161 = vsel %vm624, %v2797, 0.0
  %v3162 = vrot.slane %v3161, 4
  %v3163 = vadd.f32 %v3161, %v3162
  %v3164 = vrot.slane %v3163, 2
  %v3165 = vadd.f32 %v3163, %v3164
  %v3166 = vrot.slane %v3165, 1
  %v3167 = vadd.f32 %v3165, %v3166
  %v3168 = vsel %vm624, %v2798, 0.0
  %v3169 = vrot.slane %v3168, 4
  %v3170 = vadd.f32 %v3168, %v3169
  %v3171 = vrot.slane %v3170, 2
  %v3172 = vadd.f32 %v3170, %v3171
  %v3173 = vrot.slane %v3172, 1
  %v3174 = vadd.f32 %v3172, %v3173
  %v3175 = vsel %vm624, %v2799, 0.0
  %v3176 = vrot.slane %v3175, 4
  %v3177 = vadd.f32 %v3175, %v3176
  %v3178 = vrot.slane %v3177, 2
  %v3179 = vadd.f32 %v3177, %v3178
  %v3180 = vrot.slane %v3179, 1
  %v3181 = vadd.f32 %v3179, %v3180
  %v3182 = vsel %vm624, %v2800, 0.0
  %v3183 = vrot.slane %v3182, 4
  %v3184 = vadd.f32 %v3182, %v3183
  %v3185 = vrot.slane %v3184, 2
  %v3186 = vadd.f32 %v3184, %v3185
  %v3187 = vrot.slane %v3186, 1
  %v3188 = vadd.f32 %v3186, %v3187
  %v3189 = vsel %vm624, %v2801, 0.0
  %v3190 = vrot.slane %v3189, 4
  %v3191 = vadd.f32 %v3189, %v3190
  %v3192 = vrot.slane %v3191, 2
  %v3193 = vadd.f32 %v3191, %v3192
  %v3194 = vrot.slane %v3193, 1
  %v3195 = vadd.f32 %v3193, %v3194
  %v3196 = vsel %vm624, %v2802, 0.0
  %v3197 = vrot.slane %v3196, 4
  %v3198 = vadd.f32 %v3196, %v3197
  %v3199 = vrot.slane %v3198, 2
  %v3200 = vadd.f32 %v3198, %v3199
  %v3201 = vrot.slane %v3200, 1
  %v3202 = vadd.f32 %v3200, %v3201
  %v3203 = vsel %vm624, %v2803, 0.0
  %v3204 = vrot.slane %v3203, 4
  %v3205 = vadd.f32 %v3203, %v3204
  %v3206 = vrot.slane %v3205, 2
  %v3207 = vadd.f32 %v3205, %v3206
  %v3208 = vrot.slane %v3207, 1
  %v3209 = vadd.f32 %v3207, %v3208
  %v3210 = vsel %vm624, %v2804, 0.0
  %v3211 = vrot.slane %v3210, 4
  %v3212 = vadd.f32 %v3210, %v3211
  %v3213 = vrot.slane %v3212, 2
  %v3214 = vadd.f32 %v3212, %v3213
  %v3215 = vrot.slane %v3214, 1
  %v3216 = vadd.f32 %v3214, %v3215
  %v3217 = vsel %vm624, %v2805, 0.0
  %v3218 = vrot.slane %v3217, 4
  %v3219 = vadd.f32 %v3217, %v3218
  %v3220 = vrot.slane %v3219, 2
  %v3221 = vadd.f32 %v3219, %v3220
  %v3222 = vrot.slane %v3221, 1
  %v3223 = vadd.f32 %v3221, %v3222
  %v3224 = vsel %vm624, %v2806, 0.0
  %v3225 = vrot.slane %v3224, 4
  %v3226 = vadd.f32 %v3224, %v3225
  %v3227 = vrot.slane %v3226, 2
  %v3228 = vadd.f32 %v3226, %v3227
  %v3229 = vrot.slane %v3228, 1
  %v3230 = vadd.f32 %v3228, %v3229
  %v3231 = vsel %vm624, %v2807, 0.0
  %v3232 = vrot.slane %v3231, 4
  %v3233 = vadd.f32 %v3231, %v3232
  %v3234 = vrot.slane %v3233, 2
  %v3235 = vadd.f32 %v3233, %v3234
  %v3236 = vrot.slane %v3235, 1
  %v3237 = vadd.f32 %v3235, %v3236
  %v3238 = vsel %vm624, %v2808, 0.0
  %v3239 = vrot.slane %v3238, 4
  %v3240 = vadd.f32 %v3238, %v3239
  %v3241 = vrot.slane %v3240, 2
  %v3242 = vadd.f32 %v3240, %v3241
  %v3243 = vrot.slane %v3242, 1
  %v3244 = vadd.f32 %v3242, %v3243
  %v3245 = vsel %vm624, %v2809, 0.0
  %v3246 = vrot.slane %v3245, 4
  %v3247 = vadd.f32 %v3245, %v3246
  %v3248 = vrot.slane %v3247, 2
  %v3249 = vadd.f32 %v3247, %v3248
  %v3250 = vrot.slane %v3249, 1
  %v3251 = vadd.f32 %v3249, %v3250
  %v3252 = vsel %vm624, %v2810, 0.0
  %v3253 = vrot.slane %v3252, 4
  %v3254 = vadd.f32 %v3252, %v3253
  %v3255 = vrot.slane %v3254, 2
  %v3256 = vadd.f32 %v3254, %v3255
  %v3257 = vrot.slane %v3256, 1
  %v3258 = vadd.f32 %v3256, %v3257
  %v3259 = vpack.c.bf16 %v2817, %v2817
  %v3260 = vpack.c.bf16 %v2824, %v2824
  %v3261 = vpack.c.bf16 %v2831, %v2831
  %v3262 = vpack.c.bf16 %v2838, %v2838
  %v3263 = vpack.c.bf16 %v2845, %v2845
  %v3264 = vpack.c.bf16 %v2852, %v2852
  %v3265 = vpack.c.bf16 %v2859, %v2859
  %v3266 = vpack.c.bf16 %v2866, %v2866
  %v3267 = vpack.c.bf16 %v2873, %v2873
  %v3268 = vpack.c.bf16 %v2880, %v2880
  %v3269 = vpack.c.bf16 %v2887, %v2887
  %v3270 = vpack.c.bf16 %v2894, %v2894
  %v3271 = vpack.c.bf16 %v2901, %v2901
  %v3272 = vpack.c.bf16 %v2908, %v2908
  %v3273 = vpack.c.bf16 %v2915, %v2915
  %v3274 = vpack.c.bf16 %v2922, %v2922
  %v3275 = vpack.c.bf16 %v2929, %v2929
  %v3276 = vpack.c.bf16 %v2936, %v2936
  %v3277 = vpack.c.bf16 %v2943, %v2943
  %v3278 = vpack.c.bf16 %v2950, %v2950
  %v3279 = vpack.c.bf16 %v2957, %v2957
  %v3280 = vpack.c.bf16 %v2964, %v2964
  %v3281 = vpack.c.bf16 %v2971, %v2971
  %v3282 = vpack.c.bf16 %v2978, %v2978
  %v3283 = vpack.c.bf16 %v2985, %v2985
  %v3284 = vpack.c.bf16 %v2992, %v2992
  %v3285 = vpack.c.bf16 %v2999, %v2999
  %v3286 = vpack.c.bf16 %v3006, %v3006
  %v3287 = vpack.c.bf16 %v3013, %v3013
  %v3288 = vpack.c.bf16 %v3020, %v3020
  %v3289 = vpack.c.bf16 %v3027, %v3027
  %v3290 = vpack.c.bf16 %v3034, %v3034
  %v3291 = vpack.c.bf16 %v3041, %v3041
  %v3292 = vpack.c.bf16 %v3048, %v3048
  %v3293 = vpack.c.bf16 %v3055, %v3055
  %v3294 = vpack.c.bf16 %v3062, %v3062
  %v3295 = vpack.c.bf16 %v3069, %v3069
  %v3296 = vpack.c.bf16 %v3076, %v3076
  %v3297 = vpack.c.bf16 %v3083, %v3083
  %v3298 = vpack.c.bf16 %v3090, %v3090
  %v3299 = vpack.c.bf16 %v3097, %v3097
  %v3300 = vpack.c.bf16 %v3104, %v3104
  %v3301 = vpack.c.bf16 %v3111, %v3111
  %v3302 = vpack.c.bf16 %v3118, %v3118
  %v3303 = vpack.c.bf16 %v3125, %v3125
  %v3304 = vpack.c.bf16 %v3132, %v3132
  %v3305 = vpack.c.bf16 %v3139, %v3139
  %v3306 = vpack.c.bf16 %v3146, %v3146
  %v3307 = vpack.c.bf16 %v3153, %v3153
  %v3308 = vpack.c.bf16 %v3160, %v3160
  %v3309 = vpack.c.bf16 %v3167, %v3167
  %v3310 = vpack.c.bf16 %v3174, %v3174
  %v3311 = vpack.c.bf16 %v3181, %v3181
  %v3312 = vpack.c.bf16 %v3188, %v3188
  %v3313 = vpack.c.bf16 %v3195, %v3195
  %v3314 = vpack.c.bf16 %v3202, %v3202
  %v3315 = vpack.c.bf16 %v3209, %v3209
  %v3316 = vpack.c.bf16 %v3216, %v3216
  %v3317 = vpack.c.bf16 %v3223, %v3223
  %v3318 = vpack.c.bf16 %v3230, %v3230
  %v3319 = vpack.c.bf16 %v3237, %v3237
  %v3320 = vpack.c.bf16 %v3244, %v3244
  %v3321 = vpack.c.bf16 %v3251, %v3251
  %v3322 = vpack.c.bf16 %v3258, %v3258
  %v3387 = vunpack.c.l.b16 %v3259
  %v3388 = vunpack.c.l.b16 %v3260
  %v3389 = vunpack.c.l.b16 %v3261
  %v3390 = vunpack.c.l.b16 %v3262
  %v3391 = vunpack.c.l.b16 %v3263
  %v3392 = vunpack.c.l.b16 %v3264
  %v3393 = vunpack.c.l.b16 %v3265
  %v3394 = vunpack.c.l.b16 %v3266
  %v3395 = vunpack.c.l.b16 %v3267
  %v3396 = vunpack.c.l.b16 %v3268
  %v3397 = vunpack.c.l.b16 %v3269
  %v3398 = vunpack.c.l.b16 %v3270
  %v3399 = vunpack.c.l.b16 %v3271
  %v3400 = vunpack.c.l.b16 %v3272
  %v3401 = vunpack.c.l.b16 %v3273
  %v3402 = vunpack.c.l.b16 %v3274
  %v3403 = vunpack.c.l.b16 %v3275
  %v3404 = vunpack.c.l.b16 %v3276
  %v3405 = vunpack.c.l.b16 %v3277
  %v3406 = vunpack.c.l.b16 %v3278
  %v3407 = vunpack.c.l.b16 %v3279
  %v3408 = vunpack.c.l.b16 %v3280
  %v3409 = vunpack.c.l.b16 %v3281
  %v3410 = vunpack.c.l.b16 %v3282
  %v3411 = vunpack.c.l.b16 %v3283
  %v3412 = vunpack.c.l.b16 %v3284
  %v3413 = vunpack.c.l.b16 %v3285
  %v3414 = vunpack.c.l.b16 %v3286
  %v3415 = vunpack.c.l.b16 %v3287
  %v3416 = vunpack.c.l.b16 %v3288
  %v3417 = vunpack.c.l.b16 %v3289
  %v3418 = vunpack.c.l.b16 %v3290
  %v3419 = vunpack.c.l.b16 %v3291
  %v3420 = vunpack.c.l.b16 %v3292
  %v3421 = vunpack.c.l.b16 %v3293
  %v3422 = vunpack.c.l.b16 %v3294
  %v3423 = vunpack.c.l.b16 %v3295
  %v3424 = vunpack.c.l.b16 %v3296
  %v3425 = vunpack.c.l.b16 %v3297
  %v3426 = vunpack.c.l.b16 %v3298
  %v3427 = vunpack.c.l.b16 %v3299
  %v3428 = vunpack.c.l.b16 %v3300
  %v3429 = vunpack.c.l.b16 %v3301
  %v3430 = vunpack.c.l.b16 %v3302
  %v3431 = vunpack.c.l.b16 %v3303
  %v3432 = vunpack.c.l.b16 %v3304
  %v3433 = vunpack.c.l.b16 %v3305
  %v3434 = vunpack.c.l.b16 %v3306
  %v3435 = vunpack.c.l.b16 %v3307
  %v3436 = vunpack.c.l.b16 %v3308
  %v3437 = vunpack.c.l.b16 %v3309
  %v3438 = vunpack.c.l.b16 %v3310
  %v3439 = vunpack.c.l.b16 %v3311
  %v3440 = vunpack.c.l.b16 %v3312
  %v3441 = vunpack.c.l.b16 %v3313
  %v3442 = vunpack.c.l.b16 %v3314
  %v3443 = vunpack.c.l.b16 %v3315
  %v3444 = vunpack.c.l.b16 %v3316
  %v3445 = vunpack.c.l.b16 %v3317
  %v3446 = vunpack.c.l.b16 %v3318
  %v3447 = vunpack.c.l.b16 %v3319
  %v3448 = vunpack.c.l.b16 %v3320
  %v3449 = vunpack.c.l.b16 %v3321
  %v3450 = vunpack.c.l.b16 %v3322
  %vm3451 = vcmask 1041409
  %v3452 = vsel %vm3451, %v3388, %v3387
  %vm3453 = vcmask 1042434
  %v3454 = vsel %vm3453, %v3389, %v3452
  %vm3455 = vcmask 1043459
  %v3456 = vsel %vm3455, %v3390, %v3454
  %vm3457 = vcmask 1044484
  %v3458 = vsel %vm3457, %v3391, %v3456
  %vm3459 = vcmask 1045509
  %v3460 = vsel %vm3459, %v3392, %v3458
  %vm3461 = vcmask 1046534
  %v3462 = vsel %vm3461, %v3393, %v3460
  %vm3463 = vcmask 1047559
  %v3464 = vsel %vm3463, %v3394, %v3462
  %v3465 = vsel %vm3451, %v3396, %v3395
  %v3466 = vsel %vm3453, %v3397, %v3465
  %v3467 = vsel %vm3455, %v3398, %v3466
  %v3468 = vsel %vm3457, %v3399, %v3467
  %v3469 = vsel %vm3459, %v3400, %v3468
  %v3470 = vsel %vm3461, %v3401, %v3469
  %v3471 = vsel %vm3463, %v3402, %v3470
  %v3472 = vsel %vm3451, %v3404, %v3403
  %v3473 = vsel %vm3453, %v3405, %v3472
  %v3474 = vsel %vm3455, %v3406, %v3473
  %v3475 = vsel %vm3457, %v3407, %v3474
  %v3476 = vsel %vm3459, %v3408, %v3475
  %v3477 = vsel %vm3461, %v3409, %v3476
  %v3478 = vsel %vm3463, %v3410, %v3477
  %v3479 = vsel %vm3451, %v3412, %v3411
  %v3480 = vsel %vm3453, %v3413, %v3479
  %v3481 = vsel %vm3455, %v3414, %v3480
  %v3482 = vsel %vm3457, %v3415, %v3481
  %v3483 = vsel %vm3459, %v3416, %v3482
  %v3484 = vsel %vm3461, %v3417, %v3483
  %v3485 = vsel %vm3463, %v3418, %v3484
  %v3486 = vsel %vm3451, %v3420, %v3419
  %v3487 = vsel %vm3453, %v3421, %v3486
  %v3488 = vsel %vm3455, %v3422, %v3487
  %v3489 = vsel %vm3457, %v3423, %v3488
  %v3490 = vsel %vm3459, %v3424, %v3489
  %v3491 = vsel %vm3461, %v3425, %v3490
  %v3492 = vsel %vm3463, %v3426, %v3491
  %v3493 = vsel %vm3451, %v3428, %v3427
  %v3494 = vsel %vm3453, %v3429, %v3493
  %v3495 = vsel %vm3455, %v3430, %v3494
  %v3496 = vsel %vm3457, %v3431, %v3495
  %v3497 = vsel %vm3459, %v3432, %v3496
  %v3498 = vsel %vm3461, %v3433, %v3497
  %v3499 = vsel %vm3463, %v3434, %v3498
  %v3500 = vsel %vm3451, %v3436, %v3435
  %v3501 = vsel %vm3453, %v3437, %v3500
  %v3502 = vsel %vm3455, %v3438, %v3501
  %v3503 = vsel %vm3457, %v3439, %v3502
  %v3504 = vsel %vm3459, %v3440, %v3503
  %v3505 = vsel %vm3461, %v3441, %v3504
  %v3506 = vsel %vm3463, %v3442, %v3505
  %v3507 = vsel %vm3451, %v3444, %v3443
  %v3508 = vsel %vm3453, %v3445, %v3507
  %v3509 = vsel %vm3455, %v3446, %v3508
  %v3510 = vsel %vm3457, %v3447, %v3509
  %v3511 = vsel %vm3459, %v3448, %v3510
  %v3512 = vsel %vm3461, %v3449, %v3511
  %v3513 = vsel %vm3463, %v3450, %v3512
  %v3514 = vpack.c.b16 %v3464, %v3464
  %v3515 = vpack.c.b16 %v3471, %v3471
  %v3516 = vpack.c.b16 %v3478, %v3478
  %v3517 = vpack.c.b16 %v3485, %v3485
  %v3518 = vpack.c.b16 %v3492, %v3492
  %v3519 = vpack.c.b16 %v3499, %v3499
  %v3520 = vpack.c.b16 %v3506, %v3506
  %v3521 = vpack.c.b16 %v3513, %v3513
  %vm3530 = vcmask 519168
  %3531 = vst.msk [vmem:[%s7] sm:$0xf] %vm3530, %v3514
  %3532 = vst.msk [vmem:[%s7 + $0x4] sm:$0xf] %vm3530, %v3515
  %3533 = vst.msk [vmem:[%s7 + $0x8] sm:$0xf] %vm3530, %v3516
  %3534 = vst.msk [vmem:[%s7 + $0xc] sm:$0xf] %vm3530, %v3517
  %3535 = vst.msk [vmem:[%s7 + $0x10] sm:$0xf] %vm3530, %v3518
  %3536 = vst.msk [vmem:[%s7 + $0x14] sm:$0xf] %vm3530, %v3519
  %3537 = vst.msk [vmem:[%s7 + $0x18] sm:$0xf] %vm3530, %v3520
  %3538 = vst.msk [vmem:[%s7 + $0x1c] sm:$0xf] %vm3530, %v3521
  // Predicated region
  $region30: #{eventmamba_forward.9} parent=0 // pred_check
    _
  $region31: #{eventmamba_forward.9} parent=0 // pred_check_branch
    %3540 = sbr.rel (0) target = $region33
  $region32: #{eventmamba_forward.9} parent=0 // pred_region
    _
  $region33: #{eventmamba_forward.9} parent=0 // pred_fallthru
    _
  // Predicated region
  $region34: #{eventmamba_forward.9} parent=0 // pred_check
    _
  $region35: #{eventmamba_forward.9} parent=0 // pred_check_branch
    %3542 = sbr.rel (0) target = $region37
  $region36: #{eventmamba_forward.9} parent=0 // pred_region
    _
  $region37: #{eventmamba_forward.9} parent=0 // pred_fallthru
    _

// kernel: eventmamba_forward.12
$region0: #{eventmamba_forward.12}
  #allocation0 [shape = 'u32[]', space=smem, size = 0x4, offset = 0x4, fixed_abs, tag = 'smem constant byte address 0x4 - core index']
  #allocation1 [shape = 'u32[72,128]{1,0:T(1,128)}', space=vmem, size = 0x9000, scoped, tag = 'internal scratch']
  %s0 = inlined_call_operand.vmem [shape: bf16[32,128], index: 0, kind: input, shape index: {}]
  %s1 = inlined_call_operand.vmem [shape: bf16[128,64], index: 1, kind: input, shape index: {}]
  %s2 = inlined_call_operand.vmem [shape: f32[1,64], index: 2, kind: input, shape index: {}]
  %s3 = inlined_call_operand.vmem [shape: bf16[64,128], index: 3, kind: input, shape index: {}]
  %s4 = inlined_call_operand.vmem [shape: f32[1,128], index: 4, kind: input, shape index: {}]
  %s5 = inlined_call_operand.vmem [shape: bf16[32,128], index: 5, kind: output, shape index: {}]
  %s6 = sld [smem:[#allocation0]]
  $region30: #{eventmamba_forward.12} parent=0
    _
  %s8 = ssub.s32 1, %s6
  %s9 = scalar_select 0, %s8, %s6
  // Predicated region
  $region2: #{eventmamba_forward.12} parent=0 // pred_check
    _
  $region3: #{eventmamba_forward.12} parent=0 // pred_check_branch
    %11 = sbr.rel (0) target = $region5
  $region4: #{eventmamba_forward.12} parent=0 // pred_region
    _
  $region5: #{eventmamba_forward.12} parent=0 // pred_fallthru
    _
  // Predicated region
  $region6: #{eventmamba_forward.12} parent=0 // pred_check
    _
  $region7: #{eventmamba_forward.12} parent=0 // pred_check_branch
    %13 = sbr.rel (0) target = $region9
  $region8: #{eventmamba_forward.12} parent=0 // pred_region
    _
  $region9: #{eventmamba_forward.12} parent=0 // pred_fallthru
    _
  // Predicated region
  $region10: #{eventmamba_forward.12} parent=0 // pred_check
    _
  $region11: #{eventmamba_forward.12} parent=0 // pred_check_branch
    %15 = sbr.rel (0) target = $region13
  $region12: #{eventmamba_forward.12} parent=0 // pred_region
    _
  $region13: #{eventmamba_forward.12} parent=0 // pred_fallthru
    _
  // Predicated region
  $region14: #{eventmamba_forward.12} parent=0 // pred_check
    _
  $region15: #{eventmamba_forward.12} parent=0 // pred_check_branch
    %17 = sbr.rel (0) target = $region17
  $region16: #{eventmamba_forward.12} parent=0 // pred_region
    _
  $region17: #{eventmamba_forward.12} parent=0 // pred_fallthru
    _
  // Predicated region
  $region18: #{eventmamba_forward.12} parent=0 // pred_check
    _
  $region19: #{eventmamba_forward.12} parent=0 // pred_check_branch
    %19 = sbr.rel (0) target = $region21
  $region20: #{eventmamba_forward.12} parent=0 // pred_region
    _
  $region21: #{eventmamba_forward.12} parent=0 // pred_fallthru
    _
  %v21 = vld [vmem:[%s0] sm:$0xf]
  %v22 = vld [vmem:[%s0 + $0x4] sm:$0xf]
  %v23 = vld [vmem:[%s0 + $0x8] sm:$0xf]
  %v24 = vld [vmem:[%s0 + $0xc] sm:$0xf]
  %v25 = vunpack.c.l.bf16 %v21
  %v26 = vunpack.c.l.bf16 %v22
  %v27 = vunpack.c.l.bf16 %v23
  %v28 = vunpack.c.l.bf16 %v24
  %v29 = vld [vmem:[%s1] sm:$0xf]
  %v30 = vld [vmem:[%s1 + $0x4] sm:$0xf]
  %v31 = vld [vmem:[%s1 + $0x8] sm:$0xf]
  %v32 = vld [vmem:[%s1 + $0xc] sm:$0xf]
  %v33 = vld [vmem:[%s1 + $0x10] sm:$0xf]
  %v34 = vld [vmem:[%s1 + $0x14] sm:$0xf]
  %v35 = vld [vmem:[%s1 + $0x18] sm:$0xf]
  %v36 = vld [vmem:[%s1 + $0x1c] sm:$0xf]
  %v37 = vld [vmem:[%s1 + $0x20] sm:$0xf]
  %v38 = vld [vmem:[%s1 + $0x24] sm:$0xf]
  %v39 = vld [vmem:[%s1 + $0x28] sm:$0xf]
  %v40 = vld [vmem:[%s1 + $0x2c] sm:$0xf]
  %v41 = vld [vmem:[%s1 + $0x30] sm:$0xf]
  %v42 = vld [vmem:[%s1 + $0x34] sm:$0xf]
  %v43 = vld [vmem:[%s1 + $0x38] sm:$0xf]
  %v44 = vld [vmem:[%s1 + $0x3c] sm:$0xf]
  %v45 = vld [vmem:[%s2] sm:$0x1]
  %v47 = vperm.slane %v45, 0
  %v53 = vunpack.c.l.b16 %v21
  %v54 = vunpack.c.l.b16 %v22
  %v55 = vunpack.c.l.b16 %v23
  %v56 = vunpack.c.l.b16 %v24
  %v57 = vpack.c.b16 %v54, %v53
  %v58 = vpack.c.b16 %v56, %v55
  %v77 = vunpack.c.l.b16 %v29
  %v78 = vunpack.c.l.b16 %v30
  %v79 = vunpack.c.l.b16 %v31
  %v80 = vunpack.c.l.b16 %v32
  %v81 = vunpack.c.l.b16 %v33
  %v82 = vunpack.c.l.b16 %v34
  %v83 = vunpack.c.l.b16 %v35
  %v84 = vunpack.c.l.b16 %v36
  %v85 = vunpack.c.l.b16 %v37
  %v86 = vunpack.c.l.b16 %v38
  %v87 = vunpack.c.l.b16 %v39
  %v88 = vunpack.c.l.b16 %v40
  %v89 = vunpack.c.l.b16 %v41
  %v90 = vunpack.c.l.b16 %v42
  %v91 = vunpack.c.l.b16 %v43
  %v92 = vunpack.c.l.b16 %v44
  %v93 = vpack.c.b16 %v78, %v77
  %v94 = vpack.c.b16 %v80, %v79
  %v95 = vpack.c.b16 %v82, %v81
  %v96 = vpack.c.b16 %v84, %v83
  %v97 = vpack.c.b16 %v86, %v85
  %v98 = vpack.c.b16 %v88, %v87
  %v99 = vpack.c.b16 %v90, %v89
  %v100 = vpack.c.b16 %v92, %v91
  %109 = vmatpush.bf16.msra.mxu0 %v100
  %110 = vmatpush.bf16.msra.mxu0 %v99
  %111 = vmatpush.bf16.msra.mxu0 %v98
  %112 = vmatpush.bf16.msra.mxu0 %v97
  %113 = vmatpush.bf16.msra.mxu0 %v96
  %114 = vmatpush.bf16.msra.mxu0 %v95
  %115 = vmatpush.bf16.msra.mxu0 %v94
  %116 = vmatpush.bf16.msra.mxu0 %v93
  %117 = vmatmul.bf16.gmra.mxu0 %v57
  %v118 = vpop.f32.mrf.mxu0
  %v119 = vadd.f32 %v47, %v118
  %v120 = vpop.f32.mrf.mxu0
  %v121 = vadd.f32 %v47, %v120
  %122 = vmatmul.bf16.gmra.mxu0 %v58
  %v123 = vpop.f32.mrf.mxu0
  %v124 = vadd.f32 %v47, %v123
  %v125 = vpop.f32.mrf.mxu0
  %v126 = vadd.f32 %v47, %v125
  %127 = vdwg.mxu0
  %v128 = vmax.f32 %v119, 0.0
  %v129 = vmax.f32 %v121, 0.0
  %v130 = vmax.f32 %v124, 0.0
  %v131 = vmax.f32 %v126, 0.0
  %v132 = vpack.c.bf16 %v129, %v128
  %v133 = vpack.c.bf16 %v131, %v130
  %v134 = vld [vmem:[%s3] sm:$0xf]
  %v135 = vld [vmem:[%s3 + $0x4] sm:$0xf]
  %v136 = vld [vmem:[%s3 + $0x8] sm:$0xf]
  %v137 = vld [vmem:[%s3 + $0xc] sm:$0xf]
  %v138 = vld [vmem:[%s3 + $0x10] sm:$0xf]
  %v139 = vld [vmem:[%s3 + $0x14] sm:$0xf]
  %v140 = vld [vmem:[%s3 + $0x18] sm:$0xf]
  %v141 = vld [vmem:[%s3 + $0x1c] sm:$0xf]
  %v142 = vld [vmem:[%s4] sm:$0x1]
  %v144 = vperm.slane %v142, 0
  %v154 = vunpack.c.l.b16 %v134
  %v155 = vunpack.c.l.b16 %v135
  %v156 = vunpack.c.l.b16 %v136
  %v157 = vunpack.c.l.b16 %v137
  %v158 = vunpack.c.l.b16 %v138
  %v159 = vunpack.c.l.b16 %v139
  %v160 = vunpack.c.l.b16 %v140
  %v161 = vunpack.c.l.b16 %v141
  %v162 = vpack.c.b16 %v155, %v154
  %v163 = vpack.c.b16 %v157, %v156
  %v164 = vpack.c.b16 %v159, %v158
  %v165 = vpack.c.b16 %v161, %v160
  %vm170 = vcmask 523264
  %v172 = vsel %vm170, %v132, 0
  %v175 = vsel %vm170, %v133, 0
  %177 = vmatpush.bf16.msra.mxu0 0
  %178 = vmatpush.bf16.msra.mxu0 0
  %179 = vmatpush.bf16.msra.mxu0 0
  %180 = vmatpush.bf16.msra.mxu0 0
  %181 = vmatpush.bf16.msra.mxu0 %v165
  %182 = vmatpush.bf16.msra.mxu0 %v164
  %183 = vmatpush.bf16.msra.mxu0 %v163
  %184 = vmatpush.bf16.msra.mxu0 %v162
  %185 = vmatmul.bf16.gmra.mxu0 %v172
  %v186 = vpop.f32.mrf.mxu0
  %v187 = vadd.f32 %v144, %v186
  %v188 = vpop.f32.mrf.mxu0
  %v189 = vadd.f32 %v144, %v188
  %190 = vmatmul.bf16.gmra.mxu0 %v175
  %v191 = vpop.f32.mrf.mxu0
  %v192 = vadd.f32 %v144, %v191
  %v193 = vpop.f32.mrf.mxu0
  %v194 = vadd.f32 %v144, %v193
  %195 = vdwg.mxu0
  %v196 = vadd.f32 %v187, %v25
  %v197 = vadd.f32 %v189, %v26
  %v198 = vadd.f32 %v192, %v27
  %v199 = vadd.f32 %v194, %v28
  %v200 = vmax.f32 %v196, 0.0
  %v201 = vmax.f32 %v197, 0.0
  %v202 = vmax.f32 %v198, 0.0
  %v203 = vmax.f32 %v199, 0.0
  %v204 = vpack.c.bf16 %v200, %v200
  %v205 = vpack.c.bf16 %v201, %v201
  %v206 = vpack.c.bf16 %v202, %v202
  %v207 = vpack.c.bf16 %v203, %v203
  %208 = vst [vmem:[%s5] sm:$0xf] %v204
  %209 = vst [vmem:[%s5 + $0x4] sm:$0xf] %v205
  %210 = vst [vmem:[%s5 + $0x8] sm:$0xf] %v206
  %211 = vst [vmem:[%s5 + $0xc] sm:$0xf] %v207
  // Predicated region
  $region22: #{eventmamba_forward.12} parent=0 // pred_check
    _
  $region23: #{eventmamba_forward.12} parent=0 // pred_check_branch
    %213 = sbr.rel (0) target = $region25
  $region24: #{eventmamba_forward.12} parent=0 // pred_region
    _
  $region25: #{eventmamba_forward.12} parent=0 // pred_fallthru
    _
  // Predicated region
  $region26: #{eventmamba_forward.12} parent=0 // pred_check
    _
  $region27: #{eventmamba_forward.12} parent=0 // pred_check_branch
    %215 = sbr.rel (0) target = $region29
  $region28: #{eventmamba_forward.12} parent=0 // pred_region
    _
  $region29: #{eventmamba_forward.12} parent=0 // pred_fallthru
    _

// kernel: neg.5
$region0: #{neg.5}
  #allocation0 [shape = 's32[1]{0}', space=sflag, size = 0x4, scoped, tag = 'scoped memory for neg.5']
  %s0 = inlined_call_operand.vmem [shape: f32[2,8,16], index: 0, kind: input, shape index: {}]
  %s1 = inlined_call_operand.vmem [shape: f32[2,8,16], index: 1, kind: output, shape index: {}]
  %v2 = vld [vmem:[%s0] sm:$0xff]
  %3 = xla_tuple %v2
  %4 = xla_tuple %3
  %v5 = vxor.u32 %v2, 2147483648
  %6 = xla_tuple %v5
  %7 = vst [vmem:[%s1] sm:$0xff] %v5
  %s8 = scalar_lea.vmem %s0, 8
  %v9 = vld [vmem:[%s8] sm:$0xff]
  %10 = xla_tuple %v9
  %11 = xla_tuple %10
  %v12 = vxor.u32 %v9, 2147483648
  %13 = xla_tuple %v12
  %s14 = scalar_lea.vmem %s1, 8
  %15 = vst [vmem:[%s14] sm:$0xff] %v12

// kernel: eventmamba_forward.11
$region0: #{eventmamba_forward.11}
  #allocation0 [shape = 'u32[]', space=smem, size = 0x4, offset = 0x4, fixed_abs, tag = 'smem constant byte address 0x4 - core index']
  #allocation1 [shape = 'u32[72,128]{1,0:T(1,128)}', space=vmem, size = 0x9000, scoped, tag = 'internal scratch']
  %s0 = inlined_call_operand.vmem [shape: bf16[32,8,64], index: 0, kind: input, shape index: {}]
  %s1 = inlined_call_operand.vmem [shape: bf16[32,64], index: 1, kind: input, shape index: {}]
  %s2 = inlined_call_operand.vmem [shape: bf16[128,64], index: 2, kind: input, shape index: {}]
  %s3 = inlined_call_operand.vmem [shape: f32[1,64], index: 3, kind: input, shape index: {}]
  %s4 = inlined_call_operand.vmem [shape: bf16[64,128], index: 4, kind: input, shape index: {}]
  %s5 = inlined_call_operand.vmem [shape: f32[1,128], index: 5, kind: input, shape index: {}]
  %s6 = inlined_call_operand.vmem [shape: f32[1,128], index: 6, kind: input, shape index: {}]
  %s7 = inlined_call_operand.vmem [shape: bf16[32,128], index: 7, kind: output, shape index: {}]
  %s8 = sld [smem:[#allocation0]]
  $region38: #{eventmamba_forward.11} parent=0
    _
  %s10 = ssub.s32 1, %s8
  %s11 = scalar_select 0, %s10, %s8
  // Predicated region
  $region2: #{eventmamba_forward.11} parent=0 // pred_check
    _
  $region3: #{eventmamba_forward.11} parent=0 // pred_check_branch
    %13 = sbr.rel (0) target = $region5
  $region4: #{eventmamba_forward.11} parent=0 // pred_region
    _
  $region5: #{eventmamba_forward.11} parent=0 // pred_fallthru
    _
  // Predicated region
  $region6: #{eventmamba_forward.11} parent=0 // pred_check
    _
  $region7: #{eventmamba_forward.11} parent=0 // pred_check_branch
    %15 = sbr.rel (0) target = $region9
  $region8: #{eventmamba_forward.11} parent=0 // pred_region
    _
  $region9: #{eventmamba_forward.11} parent=0 // pred_fallthru
    _
  // Predicated region
  $region10: #{eventmamba_forward.11} parent=0 // pred_check
    _
  $region11: #{eventmamba_forward.11} parent=0 // pred_check_branch
    %17 = sbr.rel (0) target = $region13
  $region12: #{eventmamba_forward.11} parent=0 // pred_region
    _
  $region13: #{eventmamba_forward.11} parent=0 // pred_fallthru
    _
  // Predicated region
  $region14: #{eventmamba_forward.11} parent=0 // pred_check
    _
  $region15: #{eventmamba_forward.11} parent=0 // pred_check_branch
    %19 = sbr.rel (0) target = $region17
  $region16: #{eventmamba_forward.11} parent=0 // pred_region
    _
  $region17: #{eventmamba_forward.11} parent=0 // pred_fallthru
    _
  // Predicated region
  $region18: #{eventmamba_forward.11} parent=0 // pred_check
    _
  $region19: #{eventmamba_forward.11} parent=0 // pred_check_branch
    %21 = sbr.rel (0) target = $region21
  $region20: #{eventmamba_forward.11} parent=0 // pred_region
    _
  $region21: #{eventmamba_forward.11} parent=0 // pred_fallthru
    _
  // Predicated region
  $region22: #{eventmamba_forward.11} parent=0 // pred_check
    _
  $region23: #{eventmamba_forward.11} parent=0 // pred_check_branch
    %23 = sbr.rel (0) target = $region25
  $region24: #{eventmamba_forward.11} parent=0 // pred_region
    _
  $region25: #{eventmamba_forward.11} parent=0 // pred_fallthru
    _
  // Predicated region
  $region26: #{eventmamba_forward.11} parent=0 // pred_check
    _
  $region27: #{eventmamba_forward.11} parent=0 // pred_check_branch
    %25 = sbr.rel (0) target = $region29
  $region28: #{eventmamba_forward.11} parent=0 // pred_region
    _
  $region29: #{eventmamba_forward.11} parent=0 // pred_fallthru
    _
  %v27 = vld [vmem:[%s0] sm:$0xf]
  %v28 = vld [vmem:[%s0 + $0x4] sm:$0xf]
  %v29 = vld [vmem:[%s0 + $0x8] sm:$0xf]
  %v30 = vld [vmem:[%s0 + $0xc] sm:$0xf]
  %v31 = vld [vmem:[%s0 + $0x10] sm:$0xf]
  %v32 = vld [vmem:[%s0 + $0x14] sm:$0xf]
  %v33 = vld [vmem:[%s0 + $0x18] sm:$0xf]
  %v34 = vld [vmem:[%s0 + $0x1c] sm:$0xf]
  %v35 = vld [vmem:[%s0 + $0x20] sm:$0xf]
  %v36 = vld [vmem:[%s0 + $0x24] sm:$0xf]
  %v37 = vld [vmem:[%s0 + $0x28] sm:$0xf]
  %v38 = vld [vmem:[%s0 + $0x2c] sm:$0xf]
  %v39 = vld [vmem:[%s0 + $0x30] sm:$0xf]
  %v40 = vld [vmem:[%s0 + $0x34] sm:$0xf]
  %v41 = vld [vmem:[%s0 + $0x38] sm:$0xf]
  %v42 = vld [vmem:[%s0 + $0x3c] sm:$0xf]
  %v43 = vld [vmem:[%s0 + $0x40] sm:$0xf]
  %v44 = vld [vmem:[%s0 + $0x44] sm:$0xf]
  %v45 = vld [vmem:[%s0 + $0x48] sm:$0xf]
  %v46 = vld [vmem:[%s0 + $0x4c] sm:$0xf]
  %v47 = vld [vmem:[%s0 + $0x50] sm:$0xf]
  %v48 = vld [vmem:[%s0 + $0x54] sm:$0xf]
  %v49 = vld [vmem:[%s0 + $0x58] sm:$0xf]
  %v50 = vld [vmem:[%s0 + $0x5c] sm:$0xf]
  %v51 = vld [vmem:[%s0 + $0x60] sm:$0xf]
  %v52 = vld [vmem:[%s0 + $0x64] sm:$0xf]
  %v53 = vld [vmem:[%s0 + $0x68] sm:$0xf]
  %v54 = vld [vmem:[%s0 + $0x6c] sm:$0xf]
  %v55 = vld [vmem:[%s0 + $0x70] sm:$0xf]
  %v56 = vld [vmem:[%s0 + $0x74] sm:$0xf]
  %v57 = vld [vmem:[%s0 + $0x78] sm:$0xf]
  %v58 = vld [vmem:[%s0 + $0x7c] sm:$0xf]
  %v59 = vunpack.c.l.bf16 %v27
  %v60 = vunpack.c.l.bf16 %v28
  %v61 = vunpack.c.l.bf16 %v29
  %v62 = vunpack.c.l.bf16 %v30
  %v63 = vunpack.c.l.bf16 %v31
  %v64 = vunpack.c.l.bf16 %v32
  %v65 = vunpack.c.l.bf16 %v33
  %v66 = vunpack.c.l.bf16 %v34
  %v67 = vunpack.c.l.bf16 %v35
  %v68 = vunpack.c.l.bf16 %v36
  %v69 = vunpack.c.l.bf16 %v37
  %v70 = vunpack.c.l.bf16 %v38
  %v71 = vunpack.c.l.bf16 %v39
  %v72 = vunpack.c.l.bf16 %v40
  %v73 = vunpack.c.l.bf16 %v41
  %v74 = vunpack.c.l.bf16 %v42
  %v75 = vunpack.c.l.bf16 %v43
  %v76 = vunpack.c.l.bf16 %v44
  %v77 = vunpack.c.l.bf16 %v45
  %v78 = vunpack.c.l.bf16 %v46
  %v79 = vunpack.c.l.bf16 %v47
  %v80 = vunpack.c.l.bf16 %v48
  %v81 = vunpack.c.l.bf16 %v49
  %v82 = vunpack.c.l.bf16 %v50
  %v83 = vunpack.c.l.bf16 %v51
  %v84 = vunpack.c.l.bf16 %v52
  %v85 = vunpack.c.l.bf16 %v53
  %v86 = vunpack.c.l.bf16 %v54
  %v87 = vunpack.c.l.bf16 %v55
  %v88 = vunpack.c.l.bf16 %v56
  %v89 = vunpack.c.l.bf16 %v57
  %v90 = vunpack.c.l.bf16 %v58
  %v91 = vld [vmem:[%s1] sm:$0xf]
  %v92 = vld [vmem:[%s1 + $0x4] sm:$0xf]
  %v93 = vld [vmem:[%s1 + $0x8] sm:$0xf]
  %v94 = vld [vmem:[%s1 + $0xc] sm:$0xf]
  %v95 = vunpack.c.l.bf16 %v91
  %v96 = vunpack.c.l.bf16 %v92
  %v97 = vunpack.c.l.bf16 %v93
  %v98 = vunpack.c.l.bf16 %v94
  %v103 = vrot.slane %v95, 1
  %v104 = vrot.slane %v95, 2
  %v105 = vrot.slane %v95, 3
  %v106 = vrot.slane %v95, 4
  %v107 = vrot.slane %v95, 5
  %v108 = vrot.slane %v95, 6
  %v109 = vrot.slane %v95, 7
  %v110 = vrot.slane %v96, 1
  %v111 = vrot.slane %v96, 2
  %v112 = vrot.slane %v96, 3
  %v113 = vrot.slane %v96, 4
  %v114 = vrot.slane %v96, 5
  %v115 = vrot.slane %v96, 6
  %v116 = vrot.slane %v96, 7
  %v117 = vrot.slane %v97, 1
  %v118 = vrot.slane %v97, 2
  %v119 = vrot.slane %v97, 3
  %v120 = vrot.slane %v97, 4
  %v121 = vrot.slane %v97, 5
  %v122 = vrot.slane %v97, 6
  %v123 = vrot.slane %v97, 7
  %v124 = vrot.slane %v98, 1
  %v125 = vrot.slane %v98, 2
  %v126 = vrot.slane %v98, 3
  %v127 = vrot.slane %v98, 4
  %v128 = vrot.slane %v98, 5
  %v129 = vrot.slane %v98, 6
  %v130 = vrot.slane %v98, 7
  %v131 = vperm.slane %v95, 0
  %v132 = vperm.slane %v103, 0
  %v133 = vperm.slane %v104, 0
  %v134 = vperm.slane %v105, 0
  %v135 = vperm.slane %v106, 0
  %v136 = vperm.slane %v107, 0
  %v137 = vperm.slane %v108, 0
  %v138 = vperm.slane %v109, 0
  %v139 = vperm.slane %v96, 0
  %v140 = vperm.slane %v110, 0
  %v141 = vperm.slane %v111, 0
  %v142 = vperm.slane %v112, 0
  %v143 = vperm.slane %v113, 0
  %v144 = vperm.slane %v114, 0
  %v145 = vperm.slane %v115, 0
  %v146 = vperm.slane %v116, 0
  %v147 = vperm.slane %v97, 0
  %v148 = vperm.slane %v117, 0
  %v149 = vperm.slane %v118, 0
  %v150 = vperm.slane %v119, 0
  %v151 = vperm.slane %v120, 0
  %v152 = vperm.slane %v121, 0
  %v153 = vperm.slane %v122, 0
  %v154 = vperm.slane %v123, 0
  %v155 = vperm.slane %v98, 0
  %v156 = vperm.slane %v124, 0
  %v157 = vperm.slane %v125, 0
  %v158 = vperm.slane %v126, 0
  %v159 = vperm.slane %v127, 0
  %v160 = vperm.slane %v128, 0
  %v161 = vperm.slane %v129, 0
  %v162 = vperm.slane %v130, 0
  %163 = vrot.lane.b32.xlu0 %v131, 64
  %v164 = vpop.permute.xlu0 %163
  %165 = vrot.lane.b32.xlu0 %v132, 64
  %v166 = vpop.permute.xlu0 %165
  %167 = vrot.lane.b32.xlu0 %v133, 64
  %v168 = vpop.permute.xlu0 %167
  %169 = vrot.lane.b32.xlu0 %v134, 64
  %v170 = vpop.permute.xlu0 %169
  %171 = vrot.lane.b32.xlu0 %v135, 64
  %v172 = vpop.permute.xlu0 %171
  %173 = vrot.lane.b32.xlu0 %v136, 64
  %v174 = vpop.permute.xlu0 %173
  %175 = vrot.lane.b32.xlu0 %v137, 64
  %v176 = vpop.permute.xlu0 %175
  %177 = vrot.lane.b32.xlu0 %v138, 64
  %v178 = vpop.permute.xlu0 %177
  %179 = vrot.lane.b32.xlu0 %v139, 64
  %v180 = vpop.permute.xlu0 %179
  %181 = vrot.lane.b32.xlu0 %v140, 64
  %v182 = vpop.permute.xlu0 %181
  %183 = vrot.lane.b32.xlu0 %v141, 64
  %v184 = vpop.permute.xlu0 %183
  %185 = vrot.lane.b32.xlu0 %v142, 64
  %v186 = vpop.permute.xlu0 %185
  %187 = vrot.lane.b32.xlu0 %v143, 64
  %v188 = vpop.permute.xlu0 %187
  %189 = vrot.lane.b32.xlu0 %v144, 64
  %v190 = vpop.permute.xlu0 %189
  %191 = vrot.lane.b32.xlu0 %v145, 64
  %v192 = vpop.permute.xlu0 %191
  %193 = vrot.lane.b32.xlu0 %v146, 64
  %v194 = vpop.permute.xlu0 %193
  %195 = vrot.lane.b32.xlu0 %v147, 64
  %v196 = vpop.permute.xlu0 %195
  %197 = vrot.lane.b32.xlu0 %v148, 64
  %v198 = vpop.permute.xlu0 %197
  %199 = vrot.lane.b32.xlu0 %v149, 64
  %v200 = vpop.permute.xlu0 %199
  %201 = vrot.lane.b32.xlu0 %v150, 64
  %v202 = vpop.permute.xlu0 %201
  %203 = vrot.lane.b32.xlu0 %v151, 64
  %v204 = vpop.permute.xlu0 %203
  %205 = vrot.lane.b32.xlu0 %v152, 64
  %v206 = vpop.permute.xlu0 %205
  %207 = vrot.lane.b32.xlu0 %v153, 64
  %v208 = vpop.permute.xlu0 %207
  %209 = vrot.lane.b32.xlu0 %v154, 64
  %v210 = vpop.permute.xlu0 %209
  %211 = vrot.lane.b32.xlu0 %v155, 64
  %v212 = vpop.permute.xlu0 %211
  %213 = vrot.lane.b32.xlu0 %v156, 64
  %v214 = vpop.permute.xlu0 %213
  %215 = vrot.lane.b32.xlu0 %v157, 64
  %v216 = vpop.permute.xlu0 %215
  %217 = vrot.lane.b32.xlu0 %v158, 64
  %v218 = vpop.permute.xlu0 %217
  %219 = vrot.lane.b32.xlu0 %v159, 64
  %v220 = vpop.permute.xlu0 %219
  %221 = vrot.lane.b32.xlu0 %v160, 64
  %v222 = vpop.permute.xlu0 %221
  %223 = vrot.lane.b32.xlu0 %v161, 64
  %v224 = vpop.permute.xlu0 %223
  %225 = vrot.lane.b32.xlu0 %v162, 64
  %v226 = vpop.permute.xlu0 %225
  %vm259 = vcmask 523264
  %v260 = vsel %vm259, %v59, %v164
  %v261 = vsel %vm259, %v60, %v166
  %v262 = vsel %vm259, %v61, %v168
  %v263 = vsel %vm259, %v62, %v170
  %v264 = vsel %vm259, %v63, %v172
  %v265 = vsel %vm259, %v64, %v174
  %v266 = vsel %vm259, %v65, %v176
  %v267 = vsel %vm259, %v66, %v178
  %v268 = vsel %vm259, %v67, %v180
  %v269 = vsel %vm259, %v68, %v182
  %v270 = vsel %vm259, %v69, %v184
  %v271 = vsel %vm259, %v70, %v186
  %v272 = vsel %vm259, %v71, %v188
  %v273 = vsel %vm259, %v72, %v190
  %v274 = vsel %vm259, %v73, %v192
  %v275 = vsel %vm259, %v74, %v194
  %v276 = vsel %vm259, %v75, %v196
  %v277 = vsel %vm259, %v76, %v198
  %v278 = vsel %vm259, %v77, %v200
  %v279 = vsel %vm259, %v78, %v202
  %v280 = vsel %vm259, %v79, %v204
  %v281 = vsel %vm259, %v80, %v206
  %v282 = vsel %vm259, %v81, %v208
  %v283 = vsel %vm259, %v82, %v210
  %v284 = vsel %vm259, %v83, %v212
  %v285 = vsel %vm259, %v84, %v214
  %v286 = vsel %vm259, %v85, %v216
  %v287 = vsel %vm259, %v86, %v218
  %v288 = vsel %vm259, %v87, %v220
  %v289 = vsel %vm259, %v88, %v222
  %v290 = vsel %vm259, %v89, %v224
  %v291 = vsel %vm259, %v90, %v226
  %v292 = vpack.c.bf16 %v261, %v260
  %v293 = vpack.c.bf16 %v263, %v262
  %v294 = vpack.c.bf16 %v265, %v264
  %v295 = vpack.c.bf16 %v267, %v266
  %v296 = vpack.c.bf16 %v269, %v268
  %v297 = vpack.c.bf16 %v271, %v270
  %v298 = vpack.c.bf16 %v273, %v272
  %v299 = vpack.c.bf16 %v275, %v274
  %v300 = vpack.c.bf16 %v277, %v276
  %v301 = vpack.c.bf16 %v279, %v278
  %v302 = vpack.c.bf16 %v281, %v280
  %v303 = vpack.c.bf16 %v283, %v282
  %v304 = vpack.c.bf16 %v285, %v284
  %v305 = vpack.c.bf16 %v287, %v286
  %v306 = vpack.c.bf16 %v289, %v288
  %v307 = vpack.c.bf16 %v291, %v290
  %v308 = vld [vmem:[%s2] sm:$0xf]
  %v309 = vld [vmem:[%s2 + $0x4] sm:$0xf]
  %v310 = vld [vmem:[%s2 + $0x8] sm:$0xf]
  %v311 = vld [vmem:[%s2 + $0xc] sm:$0xf]
  %v312 = vld [vmem:[%s2 + $0x10] sm:$0xf]
  %v313 = vld [vmem:[%s2 + $0x14] sm:$0xf]
  %v314 = vld [vmem:[%s2 + $0x18] sm:$0xf]
  %v315 = vld [vmem:[%s2 + $0x1c] sm:$0xf]
  %v316 = vld [vmem:[%s2 + $0x20] sm:$0xf]
  %v317 = vld [vmem:[%s2 + $0x24] sm:$0xf]
  %v318 = vld [vmem:[%s2 + $0x28] sm:$0xf]
  %v319 = vld [vmem:[%s2 + $0x2c] sm:$0xf]
  %v320 = vld [vmem:[%s2 + $0x30] sm:$0xf]
  %v321 = vld [vmem:[%s2 + $0x34] sm:$0xf]
  %v322 = vld [vmem:[%s2 + $0x38] sm:$0xf]
  %v323 = vld [vmem:[%s2 + $0x3c] sm:$0xf]
  %v324 = vld [vmem:[%s3] sm:$0x1]
  %v326 = vperm.slane %v324, 0
  %v344 = vunpack.c.l.b16 %v308
  %v345 = vunpack.c.l.b16 %v309
  %v346 = vunpack.c.l.b16 %v310
  %v347 = vunpack.c.l.b16 %v311
  %v348 = vunpack.c.l.b16 %v312
  %v349 = vunpack.c.l.b16 %v313
  %v350 = vunpack.c.l.b16 %v314
  %v351 = vunpack.c.l.b16 %v315
  %v352 = vunpack.c.l.b16 %v316
  %v353 = vunpack.c.l.b16 %v317
  %v354 = vunpack.c.l.b16 %v318
  %v355 = vunpack.c.l.b16 %v319
  %v356 = vunpack.c.l.b16 %v320
  %v357 = vunpack.c.l.b16 %v321
  %v358 = vunpack.c.l.b16 %v322
  %v359 = vunpack.c.l.b16 %v323
  %v360 = vpack.c.b16 %v345, %v344
  %v361 = vpack.c.b16 %v347, %v346
  %v362 = vpack.c.b16 %v349, %v348
  %v363 = vpack.c.b16 %v351, %v350
  %v364 = vpack.c.b16 %v353, %v352
  %v365 = vpack.c.b16 %v355, %v354
  %v366 = vpack.c.b16 %v357, %v356
  %v367 = vpack.c.b16 %v359, %v358
  %376 = vmatpush.bf16.msra.mxu0 %v367
  %377 = vmatpush.bf16.msra.mxu0 %v366
  %378 = vmatpush.bf16.msra.mxu0 %v365
  %379 = vmatpush.bf16.msra.mxu0 %v364
  %380 = vmatpush.bf16.msra.mxu0 %v363
  %381 = vmatpush.bf16.msra.mxu0 %v362
  %382 = vmatpush.bf16.msra.mxu0 %v361
  %383 = vmatpush.bf16.msra.mxu0 %v360
  %384 = vmatmul.bf16.gmra.mxu0 %v292
  %v385 = vpop.f32.mrf.mxu0
  %v386 = vadd.f32 %v326, %v385
  %v387 = vpop.f32.mrf.mxu0
  %v388 = vadd.f32 %v326, %v387
  %389 = vmatmul.bf16.gmra.mxu0 %v293
  %v390 = vpop.f32.mrf.mxu0
  %v391 = vadd.f32 %v326, %v390
  %v392 = vpop.f32.mrf.mxu0
  %v393 = vadd.f32 %v326, %v392
  %394 = vmatmul.bf16.gmra.mxu0 %v294
  %v395 = vpop.f32.mrf.mxu0
  %v396 = vadd.f32 %v326, %v395
  %v397 = vpop.f32.mrf.mxu0
  %v398 = vadd.f32 %v326, %v397
  %399 = vmatmul.bf16.gmra.mxu0 %v295
  %v400 = vpop.f32.mrf.mxu0
  %v401 = vadd.f32 %v326, %v400
  %v402 = vpop.f32.mrf.mxu0
  %v403 = vadd.f32 %v326, %v402
  %404 = vmatmul.bf16.gmra.mxu0 %v296
  %v405 = vpop.f32.mrf.mxu0
  %v406 = vadd.f32 %v326, %v405
  %v407 = vpop.f32.mrf.mxu0
  %v408 = vadd.f32 %v326, %v407
  %409 = vmatmul.bf16.gmra.mxu0 %v297
  %v410 = vpop.f32.mrf.mxu0
  %v411 = vadd.f32 %v326, %v410
  %v412 = vpop.f32.mrf.mxu0
  %v413 = vadd.f32 %v326, %v412
  %414 = vmatmul.bf16.gmra.mxu0 %v298
  %v415 = vpop.f32.mrf.mxu0
  %v416 = vadd.f32 %v326, %v415
  %v417 = vpop.f32.mrf.mxu0
  %v418 = vadd.f32 %v326, %v417
  %419 = vmatmul.bf16.gmra.mxu0 %v299
  %v420 = vpop.f32.mrf.mxu0
  %v421 = vadd.f32 %v326, %v420
  %v422 = vpop.f32.mrf.mxu0
  %v423 = vadd.f32 %v326, %v422
  %424 = vmatmul.bf16.gmra.mxu0 %v300
  %v425 = vpop.f32.mrf.mxu0
  %v426 = vadd.f32 %v326, %v425
  %v427 = vpop.f32.mrf.mxu0
  %v428 = vadd.f32 %v326, %v427
  %429 = vmatmul.bf16.gmra.mxu0 %v301
  %v430 = vpop.f32.mrf.mxu0
  %v431 = vadd.f32 %v326, %v430
  %v432 = vpop.f32.mrf.mxu0
  %v433 = vadd.f32 %v326, %v432
  %434 = vmatmul.bf16.gmra.mxu0 %v302
  %v435 = vpop.f32.mrf.mxu0
  %v436 = vadd.f32 %v326, %v435
  %v437 = vpop.f32.mrf.mxu0
  %v438 = vadd.f32 %v326, %v437
  %439 = vmatmul.bf16.gmra.mxu0 %v303
  %v440 = vpop.f32.mrf.mxu0
  %v441 = vadd.f32 %v326, %v440
  %v442 = vpop.f32.mrf.mxu0
  %v443 = vadd.f32 %v326, %v442
  %444 = vmatmul.bf16.gmra.mxu0 %v304
  %v445 = vpop.f32.mrf.mxu0
  %v446 = vadd.f32 %v326, %v445
  %v447 = vpop.f32.mrf.mxu0
  %v448 = vadd.f32 %v326, %v447
  %449 = vmatmul.bf16.gmra.mxu0 %v305
  %v450 = vpop.f32.mrf.mxu0
  %v451 = vadd.f32 %v326, %v450
  %v452 = vpop.f32.mrf.mxu0
  %v453 = vadd.f32 %v326, %v452
  %454 = vmatmul.bf16.gmra.mxu0 %v306
  %v455 = vpop.f32.mrf.mxu0
  %v456 = vadd.f32 %v326, %v455
  %v457 = vpop.f32.mrf.mxu0
  %v458 = vadd.f32 %v326, %v457
  %459 = vmatmul.bf16.gmra.mxu0 %v307
  %v460 = vpop.f32.mrf.mxu0
  %v461 = vadd.f32 %v326, %v460
  %v462 = vpop.f32.mrf.mxu0
  %v463 = vadd.f32 %v326, %v462
  %464 = vdwg.mxu0
  %v465 = vmax.f32 %v386, 0.0
  %v466 = vmax.f32 %v388, 0.0
  %v467 = vmax.f32 %v391, 0.0
  %v468 = vmax.f32 %v393, 0.0
  %v469 = vmax.f32 %v396, 0.0
  %v470 = vmax.f32 %v398, 0.0
  %v471 = vmax.f32 %v401, 0.0
  %v472 = vmax.f32 %v403, 0.0
  %v473 = vmax.f32 %v406, 0.0
  %v474 = vmax.f32 %v408, 0.0
  %v475 = vmax.f32 %v411, 0.0
  %v476 = vmax.f32 %v413, 0.0
  %v477 = vmax.f32 %v416, 0.0
  %v478 = vmax.f32 %v418, 0.0
  %v479 = vmax.f32 %v421, 0.0
  %v480 = vmax.f32 %v423, 0.0
  %v481 = vmax.f32 %v426, 0.0
  %v482 = vmax.f32 %v428, 0.0
  %v483 = vmax.f32 %v431, 0.0
  %v484 = vmax.f32 %v433, 0.0
  %v485 = vmax.f32 %v436, 0.0
  %v486 = vmax.f32 %v438, 0.0
  %v487 = vmax.f32 %v441, 0.0
  %v488 = vmax.f32 %v443, 0.0
  %v489 = vmax.f32 %v446, 0.0
  %v490 = vmax.f32 %v448, 0.0
  %v491 = vmax.f32 %v451, 0.0
  %v492 = vmax.f32 %v453, 0.0
  %v493 = vmax.f32 %v456, 0.0
  %v494 = vmax.f32 %v458, 0.0
  %v495 = vmax.f32 %v461, 0.0
  %v496 = vmax.f32 %v463, 0.0
  %v497 = vpack.c.bf16 %v466, %v465
  %v498 = vpack.c.bf16 %v468, %v467
  %v499 = vpack.c.bf16 %v470, %v469
  %v500 = vpack.c.bf16 %v472, %v471
  %v501 = vpack.c.bf16 %v474, %v473
  %v502 = vpack.c.bf16 %v476, %v475
  %v503 = vpack.c.bf16 %v478, %v477
  %v504 = vpack.c.bf16 %v480, %v479
  %v505 = vpack.c.bf16 %v482, %v481
  %v506 = vpack.c.bf16 %v484, %v483
  %v507 = vpack.c.bf16 %v486, %v485
  %v508 = vpack.c.bf16 %v488, %v487
  %v509 = vpack.c.bf16 %v490, %v489
  %v510 = vpack.c.bf16 %v492, %v491
  %v511 = vpack.c.bf16 %v494, %v493
  %v512 = vpack.c.bf16 %v496, %v495
  %v513 = vld [vmem:[%s4] sm:$0xf]
  %v514 = vld [vmem:[%s4 + $0x4] sm:$0xf]
  %v515 = vld [vmem:[%s4 + $0x8] sm:$0xf]
  %v516 = vld [vmem:[%s4 + $0xc] sm:$0xf]
  %v517 = vld [vmem:[%s4 + $0x10] sm:$0xf]
  %v518 = vld [vmem:[%s4 + $0x14] sm:$0xf]
  %v519 = vld [vmem:[%s4 + $0x18] sm:$0xf]
  %v520 = vld [vmem:[%s4 + $0x1c] sm:$0xf]
  %v521 = vld [vmem:[%s5] sm:$0x1]
  %v523 = vperm.slane %v521, 0
  %v533 = vunpack.c.l.b16 %v513
  %v534 = vunpack.c.l.b16 %v514
  %v535 = vunpack.c.l.b16 %v515
  %v536 = vunpack.c.l.b16 %v516
  %v537 = vunpack.c.l.b16 %v517
  %v538 = vunpack.c.l.b16 %v518
  %v539 = vunpack.c.l.b16 %v519
  %v540 = vunpack.c.l.b16 %v520
  %v541 = vpack.c.b16 %v534, %v533
  %v542 = vpack.c.b16 %v536, %v535
  %v543 = vpack.c.b16 %v538, %v537
  %v544 = vpack.c.b16 %v540, %v539
  %v550 = vsel %vm259, %v497, 0
  %v553 = vsel %vm259, %v498, 0
  %v556 = vsel %vm259, %v499, 0
  %v559 = vsel %vm259, %v500, 0
  %v562 = vsel %vm259, %v501, 0
  %v565 = vsel %vm259, %v502, 0
  %v568 = vsel %vm259, %v503, 0
  %v571 = vsel %vm259, %v504, 0
  %v574 = vsel %vm259, %v505, 0
  %v577 = vsel %vm259, %v506, 0
  %v580 = vsel %vm259, %v507, 0
  %v583 = vsel %vm259, %v508, 0
  %v586 = vsel %vm259, %v509, 0
  %v589 = vsel %vm259, %v510, 0
  %v592 = vsel %vm259, %v511, 0
  %v595 = vsel %vm259, %v512, 0
  %597 = vmatpush.bf16.msra.mxu0 0
  %598 = vmatpush.bf16.msra.mxu0 0
  %599 = vmatpush.bf16.msra.mxu0 0
  %600 = vmatpush.bf16.msra.mxu0 0
  %601 = vmatpush.bf16.msra.mxu0 %v544
  %602 = vmatpush.bf16.msra.mxu0 %v543
  %603 = vmatpush.bf16.msra.mxu0 %v542
  %604 = vmatpush.bf16.msra.mxu0 %v541
  %605 = vmatmul.bf16.gmra.mxu0 %v550
  %v606 = vpop.f32.mrf.mxu0
  %v607 = vadd.f32 %v523, %v606
  %v608 = vpop.f32.mrf.mxu0
  %v609 = vadd.f32 %v523, %v608
  %610 = vmatmul.bf16.gmra.mxu0 %v553
  %v611 = vpop.f32.mrf.mxu0
  %v612 = vadd.f32 %v523, %v611
  %v613 = vpop.f32.mrf.mxu0
  %v614 = vadd.f32 %v523, %v613
  %615 = vmatmul.bf16.gmra.mxu0 %v556
  %v616 = vpop.f32.mrf.mxu0
  %v617 = vadd.f32 %v523, %v616
  %v618 = vpop.f32.mrf.mxu0
  %v619 = vadd.f32 %v523, %v618
  %620 = vmatmul.bf16.gmra.mxu0 %v559
  %v621 = vpop.f32.mrf.mxu0
  %v622 = vadd.f32 %v523, %v621
  %v623 = vpop.f32.mrf.mxu0
  %v624 = vadd.f32 %v523, %v623
  %625 = vmatmul.bf16.gmra.mxu0 %v562
  %v626 = vpop.f32.mrf.mxu0
  %v627 = vadd.f32 %v523, %v626
  %v628 = vpop.f32.mrf.mxu0
  %v629 = vadd.f32 %v523, %v628
  %630 = vmatmul.bf16.gmra.mxu0 %v565
  %v631 = vpop.f32.mrf.mxu0
  %v632 = vadd.f32 %v523, %v631
  %v633 = vpop.f32.mrf.mxu0
  %v634 = vadd.f32 %v523, %v633
  %635 = vmatmul.bf16.gmra.mxu0 %v568
  %v636 = vpop.f32.mrf.mxu0
  %v637 = vadd.f32 %v523, %v636
  %v638 = vpop.f32.mrf.mxu0
  %v639 = vadd.f32 %v523, %v638
  %640 = vmatmul.bf16.gmra.mxu0 %v571
  %v641 = vpop.f32.mrf.mxu0
  %v642 = vadd.f32 %v523, %v641
  %v643 = vpop.f32.mrf.mxu0
  %v644 = vadd.f32 %v523, %v643
  %645 = vmatmul.bf16.gmra.mxu0 %v574
  %v646 = vpop.f32.mrf.mxu0
  %v647 = vadd.f32 %v523, %v646
  %v648 = vpop.f32.mrf.mxu0
  %v649 = vadd.f32 %v523, %v648
  %650 = vmatmul.bf16.gmra.mxu0 %v577
  %v651 = vpop.f32.mrf.mxu0
  %v652 = vadd.f32 %v523, %v651
  %v653 = vpop.f32.mrf.mxu0
  %v654 = vadd.f32 %v523, %v653
  %655 = vmatmul.bf16.gmra.mxu0 %v580
  %v656 = vpop.f32.mrf.mxu0
  %v657 = vadd.f32 %v523, %v656
  %v658 = vpop.f32.mrf.mxu0
  %v659 = vadd.f32 %v523, %v658
  %660 = vmatmul.bf16.gmra.mxu0 %v583
  %v661 = vpop.f32.mrf.mxu0
  %v662 = vadd.f32 %v523, %v661
  %v663 = vpop.f32.mrf.mxu0
  %v664 = vadd.f32 %v523, %v663
  %665 = vmatmul.bf16.gmra.mxu0 %v586
  %v666 = vpop.f32.mrf.mxu0
  %v667 = vadd.f32 %v523, %v666
  %v668 = vpop.f32.mrf.mxu0
  %v669 = vadd.f32 %v523, %v668
  %670 = vmatmul.bf16.gmra.mxu0 %v589
  %v671 = vpop.f32.mrf.mxu0
  %v672 = vadd.f32 %v523, %v671
  %v673 = vpop.f32.mrf.mxu0
  %v674 = vadd.f32 %v523, %v673
  %675 = vmatmul.bf16.gmra.mxu0 %v592
  %v676 = vpop.f32.mrf.mxu0
  %v677 = vadd.f32 %v523, %v676
  %v678 = vpop.f32.mrf.mxu0
  %v679 = vadd.f32 %v523, %v678
  %680 = vmatmul.bf16.gmra.mxu0 %v595
  %v681 = vpop.f32.mrf.mxu0
  %v682 = vadd.f32 %v523, %v681
  %v683 = vpop.f32.mrf.mxu0
  %v684 = vadd.f32 %v523, %v683
  %685 = vdwg.mxu0
  %v686 = vadd.f32 %v607, %v260
  %v687 = vadd.f32 %v609, %v261
  %v688 = vadd.f32 %v612, %v262
  %v689 = vadd.f32 %v614, %v263
  %v690 = vadd.f32 %v617, %v264
  %v691 = vadd.f32 %v619, %v265
  %v692 = vadd.f32 %v622, %v266
  %v693 = vadd.f32 %v624, %v267
  %v694 = vadd.f32 %v627, %v268
  %v695 = vadd.f32 %v629, %v269
  %v696 = vadd.f32 %v632, %v270
  %v697 = vadd.f32 %v634, %v271
  %v698 = vadd.f32 %v637, %v272
  %v699 = vadd.f32 %v639, %v273
  %v700 = vadd.f32 %v642, %v274
  %v701 = vadd.f32 %v644, %v275
  %v702 = vadd.f32 %v647, %v276
  %v703 = vadd.f32 %v649, %v277
  %v704 = vadd.f32 %v652, %v278
  %v705 = vadd.f32 %v654, %v279
  %v706 = vadd.f32 %v657, %v280
  %v707 = vadd.f32 %v659, %v281
  %v708 = vadd.f32 %v662, %v282
  %v709 = vadd.f32 %v664, %v283
  %v710 = vadd.f32 %v667, %v284
  %v711 = vadd.f32 %v669, %v285
  %v712 = vadd.f32 %v672, %v286
  %v713 = vadd.f32 %v674, %v287
  %v714 = vadd.f32 %v677, %v288
  %v715 = vadd.f32 %v679, %v289
  %v716 = vadd.f32 %v682, %v290
  %v717 = vadd.f32 %v684, %v291
  %v718 = vmax.f32 %v686, 0.0
  %v719 = vmax.f32 %v687, 0.0
  %v720 = vmax.f32 %v688, 0.0
  %v721 = vmax.f32 %v689, 0.0
  %v722 = vmax.f32 %v690, 0.0
  %v723 = vmax.f32 %v691, 0.0
  %v724 = vmax.f32 %v692, 0.0
  %v725 = vmax.f32 %v693, 0.0
  %v726 = vmax.f32 %v694, 0.0
  %v727 = vmax.f32 %v695, 0.0
  %v728 = vmax.f32 %v696, 0.0
  %v729 = vmax.f32 %v697, 0.0
  %v730 = vmax.f32 %v698, 0.0
  %v731 = vmax.f32 %v699, 0.0
  %v732 = vmax.f32 %v700, 0.0
  %v733 = vmax.f32 %v701, 0.0
  %v734 = vmax.f32 %v702, 0.0
  %v735 = vmax.f32 %v703, 0.0
  %v736 = vmax.f32 %v704, 0.0
  %v737 = vmax.f32 %v705, 0.0
  %v738 = vmax.f32 %v706, 0.0
  %v739 = vmax.f32 %v707, 0.0
  %v740 = vmax.f32 %v708, 0.0
  %v741 = vmax.f32 %v709, 0.0
  %v742 = vmax.f32 %v710, 0.0
  %v743 = vmax.f32 %v711, 0.0
  %v744 = vmax.f32 %v712, 0.0
  %v745 = vmax.f32 %v713, 0.0
  %v746 = vmax.f32 %v714, 0.0
  %v747 = vmax.f32 %v715, 0.0
  %v748 = vmax.f32 %v716, 0.0
  %v749 = vmax.f32 %v717, 0.0
  %v750 = vld [vmem:[%s6] sm:$0x1]
  %v752 = vperm.slane %v750, 0
  %v754 = vmul.f32 %v718, %v752
  %v755 = vmul.f32 %v719, %v752
  %v756 = vmul.f32 %v720, %v752
  %v757 = vmul.f32 %v721, %v752
  %v758 = vmul.f32 %v722, %v752
  %v759 = vmul.f32 %v723, %v752
  %v760 = vmul.f32 %v724, %v752
  %v761 = vmul.f32 %v725, %v752
  %v762 = vmul.f32 %v726, %v752
  %v763 = vmul.f32 %v727, %v752
  %v764 = vmul.f32 %v728, %v752
  %v765 = vmul.f32 %v729, %v752
  %v766 = vmul.f32 %v730, %v752
  %v767 = vmul.f32 %v731, %v752
  %v768 = vmul.f32 %v732, %v752
  %v769 = vmul.f32 %v733, %v752
  %v770 = vmul.f32 %v734, %v752
  %v771 = vmul.f32 %v735, %v752
  %v772 = vmul.f32 %v736, %v752
  %v773 = vmul.f32 %v737, %v752
  %v774 = vmul.f32 %v738, %v752
  %v775 = vmul.f32 %v739, %v752
  %v776 = vmul.f32 %v740, %v752
  %v777 = vmul.f32 %v741, %v752
  %v778 = vmul.f32 %v742, %v752
  %v779 = vmul.f32 %v743, %v752
  %v780 = vmul.f32 %v744, %v752
  %v781 = vmul.f32 %v745, %v752
  %v782 = vmul.f32 %v746, %v752
  %v783 = vmul.f32 %v747, %v752
  %v784 = vmul.f32 %v748, %v752
  %v785 = vmul.f32 %v749, %v752
  %786 = vadd.xlane.f32.xlu0 %v754
  %v787 = vpop.xlane.xlu0 %786
  %788 = vadd.xlane.f32.xlu0 %v755
  %v789 = vpop.xlane.xlu0 %788
  %790 = vadd.xlane.f32.xlu0 %v756
  %v791 = vpop.xlane.xlu0 %790
  %792 = vadd.xlane.f32.xlu0 %v757
  %v793 = vpop.xlane.xlu0 %792
  %794 = vadd.xlane.f32.xlu0 %v758
  %v795 = vpop.xlane.xlu0 %794
  %796 = vadd.xlane.f32.xlu0 %v759
  %v797 = vpop.xlane.xlu0 %796
  %798 = vadd.xlane.f32.xlu0 %v760
  %v799 = vpop.xlane.xlu0 %798
  %800 = vadd.xlane.f32.xlu0 %v761
  %v801 = vpop.xlane.xlu0 %800
  %802 = vadd.xlane.f32.xlu0 %v762
  %v803 = vpop.xlane.xlu0 %802
  %804 = vadd.xlane.f32.xlu0 %v763
  %v805 = vpop.xlane.xlu0 %804
  %806 = vadd.xlane.f32.xlu0 %v764
  %v807 = vpop.xlane.xlu0 %806
  %808 = vadd.xlane.f32.xlu0 %v765
  %v809 = vpop.xlane.xlu0 %808
  %810 = vadd.xlane.f32.xlu0 %v766
  %v811 = vpop.xlane.xlu0 %810
  %812 = vadd.xlane.f32.xlu0 %v767
  %v813 = vpop.xlane.xlu0 %812
  %814 = vadd.xlane.f32.xlu0 %v768
  %v815 = vpop.xlane.xlu0 %814
  %816 = vadd.xlane.f32.xlu0 %v769
  %v817 = vpop.xlane.xlu0 %816
  %818 = vadd.xlane.f32.xlu0 %v770
  %v819 = vpop.xlane.xlu0 %818
  %820 = vadd.xlane.f32.xlu0 %v771
  %v821 = vpop.xlane.xlu0 %820
  %822 = vadd.xlane.f32.xlu0 %v772
  %v823 = vpop.xlane.xlu0 %822
  %824 = vadd.xlane.f32.xlu0 %v773
  %v825 = vpop.xlane.xlu0 %824
  %826 = vadd.xlane.f32.xlu0 %v774
  %v827 = vpop.xlane.xlu0 %826
  %828 = vadd.xlane.f32.xlu0 %v775
  %v829 = vpop.xlane.xlu0 %828
  %830 = vadd.xlane.f32.xlu0 %v776
  %v831 = vpop.xlane.xlu0 %830
  %832 = vadd.xlane.f32.xlu0 %v777
  %v833 = vpop.xlane.xlu0 %832
  %834 = vadd.xlane.f32.xlu0 %v778
  %v835 = vpop.xlane.xlu0 %834
  %836 = vadd.xlane.f32.xlu0 %v779
  %v837 = vpop.xlane.xlu0 %836
  %838 = vadd.xlane.f32.xlu0 %v780
  %v839 = vpop.xlane.xlu0 %838
  %840 = vadd.xlane.f32.xlu0 %v781
  %v841 = vpop.xlane.xlu0 %840
  %842 = vadd.xlane.f32.xlu0 %v782
  %v843 = vpop.xlane.xlu0 %842
  %844 = vadd.xlane.f32.xlu0 %v783
  %v845 = vpop.xlane.xlu0 %844
  %846 = vadd.xlane.f32.xlu0 %v784
  %v847 = vpop.xlane.xlu0 %846
  %848 = vadd.xlane.f32.xlu0 %v785
  %v849 = vpop.xlane.xlu0 %848
  %v850 = vrot.slane %v787, 4
  %v851 = vmax.f32 %v787, %v850
  %v852 = vrot.slane %v851, 2
  %v853 = vmax.f32 %v851, %v852
  %v854 = vrot.slane %v853, 1
  %v855 = vmax.f32 %v853, %v854
  %v856 = vrot.slane %v789, 4
  %v857 = vmax.f32 %v789, %v856
  %v858 = vrot.slane %v857, 2
  %v859 = vmax.f32 %v857, %v858
  %v860 = vrot.slane %v859, 1
  %v861 = vmax.f32 %v859, %v860
  %v862 = vrot.slane %v791, 4
  %v863 = vmax.f32 %v791, %v862
  %v864 = vrot.slane %v863, 2
  %v865 = vmax.f32 %v863, %v864
  %v866 = vrot.slane %v865, 1
  %v867 = vmax.f32 %v865, %v866
  %v868 = vrot.slane %v793, 4
  %v869 = vmax.f32 %v793, %v868
  %v870 = vrot.slane %v869, 2
  %v871 = vmax.f32 %v869, %v870
  %v872 = vrot.slane %v871, 1
  %v873 = vmax.f32 %v871, %v872
  %v874 = vrot.slane %v795, 4
  %v875 = vmax.f32 %v795, %v874
  %v876 = vrot.slane %v875, 2
  %v877 = vmax.f32 %v875, %v876
  %v878 = vrot.slane %v877, 1
  %v879 = vmax.f32 %v877, %v878
  %v880 = vrot.slane %v797, 4
  %v881 = vmax.f32 %v797, %v880
  %v882 = vrot.slane %v881, 2
  %v883 = vmax.f32 %v881, %v882
  %v884 = vrot.slane %v883, 1
  %v885 = vmax.f32 %v883, %v884
  %v886 = vrot.slane %v799, 4
  %v887 = vmax.f32 %v799, %v886
  %v888 = vrot.slane %v887, 2
  %v889 = vmax.f32 %v887, %v888
  %v890 = vrot.slane %v889, 1
  %v891 = vmax.f32 %v889, %v890
  %v892 = vrot.slane %v801, 4
  %v893 = vmax.f32 %v801, %v892
  %v894 = vrot.slane %v893, 2
  %v895 = vmax.f32 %v893, %v894
  %v896 = vrot.slane %v895, 1
  %v897 = vmax.f32 %v895, %v896
  %v898 = vrot.slane %v803, 4
  %v899 = vmax.f32 %v803, %v898
  %v900 = vrot.slane %v899, 2
  %v901 = vmax.f32 %v899, %v900
  %v902 = vrot.slane %v901, 1
  %v903 = vmax.f32 %v901, %v902
  %v904 = vrot.slane %v805, 4
  %v905 = vmax.f32 %v805, %v904
  %v906 = vrot.slane %v905, 2
  %v907 = vmax.f32 %v905, %v906
  %v908 = vrot.slane %v907, 1
  %v909 = vmax.f32 %v907, %v908
  %v910 = vrot.slane %v807, 4
  %v911 = vmax.f32 %v807, %v910
  %v912 = vrot.slane %v911, 2
  %v913 = vmax.f32 %v911, %v912
  %v914 = vrot.slane %v913, 1
  %v915 = vmax.f32 %v913, %v914
  %v916 = vrot.slane %v809, 4
  %v917 = vmax.f32 %v809, %v916
  %v918 = vrot.slane %v917, 2
  %v919 = vmax.f32 %v917, %v918
  %v920 = vrot.slane %v919, 1
  %v921 = vmax.f32 %v919, %v920
  %v922 = vrot.slane %v811, 4
  %v923 = vmax.f32 %v811, %v922
  %v924 = vrot.slane %v923, 2
  %v925 = vmax.f32 %v923, %v924
  %v926 = vrot.slane %v925, 1
  %v927 = vmax.f32 %v925, %v926
  %v928 = vrot.slane %v813, 4
  %v929 = vmax.f32 %v813, %v928
  %v930 = vrot.slane %v929, 2
  %v931 = vmax.f32 %v929, %v930
  %v932 = vrot.slane %v931, 1
  %v933 = vmax.f32 %v931, %v932
  %v934 = vrot.slane %v815, 4
  %v935 = vmax.f32 %v815, %v934
  %v936 = vrot.slane %v935, 2
  %v937 = vmax.f32 %v935, %v936
  %v938 = vrot.slane %v937, 1
  %v939 = vmax.f32 %v937, %v938
  %v940 = vrot.slane %v817, 4
  %v941 = vmax.f32 %v817, %v940
  %v942 = vrot.slane %v941, 2
  %v943 = vmax.f32 %v941, %v942
  %v944 = vrot.slane %v943, 1
  %v945 = vmax.f32 %v943, %v944
  %v946 = vrot.slane %v819, 4
  %v947 = vmax.f32 %v819, %v946
  %v948 = vrot.slane %v947, 2
  %v949 = vmax.f32 %v947, %v948
  %v950 = vrot.slane %v949, 1
  %v951 = vmax.f32 %v949, %v950
  %v952 = vrot.slane %v821, 4
  %v953 = vmax.f32 %v821, %v952
  %v954 = vrot.slane %v953, 2
  %v955 = vmax.f32 %v953, %v954
  %v956 = vrot.slane %v955, 1
  %v957 = vmax.f32 %v955, %v956
  %v958 = vrot.slane %v823, 4
  %v959 = vmax.f32 %v823, %v958
  %v960 = vrot.slane %v959, 2
  %v961 = vmax.f32 %v959, %v960
  %v962 = vrot.slane %v961, 1
  %v963 = vmax.f32 %v961, %v962
  %v964 = vrot.slane %v825, 4
  %v965 = vmax.f32 %v825, %v964
  %v966 = vrot.slane %v965, 2
  %v967 = vmax.f32 %v965, %v966
  %v968 = vrot.slane %v967, 1
  %v969 = vmax.f32 %v967, %v968
  %v970 = vrot.slane %v827, 4
  %v971 = vmax.f32 %v827, %v970
  %v972 = vrot.slane %v971, 2
  %v973 = vmax.f32 %v971, %v972
  %v974 = vrot.slane %v973, 1
  %v975 = vmax.f32 %v973, %v974
  %v976 = vrot.slane %v829, 4
  %v977 = vmax.f32 %v829, %v976
  %v978 = vrot.slane %v977, 2
  %v979 = vmax.f32 %v977, %v978
  %v980 = vrot.slane %v979, 1
  %v981 = vmax.f32 %v979, %v980
  %v982 = vrot.slane %v831, 4
  %v983 = vmax.f32 %v831, %v982
  %v984 = vrot.slane %v983, 2
  %v985 = vmax.f32 %v983, %v984
  %v986 = vrot.slane %v985, 1
  %v987 = vmax.f32 %v985, %v986
  %v988 = vrot.slane %v833, 4
  %v989 = vmax.f32 %v833, %v988
  %v990 = vrot.slane %v989, 2
  %v991 = vmax.f32 %v989, %v990
  %v992 = vrot.slane %v991, 1
  %v993 = vmax.f32 %v991, %v992
  %v994 = vrot.slane %v835, 4
  %v995 = vmax.f32 %v835, %v994
  %v996 = vrot.slane %v995, 2
  %v997 = vmax.f32 %v995, %v996
  %v998 = vrot.slane %v997, 1
  %v999 = vmax.f32 %v997, %v998
  %v1000 = vrot.slane %v837, 4
  %v1001 = vmax.f32 %v837, %v1000
  %v1002 = vrot.slane %v1001, 2
  %v1003 = vmax.f32 %v1001, %v1002
  %v1004 = vrot.slane %v1003, 1
  %v1005 = vmax.f32 %v1003, %v1004
  %v1006 = vrot.slane %v839, 4
  %v1007 = vmax.f32 %v839, %v1006
  %v1008 = vrot.slane %v1007, 2
  %v1009 = vmax.f32 %v1007, %v1008
  %v1010 = vrot.slane %v1009, 1
  %v1011 = vmax.f32 %v1009, %v1010
  %v1012 = vrot.slane %v841, 4
  %v1013 = vmax.f32 %v841, %v1012
  %v1014 = vrot.slane %v1013, 2
  %v1015 = vmax.f32 %v1013, %v1014
  %v1016 = vrot.slane %v1015, 1
  %v1017 = vmax.f32 %v1015, %v1016
  %v1018 = vrot.slane %v843, 4
  %v1019 = vmax.f32 %v843, %v1018
  %v1020 = vrot.slane %v1019, 2
  %v1021 = vmax.f32 %v1019, %v1020
  %v1022 = vrot.slane %v1021, 1
  %v1023 = vmax.f32 %v1021, %v1022
  %v1024 = vrot.slane %v845, 4
  %v1025 = vmax.f32 %v845, %v1024
  %v1026 = vrot.slane %v1025, 2
  %v1027 = vmax.f32 %v1025, %v1026
  %v1028 = vrot.slane %v1027, 1
  %v1029 = vmax.f32 %v1027, %v1028
  %v1030 = vrot.slane %v847, 4
  %v1031 = vmax.f32 %v847, %v1030
  %v1032 = vrot.slane %v1031, 2
  %v1033 = vmax.f32 %v1031, %v1032
  %v1034 = vrot.slane %v1033, 1
  %v1035 = vmax.f32 %v1033, %v1034
  %v1036 = vrot.slane %v849, 4
  %v1037 = vmax.f32 %v849, %v1036
  %v1038 = vrot.slane %v1037, 2
  %v1039 = vmax.f32 %v1037, %v1038
  %v1040 = vrot.slane %v1039, 1
  %v1041 = vmax.f32 %v1039, %v1040
  %v1042 = vsub.f32 %v787, %v855
  %v1043 = vsub.f32 %v789, %v861
  %v1044 = vsub.f32 %v791, %v867
  %v1045 = vsub.f32 %v793, %v873
  %v1046 = vsub.f32 %v795, %v879
  %v1047 = vsub.f32 %v797, %v885
  %v1048 = vsub.f32 %v799, %v891
  %v1049 = vsub.f32 %v801, %v897
  %v1050 = vsub.f32 %v803, %v903
  %v1051 = vsub.f32 %v805, %v909
  %v1052 = vsub.f32 %v807, %v915
  %v1053 = vsub.f32 %v809, %v921
  %v1054 = vsub.f32 %v811, %v927
  %v1055 = vsub.f32 %v813, %v933
  %v1056 = vsub.f32 %v815, %v939
  %v1057 = vsub.f32 %v817, %v945
  %v1058 = vsub.f32 %v819, %v951
  %v1059 = vsub.f32 %v821, %v957
  %v1060 = vsub.f32 %v823, %v963
  %v1061 = vsub.f32 %v825, %v969
  %v1062 = vsub.f32 %v827, %v975
  %v1063 = vsub.f32 %v829, %v981
  %v1064 = vsub.f32 %v831, %v987
  %v1065 = vsub.f32 %v833, %v993
  %v1066 = vsub.f32 %v835, %v999
  %v1067 = vsub.f32 %v837, %v1005
  %v1068 = vsub.f32 %v839, %v1011
  %v1069 = vsub.f32 %v841, %v1017
  %v1070 = vsub.f32 %v843, %v1023
  %v1071 = vsub.f32 %v845, %v1029
  %v1072 = vsub.f32 %v847, %v1035
  %v1073 = vsub.f32 %v849, %v1041
  %v1074 = vmul.f32 %v1042, 1.442695
  %v1075 = vpow.pop %v1074
  %v1076 = vmul.f32 %v1043, 1.442695
  %v1077 = vpow.pop %v1076
  %v1078 = vmul.f32 %v1044, 1.442695
  %v1079 = vpow.pop %v1078
  %v1080 = vmul.f32 %v1045, 1.442695
  %v1081 = vpow.pop %v1080
  %v1082 = vmul.f32 %v1046, 1.442695
  %v1083 = vpow.pop %v1082
  %v1084 = vmul.f32 %v1047, 1.442695
  %v1085 = vpow.pop %v1084
  %v1086 = vmul.f32 %v1048, 1.442695
  %v1087 = vpow.pop %v1086
  %v1088 = vmul.f32 %v1049, 1.442695
  %v1089 = vpow.pop %v1088
  %v1090 = vmul.f32 %v1050, 1.442695
  %v1091 = vpow.pop %v1090
  %v1092 = vmul.f32 %v1051, 1.442695
  %v1093 = vpow.pop %v1092
  %v1094 = vmul.f32 %v1052, 1.442695
  %v1095 = vpow.pop %v1094
  %v1096 = vmul.f32 %v1053, 1.442695
  %v1097 = vpow.pop %v1096
  %v1098 = vmul.f32 %v1054, 1.442695
  %v1099 = vpow.pop %v1098
  %v1100 = vmul.f32 %v1055, 1.442695
  %v1101 = vpow.pop %v1100
  %v1102 = vmul.f32 %v1056, 1.442695
  %v1103 = vpow.pop %v1102
  %v1104 = vmul.f32 %v1057, 1.442695
  %v1105 = vpow.pop %v1104
  %v1106 = vmul.f32 %v1058, 1.442695
  %v1107 = vpow.pop %v1106
  %v1108 = vmul.f32 %v1059, 1.442695
  %v1109 = vpow.pop %v1108
  %v1110 = vmul.f32 %v1060, 1.442695
  %v1111 = vpow.pop %v1110
  %v1112 = vmul.f32 %v1061, 1.442695
  %v1113 = vpow.pop %v1112
  %v1114 = vmul.f32 %v1062, 1.442695
  %v1115 = vpow.pop %v1114
  %v1116 = vmul.f32 %v1063, 1.442695
  %v1117 = vpow.pop %v1116
  %v1118 = vmul.f32 %v1064, 1.442695
  %v1119 = vpow.pop %v1118
  %v1120 = vmul.f32 %v1065, 1.442695
  %v1121 = vpow.pop %v1120
  %v1122 = vmul.f32 %v1066, 1.442695
  %v1123 = vpow.pop %v1122
  %v1124 = vmul.f32 %v1067, 1.442695
  %v1125 = vpow.pop %v1124
  %v1126 = vmul.f32 %v1068, 1.442695
  %v1127 = vpow.pop %v1126
  %v1128 = vmul.f32 %v1069, 1.442695
  %v1129 = vpow.pop %v1128
  %v1130 = vmul.f32 %v1070, 1.442695
  %v1131 = vpow.pop %v1130
  %v1132 = vmul.f32 %v1071, 1.442695
  %v1133 = vpow.pop %v1132
  %v1134 = vmul.f32 %v1072, 1.442695
  %v1135 = vpow.pop %v1134
  %v1136 = vmul.f32 %v1073, 1.442695
  %v1137 = vpow.pop %v1136
  %v1138 = vrot.slane %v1075, 4
  %v1139 = vadd.f32 %v1075, %v1138
  %v1140 = vrot.slane %v1139, 2
  %v1141 = vadd.f32 %v1139, %v1140
  %v1142 = vrot.slane %v1141, 1
  %v1143 = vadd.f32 %v1141, %v1142
  %v1144 = vrot.slane %v1077, 4
  %v1145 = vadd.f32 %v1077, %v1144
  %v1146 = vrot.slane %v1145, 2
  %v1147 = vadd.f32 %v1145, %v1146
  %v1148 = vrot.slane %v1147, 1
  %v1149 = vadd.f32 %v1147, %v1148
  %v1150 = vrot.slane %v1079, 4
  %v1151 = vadd.f32 %v1079, %v1150
  %v1152 = vrot.slane %v1151, 2
  %v1153 = vadd.f32 %v1151, %v1152
  %v1154 = vrot.slane %v1153, 1
  %v1155 = vadd.f32 %v1153, %v1154
  %v1156 = vrot.slane %v1081, 4
  %v1157 = vadd.f32 %v1081, %v1156
  %v1158 = vrot.slane %v1157, 2
  %v1159 = vadd.f32 %v1157, %v1158
  %v1160 = vrot.slane %v1159, 1
  %v1161 = vadd.f32 %v1159, %v1160
  %v1162 = vrot.slane %v1083, 4
  %v1163 = vadd.f32 %v1083, %v1162
  %v1164 = vrot.slane %v1163, 2
  %v1165 = vadd.f32 %v1163, %v1164
  %v1166 = vrot.slane %v1165, 1
  %v1167 = vadd.f32 %v1165, %v1166
  %v1168 = vrot.slane %v1085, 4
  %v1169 = vadd.f32 %v1085, %v1168
  %v1170 = vrot.slane %v1169, 2
  %v1171 = vadd.f32 %v1169, %v1170
  %v1172 = vrot.slane %v1171, 1
  %v1173 = vadd.f32 %v1171, %v1172
  %v1174 = vrot.slane %v1087, 4
  %v1175 = vadd.f32 %v1087, %v1174
  %v1176 = vrot.slane %v1175, 2
  %v1177 = vadd.f32 %v1175, %v1176
  %v1178 = vrot.slane %v1177, 1
  %v1179 = vadd.f32 %v1177, %v1178
  %v1180 = vrot.slane %v1089, 4
  %v1181 = vadd.f32 %v1089, %v1180
  %v1182 = vrot.slane %v1181, 2
  %v1183 = vadd.f32 %v1181, %v1182
  %v1184 = vrot.slane %v1183, 1
  %v1185 = vadd.f32 %v1183, %v1184
  %v1186 = vrot.slane %v1091, 4
  %v1187 = vadd.f32 %v1091, %v1186
  %v1188 = vrot.slane %v1187, 2
  %v1189 = vadd.f32 %v1187, %v1188
  %v1190 = vrot.slane %v1189, 1
  %v1191 = vadd.f32 %v1189, %v1190
  %v1192 = vrot.slane %v1093, 4
  %v1193 = vadd.f32 %v1093, %v1192
  %v1194 = vrot.slane %v1193, 2
  %v1195 = vadd.f32 %v1193, %v1194
  %v1196 = vrot.slane %v1195, 1
  %v1197 = vadd.f32 %v1195, %v1196
  %v1198 = vrot.slane %v1095, 4
  %v1199 = vadd.f32 %v1095, %v1198
  %v1200 = vrot.slane %v1199, 2
  %v1201 = vadd.f32 %v1199, %v1200
  %v1202 = vrot.slane %v1201, 1
  %v1203 = vadd.f32 %v1201, %v1202
  %v1204 = vrot.slane %v1097, 4
  %v1205 = vadd.f32 %v1097, %v1204
  %v1206 = vrot.slane %v1205, 2
  %v1207 = vadd.f32 %v1205, %v1206
  %v1208 = vrot.slane %v1207, 1
  %v1209 = vadd.f32 %v1207, %v1208
  %v1210 = vrot.slane %v1099, 4
  %v1211 = vadd.f32 %v1099, %v1210
  %v1212 = vrot.slane %v1211, 2
  %v1213 = vadd.f32 %v1211, %v1212
  %v1214 = vrot.slane %v1213, 1
  %v1215 = vadd.f32 %v1213, %v1214
  %v1216 = vrot.slane %v1101, 4
  %v1217 = vadd.f32 %v1101, %v1216
  %v1218 = vrot.slane %v1217, 2
  %v1219 = vadd.f32 %v1217, %v1218
  %v1220 = vrot.slane %v1219, 1
  %v1221 = vadd.f32 %v1219, %v1220
  %v1222 = vrot.slane %v1103, 4
  %v1223 = vadd.f32 %v1103, %v1222
  %v1224 = vrot.slane %v1223, 2
  %v1225 = vadd.f32 %v1223, %v1224
  %v1226 = vrot.slane %v1225, 1
  %v1227 = vadd.f32 %v1225, %v1226
  %v1228 = vrot.slane %v1105, 4
  %v1229 = vadd.f32 %v1105, %v1228
  %v1230 = vrot.slane %v1229, 2
  %v1231 = vadd.f32 %v1229, %v1230
  %v1232 = vrot.slane %v1231, 1
  %v1233 = vadd.f32 %v1231, %v1232
  %v1234 = vrot.slane %v1107, 4
  %v1235 = vadd.f32 %v1107, %v1234
  %v1236 = vrot.slane %v1235, 2
  %v1237 = vadd.f32 %v1235, %v1236
  %v1238 = vrot.slane %v1237, 1
  %v1239 = vadd.f32 %v1237, %v1238
  %v1240 = vrot.slane %v1109, 4
  %v1241 = vadd.f32 %v1109, %v1240
  %v1242 = vrot.slane %v1241, 2
  %v1243 = vadd.f32 %v1241, %v1242
  %v1244 = vrot.slane %v1243, 1
  %v1245 = vadd.f32 %v1243, %v1244
  %v1246 = vrot.slane %v1111, 4
  %v1247 = vadd.f32 %v1111, %v1246
  %v1248 = vrot.slane %v1247, 2
  %v1249 = vadd.f32 %v1247, %v1248
  %v1250 = vrot.slane %v1249, 1
  %v1251 = vadd.f32 %v1249, %v1250
  %v1252 = vrot.slane %v1113, 4
  %v1253 = vadd.f32 %v1113, %v1252
  %v1254 = vrot.slane %v1253, 2
  %v1255 = vadd.f32 %v1253, %v1254
  %v1256 = vrot.slane %v1255, 1
  %v1257 = vadd.f32 %v1255, %v1256
  %v1258 = vrot.slane %v1115, 4
  %v1259 = vadd.f32 %v1115, %v1258
  %v1260 = vrot.slane %v1259, 2
  %v1261 = vadd.f32 %v1259, %v1260
  %v1262 = vrot.slane %v1261, 1
  %v1263 = vadd.f32 %v1261, %v1262
  %v1264 = vrot.slane %v1117, 4
  %v1265 = vadd.f32 %v1117, %v1264
  %v1266 = vrot.slane %v1265, 2
  %v1267 = vadd.f32 %v1265, %v1266
  %v1268 = vrot.slane %v1267, 1
  %v1269 = vadd.f32 %v1267, %v1268
  %v1270 = vrot.slane %v1119, 4
  %v1271 = vadd.f32 %v1119, %v1270
  %v1272 = vrot.slane %v1271, 2
  %v1273 = vadd.f32 %v1271, %v1272
  %v1274 = vrot.slane %v1273, 1
  %v1275 = vadd.f32 %v1273, %v1274
  %v1276 = vrot.slane %v1121, 4
  %v1277 = vadd.f32 %v1121, %v1276
  %v1278 = vrot.slane %v1277, 2
  %v1279 = vadd.f32 %v1277, %v1278
  %v1280 = vrot.slane %v1279, 1
  %v1281 = vadd.f32 %v1279, %v1280
  %v1282 = vrot.slane %v1123, 4
  %v1283 = vadd.f32 %v1123, %v1282
  %v1284 = vrot.slane %v1283, 2
  %v1285 = vadd.f32 %v1283, %v1284
  %v1286 = vrot.slane %v1285, 1
  %v1287 = vadd.f32 %v1285, %v1286
  %v1288 = vrot.slane %v1125, 4
  %v1289 = vadd.f32 %v1125, %v1288
  %v1290 = vrot.slane %v1289, 2
  %v1291 = vadd.f32 %v1289, %v1290
  %v1292 = vrot.slane %v1291, 1
  %v1293 = vadd.f32 %v1291, %v1292
  %v1294 = vrot.slane %v1127, 4
  %v1295 = vadd.f32 %v1127, %v1294
  %v1296 = vrot.slane %v1295, 2
  %v1297 = vadd.f32 %v1295, %v1296
  %v1298 = vrot.slane %v1297, 1
  %v1299 = vadd.f32 %v1297, %v1298
  %v1300 = vrot.slane %v1129, 4
  %v1301 = vadd.f32 %v1129, %v1300
  %v1302 = vrot.slane %v1301, 2
  %v1303 = vadd.f32 %v1301, %v1302
  %v1304 = vrot.slane %v1303, 1
  %v1305 = vadd.f32 %v1303, %v1304
  %v1306 = vrot.slane %v1131, 4
  %v1307 = vadd.f32 %v1131, %v1306
  %v1308 = vrot.slane %v1307, 2
  %v1309 = vadd.f32 %v1307, %v1308
  %v1310 = vrot.slane %v1309, 1
  %v1311 = vadd.f32 %v1309, %v1310
  %v1312 = vrot.slane %v1133, 4
  %v1313 = vadd.f32 %v1133, %v1312
  %v1314 = vrot.slane %v1313, 2
  %v1315 = vadd.f32 %v1313, %v1314
  %v1316 = vrot.slane %v1315, 1
  %v1317 = vadd.f32 %v1315, %v1316
  %v1318 = vrot.slane %v1135, 4
  %v1319 = vadd.f32 %v1135, %v1318
  %v1320 = vrot.slane %v1319, 2
  %v1321 = vadd.f32 %v1319, %v1320
  %v1322 = vrot.slane %v1321, 1
  %v1323 = vadd.f32 %v1321, %v1322
  %v1324 = vrot.slane %v1137, 4
  %v1325 = vadd.f32 %v1137, %v1324
  %v1326 = vrot.slane %v1325, 2
  %v1327 = vadd.f32 %v1325, %v1326
  %v1328 = vrot.slane %v1327, 1
  %v1329 = vadd.f32 %v1327, %v1328
  %v1330 = vrcp.pop %v1143
  %v1331 = vrcp.pop %v1149
  %v1332 = vrcp.pop %v1155
  %v1333 = vrcp.pop %v1161
  %v1334 = vrcp.pop %v1167
  %v1335 = vrcp.pop %v1173
  %v1336 = vrcp.pop %v1179
  %v1337 = vrcp.pop %v1185
  %v1338 = vrcp.pop %v1191
  %v1339 = vrcp.pop %v1197
  %v1340 = vrcp.pop %v1203
  %v1341 = vrcp.pop %v1209
  %v1342 = vrcp.pop %v1215
  %v1343 = vrcp.pop %v1221
  %v1344 = vrcp.pop %v1227
  %v1345 = vrcp.pop %v1233
  %v1346 = vrcp.pop %v1239
  %v1347 = vrcp.pop %v1245
  %v1348 = vrcp.pop %v1251
  %v1349 = vrcp.pop %v1257
  %v1350 = vrcp.pop %v1263
  %v1351 = vrcp.pop %v1269
  %v1352 = vrcp.pop %v1275
  %v1353 = vrcp.pop %v1281
  %v1354 = vrcp.pop %v1287
  %v1355 = vrcp.pop %v1293
  %v1356 = vrcp.pop %v1299
  %v1357 = vrcp.pop %v1305
  %v1358 = vrcp.pop %v1311
  %v1359 = vrcp.pop %v1317
  %v1360 = vrcp.pop %v1323
  %v1361 = vrcp.pop %v1329
  %v1362 = vmul.f32 %v1075, %v1330
  %v1363 = vmul.f32 %v1077, %v1331
  %v1364 = vmul.f32 %v1079, %v1332
  %v1365 = vmul.f32 %v1081, %v1333
  %v1366 = vmul.f32 %v1083, %v1334
  %v1367 = vmul.f32 %v1085, %v1335
  %v1368 = vmul.f32 %v1087, %v1336
  %v1369 = vmul.f32 %v1089, %v1337
  %v1370 = vmul.f32 %v1091, %v1338
  %v1371 = vmul.f32 %v1093, %v1339
  %v1372 = vmul.f32 %v1095, %v1340
  %v1373 = vmul.f32 %v1097, %v1341
  %v1374 = vmul.f32 %v1099, %v1342
  %v1375 = vmul.f32 %v1101, %v1343
  %v1376 = vmul.f32 %v1103, %v1344
  %v1377 = vmul.f32 %v1105, %v1345
  %v1378 = vmul.f32 %v1107, %v1346
  %v1379 = vmul.f32 %v1109, %v1347
  %v1380 = vmul.f32 %v1111, %v1348
  %v1381 = vmul.f32 %v1113, %v1349
  %v1382 = vmul.f32 %v1115, %v1350
  %v1383 = vmul.f32 %v1117, %v1351
  %v1384 = vmul.f32 %v1119, %v1352
  %v1385 = vmul.f32 %v1121, %v1353
  %v1386 = vmul.f32 %v1123, %v1354
  %v1387 = vmul.f32 %v1125, %v1355
  %v1388 = vmul.f32 %v1127, %v1356
  %v1389 = vmul.f32 %v1129, %v1357
  %v1390 = vmul.f32 %v1131, %v1358
  %v1391 = vmul.f32 %v1133, %v1359
  %v1392 = vmul.f32 %v1135, %v1360
  %v1393 = vmul.f32 %v1137, %v1361
  %v1394 = vmul.f32 %v1362, %v718
  %v1395 = vmul.f32 %v1363, %v719
  %v1396 = vmul.f32 %v1364, %v720
  %v1397 = vmul.f32 %v1365, %v721
  %v1398 = vmul.f32 %v1366, %v722
  %v1399 = vmul.f32 %v1367, %v723
  %v1400 = vmul.f32 %v1368, %v724
  %v1401 = vmul.f32 %v1369, %v725
  %v1402 = vmul.f32 %v1370, %v726
  %v1403 = vmul.f32 %v1371, %v727
  %v1404 = vmul.f32 %v1372, %v728
  %v1405 = vmul.f32 %v1373, %v729
  %v1406 = vmul.f32 %v1374, %v730
  %v1407 = vmul.f32 %v1375, %v731
  %v1408 = vmul.f32 %v1376, %v732
  %v1409 = vmul.f32 %v1377, %v733
  %v1410 = vmul.f32 %v1378, %v734
  %v1411 = vmul.f32 %v1379, %v735
  %v1412 = vmul.f32 %v1380, %v736
  %v1413 = vmul.f32 %v1381, %v737
  %v1414 = vmul.f32 %v1382, %v738
  %v1415 = vmul.f32 %v1383, %v739
  %v1416 = vmul.f32 %v1384, %v740
  %v1417 = vmul.f32 %v1385, %v741
  %v1418 = vmul.f32 %v1386, %v742
  %v1419 = vmul.f32 %v1387, %v743
  %v1420 = vmul.f32 %v1388, %v744
  %v1421 = vmul.f32 %v1389, %v745
  %v1422 = vmul.f32 %v1390, %v746
  %v1423 = vmul.f32 %v1391, %v747
  %v1424 = vmul.f32 %v1392, %v748
  %v1425 = vmul.f32 %v1393, %v749
  %v1426 = vrot.slane %v1394, 4
  %v1427 = vadd.f32 %v1394, %v1426
  %v1428 = vrot.slane %v1427, 2
  %v1429 = vadd.f32 %v1427, %v1428
  %v1430 = vrot.slane %v1429, 1
  %v1431 = vadd.f32 %v1429, %v1430
  %v1432 = vrot.slane %v1395, 4
  %v1433 = vadd.f32 %v1395, %v1432
  %v1434 = vrot.slane %v1433, 2
  %v1435 = vadd.f32 %v1433, %v1434
  %v1436 = vrot.slane %v1435, 1
  %v1437 = vadd.f32 %v1435, %v1436
  %v1438 = vrot.slane %v1396, 4
  %v1439 = vadd.f32 %v1396, %v1438
  %v1440 = vrot.slane %v1439, 2
  %v1441 = vadd.f32 %v1439, %v1440
  %v1442 = vrot.slane %v1441, 1
  %v1443 = vadd.f32 %v1441, %v1442
  %v1444 = vrot.slane %v1397, 4
  %v1445 = vadd.f32 %v1397, %v1444
  %v1446 = vrot.slane %v1445, 2
  %v1447 = vadd.f32 %v1445, %v1446
  %v1448 = vrot.slane %v1447, 1
  %v1449 = vadd.f32 %v1447, %v1448
  %v1450 = vrot.slane %v1398, 4
  %v1451 = vadd.f32 %v1398, %v1450
  %v1452 = vrot.slane %v1451, 2
  %v1453 = vadd.f32 %v1451, %v1452
  %v1454 = vrot.slane %v1453, 1
  %v1455 = vadd.f32 %v1453, %v1454
  %v1456 = vrot.slane %v1399, 4
  %v1457 = vadd.f32 %v1399, %v1456
  %v1458 = vrot.slane %v1457, 2
  %v1459 = vadd.f32 %v1457, %v1458
  %v1460 = vrot.slane %v1459, 1
  %v1461 = vadd.f32 %v1459, %v1460
  %v1462 = vrot.slane %v1400, 4
  %v1463 = vadd.f32 %v1400, %v1462
  %v1464 = vrot.slane %v1463, 2
  %v1465 = vadd.f32 %v1463, %v1464
  %v1466 = vrot.slane %v1465, 1
  %v1467 = vadd.f32 %v1465, %v1466
  %v1468 = vrot.slane %v1401, 4
  %v1469 = vadd.f32 %v1401, %v1468
  %v1470 = vrot.slane %v1469, 2
  %v1471 = vadd.f32 %v1469, %v1470
  %v1472 = vrot.slane %v1471, 1
  %v1473 = vadd.f32 %v1471, %v1472
  %v1474 = vrot.slane %v1402, 4
  %v1475 = vadd.f32 %v1402, %v1474
  %v1476 = vrot.slane %v1475, 2
  %v1477 = vadd.f32 %v1475, %v1476
  %v1478 = vrot.slane %v1477, 1
  %v1479 = vadd.f32 %v1477, %v1478
  %v1480 = vrot.slane %v1403, 4
  %v1481 = vadd.f32 %v1403, %v1480
  %v1482 = vrot.slane %v1481, 2
  %v1483 = vadd.f32 %v1481, %v1482
  %v1484 = vrot.slane %v1483, 1
  %v1485 = vadd.f32 %v1483, %v1484
  %v1486 = vrot.slane %v1404, 4
  %v1487 = vadd.f32 %v1404, %v1486
  %v1488 = vrot.slane %v1487, 2
  %v1489 = vadd.f32 %v1487, %v1488
  %v1490 = vrot.slane %v1489, 1
  %v1491 = vadd.f32 %v1489, %v1490
  %v1492 = vrot.slane %v1405, 4
  %v1493 = vadd.f32 %v1405, %v1492
  %v1494 = vrot.slane %v1493, 2
  %v1495 = vadd.f32 %v1493, %v1494
  %v1496 = vrot.slane %v1495, 1
  %v1497 = vadd.f32 %v1495, %v1496
  %v1498 = vrot.slane %v1406, 4
  %v1499 = vadd.f32 %v1406, %v1498
  %v1500 = vrot.slane %v1499, 2
  %v1501 = vadd.f32 %v1499, %v1500
  %v1502 = vrot.slane %v1501, 1
  %v1503 = vadd.f32 %v1501, %v1502
  %v1504 = vrot.slane %v1407, 4
  %v1505 = vadd.f32 %v1407, %v1504
  %v1506 = vrot.slane %v1505, 2
  %v1507 = vadd.f32 %v1505, %v1506
  %v1508 = vrot.slane %v1507, 1
  %v1509 = vadd.f32 %v1507, %v1508
  %v1510 = vrot.slane %v1408, 4
  %v1511 = vadd.f32 %v1408, %v1510
  %v1512 = vrot.slane %v1511, 2
  %v1513 = vadd.f32 %v1511, %v1512
  %v1514 = vrot.slane %v1513, 1
  %v1515 = vadd.f32 %v1513, %v1514
  %v1516 = vrot.slane %v1409, 4
  %v1517 = vadd.f32 %v1409, %v1516
  %v1518 = vrot.slane %v1517, 2
  %v1519 = vadd.f32 %v1517, %v1518
  %v1520 = vrot.slane %v1519, 1
  %v1521 = vadd.f32 %v1519, %v1520
  %v1522 = vrot.slane %v1410, 4
  %v1523 = vadd.f32 %v1410, %v1522
  %v1524 = vrot.slane %v1523, 2
  %v1525 = vadd.f32 %v1523, %v1524
  %v1526 = vrot.slane %v1525, 1
  %v1527 = vadd.f32 %v1525, %v1526
  %v1528 = vrot.slane %v1411, 4
  %v1529 = vadd.f32 %v1411, %v1528
  %v1530 = vrot.slane %v1529, 2
  %v1531 = vadd.f32 %v1529, %v1530
  %v1532 = vrot.slane %v1531, 1
  %v1533 = vadd.f32 %v1531, %v1532
  %v1534 = vrot.slane %v1412, 4
  %v1535 = vadd.f32 %v1412, %v1534
  %v1536 = vrot.slane %v1535, 2
  %v1537 = vadd.f32 %v1535, %v1536
  %v1538 = vrot.slane %v1537, 1
  %v1539 = vadd.f32 %v1537, %v1538
  %v1540 = vrot.slane %v1413, 4
  %v1541 = vadd.f32 %v1413, %v1540
  %v1542 = vrot.slane %v1541, 2
  %v1543 = vadd.f32 %v1541, %v1542
  %v1544 = vrot.slane %v1543, 1
  %v1545 = vadd.f32 %v1543, %v1544
  %v1546 = vrot.slane %v1414, 4
  %v1547 = vadd.f32 %v1414, %v1546
  %v1548 = vrot.slane %v1547, 2
  %v1549 = vadd.f32 %v1547, %v1548
  %v1550 = vrot.slane %v1549, 1
  %v1551 = vadd.f32 %v1549, %v1550
  %v1552 = vrot.slane %v1415, 4
  %v1553 = vadd.f32 %v1415, %v1552
  %v1554 = vrot.slane %v1553, 2
  %v1555 = vadd.f32 %v1553, %v1554
  %v1556 = vrot.slane %v1555, 1
  %v1557 = vadd.f32 %v1555, %v1556
  %v1558 = vrot.slane %v1416, 4
  %v1559 = vadd.f32 %v1416, %v1558
  %v1560 = vrot.slane %v1559, 2
  %v1561 = vadd.f32 %v1559, %v1560
  %v1562 = vrot.slane %v1561, 1
  %v1563 = vadd.f32 %v1561, %v1562
  %v1564 = vrot.slane %v1417, 4
  %v1565 = vadd.f32 %v1417, %v1564
  %v1566 = vrot.slane %v1565, 2
  %v1567 = vadd.f32 %v1565, %v1566
  %v1568 = vrot.slane %v1567, 1
  %v1569 = vadd.f32 %v1567, %v1568
  %v1570 = vrot.slane %v1418, 4
  %v1571 = vadd.f32 %v1418, %v1570
  %v1572 = vrot.slane %v1571, 2
  %v1573 = vadd.f32 %v1571, %v1572
  %v1574 = vrot.slane %v1573, 1
  %v1575 = vadd.f32 %v1573, %v1574
  %v1576 = vrot.slane %v1419, 4
  %v1577 = vadd.f32 %v1419, %v1576
  %v1578 = vrot.slane %v1577, 2
  %v1579 = vadd.f32 %v1577, %v1578
  %v1580 = vrot.slane %v1579, 1
  %v1581 = vadd.f32 %v1579, %v1580
  %v1582 = vrot.slane %v1420, 4
  %v1583 = vadd.f32 %v1420, %v1582
  %v1584 = vrot.slane %v1583, 2
  %v1585 = vadd.f32 %v1583, %v1584
  %v1586 = vrot.slane %v1585, 1
  %v1587 = vadd.f32 %v1585, %v1586
  %v1588 = vrot.slane %v1421, 4
  %v1589 = vadd.f32 %v1421, %v1588
  %v1590 = vrot.slane %v1589, 2
  %v1591 = vadd.f32 %v1589, %v1590
  %v1592 = vrot.slane %v1591, 1
  %v1593 = vadd.f32 %v1591, %v1592
  %v1594 = vrot.slane %v1422, 4
  %v1595 = vadd.f32 %v1422, %v1594
  %v1596 = vrot.slane %v1595, 2
  %v1597 = vadd.f32 %v1595, %v1596
  %v1598 = vrot.slane %v1597, 1
  %v1599 = vadd.f32 %v1597, %v1598
  %v1600 = vrot.slane %v1423, 4
  %v1601 = vadd.f32 %v1423, %v1600
  %v1602 = vrot.slane %v1601, 2
  %v1603 = vadd.f32 %v1601, %v1602
  %v1604 = vrot.slane %v1603, 1
  %v1605 = vadd.f32 %v1603, %v1604
  %v1606 = vrot.slane %v1424, 4
  %v1607 = vadd.f32 %v1424, %v1606
  %v1608 = vrot.slane %v1607, 2
  %v1609 = vadd.f32 %v1607, %v1608
  %v1610 = vrot.slane %v1609, 1
  %v1611 = vadd.f32 %v1609, %v1610
  %v1612 = vrot.slane %v1425, 4
  %v1613 = vadd.f32 %v1425, %v1612
  %v1614 = vrot.slane %v1613, 2
  %v1615 = vadd.f32 %v1613, %v1614
  %v1616 = vrot.slane %v1615, 1
  %v1617 = vadd.f32 %v1615, %v1616
  %v1618 = vpack.c.bf16 %v1431, %v1431
  %v1619 = vpack.c.bf16 %v1437, %v1437
  %v1620 = vpack.c.bf16 %v1443, %v1443
  %v1621 = vpack.c.bf16 %v1449, %v1449
  %v1622 = vpack.c.bf16 %v1455, %v1455
  %v1623 = vpack.c.bf16 %v1461, %v1461
  %v1624 = vpack.c.bf16 %v1467, %v1467
  %v1625 = vpack.c.bf16 %v1473, %v1473
  %v1626 = vpack.c.bf16 %v1479, %v1479
  %v1627 = vpack.c.bf16 %v1485, %v1485
  %v1628 = vpack.c.bf16 %v1491, %v1491
  %v1629 = vpack.c.bf16 %v1497, %v1497
  %v1630 = vpack.c.bf16 %v1503, %v1503
  %v1631 = vpack.c.bf16 %v1509, %v1509
  %v1632 = vpack.c.bf16 %v1515, %v1515
  %v1633 = vpack.c.bf16 %v1521, %v1521
  %v1634 = vpack.c.bf16 %v1527, %v1527
  %v1635 = vpack.c.bf16 %v1533, %v1533
  %v1636 = vpack.c.bf16 %v1539, %v1539
  %v1637 = vpack.c.bf16 %v1545, %v1545
  %v1638 = vpack.c.bf16 %v1551, %v1551
  %v1639 = vpack.c.bf16 %v1557, %v1557
  %v1640 = vpack.c.bf16 %v1563, %v1563
  %v1641 = vpack.c.bf16 %v1569, %v1569
  %v1642 = vpack.c.bf16 %v1575, %v1575
  %v1643 = vpack.c.bf16 %v1581, %v1581
  %v1644 = vpack.c.bf16 %v1587, %v1587
  %v1645 = vpack.c.bf16 %v1593, %v1593
  %v1646 = vpack.c.bf16 %v1599, %v1599
  %v1647 = vpack.c.bf16 %v1605, %v1605
  %v1648 = vpack.c.bf16 %v1611, %v1611
  %v1649 = vpack.c.bf16 %v1617, %v1617
  %v1682 = vunpack.c.l.b16 %v1618
  %v1683 = vunpack.c.l.b16 %v1619
  %v1684 = vunpack.c.l.b16 %v1620
  %v1685 = vunpack.c.l.b16 %v1621
  %v1686 = vunpack.c.l.b16 %v1622
  %v1687 = vunpack.c.l.b16 %v1623
  %v1688 = vunpack.c.l.b16 %v1624
  %v1689 = vunpack.c.l.b16 %v1625
  %v1690 = vunpack.c.l.b16 %v1626
  %v1691 = vunpack.c.l.b16 %v1627
  %v1692 = vunpack.c.l.b16 %v1628
  %v1693 = vunpack.c.l.b16 %v1629
  %v1694 = vunpack.c.l.b16 %v1630
  %v1695 = vunpack.c.l.b16 %v1631
  %v1696 = vunpack.c.l.b16 %v1632
  %v1697 = vunpack.c.l.b16 %v1633
  %v1698 = vunpack.c.l.b16 %v1634
  %v1699 = vunpack.c.l.b16 %v1635
  %v1700 = vunpack.c.l.b16 %v1636
  %v1701 = vunpack.c.l.b16 %v1637
  %v1702 = vunpack.c.l.b16 %v1638
  %v1703 = vunpack.c.l.b16 %v1639
  %v1704 = vunpack.c.l.b16 %v1640
  %v1705 = vunpack.c.l.b16 %v1641
  %v1706 = vunpack.c.l.b16 %v1642
  %v1707 = vunpack.c.l.b16 %v1643
  %v1708 = vunpack.c.l.b16 %v1644
  %v1709 = vunpack.c.l.b16 %v1645
  %v1710 = vunpack.c.l.b16 %v1646
  %v1711 = vunpack.c.l.b16 %v1647
  %v1712 = vunpack.c.l.b16 %v1648
  %v1713 = vunpack.c.l.b16 %v1649
  %vm1714 = vcmask 1041409
  %v1715 = vsel %vm1714, %v1683, %v1682
  %vm1716 = vcmask 1042434
  %v1717 = vsel %vm1716, %v1684, %v1715
  %vm1718 = vcmask 1043459
  %v1719 = vsel %vm1718, %v1685, %v1717
  %vm1720 = vcmask 1044484
  %v1721 = vsel %vm1720, %v1686, %v1719
  %vm1722 = vcmask 1045509
  %v1723 = vsel %vm1722, %v1687, %v1721
  %vm1724 = vcmask 1046534
  %v1725 = vsel %vm1724, %v1688, %v1723
  %vm1726 = vcmask 1047559
  %v1727 = vsel %vm1726, %v1689, %v1725
  %v1728 = vsel %vm1714, %v1691, %v1690
  %v1729 = vsel %vm1716, %v1692, %v1728
  %v1730 = vsel %vm1718, %v1693, %v1729
  %v1731 = vsel %vm1720, %v1694, %v1730
  %v1732 = vsel %vm1722, %v1695, %v1731
  %v1733 = vsel %vm1724, %v1696, %v1732
  %v1734 = vsel %vm1726, %v1697, %v1733
  %v1735 = vsel %vm1714, %v1699, %v1698
  %v1736 = vsel %vm1716, %v1700, %v1735
  %v1737 = vsel %vm1718, %v1701, %v1736
  %v1738 = vsel %vm1720, %v1702, %v1737
  %v1739 = vsel %vm1722, %v1703, %v1738
  %v1740 = vsel %vm1724, %v1704, %v1739
  %v1741 = vsel %vm1726, %v1705, %v1740
  %v1742 = vsel %vm1714, %v1707, %v1706
  %v1743 = vsel %vm1716, %v1708, %v1742
  %v1744 = vsel %vm1718, %v1709, %v1743
  %v1745 = vsel %vm1720, %v1710, %v1744
  %v1746 = vsel %vm1722, %v1711, %v1745
  %v1747 = vsel %vm1724, %v1712, %v1746
  %v1748 = vsel %vm1726, %v1713, %v1747
  %v1749 = vpack.c.b16 %v1727, %v1727
  %v1750 = vpack.c.b16 %v1734, %v1734
  %v1751 = vpack.c.b16 %v1741, %v1741
  %v1752 = vpack.c.b16 %v1748, %v1748
  %1757 = vst [vmem:[%s7] sm:$0xf] %v1749
  %1758 = vst [vmem:[%s7 + $0x4] sm:$0xf] %v1750
  %1759 = vst [vmem:[%s7 + $0x8] sm:$0xf] %v1751
  %1760 = vst [vmem:[%s7 + $0xc] sm:$0xf] %v1752
  // Predicated region
  $region30: #{eventmamba_forward.11} parent=0 // pred_check
    _
  $region31: #{eventmamba_forward.11} parent=0 // pred_check_branch
    %1762 = sbr.rel (0) target = $region33
  $region32: #{eventmamba_forward.11} parent=0 // pred_region
    _
  $region33: #{eventmamba_forward.11} parent=0 // pred_fallthru
    _
  // Predicated region
  $region34: #{eventmamba_forward.11} parent=0 // pred_check
    _
  $region35: #{eventmamba_forward.11} parent=0 // pred_check_branch
    %1764 = sbr.rel (0) target = $region37
  $region36: #{eventmamba_forward.11} parent=0 // pred_region
    _
  $region37: #{eventmamba_forward.11} parent=0 // pred_fallthru
    _

// kernel: eventmamba_forward.14
$region0: #{eventmamba_forward.14}
  #allocation0 [shape = 'u32[]', space=smem, size = 0x4, offset = 0x4, fixed_abs, tag = 'smem constant byte address 0x4 - core index']
  #allocation1 [shape = 'u32[72,128]{1,0:T(1,128)}', space=vmem, size = 0x9000, scoped, tag = 'internal scratch']
  %s0 = inlined_call_operand.vmem [shape: bf16[16,256], index: 0, kind: input, shape index: {}]
  %s1 = inlined_call_operand.vmem [shape: bf16[256,128], index: 1, kind: input, shape index: {}]
  %s2 = inlined_call_operand.vmem [shape: f32[1,128], index: 2, kind: input, shape index: {}]
  %s3 = inlined_call_operand.vmem [shape: bf16[128,256], index: 3, kind: input, shape index: {}]
  %s4 = inlined_call_operand.vmem [shape: f32[1,256], index: 4, kind: input, shape index: {}]
  %s5 = inlined_call_operand.vmem [shape: bf16[16,256], index: 5, kind: output, shape index: {}]
  %s6 = sld [smem:[#allocation0]]
  $region30: #{eventmamba_forward.14} parent=0
    _
  %s8 = ssub.s32 1, %s6
  %s9 = scalar_select 0, %s8, %s6
  // Predicated region
  $region2: #{eventmamba_forward.14} parent=0 // pred_check
    _
  $region3: #{eventmamba_forward.14} parent=0 // pred_check_branch
    %11 = sbr.rel (0) target = $region5
  $region4: #{eventmamba_forward.14} parent=0 // pred_region
    _
  $region5: #{eventmamba_forward.14} parent=0 // pred_fallthru
    _
  // Predicated region
  $region6: #{eventmamba_forward.14} parent=0 // pred_check
    _
  $region7: #{eventmamba_forward.14} parent=0 // pred_check_branch
    %13 = sbr.rel (0) target = $region9
  $region8: #{eventmamba_forward.14} parent=0 // pred_region
    _
  $region9: #{eventmamba_forward.14} parent=0 // pred_fallthru
    _
  // Predicated region
  $region10: #{eventmamba_forward.14} parent=0 // pred_check
    _
  $region11: #{eventmamba_forward.14} parent=0 // pred_check_branch
    %15 = sbr.rel (0) target = $region13
  $region12: #{eventmamba_forward.14} parent=0 // pred_region
    _
  $region13: #{eventmamba_forward.14} parent=0 // pred_fallthru
    _
  // Predicated region
  $region14: #{eventmamba_forward.14} parent=0 // pred_check
    _
  $region15: #{eventmamba_forward.14} parent=0 // pred_check_branch
    %17 = sbr.rel (0) target = $region17
  $region16: #{eventmamba_forward.14} parent=0 // pred_region
    _
  $region17: #{eventmamba_forward.14} parent=0 // pred_fallthru
    _
  // Predicated region
  $region18: #{eventmamba_forward.14} parent=0 // pred_check
    _
  $region19: #{eventmamba_forward.14} parent=0 // pred_check_branch
    %19 = sbr.rel (0) target = $region21
  $region20: #{eventmamba_forward.14} parent=0 // pred_region
    _
  $region21: #{eventmamba_forward.14} parent=0 // pred_fallthru
    _
  %v20 = vld [vmem:[%s0] sm:$0xff]
  %v21 = vld [vmem:[%s0 + $0x8] sm:$0xff]
  %v22 = vunpack.c.l.bf16 %v20
  %v23 = vunpack.c.h.bf16 %v20
  %v24 = vunpack.c.l.bf16 %v21
  %v25 = vunpack.c.h.bf16 %v21
  %v26 = vld [vmem:[%s1] sm:$0xf]
  %v27 = vld [vmem:[%s1 + $0x4] sm:$0xf]
  %v28 = vld [vmem:[%s1 + $0x8] sm:$0xf]
  %v29 = vld [vmem:[%s1 + $0xc] sm:$0xf]
  %v30 = vld [vmem:[%s1 + $0x10] sm:$0xf]
  %v31 = vld [vmem:[%s1 + $0x14] sm:$0xf]
  %v32 = vld [vmem:[%s1 + $0x18] sm:$0xf]
  %v33 = vld [vmem:[%s1 + $0x1c] sm:$0xf]
  %v34 = vld [vmem:[%s1 + $0x20] sm:$0xf]
  %v35 = vld [vmem:[%s1 + $0x24] sm:$0xf]
  %v36 = vld [vmem:[%s1 + $0x28] sm:$0xf]
  %v37 = vld [vmem:[%s1 + $0x2c] sm:$0xf]
  %v38 = vld [vmem:[%s1 + $0x30] sm:$0xf]
  %v39 = vld [vmem:[%s1 + $0x34] sm:$0xf]
  %v40 = vld [vmem:[%s1 + $0x38] sm:$0xf]
  %v41 = vld [vmem:[%s1 + $0x3c] sm:$0xf]
  %v42 = vld [vmem:[%s1 + $0x40] sm:$0xf]
  %v43 = vld [vmem:[%s1 + $0x44] sm:$0xf]
  %v44 = vld [vmem:[%s1 + $0x48] sm:$0xf]
  %v45 = vld [vmem:[%s1 + $0x4c] sm:$0xf]
  %v46 = vld [vmem:[%s1 + $0x50] sm:$0xf]
  %v47 = vld [vmem:[%s1 + $0x54] sm:$0xf]
  %v48 = vld [vmem:[%s1 + $0x58] sm:$0xf]
  %v49 = vld [vmem:[%s1 + $0x5c] sm:$0xf]
  %v50 = vld [vmem:[%s1 + $0x60] sm:$0xf]
  %v51 = vld [vmem:[%s1 + $0x64] sm:$0xf]
  %v52 = vld [vmem:[%s1 + $0x68] sm:$0xf]
  %v53 = vld [vmem:[%s1 + $0x6c] sm:$0xf]
  %v54 = vld [vmem:[%s1 + $0x70] sm:$0xf]
  %v55 = vld [vmem:[%s1 + $0x74] sm:$0xf]
  %v56 = vld [vmem:[%s1 + $0x78] sm:$0xf]
  %v57 = vld [vmem:[%s1 + $0x7c] sm:$0xf]
  %v58 = vld [vmem:[%s2] sm:$0x1]
  %v60 = vperm.slane %v58, 0
  %v64 = vunpack.c.l.b16 %v20
  %v65 = vunpack.c.h.b16 %v20
  %v66 = vunpack.c.l.b16 %v21
  %v67 = vunpack.c.h.b16 %v21
  %v68 = vpack.c.b16 %v66, %v64
  %v69 = vpack.c.b16 %v67, %v65
  %v104 = vunpack.c.l.b16 %v26
  %v105 = vunpack.c.l.b16 %v27
  %v106 = vunpack.c.l.b16 %v28
  %v107 = vunpack.c.l.b16 %v29
  %v108 = vunpack.c.l.b16 %v30
  %v109 = vunpack.c.l.b16 %v31
  %v110 = vunpack.c.l.b16 %v32
  %v111 = vunpack.c.l.b16 %v33
  %v112 = vunpack.c.l.b16 %v34
  %v113 = vunpack.c.l.b16 %v35
  %v114 = vunpack.c.l.b16 %v36
  %v115 = vunpack.c.l.b16 %v37
  %v116 = vunpack.c.l.b16 %v38
  %v117 = vunpack.c.l.b16 %v39
  %v118 = vunpack.c.l.b16 %v40
  %v119 = vunpack.c.l.b16 %v41
  %v120 = vunpack.c.l.b16 %v42
  %v121 = vunpack.c.l.b16 %v43
  %v122 = vunpack.c.l.b16 %v44
  %v123 = vunpack.c.l.b16 %v45
  %v124 = vunpack.c.l.b16 %v46
  %v125 = vunpack.c.l.b16 %v47
  %v126 = vunpack.c.l.b16 %v48
  %v127 = vunpack.c.l.b16 %v49
  %v128 = vunpack.c.l.b16 %v50
  %v129 = vunpack.c.l.b16 %v51
  %v130 = vunpack.c.l.b16 %v52
  %v131 = vunpack.c.l.b16 %v53
  %v132 = vunpack.c.l.b16 %v54
  %v133 = vunpack.c.l.b16 %v55
  %v134 = vunpack.c.l.b16 %v56
  %v135 = vunpack.c.l.b16 %v57
  %v136 = vpack.c.b16 %v105, %v104
  %v137 = vpack.c.b16 %v107, %v106
  %v138 = vpack.c.b16 %v109, %v108
  %v139 = vpack.c.b16 %v111, %v110
  %v140 = vpack.c.b16 %v113, %v112
  %v141 = vpack.c.b16 %v115, %v114
  %v142 = vpack.c.b16 %v117, %v116
  %v143 = vpack.c.b16 %v119, %v118
  %v144 = vpack.c.b16 %v121, %v120
  %v145 = vpack.c.b16 %v123, %v122
  %v146 = vpack.c.b16 %v125, %v124
  %v147 = vpack.c.b16 %v127, %v126
  %v148 = vpack.c.b16 %v129, %v128
  %v149 = vpack.c.b16 %v131, %v130
  %v150 = vpack.c.b16 %v133, %v132
  %v151 = vpack.c.b16 %v135, %v134
  %168 = vmatpush.bf16.msra.mxu0 %v143
  %169 = vmatpush.bf16.msra.mxu0 %v142
  %170 = vmatpush.bf16.msra.mxu0 %v141
  %171 = vmatpush.bf16.msra.mxu0 %v140
  %172 = vmatpush.bf16.msra.mxu0 %v139
  %173 = vmatpush.bf16.msra.mxu0 %v138
  %174 = vmatpush.bf16.msra.mxu0 %v137
  %175 = vmatpush.bf16.msra.mxu0 %v136
  %176 = vmatmul.bf16.gmra.mxu0 %v68
  %v177 = vpop.f32.mrf.mxu0
  %v178 = vadd.f32 %v60, %v177
  %v179 = vpop.f32.mrf.mxu0
  %v180 = vadd.f32 %v60, %v179
  %181 = vdwg.mxu0
  %182 = vmatpush.bf16.msra.mxu0 %v151
  %183 = vmatpush.bf16.msra.mxu0 %v150
  %184 = vmatpush.bf16.msra.mxu0 %v149
  %185 = vmatpush.bf16.msra.mxu0 %v148
  %186 = vmatpush.bf16.msra.mxu0 %v147
  %187 = vmatpush.bf16.msra.mxu0 %v146
  %188 = vmatpush.bf16.msra.mxu0 %v145
  %189 = vmatpush.bf16.msra.mxu0 %v144
  %190 = vmatmul.bf16.gmra.mxu0 %v69
  %v191 = vpop.f32.mrf.mxu0
  %v192 = vadd.f32 %v178, %v191
  %v193 = vpop.f32.mrf.mxu0
  %v194 = vadd.f32 %v180, %v193
  %195 = vdwg.mxu0
  %v196 = vmax.f32 %v192, 0.0
  %v197 = vmax.f32 %v194, 0.0
  %v198 = vpack.c.bf16 %v197, %v196
  %v199 = vld [vmem:[%s3] sm:$0xff]
  %v200 = vld [vmem:[%s3 + $0x8] sm:$0xff]
  %v201 = vld [vmem:[%s3 + $0x10] sm:$0xff]
  %v202 = vld [vmem:[%s3 + $0x18] sm:$0xff]
  %v203 = vld [vmem:[%s3 + $0x20] sm:$0xff]
  %v204 = vld [vmem:[%s3 + $0x28] sm:$0xff]
  %v205 = vld [vmem:[%s3 + $0x30] sm:$0xff]
  %v206 = vld [vmem:[%s3 + $0x38] sm:$0xff]
  %v207 = vld [vmem:[%s3 + $0x40] sm:$0xff]
  %v208 = vld [vmem:[%s3 + $0x48] sm:$0xff]
  %v209 = vld [vmem:[%s3 + $0x50] sm:$0xff]
  %v210 = vld [vmem:[%s3 + $0x58] sm:$0xff]
  %v211 = vld [vmem:[%s3 + $0x60] sm:$0xff]
  %v212 = vld [vmem:[%s3 + $0x68] sm:$0xff]
  %v213 = vld [vmem:[%s3 + $0x70] sm:$0xff]
  %v214 = vld [vmem:[%s3 + $0x78] sm:$0xff]
  %v215 = vld [vmem:[%s4] sm:$0x3]
  %v217 = vperm.slane %v215, 0
  %v218 = vperm.slane %v215, 1
  %v237 = vunpack.c.l.b16 %v199
  %v238 = vunpack.c.h.b16 %v199
  %v239 = vunpack.c.l.b16 %v200
  %v240 = vunpack.c.h.b16 %v200
  %v241 = vunpack.c.l.b16 %v201
  %v242 = vunpack.c.h.b16 %v201
  %v243 = vunpack.c.l.b16 %v202
  %v244 = vunpack.c.h.b16 %v202
  %v245 = vunpack.c.l.b16 %v203
  %v246 = vunpack.c.h.b16 %v203
  %v247 = vunpack.c.l.b16 %v204
  %v248 = vunpack.c.h.b16 %v204
  %v249 = vunpack.c.l.b16 %v205
  %v250 = vunpack.c.h.b16 %v205
  %v251 = vunpack.c.l.b16 %v206
  %v252 = vunpack.c.h.b16 %v206
  %v253 = vunpack.c.l.b16 %v207
  %v254 = vunpack.c.h.b16 %v207
  %v255 = vunpack.c.l.b16 %v208
  %v256 = vunpack.c.h.b16 %v208
  %v257 = vunpack.c.l.b16 %v209
  %v258 = vunpack.c.h.b16 %v209
  %v259 = vunpack.c.l.b16 %v210
  %v260 = vunpack.c.h.b16 %v210
  %v261 = vunpack.c.l.b16 %v211
  %v262 = vunpack.c.h.b16 %v211
  %v263 = vunpack.c.l.b16 %v212
  %v264 = vunpack.c.h.b16 %v212
  %v265 = vunpack.c.l.b16 %v213
  %v266 = vunpack.c.h.b16 %v213
  %v267 = vunpack.c.l.b16 %v214
  %v268 = vunpack.c.h.b16 %v214
  %v269 = vpack.c.b16 %v239, %v237
  %v270 = vpack.c.b16 %v240, %v238
  %v271 = vpack.c.b16 %v243, %v241
  %v272 = vpack.c.b16 %v244, %v242
  %v273 = vpack.c.b16 %v247, %v245
  %v274 = vpack.c.b16 %v248, %v246
  %v275 = vpack.c.b16 %v251, %v249
  %v276 = vpack.c.b16 %v252, %v250
  %v277 = vpack.c.b16 %v255, %v253
  %v278 = vpack.c.b16 %v256, %v254
  %v279 = vpack.c.b16 %v259, %v257
  %v280 = vpack.c.b16 %v260, %v258
  %v281 = vpack.c.b16 %v263, %v261
  %v282 = vpack.c.b16 %v264, %v262
  %v283 = vpack.c.b16 %v267, %v265
  %v284 = vpack.c.b16 %v268, %v266
  %301 = vmatpush.bf16.msra.mxu0 %v283
  %302 = vmatpush.bf16.msra.mxu0 %v281
  %303 = vmatpush.bf16.msra.mxu0 %v279
  %304 = vmatpush.bf16.msra.mxu0 %v277
  %305 = vmatpush.bf16.msra.mxu0 %v275
  %306 = vmatpush.bf16.msra.mxu0 %v273
  %307 = vmatpush.bf16.msra.mxu0 %v271
  %308 = vmatpush.bf16.msra.mxu0 %v269
  %309 = vmatmul.bf16.gmra.mxu0 %v198
  %v310 = vpop.f32.mrf.mxu0
  %v311 = vadd.f32 %v217, %v310
  %v312 = vpop.f32.mrf.mxu0
  %v313 = vadd.f32 %v217, %v312
  %314 = vdwg.mxu0
  %315 = vmatpush.bf16.msra.mxu0 %v284
  %316 = vmatpush.bf16.msra.mxu0 %v282
  %317 = vmatpush.bf16.msra.mxu0 %v280
  %318 = vmatpush.bf16.msra.mxu0 %v278
  %319 = vmatpush.bf16.msra.mxu0 %v276
  %320 = vmatpush.bf16.msra.mxu0 %v274
  %321 = vmatpush.bf16.msra.mxu0 %v272
  %322 = vmatpush.bf16.msra.mxu0 %v270
  %323 = vmatmul.bf16.gmra.mxu0 %v198
  %v324 = vpop.f32.mrf.mxu0
  %v325 = vadd.f32 %v218, %v324
  %v326 = vpop.f32.mrf.mxu0
  %v327 = vadd.f32 %v218, %v326
  %328 = vdwg.mxu0
  %v329 = vadd.f32 %v311, %v22
  %v330 = vadd.f32 %v325, %v23
  %v331 = vadd.f32 %v313, %v24
  %v332 = vadd.f32 %v327, %v25
  %v333 = vmax.f32 %v329, 0.0
  %v334 = vmax.f32 %v330, 0.0
  %v335 = vmax.f32 %v331, 0.0
  %v336 = vmax.f32 %v332, 0.0
  %v337 = vpack.c.bf16 %v334, %v333
  %v338 = vpack.c.bf16 %v336, %v335
  %339 = vst [vmem:[%s5] sm:$0xff] %v337
  %340 = vst [vmem:[%s5 + $0x8] sm:$0xff] %v338
  // Predicated region
  $region22: #{eventmamba_forward.14} parent=0 // pred_check
    _
  $region23: #{eventmamba_forward.14} parent=0 // pred_check_branch
    %342 = sbr.rel (0) target = $region25
  $region24: #{eventmamba_forward.14} parent=0 // pred_region
    _
  $region25: #{eventmamba_forward.14} parent=0 // pred_fallthru
    _
  // Predicated region
  $region26: #{eventmamba_forward.14} parent=0 // pred_check
    _
  $region27: #{eventmamba_forward.14} parent=0 // pred_check_branch
    %344 = sbr.rel (0) target = $region29
  $region28: #{eventmamba_forward.14} parent=0 // pred_region
    _
  $region29: #{eventmamba_forward.14} parent=0 // pred_fallthru
    _

// kernel: eventmamba_forward.13
$region0: #{eventmamba_forward.13}
  #allocation0 [shape = 'u32[]', space=smem, size = 0x4, offset = 0x4, fixed_abs, tag = 'smem constant byte address 0x4 - core index']
  #allocation1 [shape = 'u32[72,128]{1,0:T(1,128)}', space=vmem, size = 0x9000, scoped, tag = 'internal scratch']
  %s0 = inlined_call_operand.vmem [shape: bf16[16,8,128], index: 0, kind: input, shape index: {}]
  %s1 = inlined_call_operand.vmem [shape: bf16[16,128], index: 1, kind: input, shape index: {}]
  %s2 = inlined_call_operand.vmem [shape: bf16[256,128], index: 2, kind: input, shape index: {}]
  %s3 = inlined_call_operand.vmem [shape: f32[1,128], index: 3, kind: input, shape index: {}]
  %s4 = inlined_call_operand.vmem [shape: bf16[128,256], index: 4, kind: input, shape index: {}]
  %s5 = inlined_call_operand.vmem [shape: f32[1,256], index: 5, kind: input, shape index: {}]
  %s6 = inlined_call_operand.vmem [shape: f32[1,256], index: 6, kind: input, shape index: {}]
  %s7 = inlined_call_operand.vmem [shape: bf16[16,256], index: 7, kind: output, shape index: {}]
  %s8 = sld [smem:[#allocation0]]
  $region38: #{eventmamba_forward.13} parent=0
    _
  %s10 = ssub.s32 1, %s8
  %s11 = scalar_select 0, %s10, %s8
  // Predicated region
  $region2: #{eventmamba_forward.13} parent=0 // pred_check
    _
  $region3: #{eventmamba_forward.13} parent=0 // pred_check_branch
    %13 = sbr.rel (0) target = $region5
  $region4: #{eventmamba_forward.13} parent=0 // pred_region
    _
  $region5: #{eventmamba_forward.13} parent=0 // pred_fallthru
    _
  // Predicated region
  $region6: #{eventmamba_forward.13} parent=0 // pred_check
    _
  $region7: #{eventmamba_forward.13} parent=0 // pred_check_branch
    %15 = sbr.rel (0) target = $region9
  $region8: #{eventmamba_forward.13} parent=0 // pred_region
    _
  $region9: #{eventmamba_forward.13} parent=0 // pred_fallthru
    _
  // Predicated region
  $region10: #{eventmamba_forward.13} parent=0 // pred_check
    _
  $region11: #{eventmamba_forward.13} parent=0 // pred_check_branch
    %17 = sbr.rel (0) target = $region13
  $region12: #{eventmamba_forward.13} parent=0 // pred_region
    _
  $region13: #{eventmamba_forward.13} parent=0 // pred_fallthru
    _
  // Predicated region
  $region14: #{eventmamba_forward.13} parent=0 // pred_check
    _
  $region15: #{eventmamba_forward.13} parent=0 // pred_check_branch
    %19 = sbr.rel (0) target = $region17
  $region16: #{eventmamba_forward.13} parent=0 // pred_region
    _
  $region17: #{eventmamba_forward.13} parent=0 // pred_fallthru
    _
  // Predicated region
  $region18: #{eventmamba_forward.13} parent=0 // pred_check
    _
  $region19: #{eventmamba_forward.13} parent=0 // pred_check_branch
    %21 = sbr.rel (0) target = $region21
  $region20: #{eventmamba_forward.13} parent=0 // pred_region
    _
  $region21: #{eventmamba_forward.13} parent=0 // pred_fallthru
    _
  // Predicated region
  $region22: #{eventmamba_forward.13} parent=0 // pred_check
    _
  $region23: #{eventmamba_forward.13} parent=0 // pred_check_branch
    %23 = sbr.rel (0) target = $region25
  $region24: #{eventmamba_forward.13} parent=0 // pred_region
    _
  $region25: #{eventmamba_forward.13} parent=0 // pred_fallthru
    _
  // Predicated region
  $region26: #{eventmamba_forward.13} parent=0 // pred_check
    _
  $region27: #{eventmamba_forward.13} parent=0 // pred_check_branch
    %25 = sbr.rel (0) target = $region29
  $region28: #{eventmamba_forward.13} parent=0 // pred_region
    _
  $region29: #{eventmamba_forward.13} parent=0 // pred_fallthru
    _
  %v26 = vld [vmem:[%s0] sm:$0xf]
  %v27 = vld [vmem:[%s0 + $0x4] sm:$0xf]
  %v28 = vld [vmem:[%s0 + $0x8] sm:$0xf]
  %v29 = vld [vmem:[%s0 + $0xc] sm:$0xf]
  %v30 = vld [vmem:[%s0 + $0x10] sm:$0xf]
  %v31 = vld [vmem:[%s0 + $0x14] sm:$0xf]
  %v32 = vld [vmem:[%s0 + $0x18] sm:$0xf]
  %v33 = vld [vmem:[%s0 + $0x1c] sm:$0xf]
  %v34 = vld [vmem:[%s0 + $0x20] sm:$0xf]
  %v35 = vld [vmem:[%s0 + $0x24] sm:$0xf]
  %v36 = vld [vmem:[%s0 + $0x28] sm:$0xf]
  %v37 = vld [vmem:[%s0 + $0x2c] sm:$0xf]
  %v38 = vld [vmem:[%s0 + $0x30] sm:$0xf]
  %v39 = vld [vmem:[%s0 + $0x34] sm:$0xf]
  %v40 = vld [vmem:[%s0 + $0x38] sm:$0xf]
  %v41 = vld [vmem:[%s0 + $0x3c] sm:$0xf]
  %v42 = vunpack.c.l.bf16 %v26
  %v43 = vunpack.c.l.bf16 %v27
  %v44 = vunpack.c.l.bf16 %v28
  %v45 = vunpack.c.l.bf16 %v29
  %v46 = vunpack.c.l.bf16 %v30
  %v47 = vunpack.c.l.bf16 %v31
  %v48 = vunpack.c.l.bf16 %v32
  %v49 = vunpack.c.l.bf16 %v33
  %v50 = vunpack.c.l.bf16 %v34
  %v51 = vunpack.c.l.bf16 %v35
  %v52 = vunpack.c.l.bf16 %v36
  %v53 = vunpack.c.l.bf16 %v37
  %v54 = vunpack.c.l.bf16 %v38
  %v55 = vunpack.c.l.bf16 %v39
  %v56 = vunpack.c.l.bf16 %v40
  %v57 = vunpack.c.l.bf16 %v41
  %v58 = vld [vmem:[%s1] sm:$0xf]
  %v59 = vld [vmem:[%s1 + $0x4] sm:$0xf]
  %v60 = vunpack.c.l.bf16 %v58
  %v61 = vunpack.c.l.bf16 %v59
  %v64 = vrot.slane %v60, 1
  %v65 = vrot.slane %v60, 2
  %v66 = vrot.slane %v60, 3
  %v67 = vrot.slane %v60, 4
  %v68 = vrot.slane %v60, 5
  %v69 = vrot.slane %v60, 6
  %v70 = vrot.slane %v60, 7
  %v71 = vrot.slane %v61, 1
  %v72 = vrot.slane %v61, 2
  %v73 = vrot.slane %v61, 3
  %v74 = vrot.slane %v61, 4
  %v75 = vrot.slane %v61, 5
  %v76 = vrot.slane %v61, 6
  %v77 = vrot.slane %v61, 7
  %v78 = vperm.slane %v60, 0
  %v79 = vperm.slane %v64, 0
  %v80 = vperm.slane %v65, 0
  %v81 = vperm.slane %v66, 0
  %v82 = vperm.slane %v67, 0
  %v83 = vperm.slane %v68, 0
  %v84 = vperm.slane %v69, 0
  %v85 = vperm.slane %v70, 0
  %v86 = vperm.slane %v61, 0
  %v87 = vperm.slane %v71, 0
  %v88 = vperm.slane %v72, 0
  %v89 = vperm.slane %v73, 0
  %v90 = vperm.slane %v74, 0
  %v91 = vperm.slane %v75, 0
  %v92 = vperm.slane %v76, 0
  %v93 = vperm.slane %v77, 0
  %v110 = vpack.c.bf16 %v43, %v42
  %v111 = vpack.c.bf16 %v79, %v78
  %v112 = vpack.c.bf16 %v45, %v44
  %v113 = vpack.c.bf16 %v81, %v80
  %v114 = vpack.c.bf16 %v47, %v46
  %v115 = vpack.c.bf16 %v83, %v82
  %v116 = vpack.c.bf16 %v49, %v48
  %v117 = vpack.c.bf16 %v85, %v84
  %v118 = vpack.c.bf16 %v51, %v50
  %v119 = vpack.c.bf16 %v87, %v86
  %v120 = vpack.c.bf16 %v53, %v52
  %v121 = vpack.c.bf16 %v89, %v88
  %v122 = vpack.c.bf16 %v55, %v54
  %v123 = vpack.c.bf16 %v91, %v90
  %v124 = vpack.c.bf16 %v57, %v56
  %v125 = vpack.c.bf16 %v93, %v92
  %v126 = vld [vmem:[%s2] sm:$0xf]
  %v127 = vld [vmem:[%s2 + $0x4] sm:$0xf]
  %v128 = vld [vmem:[%s2 + $0x8] sm:$0xf]
  %v129 = vld [vmem:[%s2 + $0xc] sm:$0xf]
  %v130 = vld [vmem:[%s2 + $0x10] sm:$0xf]
  %v131 = vld [vmem:[%s2 + $0x14] sm:$0xf]
  %v132 = vld [vmem:[%s2 + $0x18] sm:$0xf]
  %v133 = vld [vmem:[%s2 + $0x1c] sm:$0xf]
  %v134 = vld [vmem:[%s2 + $0x20] sm:$0xf]
  %v135 = vld [vmem:[%s2 + $0x24] sm:$0xf]
  %v136 = vld [vmem:[%s2 + $0x28] sm:$0xf]
  %v137 = vld [vmem:[%s2 + $0x2c] sm:$0xf]
  %v138 = vld [vmem:[%s2 + $0x30] sm:$0xf]
  %v139 = vld [vmem:[%s2 + $0x34] sm:$0xf]
  %v140 = vld [vmem:[%s2 + $0x38] sm:$0xf]
  %v141 = vld [vmem:[%s2 + $0x3c] sm:$0xf]
  %v142 = vld [vmem:[%s2 + $0x40] sm:$0xf]
  %v143 = vld [vmem:[%s2 + $0x44] sm:$0xf]
  %v144 = vld [vmem:[%s2 + $0x48] sm:$0xf]
  %v145 = vld [vmem:[%s2 + $0x4c] sm:$0xf]
  %v146 = vld [vmem:[%s2 + $0x50] sm:$0xf]
  %v147 = vld [vmem:[%s2 + $0x54] sm:$0xf]
  %v148 = vld [vmem:[%s2 + $0x58] sm:$0xf]
  %v149 = vld [vmem:[%s2 + $0x5c] sm:$0xf]
  %v150 = vld [vmem:[%s2 + $0x60] sm:$0xf]
  %v151 = vld [vmem:[%s2 + $0x64] sm:$0xf]
  %v152 = vld [vmem:[%s2 + $0x68] sm:$0xf]
  %v153 = vld [vmem:[%s2 + $0x6c] sm:$0xf]
  %v154 = vld [vmem:[%s2 + $0x70] sm:$0xf]
  %v155 = vld [vmem:[%s2 + $0x74] sm:$0xf]
  %v156 = vld [vmem:[%s2 + $0x78] sm:$0xf]
  %v157 = vld [vmem:[%s2 + $0x7c] sm:$0xf]
  %v158 = vld [vmem:[%s3] sm:$0x1]
  %v160 = vperm.slane %v158, 0
  %v194 = vunpack.c.l.b16 %v126
  %v195 = vunpack.c.l.b16 %v127
  %v196 = vunpack.c.l.b16 %v128
  %v197 = vunpack.c.l.b16 %v129
  %v198 = vunpack.c.l.b16 %v130
  %v199 = vunpack.c.l.b16 %v131
  %v200 = vunpack.c.l.b16 %v132
  %v201 = vunpack.c.l.b16 %v133
  %v202 = vunpack.c.l.b16 %v134
  %v203 = vunpack.c.l.b16 %v135
  %v204 = vunpack.c.l.b16 %v136
  %v205 = vunpack.c.l.b16 %v137
  %v206 = vunpack.c.l.b16 %v138
  %v207 = vunpack.c.l.b16 %v139
  %v208 = vunpack.c.l.b16 %v140
  %v209 = vunpack.c.l.b16 %v141
  %v210 = vunpack.c.l.b16 %v142
  %v211 = vunpack.c.l.b16 %v143
  %v212 = vunpack.c.l.b16 %v144
  %v213 = vunpack.c.l.b16 %v145
  %v214 = vunpack.c.l.b16 %v146
  %v215 = vunpack.c.l.b16 %v147
  %v216 = vunpack.c.l.b16 %v148
  %v217 = vunpack.c.l.b16 %v149
  %v218 = vunpack.c.l.b16 %v150
  %v219 = vunpack.c.l.b16 %v151
  %v220 = vunpack.c.l.b16 %v152
  %v221 = vunpack.c.l.b16 %v153
  %v222 = vunpack.c.l.b16 %v154
  %v223 = vunpack.c.l.b16 %v155
  %v224 = vunpack.c.l.b16 %v156
  %v225 = vunpack.c.l.b16 %v157
  %v226 = vpack.c.b16 %v195, %v194
  %v227 = vpack.c.b16 %v197, %v196
  %v228 = vpack.c.b16 %v199, %v198
  %v229 = vpack.c.b16 %v201, %v200
  %v230 = vpack.c.b16 %v203, %v202
  %v231 = vpack.c.b16 %v205, %v204
  %v232 = vpack.c.b16 %v207, %v206
  %v233 = vpack.c.b16 %v209, %v208
  %v234 = vpack.c.b16 %v211, %v210
  %v235 = vpack.c.b16 %v213, %v212
  %v236 = vpack.c.b16 %v215, %v214
  %v237 = vpack.c.b16 %v217, %v216
  %v238 = vpack.c.b16 %v219, %v218
  %v239 = vpack.c.b16 %v221, %v220
  %v240 = vpack.c.b16 %v223, %v222
  %v241 = vpack.c.b16 %v225, %v224
  %258 = vmatpush.bf16.msra.mxu0 %v233
  %259 = vmatpush.bf16.msra.mxu0 %v232
  %260 = vmatpush.bf16.msra.mxu0 %v231
  %261 = vmatpush.bf16.msra.mxu0 %v230
  %262 = vmatpush.bf16.msra.mxu0 %v229
  %263 = vmatpush.bf16.msra.mxu0 %v228
  %264 = vmatpush.bf16.msra.mxu0 %v227
  %265 = vmatpush.bf16.msra.mxu0 %v226
  %266 = vmatmul.bf16.gmra.mxu0 %v110
  %v267 = vpop.f32.mrf.mxu0
  %v268 = vadd.f32 %v160, %v267
  %v269 = vpop.f32.mrf.mxu0
  %v270 = vadd.f32 %v160, %v269
  %271 = vmatmul.bf16.gmra.mxu0 %v112
  %v272 = vpop.f32.mrf.mxu0
  %v273 = vadd.f32 %v160, %v272
  %v274 = vpop.f32.mrf.mxu0
  %v275 = vadd.f32 %v160, %v274
  %276 = vmatmul.bf16.gmra.mxu0 %v114
  %v277 = vpop.f32.mrf.mxu0
  %v278 = vadd.f32 %v160, %v277
  %v279 = vpop.f32.mrf.mxu0
  %v280 = vadd.f32 %v160, %v279
  %281 = vmatmul.bf16.gmra.mxu0 %v116
  %v282 = vpop.f32.mrf.mxu0
  %v283 = vadd.f32 %v160, %v282
  %v284 = vpop.f32.mrf.mxu0
  %v285 = vadd.f32 %v160, %v284
  %286 = vmatmul.bf16.gmra.mxu0 %v118
  %v287 = vpop.f32.mrf.mxu0
  %v288 = vadd.f32 %v160, %v287
  %v289 = vpop.f32.mrf.mxu0
  %v290 = vadd.f32 %v160, %v289
  %291 = vmatmul.bf16.gmra.mxu0 %v120
  %v292 = vpop.f32.mrf.mxu0
  %v293 = vadd.f32 %v160, %v292
  %v294 = vpop.f32.mrf.mxu0
  %v295 = vadd.f32 %v160, %v294
  %296 = vmatmul.bf16.gmra.mxu0 %v122
  %v297 = vpop.f32.mrf.mxu0
  %v298 = vadd.f32 %v160, %v297
  %v299 = vpop.f32.mrf.mxu0
  %v300 = vadd.f32 %v160, %v299
  %301 = vmatmul.bf16.gmra.mxu0 %v124
  %v302 = vpop.f32.mrf.mxu0
  %v303 = vadd.f32 %v160, %v302
  %v304 = vpop.f32.mrf.mxu0
  %v305 = vadd.f32 %v160, %v304
  %306 = vdwg.mxu0
  %307 = vmatpush.bf16.msra.mxu0 %v241
  %308 = vmatpush.bf16.msra.mxu0 %v240
  %309 = vmatpush.bf16.msra.mxu0 %v239
  %310 = vmatpush.bf16.msra.mxu0 %v238
  %311 = vmatpush.bf16.msra.mxu0 %v237
  %312 = vmatpush.bf16.msra.mxu0 %v236
  %313 = vmatpush.bf16.msra.mxu0 %v235
  %314 = vmatpush.bf16.msra.mxu0 %v234
  %315 = vmatmul.bf16.gmra.mxu0 %v111
  %v316 = vpop.f32.mrf.mxu0
  %v317 = vadd.f32 %v268, %v316
  %v318 = vpop.f32.mrf.mxu0
  %v319 = vadd.f32 %v270, %v318
  %320 = vmatmul.bf16.gmra.mxu0 %v113
  %v321 = vpop.f32.mrf.mxu0
  %v322 = vadd.f32 %v273, %v321
  %v323 = vpop.f32.mrf.mxu0
  %v324 = vadd.f32 %v275, %v323
  %325 = vmatmul.bf16.gmra.mxu0 %v115
  %v326 = vpop.f32.mrf.mxu0
  %v327 = vadd.f32 %v278, %v326
  %v328 = vpop.f32.mrf.mxu0
  %v329 = vadd.f32 %v280, %v328
  %330 = vmatmul.bf16.gmra.mxu0 %v117
  %v331 = vpop.f32.mrf.mxu0
  %v332 = vadd.f32 %v283, %v331
  %v333 = vpop.f32.mrf.mxu0
  %v334 = vadd.f32 %v285, %v333
  %335 = vmatmul.bf16.gmra.mxu0 %v119
  %v336 = vpop.f32.mrf.mxu0
  %v337 = vadd.f32 %v288, %v336
  %v338 = vpop.f32.mrf.mxu0
  %v339 = vadd.f32 %v290, %v338
  %340 = vmatmul.bf16.gmra.mxu0 %v121
  %v341 = vpop.f32.mrf.mxu0
  %v342 = vadd.f32 %v293, %v341
  %v343 = vpop.f32.mrf.mxu0
  %v344 = vadd.f32 %v295, %v343
  %345 = vmatmul.bf16.gmra.mxu0 %v123
  %v346 = vpop.f32.mrf.mxu0
  %v347 = vadd.f32 %v298, %v346
  %v348 = vpop.f32.mrf.mxu0
  %v349 = vadd.f32 %v300, %v348
  %350 = vmatmul.bf16.gmra.mxu0 %v125
  %v351 = vpop.f32.mrf.mxu0
  %v352 = vadd.f32 %v303, %v351
  %v353 = vpop.f32.mrf.mxu0
  %v354 = vadd.f32 %v305, %v353
  %355 = vdwg.mxu0
  %v356 = vmax.f32 %v317, 0.0
  %v357 = vmax.f32 %v319, 0.0
  %v358 = vmax.f32 %v322, 0.0
  %v359 = vmax.f32 %v324, 0.0
  %v360 = vmax.f32 %v327, 0.0
  %v361 = vmax.f32 %v329, 0.0
  %v362 = vmax.f32 %v332, 0.0
  %v363 = vmax.f32 %v334, 0.0
  %v364 = vmax.f32 %v337, 0.0
  %v365 = vmax.f32 %v339, 0.0
  %v366 = vmax.f32 %v342, 0.0
  %v367 = vmax.f32 %v344, 0.0
  %v368 = vmax.f32 %v347, 0.0
  %v369 = vmax.f32 %v349, 0.0
  %v370 = vmax.f32 %v352, 0.0
  %v371 = vmax.f32 %v354, 0.0
  %v372 = vpack.c.bf16 %v357, %v356
  %v373 = vpack.c.bf16 %v359, %v358
  %v374 = vpack.c.bf16 %v361, %v360
  %v375 = vpack.c.bf16 %v363, %v362
  %v376 = vpack.c.bf16 %v365, %v364
  %v377 = vpack.c.bf16 %v367, %v366
  %v378 = vpack.c.bf16 %v369, %v368
  %v379 = vpack.c.bf16 %v371, %v370
  %v380 = vld [vmem:[%s4] sm:$0xff]
  %v381 = vld [vmem:[%s4 + $0x8] sm:$0xff]
  %v382 = vld [vmem:[%s4 + $0x10] sm:$0xff]
  %v383 = vld [vmem:[%s4 + $0x18] sm:$0xff]
  %v384 = vld [vmem:[%s4 + $0x20] sm:$0xff]
  %v385 = vld [vmem:[%s4 + $0x28] sm:$0xff]
  %v386 = vld [vmem:[%s4 + $0x30] sm:$0xff]
  %v387 = vld [vmem:[%s4 + $0x38] sm:$0xff]
  %v388 = vld [vmem:[%s4 + $0x40] sm:$0xff]
  %v389 = vld [vmem:[%s4 + $0x48] sm:$0xff]
  %v390 = vld [vmem:[%s4 + $0x50] sm:$0xff]
  %v391 = vld [vmem:[%s4 + $0x58] sm:$0xff]
  %v392 = vld [vmem:[%s4 + $0x60] sm:$0xff]
  %v393 = vld [vmem:[%s4 + $0x68] sm:$0xff]
  %v394 = vld [vmem:[%s4 + $0x70] sm:$0xff]
  %v395 = vld [vmem:[%s4 + $0x78] sm:$0xff]
  %v396 = vld [vmem:[%s5] sm:$0x3]
  %v398 = vperm.slane %v396, 0
  %v399 = vperm.slane %v396, 1
  %v418 = vunpack.c.l.b16 %v380
  %v419 = vunpack.c.h.b16 %v380
  %v420 = vunpack.c.l.b16 %v381
  %v421 = vunpack.c.h.b16 %v381
  %v422 = vunpack.c.l.b16 %v382
  %v423 = vunpack.c.h.b16 %v382
  %v424 = vunpack.c.l.b16 %v383
  %v425 = vunpack.c.h.b16 %v383
  %v426 = vunpack.c.l.b16 %v384
  %v427 = vunpack.c.h.b16 %v384
  %v428 = vunpack.c.l.b16 %v385
  %v429 = vunpack.c.h.b16 %v385
  %v430 = vunpack.c.l.b16 %v386
  %v431 = vunpack.c.h.b16 %v386
  %v432 = vunpack.c.l.b16 %v387
  %v433 = vunpack.c.h.b16 %v387
  %v434 = vunpack.c.l.b16 %v388
  %v435 = vunpack.c.h.b16 %v388
  %v436 = vunpack.c.l.b16 %v389
  %v437 = vunpack.c.h.b16 %v389
  %v438 = vunpack.c.l.b16 %v390
  %v439 = vunpack.c.h.b16 %v390
  %v440 = vunpack.c.l.b16 %v391
  %v441 = vunpack.c.h.b16 %v391
  %v442 = vunpack.c.l.b16 %v392
  %v443 = vunpack.c.h.b16 %v392
  %v444 = vunpack.c.l.b16 %v393
  %v445 = vunpack.c.h.b16 %v393
  %v446 = vunpack.c.l.b16 %v394
  %v447 = vunpack.c.h.b16 %v394
  %v448 = vunpack.c.l.b16 %v395
  %v449 = vunpack.c.h.b16 %v395
  %v450 = vpack.c.b16 %v420, %v418
  %v451 = vpack.c.b16 %v421, %v419
  %v452 = vpack.c.b16 %v424, %v422
  %v453 = vpack.c.b16 %v425, %v423
  %v454 = vpack.c.b16 %v428, %v426
  %v455 = vpack.c.b16 %v429, %v427
  %v456 = vpack.c.b16 %v432, %v430
  %v457 = vpack.c.b16 %v433, %v431
  %v458 = vpack.c.b16 %v436, %v434
  %v459 = vpack.c.b16 %v437, %v435
  %v460 = vpack.c.b16 %v440, %v438
  %v461 = vpack.c.b16 %v441, %v439
  %v462 = vpack.c.b16 %v444, %v442
  %v463 = vpack.c.b16 %v445, %v443
  %v464 = vpack.c.b16 %v448, %v446
  %v465 = vpack.c.b16 %v449, %v447
  %482 = vmatpush.bf16.msra.mxu0 %v464
  %483 = vmatpush.bf16.msra.mxu0 %v462
  %484 = vmatpush.bf16.msra.mxu0 %v460
  %485 = vmatpush.bf16.msra.mxu0 %v458
  %486 = vmatpush.bf16.msra.mxu0 %v456
  %487 = vmatpush.bf16.msra.mxu0 %v454
  %488 = vmatpush.bf16.msra.mxu0 %v452
  %489 = vmatpush.bf16.msra.mxu0 %v450
  %490 = vmatmul.bf16.gmra.mxu0 %v372
  %v491 = vpop.f32.mrf.mxu0
  %v492 = vadd.f32 %v398, %v491
  %v493 = vpop.f32.mrf.mxu0
  %v494 = vadd.f32 %v398, %v493
  %495 = vmatmul.bf16.gmra.mxu0 %v373
  %v496 = vpop.f32.mrf.mxu0
  %v497 = vadd.f32 %v398, %v496
  %v498 = vpop.f32.mrf.mxu0
  %v499 = vadd.f32 %v398, %v498
  %500 = vmatmul.bf16.gmra.mxu0 %v374
  %v501 = vpop.f32.mrf.mxu0
  %v502 = vadd.f32 %v398, %v501
  %v503 = vpop.f32.mrf.mxu0
  %v504 = vadd.f32 %v398, %v503
  %505 = vmatmul.bf16.gmra.mxu0 %v375
  %v506 = vpop.f32.mrf.mxu0
  %v507 = vadd.f32 %v398, %v506
  %v508 = vpop.f32.mrf.mxu0
  %v509 = vadd.f32 %v398, %v508
  %510 = vmatmul.bf16.gmra.mxu0 %v376
  %v511 = vpop.f32.mrf.mxu0
  %v512 = vadd.f32 %v398, %v511
  %v513 = vpop.f32.mrf.mxu0
  %v514 = vadd.f32 %v398, %v513
  %515 = vmatmul.bf16.gmra.mxu0 %v377
  %v516 = vpop.f32.mrf.mxu0
  %v517 = vadd.f32 %v398, %v516
  %v518 = vpop.f32.mrf.mxu0
  %v519 = vadd.f32 %v398, %v518
  %520 = vmatmul.bf16.gmra.mxu0 %v378
  %v521 = vpop.f32.mrf.mxu0
  %v522 = vadd.f32 %v398, %v521
  %v523 = vpop.f32.mrf.mxu0
  %v524 = vadd.f32 %v398, %v523
  %525 = vmatmul.bf16.gmra.mxu0 %v379
  %v526 = vpop.f32.mrf.mxu0
  %v527 = vadd.f32 %v398, %v526
  %v528 = vpop.f32.mrf.mxu0
  %v529 = vadd.f32 %v398, %v528
  %530 = vdwg.mxu0
  %531 = vmatpush.bf16.msra.mxu0 %v465
  %532 = vmatpush.bf16.msra.mxu0 %v463
  %533 = vmatpush.bf16.msra.mxu0 %v461
  %534 = vmatpush.bf16.msra.mxu0 %v459
  %535 = vmatpush.bf16.msra.mxu0 %v457
  %536 = vmatpush.bf16.msra.mxu0 %v455
  %537 = vmatpush.bf16.msra.mxu0 %v453
  %538 = vmatpush.bf16.msra.mxu0 %v451
  %539 = vmatmul.bf16.gmra.mxu0 %v372
  %v540 = vpop.f32.mrf.mxu0
  %v541 = vadd.f32 %v399, %v540
  %v542 = vpop.f32.mrf.mxu0
  %v543 = vadd.f32 %v399, %v542
  %544 = vmatmul.bf16.gmra.mxu0 %v373
  %v545 = vpop.f32.mrf.mxu0
  %v546 = vadd.f32 %v399, %v545
  %v547 = vpop.f32.mrf.mxu0
  %v548 = vadd.f32 %v399, %v547
  %549 = vmatmul.bf16.gmra.mxu0 %v374
  %v550 = vpop.f32.mrf.mxu0
  %v551 = vadd.f32 %v399, %v550
  %v552 = vpop.f32.mrf.mxu0
  %v553 = vadd.f32 %v399, %v552
  %554 = vmatmul.bf16.gmra.mxu0 %v375
  %v555 = vpop.f32.mrf.mxu0
  %v556 = vadd.f32 %v399, %v555
  %v557 = vpop.f32.mrf.mxu0
  %v558 = vadd.f32 %v399, %v557
  %559 = vmatmul.bf16.gmra.mxu0 %v376
  %v560 = vpop.f32.mrf.mxu0
  %v561 = vadd.f32 %v399, %v560
  %v562 = vpop.f32.mrf.mxu0
  %v563 = vadd.f32 %v399, %v562
  %564 = vmatmul.bf16.gmra.mxu0 %v377
  %v565 = vpop.f32.mrf.mxu0
  %v566 = vadd.f32 %v399, %v565
  %v567 = vpop.f32.mrf.mxu0
  %v568 = vadd.f32 %v399, %v567
  %569 = vmatmul.bf16.gmra.mxu0 %v378
  %v570 = vpop.f32.mrf.mxu0
  %v571 = vadd.f32 %v399, %v570
  %v572 = vpop.f32.mrf.mxu0
  %v573 = vadd.f32 %v399, %v572
  %574 = vmatmul.bf16.gmra.mxu0 %v379
  %v575 = vpop.f32.mrf.mxu0
  %v576 = vadd.f32 %v399, %v575
  %v577 = vpop.f32.mrf.mxu0
  %v578 = vadd.f32 %v399, %v577
  %579 = vdwg.mxu0
  %v580 = vadd.f32 %v492, %v42
  %v581 = vadd.f32 %v541, %v78
  %v582 = vadd.f32 %v494, %v43
  %v583 = vadd.f32 %v543, %v79
  %v584 = vadd.f32 %v497, %v44
  %v585 = vadd.f32 %v546, %v80
  %v586 = vadd.f32 %v499, %v45
  %v587 = vadd.f32 %v548, %v81
  %v588 = vadd.f32 %v502, %v46
  %v589 = vadd.f32 %v551, %v82
  %v590 = vadd.f32 %v504, %v47
  %v591 = vadd.f32 %v553, %v83
  %v592 = vadd.f32 %v507, %v48
  %v593 = vadd.f32 %v556, %v84
  %v594 = vadd.f32 %v509, %v49
  %v595 = vadd.f32 %v558, %v85
  %v596 = vadd.f32 %v512, %v50
  %v597 = vadd.f32 %v561, %v86
  %v598 = vadd.f32 %v514, %v51
  %v599 = vadd.f32 %v563, %v87
  %v600 = vadd.f32 %v517, %v52
  %v601 = vadd.f32 %v566, %v88
  %v602 = vadd.f32 %v519, %v53
  %v603 = vadd.f32 %v568, %v89
  %v604 = vadd.f32 %v522, %v54
  %v605 = vadd.f32 %v571, %v90
  %v606 = vadd.f32 %v524, %v55
  %v607 = vadd.f32 %v573, %v91
  %v608 = vadd.f32 %v527, %v56
  %v609 = vadd.f32 %v576, %v92
  %v610 = vadd.f32 %v529, %v57
  %v611 = vadd.f32 %v578, %v93
  %v612 = vmax.f32 %v580, 0.0
  %v613 = vmax.f32 %v581, 0.0
  %v614 = vmax.f32 %v582, 0.0
  %v615 = vmax.f32 %v583, 0.0
  %v616 = vmax.f32 %v584, 0.0
  %v617 = vmax.f32 %v585, 0.0
  %v618 = vmax.f32 %v586, 0.0
  %v619 = vmax.f32 %v587, 0.0
  %v620 = vmax.f32 %v588, 0.0
  %v621 = vmax.f32 %v589, 0.0
  %v622 = vmax.f32 %v590, 0.0
  %v623 = vmax.f32 %v591, 0.0
  %v624 = vmax.f32 %v592, 0.0
  %v625 = vmax.f32 %v593, 0.0
  %v626 = vmax.f32 %v594, 0.0
  %v627 = vmax.f32 %v595, 0.0
  %v628 = vmax.f32 %v596, 0.0
  %v629 = vmax.f32 %v597, 0.0
  %v630 = vmax.f32 %v598, 0.0
  %v631 = vmax.f32 %v599, 0.0
  %v632 = vmax.f32 %v600, 0.0
  %v633 = vmax.f32 %v601, 0.0
  %v634 = vmax.f32 %v602, 0.0
  %v635 = vmax.f32 %v603, 0.0
  %v636 = vmax.f32 %v604, 0.0
  %v637 = vmax.f32 %v605, 0.0
  %v638 = vmax.f32 %v606, 0.0
  %v639 = vmax.f32 %v607, 0.0
  %v640 = vmax.f32 %v608, 0.0
  %v641 = vmax.f32 %v609, 0.0
  %v642 = vmax.f32 %v610, 0.0
  %v643 = vmax.f32 %v611, 0.0
  %v644 = vld [vmem:[%s6] sm:$0x3]
  %v646 = vperm.slane %v644, 0
  %v647 = vperm.slane %v644, 1
  %v650 = vmul.f32 %v612, %v646
  %v651 = vmul.f32 %v613, %v647
  %v652 = vmul.f32 %v614, %v646
  %v653 = vmul.f32 %v615, %v647
  %v654 = vmul.f32 %v616, %v646
  %v655 = vmul.f32 %v617, %v647
  %v656 = vmul.f32 %v618, %v646
  %v657 = vmul.f32 %v619, %v647
  %v658 = vmul.f32 %v620, %v646
  %v659 = vmul.f32 %v621, %v647
  %v660 = vmul.f32 %v622, %v646
  %v661 = vmul.f32 %v623, %v647
  %v662 = vmul.f32 %v624, %v646
  %v663 = vmul.f32 %v625, %v647
  %v664 = vmul.f32 %v626, %v646
  %v665 = vmul.f32 %v627, %v647
  %v666 = vmul.f32 %v628, %v646
  %v667 = vmul.f32 %v629, %v647
  %v668 = vmul.f32 %v630, %v646
  %v669 = vmul.f32 %v631, %v647
  %v670 = vmul.f32 %v632, %v646
  %v671 = vmul.f32 %v633, %v647
  %v672 = vmul.f32 %v634, %v646
  %v673 = vmul.f32 %v635, %v647
  %v674 = vmul.f32 %v636, %v646
  %v675 = vmul.f32 %v637, %v647
  %v676 = vmul.f32 %v638, %v646
  %v677 = vmul.f32 %v639, %v647
  %v678 = vmul.f32 %v640, %v646
  %v679 = vmul.f32 %v641, %v647
  %v680 = vmul.f32 %v642, %v646
  %v681 = vmul.f32 %v643, %v647
  %v682 = vadd.f32 %v650, %v651
  %683 = vadd.xlane.f32.xlu0 %v682
  %v684 = vpop.xlane.xlu0 %683
  %v685 = vadd.f32 %v652, %v653
  %686 = vadd.xlane.f32.xlu0 %v685
  %v687 = vpop.xlane.xlu0 %686
  %v688 = vadd.f32 %v654, %v655
  %689 = vadd.xlane.f32.xlu0 %v688
  %v690 = vpop.xlane.xlu0 %689
  %v691 = vadd.f32 %v656, %v657
  %692 = vadd.xlane.f32.xlu0 %v691
  %v693 = vpop.xlane.xlu0 %692
  %v694 = vadd.f32 %v658, %v659
  %695 = vadd.xlane.f32.xlu0 %v694
  %v696 = vpop.xlane.xlu0 %695
  %v697 = vadd.f32 %v660, %v661
  %698 = vadd.xlane.f32.xlu0 %v697
  %v699 = vpop.xlane.xlu0 %698
  %v700 = vadd.f32 %v662, %v663
  %701 = vadd.xlane.f32.xlu0 %v700
  %v702 = vpop.xlane.xlu0 %701
  %v703 = vadd.f32 %v664, %v665
  %704 = vadd.xlane.f32.xlu0 %v703
  %v705 = vpop.xlane.xlu0 %704
  %v706 = vadd.f32 %v666, %v667
  %707 = vadd.xlane.f32.xlu0 %v706
  %v708 = vpop.xlane.xlu0 %707
  %v709 = vadd.f32 %v668, %v669
  %710 = vadd.xlane.f32.xlu0 %v709
  %v711 = vpop.xlane.xlu0 %710
  %v712 = vadd.f32 %v670, %v671
  %713 = vadd.xlane.f32.xlu0 %v712
  %v714 = vpop.xlane.xlu0 %713
  %v715 = vadd.f32 %v672, %v673
  %716 = vadd.xlane.f32.xlu0 %v715
  %v717 = vpop.xlane.xlu0 %716
  %v718 = vadd.f32 %v674, %v675
  %719 = vadd.xlane.f32.xlu0 %v718
  %v720 = vpop.xlane.xlu0 %719
  %v721 = vadd.f32 %v676, %v677
  %722 = vadd.xlane.f32.xlu0 %v721
  %v723 = vpop.xlane.xlu0 %722
  %v724 = vadd.f32 %v678, %v679
  %725 = vadd.xlane.f32.xlu0 %v724
  %v726 = vpop.xlane.xlu0 %725
  %v727 = vadd.f32 %v680, %v681
  %728 = vadd.xlane.f32.xlu0 %v727
  %v729 = vpop.xlane.xlu0 %728
  %v730 = vrot.slane %v684, 4
  %v731 = vmax.f32 %v684, %v730
  %v732 = vrot.slane %v731, 2
  %v733 = vmax.f32 %v731, %v732
  %v734 = vrot.slane %v733, 1
  %v735 = vmax.f32 %v733, %v734
  %v736 = vrot.slane %v687, 4
  %v737 = vmax.f32 %v687, %v736
  %v738 = vrot.slane %v737, 2
  %v739 = vmax.f32 %v737, %v738
  %v740 = vrot.slane %v739, 1
  %v741 = vmax.f32 %v739, %v740
  %v742 = vrot.slane %v690, 4
  %v743 = vmax.f32 %v690, %v742
  %v744 = vrot.slane %v743, 2
  %v745 = vmax.f32 %v743, %v744
  %v746 = vrot.slane %v745, 1
  %v747 = vmax.f32 %v745, %v746
  %v748 = vrot.slane %v693, 4
  %v749 = vmax.f32 %v693, %v748
  %v750 = vrot.slane %v749, 2
  %v751 = vmax.f32 %v749, %v750
  %v752 = vrot.slane %v751, 1
  %v753 = vmax.f32 %v751, %v752
  %v754 = vrot.slane %v696, 4
  %v755 = vmax.f32 %v696, %v754
  %v756 = vrot.slane %v755, 2
  %v757 = vmax.f32 %v755, %v756
  %v758 = vrot.slane %v757, 1
  %v759 = vmax.f32 %v757, %v758
  %v760 = vrot.slane %v699, 4
  %v761 = vmax.f32 %v699, %v760
  %v762 = vrot.slane %v761, 2
  %v763 = vmax.f32 %v761, %v762
  %v764 = vrot.slane %v763, 1
  %v765 = vmax.f32 %v763, %v764
  %v766 = vrot.slane %v702, 4
  %v767 = vmax.f32 %v702, %v766
  %v768 = vrot.slane %v767, 2
  %v769 = vmax.f32 %v767, %v768
  %v770 = vrot.slane %v769, 1
  %v771 = vmax.f32 %v769, %v770
  %v772 = vrot.slane %v705, 4
  %v773 = vmax.f32 %v705, %v772
  %v774 = vrot.slane %v773, 2
  %v775 = vmax.f32 %v773, %v774
  %v776 = vrot.slane %v775, 1
  %v777 = vmax.f32 %v775, %v776
  %v778 = vrot.slane %v708, 4
  %v779 = vmax.f32 %v708, %v778
  %v780 = vrot.slane %v779, 2
  %v781 = vmax.f32 %v779, %v780
  %v782 = vrot.slane %v781, 1
  %v783 = vmax.f32 %v781, %v782
  %v784 = vrot.slane %v711, 4
  %v785 = vmax.f32 %v711, %v784
  %v786 = vrot.slane %v785, 2
  %v787 = vmax.f32 %v785, %v786
  %v788 = vrot.slane %v787, 1
  %v789 = vmax.f32 %v787, %v788
  %v790 = vrot.slane %v714, 4
  %v791 = vmax.f32 %v714, %v790
  %v792 = vrot.slane %v791, 2
  %v793 = vmax.f32 %v791, %v792
  %v794 = vrot.slane %v793, 1
  %v795 = vmax.f32 %v793, %v794
  %v796 = vrot.slane %v717, 4
  %v797 = vmax.f32 %v717, %v796
  %v798 = vrot.slane %v797, 2
  %v799 = vmax.f32 %v797, %v798
  %v800 = vrot.slane %v799, 1
  %v801 = vmax.f32 %v799, %v800
  %v802 = vrot.slane %v720, 4
  %v803 = vmax.f32 %v720, %v802
  %v804 = vrot.slane %v803, 2
  %v805 = vmax.f32 %v803, %v804
  %v806 = vrot.slane %v805, 1
  %v807 = vmax.f32 %v805, %v806
  %v808 = vrot.slane %v723, 4
  %v809 = vmax.f32 %v723, %v808
  %v810 = vrot.slane %v809, 2
  %v811 = vmax.f32 %v809, %v810
  %v812 = vrot.slane %v811, 1
  %v813 = vmax.f32 %v811, %v812
  %v814 = vrot.slane %v726, 4
  %v815 = vmax.f32 %v726, %v814
  %v816 = vrot.slane %v815, 2
  %v817 = vmax.f32 %v815, %v816
  %v818 = vrot.slane %v817, 1
  %v819 = vmax.f32 %v817, %v818
  %v820 = vrot.slane %v729, 4
  %v821 = vmax.f32 %v729, %v820
  %v822 = vrot.slane %v821, 2
  %v823 = vmax.f32 %v821, %v822
  %v824 = vrot.slane %v823, 1
  %v825 = vmax.f32 %v823, %v824
  %v826 = vsub.f32 %v684, %v735
  %v827 = vsub.f32 %v687, %v741
  %v828 = vsub.f32 %v690, %v747
  %v829 = vsub.f32 %v693, %v753
  %v830 = vsub.f32 %v696, %v759
  %v831 = vsub.f32 %v699, %v765
  %v832 = vsub.f32 %v702, %v771
  %v833 = vsub.f32 %v705, %v777
  %v834 = vsub.f32 %v708, %v783
  %v835 = vsub.f32 %v711, %v789
  %v836 = vsub.f32 %v714, %v795
  %v837 = vsub.f32 %v717, %v801
  %v838 = vsub.f32 %v720, %v807
  %v839 = vsub.f32 %v723, %v813
  %v840 = vsub.f32 %v726, %v819
  %v841 = vsub.f32 %v729, %v825
  %v842 = vmul.f32 %v826, 1.442695
  %v843 = vpow.pop %v842
  %v844 = vmul.f32 %v827, 1.442695
  %v845 = vpow.pop %v844
  %v846 = vmul.f32 %v828, 1.442695
  %v847 = vpow.pop %v846
  %v848 = vmul.f32 %v829, 1.442695
  %v849 = vpow.pop %v848
  %v850 = vmul.f32 %v830, 1.442695
  %v851 = vpow.pop %v850
  %v852 = vmul.f32 %v831, 1.442695
  %v853 = vpow.pop %v852
  %v854 = vmul.f32 %v832, 1.442695
  %v855 = vpow.pop %v854
  %v856 = vmul.f32 %v833, 1.442695
  %v857 = vpow.pop %v856
  %v858 = vmul.f32 %v834, 1.442695
  %v859 = vpow.pop %v858
  %v860 = vmul.f32 %v835, 1.442695
  %v861 = vpow.pop %v860
  %v862 = vmul.f32 %v836, 1.442695
  %v863 = vpow.pop %v862
  %v864 = vmul.f32 %v837, 1.442695
  %v865 = vpow.pop %v864
  %v866 = vmul.f32 %v838, 1.442695
  %v867 = vpow.pop %v866
  %v868 = vmul.f32 %v839, 1.442695
  %v869 = vpow.pop %v868
  %v870 = vmul.f32 %v840, 1.442695
  %v871 = vpow.pop %v870
  %v872 = vmul.f32 %v841, 1.442695
  %v873 = vpow.pop %v872
  %v874 = vrot.slane %v843, 4
  %v875 = vadd.f32 %v843, %v874
  %v876 = vrot.slane %v875, 2
  %v877 = vadd.f32 %v875, %v876
  %v878 = vrot.slane %v877, 1
  %v879 = vadd.f32 %v877, %v878
  %v880 = vrot.slane %v845, 4
  %v881 = vadd.f32 %v845, %v880
  %v882 = vrot.slane %v881, 2
  %v883 = vadd.f32 %v881, %v882
  %v884 = vrot.slane %v883, 1
  %v885 = vadd.f32 %v883, %v884
  %v886 = vrot.slane %v847, 4
  %v887 = vadd.f32 %v847, %v886
  %v888 = vrot.slane %v887, 2
  %v889 = vadd.f32 %v887, %v888
  %v890 = vrot.slane %v889, 1
  %v891 = vadd.f32 %v889, %v890
  %v892 = vrot.slane %v849, 4
  %v893 = vadd.f32 %v849, %v892
  %v894 = vrot.slane %v893, 2
  %v895 = vadd.f32 %v893, %v894
  %v896 = vrot.slane %v895, 1
  %v897 = vadd.f32 %v895, %v896
  %v898 = vrot.slane %v851, 4
  %v899 = vadd.f32 %v851, %v898
  %v900 = vrot.slane %v899, 2
  %v901 = vadd.f32 %v899, %v900
  %v902 = vrot.slane %v901, 1
  %v903 = vadd.f32 %v901, %v902
  %v904 = vrot.slane %v853, 4
  %v905 = vadd.f32 %v853, %v904
  %v906 = vrot.slane %v905, 2
  %v907 = vadd.f32 %v905, %v906
  %v908 = vrot.slane %v907, 1
  %v909 = vadd.f32 %v907, %v908
  %v910 = vrot.slane %v855, 4
  %v911 = vadd.f32 %v855, %v910
  %v912 = vrot.slane %v911, 2
  %v913 = vadd.f32 %v911, %v912
  %v914 = vrot.slane %v913, 1
  %v915 = vadd.f32 %v913, %v914
  %v916 = vrot.slane %v857, 4
  %v917 = vadd.f32 %v857, %v916
  %v918 = vrot.slane %v917, 2
  %v919 = vadd.f32 %v917, %v918
  %v920 = vrot.slane %v919, 1
  %v921 = vadd.f32 %v919, %v920
  %v922 = vrot.slane %v859, 4
  %v923 = vadd.f32 %v859, %v922
  %v924 = vrot.slane %v923, 2
  %v925 = vadd.f32 %v923, %v924
  %v926 = vrot.slane %v925, 1
  %v927 = vadd.f32 %v925, %v926
  %v928 = vrot.slane %v861, 4
  %v929 = vadd.f32 %v861, %v928
  %v930 = vrot.slane %v929, 2
  %v931 = vadd.f32 %v929, %v930
  %v932 = vrot.slane %v931, 1
  %v933 = vadd.f32 %v931, %v932
  %v934 = vrot.slane %v863, 4
  %v935 = vadd.f32 %v863, %v934
  %v936 = vrot.slane %v935, 2
  %v937 = vadd.f32 %v935, %v936
  %v938 = vrot.slane %v937, 1
  %v939 = vadd.f32 %v937, %v938
  %v940 = vrot.slane %v865, 4
  %v941 = vadd.f32 %v865, %v940
  %v942 = vrot.slane %v941, 2
  %v943 = vadd.f32 %v941, %v942
  %v944 = vrot.slane %v943, 1
  %v945 = vadd.f32 %v943, %v944
  %v946 = vrot.slane %v867, 4
  %v947 = vadd.f32 %v867, %v946
  %v948 = vrot.slane %v947, 2
  %v949 = vadd.f32 %v947, %v948
  %v950 = vrot.slane %v949, 1
  %v951 = vadd.f32 %v949, %v950
  %v952 = vrot.slane %v869, 4
  %v953 = vadd.f32 %v869, %v952
  %v954 = vrot.slane %v953, 2
  %v955 = vadd.f32 %v953, %v954
  %v956 = vrot.slane %v955, 1
  %v957 = vadd.f32 %v955, %v956
  %v958 = vrot.slane %v871, 4
  %v959 = vadd.f32 %v871, %v958
  %v960 = vrot.slane %v959, 2
  %v961 = vadd.f32 %v959, %v960
  %v962 = vrot.slane %v961, 1
  %v963 = vadd.f32 %v961, %v962
  %v964 = vrot.slane %v873, 4
  %v965 = vadd.f32 %v873, %v964
  %v966 = vrot.slane %v965, 2
  %v967 = vadd.f32 %v965, %v966
  %v968 = vrot.slane %v967, 1
  %v969 = vadd.f32 %v967, %v968
  %v970 = vrcp.pop %v879
  %v971 = vrcp.pop %v885
  %v972 = vrcp.pop %v891
  %v973 = vrcp.pop %v897
  %v974 = vrcp.pop %v903
  %v975 = vrcp.pop %v909
  %v976 = vrcp.pop %v915
  %v977 = vrcp.pop %v921
  %v978 = vrcp.pop %v927
  %v979 = vrcp.pop %v933
  %v980 = vrcp.pop %v939
  %v981 = vrcp.pop %v945
  %v982 = vrcp.pop %v951
  %v983 = vrcp.pop %v957
  %v984 = vrcp.pop %v963
  %v985 = vrcp.pop %v969
  %v986 = vmul.f32 %v843, %v970
  %v987 = vmul.f32 %v845, %v971
  %v988 = vmul.f32 %v847, %v972
  %v989 = vmul.f32 %v849, %v973
  %v990 = vmul.f32 %v851, %v974
  %v991 = vmul.f32 %v853, %v975
  %v992 = vmul.f32 %v855, %v976
  %v993 = vmul.f32 %v857, %v977
  %v994 = vmul.f32 %v859, %v978
  %v995 = vmul.f32 %v861, %v979
  %v996 = vmul.f32 %v863, %v980
  %v997 = vmul.f32 %v865, %v981
  %v998 = vmul.f32 %v867, %v982
  %v999 = vmul.f32 %v869, %v983
  %v1000 = vmul.f32 %v871, %v984
  %v1001 = vmul.f32 %v873, %v985
  %v1002 = vmul.f32 %v986, %v612
  %v1003 = vmul.f32 %v986, %v613
  %v1004 = vmul.f32 %v987, %v614
  %v1005 = vmul.f32 %v987, %v615
  %v1006 = vmul.f32 %v988, %v616
  %v1007 = vmul.f32 %v988, %v617
  %v1008 = vmul.f32 %v989, %v618
  %v1009 = vmul.f32 %v989, %v619
  %v1010 = vmul.f32 %v990, %v620
  %v1011 = vmul.f32 %v990, %v621
  %v1012 = vmul.f32 %v991, %v622
  %v1013 = vmul.f32 %v991, %v623
  %v1014 = vmul.f32 %v992, %v624
  %v1015 = vmul.f32 %v992, %v625
  %v1016 = vmul.f32 %v993, %v626
  %v1017 = vmul.f32 %v993, %v627
  %v1018 = vmul.f32 %v994, %v628
  %v1019 = vmul.f32 %v994, %v629
  %v1020 = vmul.f32 %v995, %v630
  %v1021 = vmul.f32 %v995, %v631
  %v1022 = vmul.f32 %v996, %v632
  %v1023 = vmul.f32 %v996, %v633
  %v1024 = vmul.f32 %v997, %v634
  %v1025 = vmul.f32 %v997, %v635
  %v1026 = vmul.f32 %v998, %v636
  %v1027 = vmul.f32 %v998, %v637
  %v1028 = vmul.f32 %v999, %v638
  %v1029 = vmul.f32 %v999, %v639
  %v1030 = vmul.f32 %v1000, %v640
  %v1031 = vmul.f32 %v1000, %v641
  %v1032 = vmul.f32 %v1001, %v642
  %v1033 = vmul.f32 %v1001, %v643
  %v1034 = vrot.slane %v1002, 4
  %v1035 = vadd.f32 %v1002, %v1034
  %v1036 = vrot.slane %v1035, 2
  %v1037 = vadd.f32 %v1035, %v1036
  %v1038 = vrot.slane %v1037, 1
  %v1039 = vadd.f32 %v1037, %v1038
  %v1040 = vrot.slane %v1003, 4
  %v1041 = vadd.f32 %v1003, %v1040
  %v1042 = vrot.slane %v1041, 2
  %v1043 = vadd.f32 %v1041, %v1042
  %v1044 = vrot.slane %v1043, 1
  %v1045 = vadd.f32 %v1043, %v1044
  %v1046 = vrot.slane %v1004, 4
  %v1047 = vadd.f32 %v1004, %v1046
  %v1048 = vrot.slane %v1047, 2
  %v1049 = vadd.f32 %v1047, %v1048
  %v1050 = vrot.slane %v1049, 1
  %v1051 = vadd.f32 %v1049, %v1050
  %v1052 = vrot.slane %v1005, 4
  %v1053 = vadd.f32 %v1005, %v1052
  %v1054 = vrot.slane %v1053, 2
  %v1055 = vadd.f32 %v1053, %v1054
  %v1056 = vrot.slane %v1055, 1
  %v1057 = vadd.f32 %v1055, %v1056
  %v1058 = vrot.slane %v1006, 4
  %v1059 = vadd.f32 %v1006, %v1058
  %v1060 = vrot.slane %v1059, 2
  %v1061 = vadd.f32 %v1059, %v1060
  %v1062 = vrot.slane %v1061, 1
  %v1063 = vadd.f32 %v1061, %v1062
  %v1064 = vrot.slane %v1007, 4
  %v1065 = vadd.f32 %v1007, %v1064
  %v1066 = vrot.slane %v1065, 2
  %v1067 = vadd.f32 %v1065, %v1066
  %v1068 = vrot.slane %v1067, 1
  %v1069 = vadd.f32 %v1067, %v1068
  %v1070 = vrot.slane %v1008, 4
  %v1071 = vadd.f32 %v1008, %v1070
  %v1072 = vrot.slane %v1071, 2
  %v1073 = vadd.f32 %v1071, %v1072
  %v1074 = vrot.slane %v1073, 1
  %v1075 = vadd.f32 %v1073, %v1074
  %v1076 = vrot.slane %v1009, 4
  %v1077 = vadd.f32 %v1009, %v1076
  %v1078 = vrot.slane %v1077, 2
  %v1079 = vadd.f32 %v1077, %v1078
  %v1080 = vrot.slane %v1079, 1
  %v1081 = vadd.f32 %v1079, %v1080
  %v1082 = vrot.slane %v1010, 4
  %v1083 = vadd.f32 %v1010, %v1082
  %v1084 = vrot.slane %v1083, 2
  %v1085 = vadd.f32 %v1083, %v1084
  %v1086 = vrot.slane %v1085, 1
  %v1087 = vadd.f32 %v1085, %v1086
  %v1088 = vrot.slane %v1011, 4
  %v1089 = vadd.f32 %v1011, %v1088
  %v1090 = vrot.slane %v1089, 2
  %v1091 = vadd.f32 %v1089, %v1090
  %v1092 = vrot.slane %v1091, 1
  %v1093 = vadd.f32 %v1091, %v1092
  %v1094 = vrot.slane %v1012, 4
  %v1095 = vadd.f32 %v1012, %v1094
  %v1096 = vrot.slane %v1095, 2
  %v1097 = vadd.f32 %v1095, %v1096
  %v1098 = vrot.slane %v1097, 1
  %v1099 = vadd.f32 %v1097, %v1098
  %v1100 = vrot.slane %v1013, 4
  %v1101 = vadd.f32 %v1013, %v1100
  %v1102 = vrot.slane %v1101, 2
  %v1103 = vadd.f32 %v1101, %v1102
  %v1104 = vrot.slane %v1103, 1
  %v1105 = vadd.f32 %v1103, %v1104
  %v1106 = vrot.slane %v1014, 4
  %v1107 = vadd.f32 %v1014, %v1106
  %v1108 = vrot.slane %v1107, 2
  %v1109 = vadd.f32 %v1107, %v1108
  %v1110 = vrot.slane %v1109, 1
  %v1111 = vadd.f32 %v1109, %v1110
  %v1112 = vrot.slane %v1015, 4
  %v1113 = vadd.f32 %v1015, %v1112
  %v1114 = vrot.slane %v1113, 2
  %v1115 = vadd.f32 %v1113, %v1114
  %v1116 = vrot.slane %v1115, 1
  %v1117 = vadd.f32 %v1115, %v1116
  %v1118 = vrot.slane %v1016, 4
  %v1119 = vadd.f32 %v1016, %v1118
  %v1120 = vrot.slane %v1119, 2
  %v1121 = vadd.f32 %v1119, %v1120
  %v1122 = vrot.slane %v1121, 1
  %v1123 = vadd.f32 %v1121, %v1122
  %v1124 = vrot.slane %v1017, 4
  %v1125 = vadd.f32 %v1017, %v1124
  %v1126 = vrot.slane %v1125, 2
  %v1127 = vadd.f32 %v1125, %v1126
  %v1128 = vrot.slane %v1127, 1
  %v1129 = vadd.f32 %v1127, %v1128
  %v1130 = vrot.slane %v1018, 4
  %v1131 = vadd.f32 %v1018, %v1130
  %v1132 = vrot.slane %v1131, 2
  %v1133 = vadd.f32 %v1131, %v1132
  %v1134 = vrot.slane %v1133, 1
  %v1135 = vadd.f32 %v1133, %v1134
  %v1136 = vrot.slane %v1019, 4
  %v1137 = vadd.f32 %v1019, %v1136
  %v1138 = vrot.slane %v1137, 2
  %v1139 = vadd.f32 %v1137, %v1138
  %v1140 = vrot.slane %v1139, 1
  %v1141 = vadd.f32 %v1139, %v1140
  %v1142 = vrot.slane %v1020, 4
  %v1143 = vadd.f32 %v1020, %v1142
  %v1144 = vrot.slane %v1143, 2
  %v1145 = vadd.f32 %v1143, %v1144
  %v1146 = vrot.slane %v1145, 1
  %v1147 = vadd.f32 %v1145, %v1146
  %v1148 = vrot.slane %v1021, 4
  %v1149 = vadd.f32 %v1021, %v1148
  %v1150 = vrot.slane %v1149, 2
  %v1151 = vadd.f32 %v1149, %v1150
  %v1152 = vrot.slane %v1151, 1
  %v1153 = vadd.f32 %v1151, %v1152
  %v1154 = vrot.slane %v1022, 4
  %v1155 = vadd.f32 %v1022, %v1154
  %v1156 = vrot.slane %v1155, 2
  %v1157 = vadd.f32 %v1155, %v1156
  %v1158 = vrot.slane %v1157, 1
  %v1159 = vadd.f32 %v1157, %v1158
  %v1160 = vrot.slane %v1023, 4
  %v1161 = vadd.f32 %v1023, %v1160
  %v1162 = vrot.slane %v1161, 2
  %v1163 = vadd.f32 %v1161, %v1162
  %v1164 = vrot.slane %v1163, 1
  %v1165 = vadd.f32 %v1163, %v1164
  %v1166 = vrot.slane %v1024, 4
  %v1167 = vadd.f32 %v1024, %v1166
  %v1168 = vrot.slane %v1167, 2
  %v1169 = vadd.f32 %v1167, %v1168
  %v1170 = vrot.slane %v1169, 1
  %v1171 = vadd.f32 %v1169, %v1170
  %v1172 = vrot.slane %v1025, 4
  %v1173 = vadd.f32 %v1025, %v1172
  %v1174 = vrot.slane %v1173, 2
  %v1175 = vadd.f32 %v1173, %v1174
  %v1176 = vrot.slane %v1175, 1
  %v1177 = vadd.f32 %v1175, %v1176
  %v1178 = vrot.slane %v1026, 4
  %v1179 = vadd.f32 %v1026, %v1178
  %v1180 = vrot.slane %v1179, 2
  %v1181 = vadd.f32 %v1179, %v1180
  %v1182 = vrot.slane %v1181, 1
  %v1183 = vadd.f32 %v1181, %v1182
  %v1184 = vrot.slane %v1027, 4
  %v1185 = vadd.f32 %v1027, %v1184
  %v1186 = vrot.slane %v1185, 2
  %v1187 = vadd.f32 %v1185, %v1186
  %v1188 = vrot.slane %v1187, 1
  %v1189 = vadd.f32 %v1187, %v1188
  %v1190 = vrot.slane %v1028, 4
  %v1191 = vadd.f32 %v1028, %v1190
  %v1192 = vrot.slane %v1191, 2
  %v1193 = vadd.f32 %v1191, %v1192
  %v1194 = vrot.slane %v1193, 1
  %v1195 = vadd.f32 %v1193, %v1194
  %v1196 = vrot.slane %v1029, 4
  %v1197 = vadd.f32 %v1029, %v1196
  %v1198 = vrot.slane %v1197, 2
  %v1199 = vadd.f32 %v1197, %v1198
  %v1200 = vrot.slane %v1199, 1
  %v1201 = vadd.f32 %v1199, %v1200
  %v1202 = vrot.slane %v1030, 4
  %v1203 = vadd.f32 %v1030, %v1202
  %v1204 = vrot.slane %v1203, 2
  %v1205 = vadd.f32 %v1203, %v1204
  %v1206 = vrot.slane %v1205, 1
  %v1207 = vadd.f32 %v1205, %v1206
  %v1208 = vrot.slane %v1031, 4
  %v1209 = vadd.f32 %v1031, %v1208
  %v1210 = vrot.slane %v1209, 2
  %v1211 = vadd.f32 %v1209, %v1210
  %v1212 = vrot.slane %v1211, 1
  %v1213 = vadd.f32 %v1211, %v1212
  %v1214 = vrot.slane %v1032, 4
  %v1215 = vadd.f32 %v1032, %v1214
  %v1216 = vrot.slane %v1215, 2
  %v1217 = vadd.f32 %v1215, %v1216
  %v1218 = vrot.slane %v1217, 1
  %v1219 = vadd.f32 %v1217, %v1218
  %v1220 = vrot.slane %v1033, 4
  %v1221 = vadd.f32 %v1033, %v1220
  %v1222 = vrot.slane %v1221, 2
  %v1223 = vadd.f32 %v1221, %v1222
  %v1224 = vrot.slane %v1223, 1
  %v1225 = vadd.f32 %v1223, %v1224
  %v1226 = vpack.c.bf16 %v1045, %v1039
  %v1227 = vpack.c.bf16 %v1057, %v1051
  %v1228 = vpack.c.bf16 %v1069, %v1063
  %v1229 = vpack.c.bf16 %v1081, %v1075
  %v1230 = vpack.c.bf16 %v1093, %v1087
  %v1231 = vpack.c.bf16 %v1105, %v1099
  %v1232 = vpack.c.bf16 %v1117, %v1111
  %v1233 = vpack.c.bf16 %v1129, %v1123
  %v1234 = vpack.c.bf16 %v1141, %v1135
  %v1235 = vpack.c.bf16 %v1153, %v1147
  %v1236 = vpack.c.bf16 %v1165, %v1159
  %v1237 = vpack.c.bf16 %v1177, %v1171
  %v1238 = vpack.c.bf16 %v1189, %v1183
  %v1239 = vpack.c.bf16 %v1201, %v1195
  %v1240 = vpack.c.bf16 %v1213, %v1207
  %v1241 = vpack.c.bf16 %v1225, %v1219
  %v1258 = vunpack.c.l.b16 %v1226
  %v1259 = vunpack.c.h.b16 %v1226
  %v1260 = vunpack.c.l.b16 %v1227
  %v1261 = vunpack.c.h.b16 %v1227
  %v1262 = vunpack.c.l.b16 %v1228
  %v1263 = vunpack.c.h.b16 %v1228
  %v1264 = vunpack.c.l.b16 %v1229
  %v1265 = vunpack.c.h.b16 %v1229
  %v1266 = vunpack.c.l.b16 %v1230
  %v1267 = vunpack.c.h.b16 %v1230
  %v1268 = vunpack.c.l.b16 %v1231
  %v1269 = vunpack.c.h.b16 %v1231
  %v1270 = vunpack.c.l.b16 %v1232
  %v1271 = vunpack.c.h.b16 %v1232
  %v1272 = vunpack.c.l.b16 %v1233
  %v1273 = vunpack.c.h.b16 %v1233
  %v1274 = vunpack.c.l.b16 %v1234
  %v1275 = vunpack.c.h.b16 %v1234
  %v1276 = vunpack.c.l.b16 %v1235
  %v1277 = vunpack.c.h.b16 %v1235
  %v1278 = vunpack.c.l.b16 %v1236
  %v1279 = vunpack.c.h.b16 %v1236
  %v1280 = vunpack.c.l.b16 %v1237
  %v1281 = vunpack.c.h.b16 %v1237
  %v1282 = vunpack.c.l.b16 %v1238
  %v1283 = vunpack.c.h.b16 %v1238
  %v1284 = vunpack.c.l.b16 %v1239
  %v1285 = vunpack.c.h.b16 %v1239
  %v1286 = vunpack.c.l.b16 %v1240
  %v1287 = vunpack.c.h.b16 %v1240
  %v1288 = vunpack.c.l.b16 %v1241
  %v1289 = vunpack.c.h.b16 %v1241
  %vm1290 = vcmask 1041409
  %v1291 = vsel %vm1290, %v1260, %v1258
  %vm1292 = vcmask 1042434
  %v1293 = vsel %vm1292, %v1262, %v1291
  %vm1294 = vcmask 1043459
  %v1295 = vsel %vm1294, %v1264, %v1293
  %vm1296 = vcmask 1044484
  %v1297 = vsel %vm1296, %v1266, %v1295
  %vm1298 = vcmask 1045509
  %v1299 = vsel %vm1298, %v1268, %v1297
  %vm1300 = vcmask 1046534
  %v1301 = vsel %vm1300, %v1270, %v1299
  %vm1302 = vcmask 1047559
  %v1303 = vsel %vm1302, %v1272, %v1301
  %v1304 = vsel %vm1290, %v1261, %v1259
  %v1305 = vsel %vm1292, %v1263, %v1304
  %v1306 = vsel %vm1294, %v1265, %v1305
  %v1307 = vsel %vm1296, %v1267, %v1306
  %v1308 = vsel %vm1298, %v1269, %v1307
  %v1309 = vsel %vm1300, %v1271, %v1308
  %v1310 = vsel %vm1302, %v1273, %v1309
  %v1311 = vsel %vm1290, %v1276, %v1274
  %v1312 = vsel %vm1292, %v1278, %v1311
  %v1313 = vsel %vm1294, %v1280, %v1312
  %v1314 = vsel %vm1296, %v1282, %v1313
  %v1315 = vsel %vm1298, %v1284, %v1314
  %v1316 = vsel %vm1300, %v1286, %v1315
  %v1317 = vsel %vm1302, %v1288, %v1316
  %v1318 = vsel %vm1290, %v1277, %v1275
  %v1319 = vsel %vm1292, %v1279, %v1318
  %v1320 = vsel %vm1294, %v1281, %v1319
  %v1321 = vsel %vm1296, %v1283, %v1320
  %v1322 = vsel %vm1298, %v1285, %v1321
  %v1323 = vsel %vm1300, %v1287, %v1322
  %v1324 = vsel %vm1302, %v1289, %v1323
  %v1325 = vpack.c.b16 %v1310, %v1303
  %v1326 = vpack.c.b16 %v1324, %v1317
  %1329 = vst [vmem:[%s7] sm:$0xff] %v1325
  %1330 = vst [vmem:[%s7 + $0x8] sm:$0xff] %v1326
  // Predicated region
  $region30: #{eventmamba_forward.13} parent=0 // pred_check
    _
  $region31: #{eventmamba_forward.13} parent=0 // pred_check_branch
    %1332 = sbr.rel (0) target = $region33
  $region32: #{eventmamba_forward.13} parent=0 // pred_region
    _
  $region33: #{eventmamba_forward.13} parent=0 // pred_fallthru
    _
  // Predicated region
  $region34: #{eventmamba_forward.13} parent=0 // pred_check
    _
  $region35: #{eventmamba_forward.13} parent=0 // pred_check_branch
    %1334 = sbr.rel (0) target = $region37
  $region36: #{eventmamba_forward.13} parent=0 // pred_region
    _
  $region37: #{eventmamba_forward.13} parent=0 // pred_fallthru
    _

// kernel: eventmamba_forward.15
$region0: #{eventmamba_forward.15}
  #allocation0 [shape = 'u32[]', space=smem, size = 0x4, offset = 0x4, fixed_abs, tag = 'smem constant byte address 0x4 - core index']
  #allocation1 [shape = 'u32[72,128]{1,0:T(1,128)}', space=vmem, size = 0x9000, scoped, tag = 'internal scratch']
  %s0 = inlined_call_operand.vmem [shape: bf16[2,8,256], index: 0, kind: input, shape index: {}]
  %s1 = inlined_call_operand.vmem [shape: f32[1,256], index: 1, kind: input, shape index: {}]
  %s2 = inlined_call_operand.vmem [shape: bf16[256,256], index: 2, kind: input, shape index: {}]
  %s3 = inlined_call_operand.vmem [shape: f32[1,256], index: 3, kind: input, shape index: {}]
  %s4 = inlined_call_operand.vmem [shape: bf16[256,10], index: 4, kind: input, shape index: {}]
  %s5 = inlined_call_operand.vmem [shape: f32[1,10], index: 5, kind: input, shape index: {}]
  %s6 = inlined_call_operand.hbm [shape: f32[2,10], index: 6, kind: output, shape index: {}]
  %s7 = sld [smem:[#allocation0]]
  $region34: #{eventmamba_forward.15} parent=0
    _
  %s9 = ssub.s32 1, %s7
  %s10 = scalar_select 0, %s9, %s7
  $region1: #{eventmamba_forward.15} parent=0
    #allocation2 [shape = 'u8[1024]{0}', space=vmem, size = 0x400, scoped, tag = 'output window, operand 0, single buffered']
    #allocation3 [shape = 's32[1]{0}', space=sflag, size = 0x4, scoped, tag = 'scoped memory for eventmamba_forward.15']
    %11 = vsyncpa [#allocation3], 0
    // Predicated region
    $region2: #{eventmamba_forward.15} parent=1 // pred_check
      _
    $region3: #{eventmamba_forward.15} parent=1 // pred_check_branch
      %13 = sbr.rel (0) target = $region5
    $region4: #{eventmamba_forward.15} parent=1 // pred_region
      _
    $region5: #{eventmamba_forward.15} parent=1 // pred_fallthru
      _
    // Predicated region
    $region6: #{eventmamba_forward.15} parent=1 // pred_check
      _
    $region7: #{eventmamba_forward.15} parent=1 // pred_check_branch
      %15 = sbr.rel (0) target = $region9
    $region8: #{eventmamba_forward.15} parent=1 // pred_region
      _
    $region9: #{eventmamba_forward.15} parent=1 // pred_fallthru
      _
    // Predicated region
    $region10: #{eventmamba_forward.15} parent=1 // pred_check
      _
    $region11: #{eventmamba_forward.15} parent=1 // pred_check_branch
      %17 = sbr.rel (0) target = $region13
    $region12: #{eventmamba_forward.15} parent=1 // pred_region
      _
    $region13: #{eventmamba_forward.15} parent=1 // pred_fallthru
      _
    // Predicated region
    $region14: #{eventmamba_forward.15} parent=1 // pred_check
      _
    $region15: #{eventmamba_forward.15} parent=1 // pred_check_branch
      %19 = sbr.rel (0) target = $region17
    $region16: #{eventmamba_forward.15} parent=1 // pred_region
      _
    $region17: #{eventmamba_forward.15} parent=1 // pred_fallthru
      _
    // Predicated region
    $region18: #{eventmamba_forward.15} parent=1 // pred_check
      _
    $region19: #{eventmamba_forward.15} parent=1 // pred_check_branch
      %21 = sbr.rel (0) target = $region21
    $region20: #{eventmamba_forward.15} parent=1 // pred_region
      _
    $region21: #{eventmamba_forward.15} parent=1 // pred_fallthru
      _
    // Predicated region
    $region22: #{eventmamba_forward.15} parent=1 // pred_check
      _
    $region23: #{eventmamba_forward.15} parent=1 // pred_check_branch
      %23 = sbr.rel (0) target = $region25
    $region24: #{eventmamba_forward.15} parent=1 // pred_region
      _
    $region25: #{eventmamba_forward.15} parent=1 // pred_fallthru
      _
    %v24 = vld [vmem:[%s0] sm:$0xff]
    %v25 = vld [vmem:[%s0 + $0x8] sm:$0xff]
    %v26 = vunpack.c.l.bf16 %v24
    %v27 = vunpack.c.h.bf16 %v24
    %v28 = vunpack.c.l.bf16 %v25
    %v29 = vunpack.c.h.bf16 %v25
    %v30 = vld [vmem:[%s1] sm:$0x3]
    %v32 = vperm.slane %v30, 0
    %v33 = vperm.slane %v30, 1
    %v36 = vmul.f32 %v26, %v32
    %v37 = vmul.f32 %v27, %v33
    %v38 = vmul.f32 %v28, %v32
    %v39 = vmul.f32 %v29, %v33
    %v40 = vadd.f32 %v36, %v37
    %41 = vadd.xlane.f32.xlu0 %v40
    %v42 = vpop.xlane.xlu0 %41
    %v43 = vadd.f32 %v38, %v39
    %44 = vadd.xlane.f32.xlu0 %v43
    %v45 = vpop.xlane.xlu0 %44
    %v46 = vrot.slane %v42, 4
    %v47 = vmax.f32 %v42, %v46
    %v48 = vrot.slane %v47, 2
    %v49 = vmax.f32 %v47, %v48
    %v50 = vrot.slane %v49, 1
    %v51 = vmax.f32 %v49, %v50
    %v52 = vrot.slane %v45, 4
    %v53 = vmax.f32 %v45, %v52
    %v54 = vrot.slane %v53, 2
    %v55 = vmax.f32 %v53, %v54
    %v56 = vrot.slane %v55, 1
    %v57 = vmax.f32 %v55, %v56
    %v58 = vsub.f32 %v42, %v51
    %v59 = vsub.f32 %v45, %v57
    %v60 = vmul.f32 %v58, 1.442695
    %v61 = vpow.pop %v60
    %v62 = vmul.f32 %v59, 1.442695
    %v63 = vpow.pop %v62
    %v64 = vrot.slane %v61, 4
    %v65 = vadd.f32 %v61, %v64
    %v66 = vrot.slane %v65, 2
    %v67 = vadd.f32 %v65, %v66
    %v68 = vrot.slane %v67, 1
    %v69 = vadd.f32 %v67, %v68
    %v70 = vrot.slane %v63, 4
    %v71 = vadd.f32 %v63, %v70
    %v72 = vrot.slane %v71, 2
    %v73 = vadd.f32 %v71, %v72
    %v74 = vrot.slane %v73, 1
    %v75 = vadd.f32 %v73, %v74
    %v76 = vrcp.pop %v69
    %v77 = vmul.f32 %v69, %v76
    %v78 = vsub.f32 1.0, %v77
    %v79 = vmul.f32 %v76, %v78
    %v80 = vadd.f32 %v76, %v79
    %vm81 = vweird.f32 %v69
    %vm82 = vweird.f32 %v76
    %vm83 = vmor %vm81, %vm82
    %v84 = vsel %vm83, %v76, %v80
    %v85 = vand.u32 2147483647, %v69
    %vm86 = vcmp.eq.f32.partialorder %v85, 8.507059e+37
    %v87 = vand.u32 %v69, 2147483648
    %v88 = vor.u32 1.1754944e-38, %v87
    %v89 = vsel %vm86, %v88, %v84
    %v90 = vmul.f32 %v61, %v89
    %v91 = vrcp.pop %v75
    %v92 = vmul.f32 %v75, %v91
    %v93 = vsub.f32 1.0, %v92
    %v94 = vmul.f32 %v91, %v93
    %v95 = vadd.f32 %v91, %v94
    %vm96 = vweird.f32 %v75
    %vm97 = vweird.f32 %v91
    %vm98 = vmor %vm96, %vm97
    %v99 = vsel %vm98, %v91, %v95
    %v100 = vand.u32 2147483647, %v75
    %vm101 = vcmp.eq.f32.partialorder %v100, 8.507059e+37
    %v102 = vand.u32 %v75, 2147483648
    %v103 = vor.u32 1.1754944e-38, %v102
    %v104 = vsel %vm101, %v103, %v99
    %v105 = vmul.f32 %v63, %v104
    %v106 = vmul.f32 %v90, %v26
    %v107 = vmul.f32 %v90, %v27
    %v108 = vmul.f32 %v105, %v28
    %v109 = vmul.f32 %v105, %v29
    %v110 = vrot.slane %v106, 4
    %v111 = vadd.f32 %v106, %v110
    %v112 = vrot.slane %v111, 2
    %v113 = vadd.f32 %v111, %v112
    %v114 = vrot.slane %v113, 1
    %v115 = vadd.f32 %v113, %v114
    %v116 = vrot.slane %v107, 4
    %v117 = vadd.f32 %v107, %v116
    %v118 = vrot.slane %v117, 2
    %v119 = vadd.f32 %v117, %v118
    %v120 = vrot.slane %v119, 1
    %v121 = vadd.f32 %v119, %v120
    %v122 = vrot.slane %v108, 4
    %v123 = vadd.f32 %v108, %v122
    %v124 = vrot.slane %v123, 2
    %v125 = vadd.f32 %v123, %v124
    %v126 = vrot.slane %v125, 1
    %v127 = vadd.f32 %v125, %v126
    %v128 = vrot.slane %v109, 4
    %v129 = vadd.f32 %v109, %v128
    %v130 = vrot.slane %v129, 2
    %v131 = vadd.f32 %v129, %v130
    %v132 = vrot.slane %v131, 1
    %v133 = vadd.f32 %v131, %v132
    %v134 = vpack.c.bf16 %v115, %v115
    %v135 = vpack.c.bf16 %v121, %v121
    %v136 = vpack.c.bf16 %v127, %v127
    %v137 = vpack.c.bf16 %v133, %v133
    %v138 = vld [vmem:[%s2] sm:$0xff]
    %v139 = vld [vmem:[%s2 + $0x8] sm:$0xff]
    %v140 = vld [vmem:[%s2 + $0x10] sm:$0xff]
    %v141 = vld [vmem:[%s2 + $0x18] sm:$0xff]
    %v142 = vld [vmem:[%s2 + $0x20] sm:$0xff]
    %v143 = vld [vmem:[%s2 + $0x28] sm:$0xff]
    %v144 = vld [vmem:[%s2 + $0x30] sm:$0xff]
    %v145 = vld [vmem:[%s2 + $0x38] sm:$0xff]
    %v146 = vld [vmem:[%s2 + $0x40] sm:$0xff]
    %v147 = vld [vmem:[%s2 + $0x48] sm:$0xff]
    %v148 = vld [vmem:[%s2 + $0x50] sm:$0xff]
    %v149 = vld [vmem:[%s2 + $0x58] sm:$0xff]
    %v150 = vld [vmem:[%s2 + $0x60] sm:$0xff]
    %v151 = vld [vmem:[%s2 + $0x68] sm:$0xff]
    %v152 = vld [vmem:[%s2 + $0x70] sm:$0xff]
    %v153 = vld [vmem:[%s2 + $0x78] sm:$0xff]
    %v154 = vld [vmem:[%s2 + $0x80] sm:$0xff]
    %v155 = vld [vmem:[%s2 + $0x88] sm:$0xff]
    %v156 = vld [vmem:[%s2 + $0x90] sm:$0xff]
    %v157 = vld [vmem:[%s2 + $0x98] sm:$0xff]
    %v158 = vld [vmem:[%s2 + $0xa0] sm:$0xff]
    %v159 = vld [vmem:[%s2 + $0xa8] sm:$0xff]
    %v160 = vld [vmem:[%s2 + $0xb0] sm:$0xff]
    %v161 = vld [vmem:[%s2 + $0xb8] sm:$0xff]
    %v162 = vld [vmem:[%s2 + $0xc0] sm:$0xff]
    %v163 = vld [vmem:[%s2 + $0xc8] sm:$0xff]
    %v164 = vld [vmem:[%s2 + $0xd0] sm:$0xff]
    %v165 = vld [vmem:[%s2 + $0xd8] sm:$0xff]
    %v166 = vld [vmem:[%s2 + $0xe0] sm:$0xff]
    %v167 = vld [vmem:[%s2 + $0xe8] sm:$0xff]
    %v168 = vld [vmem:[%s2 + $0xf0] sm:$0xff]
    %v169 = vld [vmem:[%s2 + $0xf8] sm:$0xff]
    %v170 = vld [vmem:[%s3] sm:$0x3]
    %v172 = vperm.slane %v170, 0
    %v173 = vperm.slane %v170, 1
    %v180 = vunpack.c.l.b16 %v134
    %v181 = vunpack.c.l.b16 %v135
    %v182 = vunpack.c.l.b16 %v136
    %v183 = vunpack.c.l.b16 %v137
    %vm184 = vcmask 1041409
    %v185 = vsel %vm184, %v182, %v180
    %v186 = vsel %vm184, %v183, %v181
    %v187 = vpack.c.b16 %v185, %v185
    %v188 = vpack.c.b16 %v186, %v186
    %v223 = vunpack.c.l.b16 %v138
    %v224 = vunpack.c.h.b16 %v138
    %v225 = vunpack.c.l.b16 %v139
    %v226 = vunpack.c.h.b16 %v139
    %v227 = vunpack.c.l.b16 %v140
    %v228 = vunpack.c.h.b16 %v140
    %v229 = vunpack.c.l.b16 %v141
    %v230 = vunpack.c.h.b16 %v141
    %v231 = vunpack.c.l.b16 %v142
    %v232 = vunpack.c.h.b16 %v142
    %v233 = vunpack.c.l.b16 %v143
    %v234 = vunpack.c.h.b16 %v143
    %v235 = vunpack.c.l.b16 %v144
    %v236 = vunpack.c.h.b16 %v144
    %v237 = vunpack.c.l.b16 %v145
    %v238 = vunpack.c.h.b16 %v145
    %v239 = vunpack.c.l.b16 %v146
    %v240 = vunpack.c.h.b16 %v146
    %v241 = vunpack.c.l.b16 %v147
    %v242 = vunpack.c.h.b16 %v147
    %v243 = vunpack.c.l.b16 %v148
    %v244 = vunpack.c.h.b16 %v148
    %v245 = vunpack.c.l.b16 %v149
    %v246 = vunpack.c.h.b16 %v149
    %v247 = vunpack.c.l.b16 %v150
    %v248 = vunpack.c.h.b16 %v150
    %v249 = vunpack.c.l.b16 %v151
    %v250 = vunpack.c.h.b16 %v151
    %v251 = vunpack.c.l.b16 %v152
    %v252 = vunpack.c.h.b16 %v152
    %v253 = vunpack.c.l.b16 %v153
    %v254 = vunpack.c.h.b16 %v153
    %v255 = vunpack.c.l.b16 %v154
    %v256 = vunpack.c.h.b16 %v154
    %v257 = vunpack.c.l.b16 %v155
    %v258 = vunpack.c.h.b16 %v155
    %v259 = vunpack.c.l.b16 %v156
    %v260 = vunpack.c.h.b16 %v156
    %v261 = vunpack.c.l.b16 %v157
    %v262 = vunpack.c.h.b16 %v157
    %v263 = vunpack.c.l.b16 %v158
    %v264 = vunpack.c.h.b16 %v158
    %v265 = vunpack.c.l.b16 %v159
    %v266 = vunpack.c.h.b16 %v159
    %v267 = vunpack.c.l.b16 %v160
    %v268 = vunpack.c.h.b16 %v160
    %v269 = vunpack.c.l.b16 %v161
    %v270 = vunpack.c.h.b16 %v161
    %v271 = vunpack.c.l.b16 %v162
    %v272 = vunpack.c.h.b16 %v162
    %v273 = vunpack.c.l.b16 %v163
    %v274 = vunpack.c.h.b16 %v163
    %v275 = vunpack.c.l.b16 %v164
    %v276 = vunpack.c.h.b16 %v164
    %v277 = vunpack.c.l.b16 %v165
    %v278 = vunpack.c.h.b16 %v165
    %v279 = vunpack.c.l.b16 %v166
    %v280 = vunpack.c.h.b16 %v166
    %v281 = vunpack.c.l.b16 %v167
    %v282 = vunpack.c.h.b16 %v167
    %v283 = vunpack.c.l.b16 %v168
    %v284 = vunpack.c.h.b16 %v168
    %v285 = vunpack.c.l.b16 %v169
    %v286 = vunpack.c.h.b16 %v169
    %v287 = vpack.c.b16 %v225, %v223
    %v288 = vpack.c.b16 %v226, %v224
    %v289 = vpack.c.b16 %v229, %v227
    %v290 = vpack.c.b16 %v230, %v228
    %v291 = vpack.c.b16 %v233, %v231
    %v292 = vpack.c.b16 %v234, %v232
    %v293 = vpack.c.b16 %v237, %v235
    %v294 = vpack.c.b16 %v238, %v236
    %v295 = vpack.c.b16 %v241, %v239
    %v296 = vpack.c.b16 %v242, %v240
    %v297 = vpack.c.b16 %v245, %v243
    %v298 = vpack.c.b16 %v246, %v244
    %v299 = vpack.c.b16 %v249, %v247
    %v300 = vpack.c.b16 %v250, %v248
    %v301 = vpack.c.b16 %v253, %v251
    %v302 = vpack.c.b16 %v254, %v252
    %v303 = vpack.c.b16 %v257, %v255
    %v304 = vpack.c.b16 %v258, %v256
    %v305 = vpack.c.b16 %v261, %v259
    %v306 = vpack.c.b16 %v262, %v260
    %v307 = vpack.c.b16 %v265, %v263
    %v308 = vpack.c.b16 %v266, %v264
    %v309 = vpack.c.b16 %v269, %v267
    %v310 = vpack.c.b16 %v270, %v268
    %v311 = vpack.c.b16 %v273, %v271
    %v312 = vpack.c.b16 %v274, %v272
    %v313 = vpack.c.b16 %v277, %v275
    %v314 = vpack.c.b16 %v278, %v276
    %v315 = vpack.c.b16 %v281, %v279
    %v316 = vpack.c.b16 %v282, %v280
    %v317 = vpack.c.b16 %v285, %v283
    %v318 = vpack.c.b16 %v286, %v284
    %351 = vmatpush.bf16.msra.mxu0 %v301
    %352 = vmatpush.bf16.msra.mxu0 %v299
    %353 = vmatpush.bf16.msra.mxu0 %v297
    %354 = vmatpush.bf16.msra.mxu0 %v295
    %355 = vmatpush.bf16.msra.mxu0 %v293
    %356 = vmatpush.bf16.msra.mxu0 %v291
    %357 = vmatpush.bf16.msra.mxu0 %v289
    %358 = vmatpush.bf16.msra.mxu0 %v287
    %359 = vmatmul.bf16.gmra.mxu0 %v187
    %v360 = vpop.f32.mrf.mxu0
    %v361 = vadd.f32 %v172, %v360
    %v362 = vpop.f32.mrf.mxu0
    %363 = vdwg.mxu0
    %364 = vmatpush.bf16.msra.mxu0 %v317
    %365 = vmatpush.bf16.msra.mxu0 %v315
    %366 = vmatpush.bf16.msra.mxu0 %v313
    %367 = vmatpush.bf16.msra.mxu0 %v311
    %368 = vmatpush.bf16.msra.mxu0 %v309
    %369 = vmatpush.bf16.msra.mxu0 %v307
    %370 = vmatpush.bf16.msra.mxu0 %v305
    %371 = vmatpush.bf16.msra.mxu0 %v303
    %372 = vmatmul.bf16.gmra.mxu0 %v188
    %v373 = vpop.f32.mrf.mxu0
    %v374 = vadd.f32 %v361, %v373
    %v375 = vpop.f32.mrf.mxu0
    %376 = vdwg.mxu0
    %377 = vmatpush.bf16.msra.mxu0 %v302
    %378 = vmatpush.bf16.msra.mxu0 %v300
    %379 = vmatpush.bf16.msra.mxu0 %v298
    %380 = vmatpush.bf16.msra.mxu0 %v296
    %381 = vmatpush.bf16.msra.mxu0 %v294
    %382 = vmatpush.bf16.msra.mxu0 %v292
    %383 = vmatpush.bf16.msra.mxu0 %v290
    %384 = vmatpush.bf16.msra.mxu0 %v288
    %385 = vmatmul.bf16.gmra.mxu0 %v187
    %v386 = vpop.f32.mrf.mxu0
    %v387 = vadd.f32 %v173, %v386
    %v388 = vpop.f32.mrf.mxu0
    %389 = vdwg.mxu0
    %390 = vmatpush.bf16.msra.mxu0 %v318
    %391 = vmatpush.bf16.msra.mxu0 %v316
    %392 = vmatpush.bf16.msra.mxu0 %v314
    %393 = vmatpush.bf16.msra.mxu0 %v312
    %394 = vmatpush.bf16.msra.mxu0 %v310
    %395 = vmatpush.bf16.msra.mxu0 %v308
    %396 = vmatpush.bf16.msra.mxu0 %v306
    %397 = vmatpush.bf16.msra.mxu0 %v304
    %398 = vmatmul.bf16.gmra.mxu0 %v188
    %v399 = vpop.f32.mrf.mxu0
    %v400 = vadd.f32 %v387, %v399
    %v401 = vpop.f32.mrf.mxu0
    %402 = vdwg.mxu0
    %v403 = vmax.f32 %v374, 0.0
    %v404 = vmax.f32 %v400, 0.0
    %v405 = vpack.c.bf16 %v403, %v403
    %v406 = vpack.c.bf16 %v404, %v404
    %v407 = vld [vmem:[%s4] sm:$0xf]
    %v408 = vld [vmem:[%s4 + $0x4] sm:$0xf]
    %v409 = vld [vmem:[%s4 + $0x8] sm:$0xf]
    %v410 = vld [vmem:[%s4 + $0xc] sm:$0xf]
    %v411 = vld [vmem:[%s4 + $0x10] sm:$0xf]
    %v412 = vld [vmem:[%s4 + $0x14] sm:$0xf]
    %v413 = vld [vmem:[%s4 + $0x18] sm:$0xf]
    %v414 = vld [vmem:[%s4 + $0x1c] sm:$0xf]
    %v415 = vld [vmem:[%s4 + $0x20] sm:$0xf]
    %v416 = vld [vmem:[%s4 + $0x24] sm:$0xf]
    %v417 = vld [vmem:[%s4 + $0x28] sm:$0xf]
    %v418 = vld [vmem:[%s4 + $0x2c] sm:$0xf]
    %v419 = vld [vmem:[%s4 + $0x30] sm:$0xf]
    %v420 = vld [vmem:[%s4 + $0x34] sm:$0xf]
    %v421 = vld [vmem:[%s4 + $0x38] sm:$0xf]
    %v422 = vld [vmem:[%s4 + $0x3c] sm:$0xf]
    %v423 = vld [vmem:[%s4 + $0x40] sm:$0xf]
    %v424 = vld [vmem:[%s4 + $0x44] sm:$0xf]
    %v425 = vld [vmem:[%s4 + $0x48] sm:$0xf]
    %v426 = vld [vmem:[%s4 + $0x4c] sm:$0xf]
    %v427 = vld [vmem:[%s4 + $0x50] sm:$0xf]
    %v428 = vld [vmem:[%s4 + $0x54] sm:$0xf]
    %v429 = vld [vmem:[%s4 + $0x58] sm:$0xf]
    %v430 = vld [vmem:[%s4 + $0x5c] sm:$0xf]
    %v431 = vld [vmem:[%s4 + $0x60] sm:$0xf]
    %v432 = vld [vmem:[%s4 + $0x64] sm:$0xf]
    %v433 = vld [vmem:[%s4 + $0x68] sm:$0xf]
    %v434 = vld [vmem:[%s4 + $0x6c] sm:$0xf]
    %v435 = vld [vmem:[%s4 + $0x70] sm:$0xf]
    %v436 = vld [vmem:[%s4 + $0x74] sm:$0xf]
    %v437 = vld [vmem:[%s4 + $0x78] sm:$0xf]
    %v438 = vld [vmem:[%s4 + $0x7c] sm:$0xf]
    %v439 = vld [vmem:[%s5] sm:$0x1]
    %v441 = vperm.slane %v439, 0
    %v475 = vunpack.c.l.b16 %v407
    %v476 = vunpack.c.l.b16 %v408
    %v477 = vunpack.c.l.b16 %v409
    %v478 = vunpack.c.l.b16 %v410
    %v479 = vunpack.c.l.b16 %v411
    %v480 = vunpack.c.l.b16 %v412
    %v481 = vunpack.c.l.b16 %v413
    %v482 = vunpack.c.l.b16 %v414
    %v483 = vunpack.c.l.b16 %v415
    %v484 = vunpack.c.l.b16 %v416
    %v485 = vunpack.c.l.b16 %v417
    %v486 = vunpack.c.l.b16 %v418
    %v487 = vunpack.c.l.b16 %v419
    %v488 = vunpack.c.l.b16 %v420
    %v489 = vunpack.c.l.b16 %v421
    %v490 = vunpack.c.l.b16 %v422
    %v491 = vunpack.c.l.b16 %v423
    %v492 = vunpack.c.l.b16 %v424
    %v493 = vunpack.c.l.b16 %v425
    %v494 = vunpack.c.l.b16 %v426
    %v495 = vunpack.c.l.b16 %v427
    %v496 = vunpack.c.l.b16 %v428
    %v497 = vunpack.c.l.b16 %v429
    %v498 = vunpack.c.l.b16 %v430
    %v499 = vunpack.c.l.b16 %v431
    %v500 = vunpack.c.l.b16 %v432
    %v501 = vunpack.c.l.b16 %v433
    %v502 = vunpack.c.l.b16 %v434
    %v503 = vunpack.c.l.b16 %v435
    %v504 = vunpack.c.l.b16 %v436
    %v505 = vunpack.c.l.b16 %v437
    %v506 = vunpack.c.l.b16 %v438
    %v507 = vpack.c.b16 %v476, %v475
    %v508 = vpack.c.b16 %v478, %v477
    %v509 = vpack.c.b16 %v480, %v479
    %v510 = vpack.c.b16 %v482, %v481
    %v511 = vpack.c.b16 %v484, %v483
    %v512 = vpack.c.b16 %v486, %v485
    %v513 = vpack.c.b16 %v488, %v487
    %v514 = vpack.c.b16 %v490, %v489
    %v515 = vpack.c.b16 %v492, %v491
    %v516 = vpack.c.b16 %v494, %v493
    %v517 = vpack.c.b16 %v496, %v495
    %v518 = vpack.c.b16 %v498, %v497
    %v519 = vpack.c.b16 %v500, %v499
    %v520 = vpack.c.b16 %v502, %v501
    %v521 = vpack.c.b16 %v504, %v503
    %v522 = vpack.c.b16 %v506, %v505
    %539 = vmatpush.bf16.msra.mxu0 %v514
    %540 = vmatpush.bf16.msra.mxu0 %v513
    %541 = vmatpush.bf16.msra.mxu0 %v512
    %542 = vmatpush.bf16.msra.mxu0 %v511
    %543 = vmatpush.bf16.msra.mxu0 %v510
    %544 = vmatpush.bf16.msra.mxu0 %v509
    %545 = vmatpush.bf16.msra.mxu0 %v508
    %546 = vmatpush.bf16.msra.mxu0 %v507
    %547 = vmatmul.bf16.gmra.mxu0 %v405
    %v548 = vpop.f32.mrf.mxu0
    %v549 = vadd.f32 %v441, %v548
    %v550 = vpop.f32.mrf.mxu0
    %551 = vdwg.mxu0
    %552 = vmatpush.bf16.msra.mxu0 %v522
    %553 = vmatpush.bf16.msra.mxu0 %v521
    %554 = vmatpush.bf16.msra.mxu0 %v520
    %555 = vmatpush.bf16.msra.mxu0 %v519
    %556 = vmatpush.bf16.msra.mxu0 %v518
    %557 = vmatpush.bf16.msra.mxu0 %v517
    %558 = vmatpush.bf16.msra.mxu0 %v516
    %559 = vmatpush.bf16.msra.mxu0 %v515
    %560 = vmatmul.bf16.gmra.mxu0 %v406
    %v561 = vpop.f32.mrf.mxu0
    %v562 = vadd.f32 %v549, %v561
    %v563 = vpop.f32.mrf.mxu0
    %564 = vdwg.mxu0
    %vm565 = vcmask 74752
    %566 = vst.msk [vmem:[#allocation2] sm:$0x3] %vm565, %v562
    // Predicated region
    $region26: #{eventmamba_forward.15} parent=1 // pred_check
      _
    $region27: #{eventmamba_forward.15} parent=1 // pred_check_branch
      %568 = sbr.rel (0) target = $region29
    $region28: #{eventmamba_forward.15} parent=1 // pred_region
      %570 = vsyncadd [#allocation3], 0
      %s572 = sshll.u32 [#allocation2], 4
      %s573 = int_to_ptr.vmem [resolvable:$true] %s572
      %s574 = sshll.u32 %s6, 4
      %s575 = int_to_ptr.hbm [resolvable:$true] %s574
      %577 = dma.vmem_to_hbm [thread:$0]  %s573, 32, %s575, [#allocation3]
    $region29: #{eventmamba_forward.15} parent=1 // pred_fallthru
      _
    // Predicated region
    $region30: #{eventmamba_forward.15} parent=1 // pred_check
      _
    $region31: #{eventmamba_forward.15} parent=1 // pred_check_branch
      %579 = sbr.rel (0) target = $region33
    $region32: #{eventmamba_forward.15} parent=1 // pred_region
      %581 = dma.done [#allocation3], 32
    $region33: #{eventmamba_forward.15} parent=1 // pred_fallthru
      _
    %582 = vsyncpa [#allocation3], 1

</llo_original>
